<compile_context>
chip_gen: v5e
topology: v5e:2x2
jax: 0.10.0
libtpu: 0.0.40
codegen_flags: <defaults>
</compile_context>

<pallas_src>
import functools

import jax
import jax.numpy as jnp
from jax import lax
from jax.experimental import pallas as pl
from jax.experimental.pallas import tpu as pltpu

PAD = 2       # shared zero pad of the fused 5x5 window
N_TAPS = 25   # 5x5 taps


def _round_up(n, m):
    return ((n + m - 1) // m) * m


def _choose_tiling(N, H, W, k_pad, patch_budget=4 << 20, lane_target=2048):
    """Pick (batch_block, row_tile).

    row_tile bounds the bf16 im2col scratch (K_pad * row_tile * W * 2 bytes) to
    `patch_budget` (sized with large headroom under v7x's 32 MiB scoped default;
    v5e/v6e have 128 MiB so the same choice is safe there). batch_block widens the
    MXU lane dim toward `lane_target` when one image tile is narrow, amortizing the
    ~0.35us per-grid-step overhead and MXU weight residency.
    """
    divs_h = [t for t in range(H, 0, -1) if H % t == 0]

    def fits(t, b=1):
        return k_pad * b * t * W * 2 <= patch_budget        # bf16 patches

    def lane_ok(t):                                          # lane-dense output tiles
        return (t * W) % 128 == 0 or t == H

    th = next((t for t in divs_h if lane_ok(t) and fits(t)), None)
    if th is None:                                           # keep lane density first
        th = next((t for t in divs_h if lane_ok(t)), H)

    bb = 1
    for b in (d for d in range(N, 0, -1) if N % d == 0):
        if b * th * W <= lane_target and fits(th, b):
            bb = b
            break
    return bb, th


# ----------------------------------------------------------------------------
# Pallas kernel: fused 5x5 conv + bias + ReLU over a (batch block, row tile)
# ----------------------------------------------------------------------------
def _make_kernel(Cin, CS, H, W, TH, BB):
    THW = TH * W

    def kernel(x_ref, w_ref, b_ref, o_ref, xpad_ref, patch_ref):
        # x_ref:     (BB, Cin, H, W)        f32  input block (full image per batch elem)
        # w_ref:     (Cout, 25*CS)          bf16 fused weight, column = tap*CS + cin
        # b_ref:     (Cout, 1)              f32  fused bias
        # o_ref:     (BB, Cout, TH*W)       f32  lane-dense output tile (NCHW row-major)
        # xpad_ref:  (BB, Cin, H+4, W+4)    f32  zero-padded input (persists over row tiles)
        # patch_ref: (25*CS, BB*TH*W)       bf16 K-major im2col scratch
        r = pl.program_id(1)

        # -- once per batch block: in-kernel zero padding into the VMEM scratch.
        #    (row axis is "arbitrary" => r runs 0..R-1 in order for each batch block,
        #     so the padded image persists across its row tiles.)
        @pl.when(r == 0)
        def _():
            xpad_ref[...] = jnp.zeros_like(xpad_ref)
            xpad_ref[:, :, PAD:PAD + H, PAD:PAD + W] = x_ref[...]

        r0 = r * TH
        if TH % 8 == 0:
            r0 = pl.multiple_of(r0, 8)

        zpad = jnp.zeros((CS - Cin, THW), jnp.bfloat16) if CS > Cin else None

        # -- K-major im2col: direct, sublane-aligned stores into the patch scratch.
        #    Every row of the scratch is (re)written each step (pad rows get explicit
        #    zeros), so no stale/garbage VMEM can leak into the contraction.
        for bi in range(BB):
            col = bi * THW
            for dy in range(5):
                for dx in range(5):
                    tap = dy * 5 + dx
                    slab = xpad_ref[bi, :, pl.ds(r0 + dy, TH), dx:dx + W]   # (Cin, TH, W)
                    slab = slab.reshape(Cin, THW).astype(jnp.bfloat16)
                    if zpad is not None:
                        slab = jnp.concatenate([slab, zpad], axis=0)        # (CS, THW)
                    patch_ref[tap * CS:(tap + 1) * CS, col:col + THW] = slab

        # -- one MXU contraction, K = 25*CS, bf16 operands, f32 accumulate.
        y = lax.dot_general(
            w_ref[...], patch_ref[...],
            dimension_numbers=(((1,), (0,)), ((), ())),
            preferred_element_type=jnp.float32)                 # (Cout, BB*THW)

        # -- fused bias + ReLU epilogue in f32, lane-dense stores.
        y = jnp.maximum(y + b_ref[...], 0.0)
        for bi in range(BB):
            o_ref[bi] = y[:, bi * THW:(bi + 1) * THW].astype(o_ref.dtype)

    return kernel


# ----------------------------------------------------------------------------
# Wrapper
# ----------------------------------------------------------------------------
@functools.partial(jax.jit, static_argnames=("row_tile", "batch_block"))
def multi_scale_block(x_nchw, w_fused, b_fused, *, row_tile=None, batch_block=None):
    """x_nchw: (N, Cin, H, W) f32 -> (N, Cout, H, W) f32."""
    N, Cin, H, W = x_nchw.shape
    Cout, K_pad = w_fused.shape
    CS = K_pad // N_TAPS
    assert K_pad == N_TAPS * CS and CS == _round_up(Cin, 8), "weight layout mismatch"

    auto_bb, auto_th = _choose_tiling(N, H, W, K_pad)
    TH = auto_th if row_tile is None else row_tile
    BB = auto_bb if batch_block is None else batch_block
    assert H % TH == 0 and N % BB == 0
    # keep the output tile lane-dense (multiple of 128 lanes, or the full image)
    assert (TH * W) % 128 == 0 or TH == H

    grid = (N // BB, H // TH)

    out = pl.pallas_call(
        _make_kernel(Cin, CS, H, W, TH, BB),
        out_shape=jax.ShapeDtypeStruct((N, Cout, H * W), jnp.float32),
        grid_spec=pltpu.PrefetchScalarGridSpec(
            num_scalar_prefetch=0,
            grid=grid,
            in_specs=[
                pl.BlockSpec((BB, Cin, H, W), lambda b, r: (b, 0, 0, 0)),
                pl.BlockSpec((Cout, K_pad), lambda b, r: (0, 0)),
                pl.BlockSpec((Cout, 1), lambda b, r: (0, 0)),
            ],
            out_specs=pl.BlockSpec((BB, Cout, TH * W), lambda b, r: (b, 0, r)),
            scratch_shapes=[
                pltpu.VMEM((BB, Cin, H + 2 * PAD, W + 2 * PAD), jnp.float32),
                pltpu.VMEM((K_pad, BB * TH * W), jnp.bfloat16),
            ],
        ),
        compiler_params=pltpu.CompilerParams(
            dimension_semantics=("parallel", "arbitrary")),
    )(x_nchw, w_fused, b_fused)

    # (N, Cout, H*W) is already NCHW row-major; the trailing reshape is free.
    return out.reshape(N, Cout, H, W)


# ----------------------------------------------------------------------------
# Deterministic parameters + algebraic fusion into a single 5x5 conv
# ----------------------------------------------------------------------------
def make_params(key, in_channels, out_channels):
    c4 = out_channels // 4
    keys = jax.random.split(key, 12)

    def w(k, shape, scale=0.2):
        return jax.random.normal(k, shape, jnp.float32) * scale

    # HWIO conv weights (used both for fusion and the pure-JAX reference)
    w1_hwio = w(keys[0], (1, 1, in_channels, c4))
    w3_hwio = w(keys[1], (3, 3, in_channels, c4))
    w5_hwio = w(keys[2], (5, 5, in_channels, c4))
    wp_hwio = w(keys[3], (1, 1, in_channels, c4))
    wc_hwio = w(keys[4], (1, 1, out_channels, out_channels))

    b1 = w(keys[5], (c4,), 0.1)
    b3 = w(keys[6], (c4,), 0.1)
    b5 = w(keys[7], (c4,), 0.1)
    bp = w(keys[8], (c4,), 0.1)
    bc = w(keys[9], (out_channels,), 0.1)

    # BatchNorm2d (inference mode): fold running stats + affine params.
    gamma = 1.0 + 0.1 * jax.random.normal(keys[10], (out_channels,), jnp.float32)
    beta = 0.05 * jax.random.normal(keys[11], (out_channels,), jnp.float32)
    running_mean = jnp.linspace(-0.1, 0.1, out_channels, dtype=jnp.float32)
    running_var = jnp.linspace(0.9, 1.1, out_channels, dtype=jnp.float32)
    eps = 1e-5
    bn_scale = gamma / jnp.sqrt(running_var + eps)
    bn_shift = beta - running_mean * bn_scale

    hwio = dict(w1=w1_hwio, w3=w3_hwio, w5=w5_hwio, wp=wp_hwio, wc=wc_hwio,
                b1=b1, b3=b3, b5=b5, bp=bp, bc=bc,
                bn_scale=bn_scale, bn_shift=bn_shift)

    # ---- fold concat + conv_concat + BN into one 5x5 conv --------------------
    wc = wc_hwio[0, 0]                                  # (concat_ch, Cout)
    wc1, wc2, wc3, wc4 = jnp.split(wc, 4, axis=0)       # each (C4, Cout)

    wf = jnp.einsum('klic,co->klio', w5_hwio, wc3)      # 5x5 branch
    inner = jnp.einsum('klic,co->klio', w3_hwio, wc2)   # 3x3 branch
    inner = inner + jnp.einsum('ic,co->io',
                               wp_hwio[0, 0] / 9.0, wc4)[None, None]  # pool branch
    wf = wf.at[1:4, 1:4].add(inner)
    wf = wf.at[2, 2].add(jnp.einsum('ic,co->io', w1_hwio[0, 0], wc1))  # 1x1 branch

    bf = b1 @ wc1 + b3 @ wc2 + b5 @ wc3 + bp @ wc4 + bc

    # BN fold (per output channel).
    wf = wf * bn_scale                                   # (5, 5, Cin, Cout)
    bf = bf * bn_scale + bn_shift

    # ---- kernel-friendly layout ----------------------------------------------
    # K ordering: k = tap*CS + cin, tap = dy*5 + dx, CS = round_up(Cin, 8).
    # Padding columns are exact zeros; the kernel writes zeros into the matching
    # patch rows, so the sublane padding contributes nothing.
    CS = _round_up(in_channels, 8)
    wf_taps = wf.reshape(N_TAPS, in_channels, out_channels)
    w_pad = jnp.zeros((N_TAPS, CS, out_channels), jnp.float32)
    w_pad = w_pad.at[:, :in_channels, :].set(wf_taps)
    w_fused = jnp.transpose(w_pad.reshape(N_TAPS * CS, out_channels)).astype(jnp.bfloat16)
    b_fused = bf.reshape(out_channels, 1).astype(jnp.float32)
    return (w_fused, b_fused), hwio


# ----------------------------------------------------------------------------
# Pure-JAX reference (unfused, f32, for verification only)
# ----------------------------------------------------------------------------
def reference_forward(x_nchw, hwio):
    x = jnp.transpose(x_nchw, (0, 2, 3, 1))  # NHWC

    def conv(inp, wgt, b, pad):
        y = lax.conv_general_dilated(
            inp, wgt, window_strides=(1, 1),
            padding=[(pad, pad), (pad, pad)],
            dimension_numbers=("NHWC", "HWIO", "NHWC"))
        return y + b

    br1 = conv(x, hwio["w1"], hwio["b1"], 0)
    br2 = conv(x, hwio["w3"], hwio["b3"], 1)
    br3 = conv(x, hwio["w5"], hwio["b5"], 2)
    pooled = lax.reduce_window(
        x, 0.0, lax.add, (1, 3, 3, 1), (1, 1, 1, 1),
        [(0, 0), (1, 1), (1, 1), (0, 0)]) / 9.0          # count_include_pad=True
    br4 = conv(pooled, hwio["wp"], hwio["bp"], 0)

    cat = jnp.concatenate([br1, br2, br3, br4], axis=-1)
    y = conv(cat, hwio["wc"], hwio["bc"], 0)
    y = y * hwio["bn_scale"] + hwio["bn_shift"]
    y = jnp.maximum(y, 0.0)
    return jnp.transpose(y, (0, 3, 1, 2))


# ----------------------------------------------------------------------------
if __name__ == "__main__":
    N, Cin, H, W = 2, 4, 16, 16
    Cout = 8

    key = jax.random.PRNGKey(0)
    kx, kp = jax.random.split(key)
    x = jax.random.normal(kx, (N, Cin, H, W), jnp.float32)

    (w_fused, b_fused), hwio = make_params(kp, Cin, Cout)
    ref = jax.block_until_ready(reference_forward(x, hwio))

    # bf16 MXU operands -> tolerance relaxed from 1e-4 to 3e-2.
    TOL = dict(atol=3e-2, rtol=3e-2)

    # 1) Auto tiling: full image per row tile, batch-blocked (512 lanes per matmul).
    out = jax.block_until_ready(multi_scale_block(x, w_fused, b_fused))
    assert out.shape == (N, Cout, H, W), out.shape
    assert jnp.allclose(out, ref, **TOL), float(jnp.max(jnp.abs(out - ref)))

    # 2) Forced row tiling (TH=8 -> 128-lane output tiles, 2 row tiles per image):
    #    exercises the v7x-style multi-tile path with the persistent padded input.
    out_t = jax.block_until_ready(
        multi_scale_block(x, w_fused, b_fused, row_tile=8, batch_block=1))
    assert jnp.allclose(out_t, ref, **TOL), float(jnp.max(jnp.abs(out_t - ref)))

    print("KERNEL_OK")
</pallas_src>

<mosaic_0001>
module attributes {stable_mosaic.version = 11 : i64} {
  func.func @kernel(%arg0: i32, %arg1: i32, %arg2: memref<2x4x16x16xf32, #tpu.memory_space<vmem>>, %arg3: memref<8x200xbf16, #tpu.memory_space<vmem>>, %arg4: memref<8x1xf32, #tpu.memory_space<vmem>>, %arg5: memref<2x8x256xf32, #tpu.memory_space<vmem>>, %arg6: memref<2x4x20x20xf32, #tpu.memory_space<vmem>>, %arg7: memref<200x512xbf16, #tpu.memory_space<vmem>>) attributes {dimension_semantics = [#tpu.dimension_semantics<parallel>, #tpu.dimension_semantics<arbitrary>], iteration_bounds = array<i64: 1, 1>, scalar_prefetch = 0 : i64, scratch_operands = 2 : i64, tpu.core_type = #tpu.core_type<tc>, window_params = [{transform_indices = @transform_0, window_bounds = array<i64: 2, 4, 16, 16>}, {pipeline_mode = #tpu.pipeline_mode<synchronous>, transform_indices = @transform_1, window_bounds = array<i64: 8, 200>}, {pipeline_mode = #tpu.pipeline_mode<synchronous>, transform_indices = @transform_2, window_bounds = array<i64: 8, 1>}, {transform_indices = @transform_3, window_bounds = array<i64: 2, 8, 256>}]} {
    %c0_i32 = arith.constant 0 : i32
    %0 = arith.cmpi eq, %arg1, %c0_i32 : i32
    %1 = arith.extui %0 : i1 to i32
    %c0_i32_0 = arith.constant 0 : i32
    %2 = arith.cmpi ne, %1, %c0_i32_0 : i32
    scf.if %2 {
      %cst_281 = arith.constant 0.000000e+00 : f32
      %422 = vector.broadcast %cst_281 : f32 to vector<2x4x20x20xf32>
      %c0_282 = arith.constant 0 : index
      %c0_283 = arith.constant 0 : index
      %c0_284 = arith.constant 0 : index
      %c0_285 = arith.constant 0 : index
      %423 = vector.load %arg6[%c0_282, %c0_283, %c0_284, %c0_285] : memref<2x4x20x20xf32, #tpu.memory_space<vmem>>, vector<2x4x20x20xf32>
      tpu.vector_store %arg6[%c0_282, %c0_283, %c0_284, %c0_285], %422 {strides = array<i32>} : memref<2x4x20x20xf32, #tpu.memory_space<vmem>>, vector<2x4x20x20xf32>,
      %c0_286 = arith.constant 0 : index
      %c0_287 = arith.constant 0 : index
      %c0_288 = arith.constant 0 : index
      %c0_289 = arith.constant 0 : index
      %424 = vector.load %arg2[%c0_286, %c0_287, %c0_288, %c0_289] : memref<2x4x16x16xf32, #tpu.memory_space<vmem>>, vector<2x4x16x16xf32>
      %c0_290 = arith.constant 0 : index
      %c0_291 = arith.constant 0 : index
      %c2_292 = arith.constant 2 : index
      %c2_293 = arith.constant 2 : index
      %425 = vector.load %arg6[%c0_290, %c0_291, %c2_292, %c2_293] : memref<2x4x20x20xf32, #tpu.memory_space<vmem>>, vector<2x4x16x16xf32>
      tpu.vector_store %arg6[%c0_290, %c0_291, %c2_292, %c2_293], %424 {strides = array<i32>} : memref<2x4x20x20xf32, #tpu.memory_space<vmem>>, vector<2x4x16x16xf32>,
    } else {
    }
    %c16_i32 = arith.constant 16 : i32
    %3 = arith.muli %arg1, %c16_i32 : i32
    %4 = tpu.assume_multiple %3, 8 : i32
    %cst = arith.constant 0.000000e+00 : bf16
    %5 = vector.broadcast %cst : bf16 to vector<4x256xbf16>
    %c0_i32_1 = arith.constant 0 : i32
    %6 = arith.addi %4, %c0_i32_1 : i32
    %c0 = arith.constant 0 : index
    %c0_2 = arith.constant 0 : index
    %7 = arith.index_cast %6 : i32 to index
    %c0_3 = arith.constant 0 : index
    %8 = vector.load %arg6[%c0, %c0_2, %7, %c0_3] : memref<2x4x20x20xf32, #tpu.memory_space<vmem>>, vector<1x4x16x16xf32>
    %9 = vector.shape_cast %8 : vector<1x4x16x16xf32> to vector<4x16x16xf32>
    %10 = vector.shape_cast %9 : vector<4x16x16xf32> to vector<4x256xf32>
    %11 = arith.truncf %10 : vector<4x256xf32> to vector<4x256xbf16>
    %12 = tpu.concatenate %11, %5 in 0 : vector<4x256xbf16>, vector<4x256xbf16> -> vector<8x256xbf16>
    %c0_4 = arith.constant 0 : index
    %c0_5 = arith.constant 0 : index
    %13 = vector.load %arg7[%c0_4, %c0_5] : memref<200x512xbf16, #tpu.memory_space<vmem>>, vector<8x256xbf16>
    tpu.vector_store %arg7[%c0_4, %c0_5], %12 {strides = array<i32>} : memref<200x512xbf16, #tpu.memory_space<vmem>>, vector<8x256xbf16>,
    %c0_i32_6 = arith.constant 0 : i32
    %14 = arith.addi %4, %c0_i32_6 : i32
    %c0_7 = arith.constant 0 : index
    %c0_8 = arith.constant 0 : index
    %15 = arith.index_cast %14 : i32 to index
    %c1 = arith.constant 1 : index
    %16 = vector.load %arg6[%c0_7, %c0_8, %15, %c1] : memref<2x4x20x20xf32, #tpu.memory_space<vmem>>, vector<1x4x16x16xf32>
    %17 = vector.shape_cast %16 : vector<1x4x16x16xf32> to vector<4x16x16xf32>
    %18 = vector.shape_cast %17 : vector<4x16x16xf32> to vector<4x256xf32>
    %19 = arith.truncf %18 : vector<4x256xf32> to vector<4x256xbf16>
    %20 = tpu.concatenate %19, %5 in 0 : vector<4x256xbf16>, vector<4x256xbf16> -> vector<8x256xbf16>
    %c8 = arith.constant 8 : index
    %c0_9 = arith.constant 0 : index
    %21 = vector.load %arg7[%c8, %c0_9] : memref<200x512xbf16, #tpu.memory_space<vmem>>, vector<8x256xbf16>
    tpu.vector_store %arg7[%c8, %c0_9], %20 {strides = array<i32>} : memref<200x512xbf16, #tpu.memory_space<vmem>>, vector<8x256xbf16>,
    %c0_i32_10 = arith.constant 0 : i32
    %22 = arith.addi %4, %c0_i32_10 : i32
    %c0_11 = arith.constant 0 : index
    %c0_12 = arith.constant 0 : index
    %23 = arith.index_cast %22 : i32 to index
    %c2 = arith.constant 2 : index
    %24 = vector.load %arg6[%c0_11, %c0_12, %23, %c2] : memref<2x4x20x20xf32, #tpu.memory_space<vmem>>, vector<1x4x16x16xf32>
    %25 = vector.shape_cast %24 : vector<1x4x16x16xf32> to vector<4x16x16xf32>
    %26 = vector.shape_cast %25 : vector<4x16x16xf32> to vector<4x256xf32>
    %27 = arith.truncf %26 : vector<4x256xf32> to vector<4x256xbf16>
    %28 = tpu.concatenate %27, %5 in 0 : vector<4x256xbf16>, vector<4x256xbf16> -> vector<8x256xbf16>
    %c16 = arith.constant 16 : index
    %c0_13 = arith.constant 0 : index
    %29 = vector.load %arg7[%c16, %c0_13] : memref<200x512xbf16, #tpu.memory_space<vmem>>, vector<8x256xbf16>
    tpu.vector_store %arg7[%c16, %c0_13], %28 {strides = array<i32>} : memref<200x512xbf16, #tpu.memory_space<vmem>>, vector<8x256xbf16>,
    %c0_i32_14 = arith.constant 0 : i32
    %30 = arith.addi %4, %c0_i32_14 : i32
    %c0_15 = arith.constant 0 : index
    %c0_16 = arith.constant 0 : index
    %31 = arith.index_cast %30 : i32 to index
    %c3 = arith.constant 3 : index
    %32 = vector.load %arg6[%c0_15, %c0_16, %31, %c3] : memref<2x4x20x20xf32, #tpu.memory_space<vmem>>, vector<1x4x16x16xf32>
    %33 = vector.shape_cast %32 : vector<1x4x16x16xf32> to vector<4x16x16xf32>
    %34 = vector.shape_cast %33 : vector<4x16x16xf32> to vector<4x256xf32>
    %35 = arith.truncf %34 : vector<4x256xf32> to vector<4x256xbf16>
    %36 = tpu.concatenate %35, %5 in 0 : vector<4x256xbf16>, vector<4x256xbf16> -> vector<8x256xbf16>
    %c24 = arith.constant 24 : index
    %c0_17 = arith.constant 0 : index
    %37 = vector.load %arg7[%c24, %c0_17] : memref<200x512xbf16, #tpu.memory_space<vmem>>, vector<8x256xbf16>
    tpu.vector_store %arg7[%c24, %c0_17], %36 {strides = array<i32>} : memref<200x512xbf16, #tpu.memory_space<vmem>>, vector<8x256xbf16>,
    %c0_i32_18 = arith.constant 0 : i32
    %38 = arith.addi %4, %c0_i32_18 : i32
    %c0_19 = arith.constant 0 : index
    %c0_20 = arith.constant 0 : index
    %39 = arith.index_cast %38 : i32 to index
    %c4 = arith.constant 4 : index
    %40 = vector.load %arg6[%c0_19, %c0_20, %39, %c4] : memref<2x4x20x20xf32, #tpu.memory_space<vmem>>, vector<1x4x16x16xf32>
    %41 = vector.shape_cast %40 : vector<1x4x16x16xf32> to vector<4x16x16xf32>
    %42 = vector.shape_cast %41 : vector<4x16x16xf32> to vector<4x256xf32>
    %43 = arith.truncf %42 : vector<4x256xf32> to vector<4x256xbf16>
    %44 = tpu.concatenate %43, %5 in 0 : vector<4x256xbf16>, vector<4x256xbf16> -> vector<8x256xbf16>
    %c32 = arith.constant 32 : index
    %c0_21 = arith.constant 0 : index
    %45 = vector.load %arg7[%c32, %c0_21] : memref<200x512xbf16, #tpu.memory_space<vmem>>, vector<8x256xbf16>
    tpu.vector_store %arg7[%c32, %c0_21], %44 {strides = array<i32>} : memref<200x512xbf16, #tpu.memory_space<vmem>>, vector<8x256xbf16>,
    %c1_i32 = arith.constant 1 : i32
    %46 = arith.addi %4, %c1_i32 : i32
    %c0_22 = arith.constant 0 : index
    %c0_23 = arith.constant 0 : index
    %47 = arith.index_cast %46 : i32 to index
    %c0_24 = arith.constant 0 : index
    %48 = vector.load %arg6[%c0_22, %c0_23, %47, %c0_24] : memref<2x4x20x20xf32, #tpu.memory_space<vmem>>, vector<1x4x16x16xf32>
    %49 = vector.shape_cast %48 : vector<1x4x16x16xf32> to vector<4x16x16xf32>
    %50 = vector.shape_cast %49 : vector<4x16x16xf32> to vector<4x256xf32>
    %51 = arith.truncf %50 : vector<4x256xf32> to vector<4x256xbf16>
    %52 = tpu.concatenate %51, %5 in 0 : vector<4x256xbf16>, vector<4x256xbf16> -> vector<8x256xbf16>
    %c40 = arith.constant 40 : index
    %c0_25 = arith.constant 0 : index
    %53 = vector.load %arg7[%c40, %c0_25] : memref<200x512xbf16, #tpu.memory_space<vmem>>, vector<8x256xbf16>
    tpu.vector_store %arg7[%c40, %c0_25], %52 {strides = array<i32>} : memref<200x512xbf16, #tpu.memory_space<vmem>>, vector<8x256xbf16>,
    %c1_i32_26 = arith.constant 1 : i32
    %54 = arith.addi %4, %c1_i32_26 : i32
    %c0_27 = arith.constant 0 : index
    %c0_28 = arith.constant 0 : index
    %55 = arith.index_cast %54 : i32 to index
    %c1_29 = arith.constant 1 : index
    %56 = vector.load %arg6[%c0_27, %c0_28, %55, %c1_29] : memref<2x4x20x20xf32, #tpu.memory_space<vmem>>, vector<1x4x16x16xf32>
    %57 = vector.shape_cast %56 : vector<1x4x16x16xf32> to vector<4x16x16xf32>
    %58 = vector.shape_cast %57 : vector<4x16x16xf32> to vector<4x256xf32>
    %59 = arith.truncf %58 : vector<4x256xf32> to vector<4x256xbf16>
    %60 = tpu.concatenate %59, %5 in 0 : vector<4x256xbf16>, vector<4x256xbf16> -> vector<8x256xbf16>
    %c48 = arith.constant 48 : index
    %c0_30 = arith.constant 0 : index
    %61 = vector.load %arg7[%c48, %c0_30] : memref<200x512xbf16, #tpu.memory_space<vmem>>, vector<8x256xbf16>
    tpu.vector_store %arg7[%c48, %c0_30], %60 {strides = array<i32>} : memref<200x512xbf16, #tpu.memory_space<vmem>>, vector<8x256xbf16>,
    %c1_i32_31 = arith.constant 1 : i32
    %62 = arith.addi %4, %c1_i32_31 : i32
    %c0_32 = arith.constant 0 : index
    %c0_33 = arith.constant 0 : index
    %63 = arith.index_cast %62 : i32 to index
    %c2_34 = arith.constant 2 : index
    %64 = vector.load %arg6[%c0_32, %c0_33, %63, %c2_34] : memref<2x4x20x20xf32, #tpu.memory_space<vmem>>, vector<1x4x16x16xf32>
    %65 = vector.shape_cast %64 : vector<1x4x16x16xf32> to vector<4x16x16xf32>
    %66 = vector.shape_cast %65 : vector<4x16x16xf32> to vector<4x256xf32>
    %67 = arith.truncf %66 : vector<4x256xf32> to vector<4x256xbf16>
    %68 = tpu.concatenate %67, %5 in 0 : vector<4x256xbf16>, vector<4x256xbf16> -> vector<8x256xbf16>
    %c56 = arith.constant 56 : index
    %c0_35 = arith.constant 0 : index
    %69 = vector.load %arg7[%c56, %c0_35] : memref<200x512xbf16, #tpu.memory_space<vmem>>, vector<8x256xbf16>
    tpu.vector_store %arg7[%c56, %c0_35], %68 {strides = array<i32>} : memref<200x512xbf16, #tpu.memory_space<vmem>>, vector<8x256xbf16>,
    %c1_i32_36 = arith.constant 1 : i32
    %70 = arith.addi %4, %c1_i32_36 : i32
    %c0_37 = arith.constant 0 : index
    %c0_38 = arith.constant 0 : index
    %71 = arith.index_cast %70 : i32 to index
    %c3_39 = arith.constant 3 : index
    %72 = vector.load %arg6[%c0_37, %c0_38, %71, %c3_39] : memref<2x4x20x20xf32, #tpu.memory_space<vmem>>, vector<1x4x16x16xf32>
    %73 = vector.shape_cast %72 : vector<1x4x16x16xf32> to vector<4x16x16xf32>
    %74 = vector.shape_cast %73 : vector<4x16x16xf32> to vector<4x256xf32>
    %75 = arith.truncf %74 : vector<4x256xf32> to vector<4x256xbf16>
    %76 = tpu.concatenate %75, %5 in 0 : vector<4x256xbf16>, vector<4x256xbf16> -> vector<8x256xbf16>
    %c64 = arith.constant 64 : index
    %c0_40 = arith.constant 0 : index
    %77 = vector.load %arg7[%c64, %c0_40] : memref<200x512xbf16, #tpu.memory_space<vmem>>, vector<8x256xbf16>
    tpu.vector_store %arg7[%c64, %c0_40], %76 {strides = array<i32>} : memref<200x512xbf16, #tpu.memory_space<vmem>>, vector<8x256xbf16>,
    %c1_i32_41 = arith.constant 1 : i32
    %78 = arith.addi %4, %c1_i32_41 : i32
    %c0_42 = arith.constant 0 : index
    %c0_43 = arith.constant 0 : index
    %79 = arith.index_cast %78 : i32 to index
    %c4_44 = arith.constant 4 : index
    %80 = vector.load %arg6[%c0_42, %c0_43, %79, %c4_44] : memref<2x4x20x20xf32, #tpu.memory_space<vmem>>, vector<1x4x16x16xf32>
    %81 = vector.shape_cast %80 : vector<1x4x16x16xf32> to vector<4x16x16xf32>
    %82 = vector.shape_cast %81 : vector<4x16x16xf32> to vector<4x256xf32>
    %83 = arith.truncf %82 : vector<4x256xf32> to vector<4x256xbf16>
    %84 = tpu.concatenate %83, %5 in 0 : vector<4x256xbf16>, vector<4x256xbf16> -> vector<8x256xbf16>
    %c72 = arith.constant 72 : index
    %c0_45 = arith.constant 0 : index
    %85 = vector.load %arg7[%c72, %c0_45] : memref<200x512xbf16, #tpu.memory_space<vmem>>, vector<8x256xbf16>
    tpu.vector_store %arg7[%c72, %c0_45], %84 {strides = array<i32>} : memref<200x512xbf16, #tpu.memory_space<vmem>>, vector<8x256xbf16>,
    %c2_i32 = arith.constant 2 : i32
    %86 = arith.addi %4, %c2_i32 : i32
    %c0_46 = arith.constant 0 : index
    %c0_47 = arith.constant 0 : index
    %87 = arith.index_cast %86 : i32 to index
    %c0_48 = arith.constant 0 : index
    %88 = vector.load %arg6[%c0_46, %c0_47, %87, %c0_48] : memref<2x4x20x20xf32, #tpu.memory_space<vmem>>, vector<1x4x16x16xf32>
    %89 = vector.shape_cast %88 : vector<1x4x16x16xf32> to vector<4x16x16xf32>
    %90 = vector.shape_cast %89 : vector<4x16x16xf32> to vector<4x256xf32>
    %91 = arith.truncf %90 : vector<4x256xf32> to vector<4x256xbf16>
    %92 = tpu.concatenate %91, %5 in 0 : vector<4x256xbf16>, vector<4x256xbf16> -> vector<8x256xbf16>
    %c80 = arith.constant 80 : index
    %c0_49 = arith.constant 0 : index
    %93 = vector.load %arg7[%c80, %c0_49] : memref<200x512xbf16, #tpu.memory_space<vmem>>, vector<8x256xbf16>
    tpu.vector_store %arg7[%c80, %c0_49], %92 {strides = array<i32>} : memref<200x512xbf16, #tpu.memory_space<vmem>>, vector<8x256xbf16>,
    %c2_i32_50 = arith.constant 2 : i32
    %94 = arith.addi %4, %c2_i32_50 : i32
    %c0_51 = arith.constant 0 : index
    %c0_52 = arith.constant 0 : index
    %95 = arith.index_cast %94 : i32 to index
    %c1_53 = arith.constant 1 : index
    %96 = vector.load %arg6[%c0_51, %c0_52, %95, %c1_53] : memref<2x4x20x20xf32, #tpu.memory_space<vmem>>, vector<1x4x16x16xf32>
    %97 = vector.shape_cast %96 : vector<1x4x16x16xf32> to vector<4x16x16xf32>
    %98 = vector.shape_cast %97 : vector<4x16x16xf32> to vector<4x256xf32>
    %99 = arith.truncf %98 : vector<4x256xf32> to vector<4x256xbf16>
    %100 = tpu.concatenate %99, %5 in 0 : vector<4x256xbf16>, vector<4x256xbf16> -> vector<8x256xbf16>
    %c88 = arith.constant 88 : index
    %c0_54 = arith.constant 0 : index
    %101 = vector.load %arg7[%c88, %c0_54] : memref<200x512xbf16, #tpu.memory_space<vmem>>, vector<8x256xbf16>
    tpu.vector_store %arg7[%c88, %c0_54], %100 {strides = array<i32>} : memref<200x512xbf16, #tpu.memory_space<vmem>>, vector<8x256xbf16>,
    %c2_i32_55 = arith.constant 2 : i32
    %102 = arith.addi %4, %c2_i32_55 : i32
    %c0_56 = arith.constant 0 : index
    %c0_57 = arith.constant 0 : index
    %103 = arith.index_cast %102 : i32 to index
    %c2_58 = arith.constant 2 : index
    %104 = vector.load %arg6[%c0_56, %c0_57, %103, %c2_58] : memref<2x4x20x20xf32, #tpu.memory_space<vmem>>, vector<1x4x16x16xf32>
    %105 = vector.shape_cast %104 : vector<1x4x16x16xf32> to vector<4x16x16xf32>
    %106 = vector.shape_cast %105 : vector<4x16x16xf32> to vector<4x256xf32>
    %107 = arith.truncf %106 : vector<4x256xf32> to vector<4x256xbf16>
    %108 = tpu.concatenate %107, %5 in 0 : vector<4x256xbf16>, vector<4x256xbf16> -> vector<8x256xbf16>
    %c96 = arith.constant 96 : index
    %c0_59 = arith.constant 0 : index
    %109 = vector.load %arg7[%c96, %c0_59] : memref<200x512xbf16, #tpu.memory_space<vmem>>, vector<8x256xbf16>
    tpu.vector_store %arg7[%c96, %c0_59], %108 {strides = array<i32>} : memref<200x512xbf16, #tpu.memory_space<vmem>>, vector<8x256xbf16>,
    %c2_i32_60 = arith.constant 2 : i32
    %110 = arith.addi %4, %c2_i32_60 : i32
    %c0_61 = arith.constant 0 : index
    %c0_62 = arith.constant 0 : index
    %111 = arith.index_cast %110 : i32 to index
    %c3_63 = arith.constant 3 : index
    %112 = vector.load %arg6[%c0_61, %c0_62, %111, %c3_63] : memref<2x4x20x20xf32, #tpu.memory_space<vmem>>, vector<1x4x16x16xf32>
    %113 = vector.shape_cast %112 : vector<1x4x16x16xf32> to vector<4x16x16xf32>
    %114 = vector.shape_cast %113 : vector<4x16x16xf32> to vector<4x256xf32>
    %115 = arith.truncf %114 : vector<4x256xf32> to vector<4x256xbf16>
    %116 = tpu.concatenate %115, %5 in 0 : vector<4x256xbf16>, vector<4x256xbf16> -> vector<8x256xbf16>
    %c104 = arith.constant 104 : index
    %c0_64 = arith.constant 0 : index
    %117 = vector.load %arg7[%c104, %c0_64] : memref<200x512xbf16, #tpu.memory_space<vmem>>, vector<8x256xbf16>
    tpu.vector_store %arg7[%c104, %c0_64], %116 {strides = array<i32>} : memref<200x512xbf16, #tpu.memory_space<vmem>>, vector<8x256xbf16>,
    %c2_i32_65 = arith.constant 2 : i32
    %118 = arith.addi %4, %c2_i32_65 : i32
    %c0_66 = arith.constant 0 : index
    %c0_67 = arith.constant 0 : index
    %119 = arith.index_cast %118 : i32 to index
    %c4_68 = arith.constant 4 : index
    %120 = vector.load %arg6[%c0_66, %c0_67, %119, %c4_68] : memref<2x4x20x20xf32, #tpu.memory_space<vmem>>, vector<1x4x16x16xf32>
    %121 = vector.shape_cast %120 : vector<1x4x16x16xf32> to vector<4x16x16xf32>
    %122 = vector.shape_cast %121 : vector<4x16x16xf32> to vector<4x256xf32>
    %123 = arith.truncf %122 : vector<4x256xf32> to vector<4x256xbf16>
    %124 = tpu.concatenate %123, %5 in 0 : vector<4x256xbf16>, vector<4x256xbf16> -> vector<8x256xbf16>
    %c112 = arith.constant 112 : index
    %c0_69 = arith.constant 0 : index
    %125 = vector.load %arg7[%c112, %c0_69] : memref<200x512xbf16, #tpu.memory_space<vmem>>, vector<8x256xbf16>
    tpu.vector_store %arg7[%c112, %c0_69], %124 {strides = array<i32>} : memref<200x512xbf16, #tpu.memory_space<vmem>>, vector<8x256xbf16>,
    %c3_i32 = arith.constant 3 : i32
    %126 = arith.addi %4, %c3_i32 : i32
    %c0_70 = arith.constant 0 : index
    %c0_71 = arith.constant 0 : index
    %127 = arith.index_cast %126 : i32 to index
    %c0_72 = arith.constant 0 : index
    %128 = vector.load %arg6[%c0_70, %c0_71, %127, %c0_72] : memref<2x4x20x20xf32, #tpu.memory_space<vmem>>, vector<1x4x16x16xf32>
    %129 = vector.shape_cast %128 : vector<1x4x16x16xf32> to vector<4x16x16xf32>
    %130 = vector.shape_cast %129 : vector<4x16x16xf32> to vector<4x256xf32>
    %131 = arith.truncf %130 : vector<4x256xf32> to vector<4x256xbf16>
    %132 = tpu.concatenate %131, %5 in 0 : vector<4x256xbf16>, vector<4x256xbf16> -> vector<8x256xbf16>
    %c120 = arith.constant 120 : index
    %c0_73 = arith.constant 0 : index
    %133 = vector.load %arg7[%c120, %c0_73] : memref<200x512xbf16, #tpu.memory_space<vmem>>, vector<8x256xbf16>
    tpu.vector_store %arg7[%c120, %c0_73], %132 {strides = array<i32>} : memref<200x512xbf16, #tpu.memory_space<vmem>>, vector<8x256xbf16>,
    %c3_i32_74 = arith.constant 3 : i32
    %134 = arith.addi %4, %c3_i32_74 : i32
    %c0_75 = arith.constant 0 : index
    %c0_76 = arith.constant 0 : index
    %135 = arith.index_cast %134 : i32 to index
    %c1_77 = arith.constant 1 : index
    %136 = vector.load %arg6[%c0_75, %c0_76, %135, %c1_77] : memref<2x4x20x20xf32, #tpu.memory_space<vmem>>, vector<1x4x16x16xf32>
    %137 = vector.shape_cast %136 : vector<1x4x16x16xf32> to vector<4x16x16xf32>
    %138 = vector.shape_cast %137 : vector<4x16x16xf32> to vector<4x256xf32>
    %139 = arith.truncf %138 : vector<4x256xf32> to vector<4x256xbf16>
    %140 = tpu.concatenate %139, %5 in 0 : vector<4x256xbf16>, vector<4x256xbf16> -> vector<8x256xbf16>
    %c128 = arith.constant 128 : index
    %c0_78 = arith.constant 0 : index
    %141 = vector.load %arg7[%c128, %c0_78] : memref<200x512xbf16, #tpu.memory_space<vmem>>, vector<8x256xbf16>
    tpu.vector_store %arg7[%c128, %c0_78], %140 {strides = array<i32>} : memref<200x512xbf16, #tpu.memory_space<vmem>>, vector<8x256xbf16>,
    %c3_i32_79 = arith.constant 3 : i32
    %142 = arith.addi %4, %c3_i32_79 : i32
    %c0_80 = arith.constant 0 : index
    %c0_81 = arith.constant 0 : index
    %143 = arith.index_cast %142 : i32 to index
    %c2_82 = arith.constant 2 : index
    %144 = vector.load %arg6[%c0_80, %c0_81, %143, %c2_82] : memref<2x4x20x20xf32, #tpu.memory_space<vmem>>, vector<1x4x16x16xf32>
    %145 = vector.shape_cast %144 : vector<1x4x16x16xf32> to vector<4x16x16xf32>
    %146 = vector.shape_cast %145 : vector<4x16x16xf32> to vector<4x256xf32>
    %147 = arith.truncf %146 : vector<4x256xf32> to vector<4x256xbf16>
    %148 = tpu.concatenate %147, %5 in 0 : vector<4x256xbf16>, vector<4x256xbf16> -> vector<8x256xbf16>
    %c136 = arith.constant 136 : index
    %c0_83 = arith.constant 0 : index
    %149 = vector.load %arg7[%c136, %c0_83] : memref<200x512xbf16, #tpu.memory_space<vmem>>, vector<8x256xbf16>
    tpu.vector_store %arg7[%c136, %c0_83], %148 {strides = array<i32>} : memref<200x512xbf16, #tpu.memory_space<vmem>>, vector<8x256xbf16>,
    %c3_i32_84 = arith.constant 3 : i32
    %150 = arith.addi %4, %c3_i32_84 : i32
    %c0_85 = arith.constant 0 : index
    %c0_86 = arith.constant 0 : index
    %151 = arith.index_cast %150 : i32 to index
    %c3_87 = arith.constant 3 : index
    %152 = vector.load %arg6[%c0_85, %c0_86, %151, %c3_87] : memref<2x4x20x20xf32, #tpu.memory_space<vmem>>, vector<1x4x16x16xf32>
    %153 = vector.shape_cast %152 : vector<1x4x16x16xf32> to vector<4x16x16xf32>
    %154 = vector.shape_cast %153 : vector<4x16x16xf32> to vector<4x256xf32>
    %155 = arith.truncf %154 : vector<4x256xf32> to vector<4x256xbf16>
    %156 = tpu.concatenate %155, %5 in 0 : vector<4x256xbf16>, vector<4x256xbf16> -> vector<8x256xbf16>
    %c144 = arith.constant 144 : index
    %c0_88 = arith.constant 0 : index
    %157 = vector.load %arg7[%c144, %c0_88] : memref<200x512xbf16, #tpu.memory_space<vmem>>, vector<8x256xbf16>
    tpu.vector_store %arg7[%c144, %c0_88], %156 {strides = array<i32>} : memref<200x512xbf16, #tpu.memory_space<vmem>>, vector<8x256xbf16>,
    %c3_i32_89 = arith.constant 3 : i32
    %158 = arith.addi %4, %c3_i32_89 : i32
    %c0_90 = arith.constant 0 : index
    %c0_91 = arith.constant 0 : index
    %159 = arith.index_cast %158 : i32 to index
    %c4_92 = arith.constant 4 : index
    %160 = vector.load %arg6[%c0_90, %c0_91, %159, %c4_92] : memref<2x4x20x20xf32, #tpu.memory_space<vmem>>, vector<1x4x16x16xf32>
    %161 = vector.shape_cast %160 : vector<1x4x16x16xf32> to vector<4x16x16xf32>
    %162 = vector.shape_cast %161 : vector<4x16x16xf32> to vector<4x256xf32>
    %163 = arith.truncf %162 : vector<4x256xf32> to vector<4x256xbf16>
    %164 = tpu.concatenate %163, %5 in 0 : vector<4x256xbf16>, vector<4x256xbf16> -> vector<8x256xbf16>
    %c152 = arith.constant 152 : index
    %c0_93 = arith.constant 0 : index
    %165 = vector.load %arg7[%c152, %c0_93] : memref<200x512xbf16, #tpu.memory_space<vmem>>, vector<8x256xbf16>
    tpu.vector_store %arg7[%c152, %c0_93], %164 {strides = array<i32>} : memref<200x512xbf16, #tpu.memory_space<vmem>>, vector<8x256xbf16>,
    %c4_i32 = arith.constant 4 : i32
    %166 = arith.addi %4, %c4_i32 : i32
    %c0_94 = arith.constant 0 : index
    %c0_95 = arith.constant 0 : index
    %167 = arith.index_cast %166 : i32 to index
    %c0_96 = arith.constant 0 : index
    %168 = vector.load %arg6[%c0_94, %c0_95, %167, %c0_96] : memref<2x4x20x20xf32, #tpu.memory_space<vmem>>, vector<1x4x16x16xf32>
    %169 = vector.shape_cast %168 : vector<1x4x16x16xf32> to vector<4x16x16xf32>
    %170 = vector.shape_cast %169 : vector<4x16x16xf32> to vector<4x256xf32>
    %171 = arith.truncf %170 : vector<4x256xf32> to vector<4x256xbf16>
    %172 = tpu.concatenate %171, %5 in 0 : vector<4x256xbf16>, vector<4x256xbf16> -> vector<8x256xbf16>
    %c160 = arith.constant 160 : index
    %c0_97 = arith.constant 0 : index
    %173 = vector.load %arg7[%c160, %c0_97] : memref<200x512xbf16, #tpu.memory_space<vmem>>, vector<8x256xbf16>
    tpu.vector_store %arg7[%c160, %c0_97], %172 {strides = array<i32>} : memref<200x512xbf16, #tpu.memory_space<vmem>>, vector<8x256xbf16>,
    %c4_i32_98 = arith.constant 4 : i32
    %174 = arith.addi %4, %c4_i32_98 : i32
    %c0_99 = arith.constant 0 : index
    %c0_100 = arith.constant 0 : index
    %175 = arith.index_cast %174 : i32 to index
    %c1_101 = arith.constant 1 : index
    %176 = vector.load %arg6[%c0_99, %c0_100, %175, %c1_101] : memref<2x4x20x20xf32, #tpu.memory_space<vmem>>, vector<1x4x16x16xf32>
    %177 = vector.shape_cast %176 : vector<1x4x16x16xf32> to vector<4x16x16xf32>
    %178 = vector.shape_cast %177 : vector<4x16x16xf32> to vector<4x256xf32>
    %179 = arith.truncf %178 : vector<4x256xf32> to vector<4x256xbf16>
    %180 = tpu.concatenate %179, %5 in 0 : vector<4x256xbf16>, vector<4x256xbf16> -> vector<8x256xbf16>
    %c168 = arith.constant 168 : index
    %c0_102 = arith.constant 0 : index
    %181 = vector.load %arg7[%c168, %c0_102] : memref<200x512xbf16, #tpu.memory_space<vmem>>, vector<8x256xbf16>
    tpu.vector_store %arg7[%c168, %c0_102], %180 {strides = array<i32>} : memref<200x512xbf16, #tpu.memory_space<vmem>>, vector<8x256xbf16>,
    %c4_i32_103 = arith.constant 4 : i32
    %182 = arith.addi %4, %c4_i32_103 : i32
    %c0_104 = arith.constant 0 : index
    %c0_105 = arith.constant 0 : index
    %183 = arith.index_cast %182 : i32 to index
    %c2_106 = arith.constant 2 : index
    %184 = vector.load %arg6[%c0_104, %c0_105, %183, %c2_106] : memref<2x4x20x20xf32, #tpu.memory_space<vmem>>, vector<1x4x16x16xf32>
    %185 = vector.shape_cast %184 : vector<1x4x16x16xf32> to vector<4x16x16xf32>
    %186 = vector.shape_cast %185 : vector<4x16x16xf32> to vector<4x256xf32>
    %187 = arith.truncf %186 : vector<4x256xf32> to vector<4x256xbf16>
    %188 = tpu.concatenate %187, %5 in 0 : vector<4x256xbf16>, vector<4x256xbf16> -> vector<8x256xbf16>
    %c176 = arith.constant 176 : index
    %c0_107 = arith.constant 0 : index
    %189 = vector.load %arg7[%c176, %c0_107] : memref<200x512xbf16, #tpu.memory_space<vmem>>, vector<8x256xbf16>
    tpu.vector_store %arg7[%c176, %c0_107], %188 {strides = array<i32>} : memref<200x512xbf16, #tpu.memory_space<vmem>>, vector<8x256xbf16>,
    %c4_i32_108 = arith.constant 4 : i32
    %190 = arith.addi %4, %c4_i32_108 : i32
    %c0_109 = arith.constant 0 : index
    %c0_110 = arith.constant 0 : index
    %191 = arith.index_cast %190 : i32 to index
    %c3_111 = arith.constant 3 : index
    %192 = vector.load %arg6[%c0_109, %c0_110, %191, %c3_111] : memref<2x4x20x20xf32, #tpu.memory_space<vmem>>, vector<1x4x16x16xf32>
    %193 = vector.shape_cast %192 : vector<1x4x16x16xf32> to vector<4x16x16xf32>
    %194 = vector.shape_cast %193 : vector<4x16x16xf32> to vector<4x256xf32>
    %195 = arith.truncf %194 : vector<4x256xf32> to vector<4x256xbf16>
    %196 = tpu.concatenate %195, %5 in 0 : vector<4x256xbf16>, vector<4x256xbf16> -> vector<8x256xbf16>
    %c184 = arith.constant 184 : index
    %c0_112 = arith.constant 0 : index
    %197 = vector.load %arg7[%c184, %c0_112] : memref<200x512xbf16, #tpu.memory_space<vmem>>, vector<8x256xbf16>
    tpu.vector_store %arg7[%c184, %c0_112], %196 {strides = array<i32>} : memref<200x512xbf16, #tpu.memory_space<vmem>>, vector<8x256xbf16>,
    %c4_i32_113 = arith.constant 4 : i32
    %198 = arith.addi %4, %c4_i32_113 : i32
    %c0_114 = arith.constant 0 : index
    %c0_115 = arith.constant 0 : index
    %199 = arith.index_cast %198 : i32 to index
    %c4_116 = arith.constant 4 : index
    %200 = vector.load %arg6[%c0_114, %c0_115, %199, %c4_116] : memref<2x4x20x20xf32, #tpu.memory_space<vmem>>, vector<1x4x16x16xf32>
    %201 = vector.shape_cast %200 : vector<1x4x16x16xf32> to vector<4x16x16xf32>
    %202 = vector.shape_cast %201 : vector<4x16x16xf32> to vector<4x256xf32>
    %203 = arith.truncf %202 : vector<4x256xf32> to vector<4x256xbf16>
    %204 = tpu.concatenate %203, %5 in 0 : vector<4x256xbf16>, vector<4x256xbf16> -> vector<8x256xbf16>
    %c192 = arith.constant 192 : index
    %c0_117 = arith.constant 0 : index
    %205 = vector.load %arg7[%c192, %c0_117] : memref<200x512xbf16, #tpu.memory_space<vmem>>, vector<8x256xbf16>
    tpu.vector_store %arg7[%c192, %c0_117], %204 {strides = array<i32>} : memref<200x512xbf16, #tpu.memory_space<vmem>>, vector<8x256xbf16>,
    %c0_i32_118 = arith.constant 0 : i32
    %206 = arith.addi %4, %c0_i32_118 : i32
    %c1_119 = arith.constant 1 : index
    %c0_120 = arith.constant 0 : index
    %207 = arith.index_cast %206 : i32 to index
    %c0_121 = arith.constant 0 : index
    %208 = vector.load %arg6[%c1_119, %c0_120, %207, %c0_121] : memref<2x4x20x20xf32, #tpu.memory_space<vmem>>, vector<1x4x16x16xf32>
    %209 = vector.shape_cast %208 : vector<1x4x16x16xf32> to vector<4x16x16xf32>
    %210 = vector.shape_cast %209 : vector<4x16x16xf32> to vector<4x256xf32>
    %211 = arith.truncf %210 : vector<4x256xf32> to vector<4x256xbf16>
    %212 = tpu.concatenate %211, %5 in 0 : vector<4x256xbf16>, vector<4x256xbf16> -> vector<8x256xbf16>
    %c0_122 = arith.constant 0 : index
    %c256 = arith.constant 256 : index
    %213 = vector.load %arg7[%c0_122, %c256] : memref<200x512xbf16, #tpu.memory_space<vmem>>, vector<8x256xbf16>
    tpu.vector_store %arg7[%c0_122, %c256], %212 {strides = array<i32>} : memref<200x512xbf16, #tpu.memory_space<vmem>>, vector<8x256xbf16>,
    %c0_i32_123 = arith.constant 0 : i32
    %214 = arith.addi %4, %c0_i32_123 : i32
    %c1_124 = arith.constant 1 : index
    %c0_125 = arith.constant 0 : index
    %215 = arith.index_cast %214 : i32 to index
    %c1_126 = arith.constant 1 : index
    %216 = vector.load %arg6[%c1_124, %c0_125, %215, %c1_126] : memref<2x4x20x20xf32, #tpu.memory_space<vmem>>, vector<1x4x16x16xf32>
    %217 = vector.shape_cast %216 : vector<1x4x16x16xf32> to vector<4x16x16xf32>
    %218 = vector.shape_cast %217 : vector<4x16x16xf32> to vector<4x256xf32>
    %219 = arith.truncf %218 : vector<4x256xf32> to vector<4x256xbf16>
    %220 = tpu.concatenate %219, %5 in 0 : vector<4x256xbf16>, vector<4x256xbf16> -> vector<8x256xbf16>
    %c8_127 = arith.constant 8 : index
    %c256_128 = arith.constant 256 : index
    %221 = vector.load %arg7[%c8_127, %c256_128] : memref<200x512xbf16, #tpu.memory_space<vmem>>, vector<8x256xbf16>
    tpu.vector_store %arg7[%c8_127, %c256_128], %220 {strides = array<i32>} : memref<200x512xbf16, #tpu.memory_space<vmem>>, vector<8x256xbf16>,
    %c0_i32_129 = arith.constant 0 : i32
    %222 = arith.addi %4, %c0_i32_129 : i32
    %c1_130 = arith.constant 1 : index
    %c0_131 = arith.constant 0 : index
    %223 = arith.index_cast %222 : i32 to index
    %c2_132 = arith.constant 2 : index
    %224 = vector.load %arg6[%c1_130, %c0_131, %223, %c2_132] : memref<2x4x20x20xf32, #tpu.memory_space<vmem>>, vector<1x4x16x16xf32>
    %225 = vector.shape_cast %224 : vector<1x4x16x16xf32> to vector<4x16x16xf32>
    %226 = vector.shape_cast %225 : vector<4x16x16xf32> to vector<4x256xf32>
    %227 = arith.truncf %226 : vector<4x256xf32> to vector<4x256xbf16>
    %228 = tpu.concatenate %227, %5 in 0 : vector<4x256xbf16>, vector<4x256xbf16> -> vector<8x256xbf16>
    %c16_133 = arith.constant 16 : index
    %c256_134 = arith.constant 256 : index
    %229 = vector.load %arg7[%c16_133, %c256_134] : memref<200x512xbf16, #tpu.memory_space<vmem>>, vector<8x256xbf16>
    tpu.vector_store %arg7[%c16_133, %c256_134], %228 {strides = array<i32>} : memref<200x512xbf16, #tpu.memory_space<vmem>>, vector<8x256xbf16>,
    %c0_i32_135 = arith.constant 0 : i32
    %230 = arith.addi %4, %c0_i32_135 : i32
    %c1_136 = arith.constant 1 : index
    %c0_137 = arith.constant 0 : index
    %231 = arith.index_cast %230 : i32 to index
    %c3_138 = arith.constant 3 : index
    %232 = vector.load %arg6[%c1_136, %c0_137, %231, %c3_138] : memref<2x4x20x20xf32, #tpu.memory_space<vmem>>, vector<1x4x16x16xf32>
    %233 = vector.shape_cast %232 : vector<1x4x16x16xf32> to vector<4x16x16xf32>
    %234 = vector.shape_cast %233 : vector<4x16x16xf32> to vector<4x256xf32>
    %235 = arith.truncf %234 : vector<4x256xf32> to vector<4x256xbf16>
    %236 = tpu.concatenate %235, %5 in 0 : vector<4x256xbf16>, vector<4x256xbf16> -> vector<8x256xbf16>
    %c24_139 = arith.constant 24 : index
    %c256_140 = arith.constant 256 : index
    %237 = vector.load %arg7[%c24_139, %c256_140] : memref<200x512xbf16, #tpu.memory_space<vmem>>, vector<8x256xbf16>
    tpu.vector_store %arg7[%c24_139, %c256_140], %236 {strides = array<i32>} : memref<200x512xbf16, #tpu.memory_space<vmem>>, vector<8x256xbf16>,
    %c0_i32_141 = arith.constant 0 : i32
    %238 = arith.addi %4, %c0_i32_141 : i32
    %c1_142 = arith.constant 1 : index
    %c0_143 = arith.constant 0 : index
    %239 = arith.index_cast %238 : i32 to index
    %c4_144 = arith.constant 4 : index
    %240 = vector.load %arg6[%c1_142, %c0_143, %239, %c4_144] : memref<2x4x20x20xf32, #tpu.memory_space<vmem>>, vector<1x4x16x16xf32>
    %241 = vector.shape_cast %240 : vector<1x4x16x16xf32> to vector<4x16x16xf32>
    %242 = vector.shape_cast %241 : vector<4x16x16xf32> to vector<4x256xf32>
    %243 = arith.truncf %242 : vector<4x256xf32> to vector<4x256xbf16>
    %244 = tpu.concatenate %243, %5 in 0 : vector<4x256xbf16>, vector<4x256xbf16> -> vector<8x256xbf16>
    %c32_145 = arith.constant 32 : index
    %c256_146 = arith.constant 256 : index
    %245 = vector.load %arg7[%c32_145, %c256_146] : memref<200x512xbf16, #tpu.memory_space<vmem>>, vector<8x256xbf16>
    tpu.vector_store %arg7[%c32_145, %c256_146], %244 {strides = array<i32>} : memref<200x512xbf16, #tpu.memory_space<vmem>>, vector<8x256xbf16>,
    %c1_i32_147 = arith.constant 1 : i32
    %246 = arith.addi %4, %c1_i32_147 : i32
    %c1_148 = arith.constant 1 : index
    %c0_149 = arith.constant 0 : index
    %247 = arith.index_cast %246 : i32 to index
    %c0_150 = arith.constant 0 : index
    %248 = vector.load %arg6[%c1_148, %c0_149, %247, %c0_150] : memref<2x4x20x20xf32, #tpu.memory_space<vmem>>, vector<1x4x16x16xf32>
    %249 = vector.shape_cast %248 : vector<1x4x16x16xf32> to vector<4x16x16xf32>
    %250 = vector.shape_cast %249 : vector<4x16x16xf32> to vector<4x256xf32>
    %251 = arith.truncf %250 : vector<4x256xf32> to vector<4x256xbf16>
    %252 = tpu.concatenate %251, %5 in 0 : vector<4x256xbf16>, vector<4x256xbf16> -> vector<8x256xbf16>
    %c40_151 = arith.constant 40 : index
    %c256_152 = arith.constant 256 : index
    %253 = vector.load %arg7[%c40_151, %c256_152] : memref<200x512xbf16, #tpu.memory_space<vmem>>, vector<8x256xbf16>
    tpu.vector_store %arg7[%c40_151, %c256_152], %252 {strides = array<i32>} : memref<200x512xbf16, #tpu.memory_space<vmem>>, vector<8x256xbf16>,
    %c1_i32_153 = arith.constant 1 : i32
    %254 = arith.addi %4, %c1_i32_153 : i32
    %c1_154 = arith.constant 1 : index
    %c0_155 = arith.constant 0 : index
    %255 = arith.index_cast %254 : i32 to index
    %c1_156 = arith.constant 1 : index
    %256 = vector.load %arg6[%c1_154, %c0_155, %255, %c1_156] : memref<2x4x20x20xf32, #tpu.memory_space<vmem>>, vector<1x4x16x16xf32>
    %257 = vector.shape_cast %256 : vector<1x4x16x16xf32> to vector<4x16x16xf32>
    %258 = vector.shape_cast %257 : vector<4x16x16xf32> to vector<4x256xf32>
    %259 = arith.truncf %258 : vector<4x256xf32> to vector<4x256xbf16>
    %260 = tpu.concatenate %259, %5 in 0 : vector<4x256xbf16>, vector<4x256xbf16> -> vector<8x256xbf16>
    %c48_157 = arith.constant 48 : index
    %c256_158 = arith.constant 256 : index
    %261 = vector.load %arg7[%c48_157, %c256_158] : memref<200x512xbf16, #tpu.memory_space<vmem>>, vector<8x256xbf16>
    tpu.vector_store %arg7[%c48_157, %c256_158], %260 {strides = array<i32>} : memref<200x512xbf16, #tpu.memory_space<vmem>>, vector<8x256xbf16>,
    %c1_i32_159 = arith.constant 1 : i32
    %262 = arith.addi %4, %c1_i32_159 : i32
    %c1_160 = arith.constant 1 : index
    %c0_161 = arith.constant 0 : index
    %263 = arith.index_cast %262 : i32 to index
    %c2_162 = arith.constant 2 : index
    %264 = vector.load %arg6[%c1_160, %c0_161, %263, %c2_162] : memref<2x4x20x20xf32, #tpu.memory_space<vmem>>, vector<1x4x16x16xf32>
    %265 = vector.shape_cast %264 : vector<1x4x16x16xf32> to vector<4x16x16xf32>
    %266 = vector.shape_cast %265 : vector<4x16x16xf32> to vector<4x256xf32>
    %267 = arith.truncf %266 : vector<4x256xf32> to vector<4x256xbf16>
    %268 = tpu.concatenate %267, %5 in 0 : vector<4x256xbf16>, vector<4x256xbf16> -> vector<8x256xbf16>
    %c56_163 = arith.constant 56 : index
    %c256_164 = arith.constant 256 : index
    %269 = vector.load %arg7[%c56_163, %c256_164] : memref<200x512xbf16, #tpu.memory_space<vmem>>, vector<8x256xbf16>
    tpu.vector_store %arg7[%c56_163, %c256_164], %268 {strides = array<i32>} : memref<200x512xbf16, #tpu.memory_space<vmem>>, vector<8x256xbf16>,
    %c1_i32_165 = arith.constant 1 : i32
    %270 = arith.addi %4, %c1_i32_165 : i32
    %c1_166 = arith.constant 1 : index
    %c0_167 = arith.constant 0 : index
    %271 = arith.index_cast %270 : i32 to index
    %c3_168 = arith.constant 3 : index
    %272 = vector.load %arg6[%c1_166, %c0_167, %271, %c3_168] : memref<2x4x20x20xf32, #tpu.memory_space<vmem>>, vector<1x4x16x16xf32>
    %273 = vector.shape_cast %272 : vector<1x4x16x16xf32> to vector<4x16x16xf32>
    %274 = vector.shape_cast %273 : vector<4x16x16xf32> to vector<4x256xf32>
    %275 = arith.truncf %274 : vector<4x256xf32> to vector<4x256xbf16>
    %276 = tpu.concatenate %275, %5 in 0 : vector<4x256xbf16>, vector<4x256xbf16> -> vector<8x256xbf16>
    %c64_169 = arith.constant 64 : index
    %c256_170 = arith.constant 256 : index
    %277 = vector.load %arg7[%c64_169, %c256_170] : memref<200x512xbf16, #tpu.memory_space<vmem>>, vector<8x256xbf16>
    tpu.vector_store %arg7[%c64_169, %c256_170], %276 {strides = array<i32>} : memref<200x512xbf16, #tpu.memory_space<vmem>>, vector<8x256xbf16>,
    %c1_i32_171 = arith.constant 1 : i32
    %278 = arith.addi %4, %c1_i32_171 : i32
    %c1_172 = arith.constant 1 : index
    %c0_173 = arith.constant 0 : index
    %279 = arith.index_cast %278 : i32 to index
    %c4_174 = arith.constant 4 : index
    %280 = vector.load %arg6[%c1_172, %c0_173, %279, %c4_174] : memref<2x4x20x20xf32, #tpu.memory_space<vmem>>, vector<1x4x16x16xf32>
    %281 = vector.shape_cast %280 : vector<1x4x16x16xf32> to vector<4x16x16xf32>
    %282 = vector.shape_cast %281 : vector<4x16x16xf32> to vector<4x256xf32>
    %283 = arith.truncf %282 : vector<4x256xf32> to vector<4x256xbf16>
    %284 = tpu.concatenate %283, %5 in 0 : vector<4x256xbf16>, vector<4x256xbf16> -> vector<8x256xbf16>
    %c72_175 = arith.constant 72 : index
    %c256_176 = arith.constant 256 : index
    %285 = vector.load %arg7[%c72_175, %c256_176] : memref<200x512xbf16, #tpu.memory_space<vmem>>, vector<8x256xbf16>
    tpu.vector_store %arg7[%c72_175, %c256_176], %284 {strides = array<i32>} : memref<200x512xbf16, #tpu.memory_space<vmem>>, vector<8x256xbf16>,
    %c2_i32_177 = arith.constant 2 : i32
    %286 = arith.addi %4, %c2_i32_177 : i32
    %c1_178 = arith.constant 1 : index
    %c0_179 = arith.constant 0 : index
    %287 = arith.index_cast %286 : i32 to index
    %c0_180 = arith.constant 0 : index
    %288 = vector.load %arg6[%c1_178, %c0_179, %287, %c0_180] : memref<2x4x20x20xf32, #tpu.memory_space<vmem>>, vector<1x4x16x16xf32>
    %289 = vector.shape_cast %288 : vector<1x4x16x16xf32> to vector<4x16x16xf32>
    %290 = vector.shape_cast %289 : vector<4x16x16xf32> to vector<4x256xf32>
    %291 = arith.truncf %290 : vector<4x256xf32> to vector<4x256xbf16>
    %292 = tpu.concatenate %291, %5 in 0 : vector<4x256xbf16>, vector<4x256xbf16> -> vector<8x256xbf16>
    %c80_181 = arith.constant 80 : index
    %c256_182 = arith.constant 256 : index
    %293 = vector.load %arg7[%c80_181, %c256_182] : memref<200x512xbf16, #tpu.memory_space<vmem>>, vector<8x256xbf16>
    tpu.vector_store %arg7[%c80_181, %c256_182], %292 {strides = array<i32>} : memref<200x512xbf16, #tpu.memory_space<vmem>>, vector<8x256xbf16>,
    %c2_i32_183 = arith.constant 2 : i32
    %294 = arith.addi %4, %c2_i32_183 : i32
    %c1_184 = arith.constant 1 : index
    %c0_185 = arith.constant 0 : index
    %295 = arith.index_cast %294 : i32 to index
    %c1_186 = arith.constant 1 : index
    %296 = vector.load %arg6[%c1_184, %c0_185, %295, %c1_186] : memref<2x4x20x20xf32, #tpu.memory_space<vmem>>, vector<1x4x16x16xf32>
    %297 = vector.shape_cast %296 : vector<1x4x16x16xf32> to vector<4x16x16xf32>
    %298 = vector.shape_cast %297 : vector<4x16x16xf32> to vector<4x256xf32>
    %299 = arith.truncf %298 : vector<4x256xf32> to vector<4x256xbf16>
    %300 = tpu.concatenate %299, %5 in 0 : vector<4x256xbf16>, vector<4x256xbf16> -> vector<8x256xbf16>
    %c88_187 = arith.constant 88 : index
    %c256_188 = arith.constant 256 : index
    %301 = vector.load %arg7[%c88_187, %c256_188] : memref<200x512xbf16, #tpu.memory_space<vmem>>, vector<8x256xbf16>
    tpu.vector_store %arg7[%c88_187, %c256_188], %300 {strides = array<i32>} : memref<200x512xbf16, #tpu.memory_space<vmem>>, vector<8x256xbf16>,
    %c2_i32_189 = arith.constant 2 : i32
    %302 = arith.addi %4, %c2_i32_189 : i32
    %c1_190 = arith.constant 1 : index
    %c0_191 = arith.constant 0 : index
    %303 = arith.index_cast %302 : i32 to index
    %c2_192 = arith.constant 2 : index
    %304 = vector.load %arg6[%c1_190, %c0_191, %303, %c2_192] : memref<2x4x20x20xf32, #tpu.memory_space<vmem>>, vector<1x4x16x16xf32>
    %305 = vector.shape_cast %304 : vector<1x4x16x16xf32> to vector<4x16x16xf32>
    %306 = vector.shape_cast %305 : vector<4x16x16xf32> to vector<4x256xf32>
    %307 = arith.truncf %306 : vector<4x256xf32> to vector<4x256xbf16>
    %308 = tpu.concatenate %307, %5 in 0 : vector<4x256xbf16>, vector<4x256xbf16> -> vector<8x256xbf16>
    %c96_193 = arith.constant 96 : index
    %c256_194 = arith.constant 256 : index
    %309 = vector.load %arg7[%c96_193, %c256_194] : memref<200x512xbf16, #tpu.memory_space<vmem>>, vector<8x256xbf16>
    tpu.vector_store %arg7[%c96_193, %c256_194], %308 {strides = array<i32>} : memref<200x512xbf16, #tpu.memory_space<vmem>>, vector<8x256xbf16>,
    %c2_i32_195 = arith.constant 2 : i32
    %310 = arith.addi %4, %c2_i32_195 : i32
    %c1_196 = arith.constant 1 : index
    %c0_197 = arith.constant 0 : index
    %311 = arith.index_cast %310 : i32 to index
    %c3_198 = arith.constant 3 : index
    %312 = vector.load %arg6[%c1_196, %c0_197, %311, %c3_198] : memref<2x4x20x20xf32, #tpu.memory_space<vmem>>, vector<1x4x16x16xf32>
    %313 = vector.shape_cast %312 : vector<1x4x16x16xf32> to vector<4x16x16xf32>
    %314 = vector.shape_cast %313 : vector<4x16x16xf32> to vector<4x256xf32>
    %315 = arith.truncf %314 : vector<4x256xf32> to vector<4x256xbf16>
    %316 = tpu.concatenate %315, %5 in 0 : vector<4x256xbf16>, vector<4x256xbf16> -> vector<8x256xbf16>
    %c104_199 = arith.constant 104 : index
    %c256_200 = arith.constant 256 : index
    %317 = vector.load %arg7[%c104_199, %c256_200] : memref<200x512xbf16, #tpu.memory_space<vmem>>, vector<8x256xbf16>
    tpu.vector_store %arg7[%c104_199, %c256_200], %316 {strides = array<i32>} : memref<200x512xbf16, #tpu.memory_space<vmem>>, vector<8x256xbf16>,
    %c2_i32_201 = arith.constant 2 : i32
    %318 = arith.addi %4, %c2_i32_201 : i32
    %c1_202 = arith.constant 1 : index
    %c0_203 = arith.constant 0 : index
    %319 = arith.index_cast %318 : i32 to index
    %c4_204 = arith.constant 4 : index
    %320 = vector.load %arg6[%c1_202, %c0_203, %319, %c4_204] : memref<2x4x20x20xf32, #tpu.memory_space<vmem>>, vector<1x4x16x16xf32>
    %321 = vector.shape_cast %320 : vector<1x4x16x16xf32> to vector<4x16x16xf32>
    %322 = vector.shape_cast %321 : vector<4x16x16xf32> to vector<4x256xf32>
    %323 = arith.truncf %322 : vector<4x256xf32> to vector<4x256xbf16>
    %324 = tpu.concatenate %323, %5 in 0 : vector<4x256xbf16>, vector<4x256xbf16> -> vector<8x256xbf16>
    %c112_205 = arith.constant 112 : index
    %c256_206 = arith.constant 256 : index
    %325 = vector.load %arg7[%c112_205, %c256_206] : memref<200x512xbf16, #tpu.memory_space<vmem>>, vector<8x256xbf16>
    tpu.vector_store %arg7[%c112_205, %c256_206], %324 {strides = array<i32>} : memref<200x512xbf16, #tpu.memory_space<vmem>>, vector<8x256xbf16>,
    %c3_i32_207 = arith.constant 3 : i32
    %326 = arith.addi %4, %c3_i32_207 : i32
    %c1_208 = arith.constant 1 : index
    %c0_209 = arith.constant 0 : index
    %327 = arith.index_cast %326 : i32 to index
    %c0_210 = arith.constant 0 : index
    %328 = vector.load %arg6[%c1_208, %c0_209, %327, %c0_210] : memref<2x4x20x20xf32, #tpu.memory_space<vmem>>, vector<1x4x16x16xf32>
    %329 = vector.shape_cast %328 : vector<1x4x16x16xf32> to vector<4x16x16xf32>
    %330 = vector.shape_cast %329 : vector<4x16x16xf32> to vector<4x256xf32>
    %331 = arith.truncf %330 : vector<4x256xf32> to vector<4x256xbf16>
    %332 = tpu.concatenate %331, %5 in 0 : vector<4x256xbf16>, vector<4x256xbf16> -> vector<8x256xbf16>
    %c120_211 = arith.constant 120 : index
    %c256_212 = arith.constant 256 : index
    %333 = vector.load %arg7[%c120_211, %c256_212] : memref<200x512xbf16, #tpu.memory_space<vmem>>, vector<8x256xbf16>
    tpu.vector_store %arg7[%c120_211, %c256_212], %332 {strides = array<i32>} : memref<200x512xbf16, #tpu.memory_space<vmem>>, vector<8x256xbf16>,
    %c3_i32_213 = arith.constant 3 : i32
    %334 = arith.addi %4, %c3_i32_213 : i32
    %c1_214 = arith.constant 1 : index
    %c0_215 = arith.constant 0 : index
    %335 = arith.index_cast %334 : i32 to index
    %c1_216 = arith.constant 1 : index
    %336 = vector.load %arg6[%c1_214, %c0_215, %335, %c1_216] : memref<2x4x20x20xf32, #tpu.memory_space<vmem>>, vector<1x4x16x16xf32>
    %337 = vector.shape_cast %336 : vector<1x4x16x16xf32> to vector<4x16x16xf32>
    %338 = vector.shape_cast %337 : vector<4x16x16xf32> to vector<4x256xf32>
    %339 = arith.truncf %338 : vector<4x256xf32> to vector<4x256xbf16>
    %340 = tpu.concatenate %339, %5 in 0 : vector<4x256xbf16>, vector<4x256xbf16> -> vector<8x256xbf16>
    %c128_217 = arith.constant 128 : index
    %c256_218 = arith.constant 256 : index
    %341 = vector.load %arg7[%c128_217, %c256_218] : memref<200x512xbf16, #tpu.memory_space<vmem>>, vector<8x256xbf16>
    tpu.vector_store %arg7[%c128_217, %c256_218], %340 {strides = array<i32>} : memref<200x512xbf16, #tpu.memory_space<vmem>>, vector<8x256xbf16>,
    %c3_i32_219 = arith.constant 3 : i32
    %342 = arith.addi %4, %c3_i32_219 : i32
    %c1_220 = arith.constant 1 : index
    %c0_221 = arith.constant 0 : index
    %343 = arith.index_cast %342 : i32 to index
    %c2_222 = arith.constant 2 : index
    %344 = vector.load %arg6[%c1_220, %c0_221, %343, %c2_222] : memref<2x4x20x20xf32, #tpu.memory_space<vmem>>, vector<1x4x16x16xf32>
    %345 = vector.shape_cast %344 : vector<1x4x16x16xf32> to vector<4x16x16xf32>
    %346 = vector.shape_cast %345 : vector<4x16x16xf32> to vector<4x256xf32>
    %347 = arith.truncf %346 : vector<4x256xf32> to vector<4x256xbf16>
    %348 = tpu.concatenate %347, %5 in 0 : vector<4x256xbf16>, vector<4x256xbf16> -> vector<8x256xbf16>
    %c136_223 = arith.constant 136 : index
    %c256_224 = arith.constant 256 : index
    %349 = vector.load %arg7[%c136_223, %c256_224] : memref<200x512xbf16, #tpu.memory_space<vmem>>, vector<8x256xbf16>
    tpu.vector_store %arg7[%c136_223, %c256_224], %348 {strides = array<i32>} : memref<200x512xbf16, #tpu.memory_space<vmem>>, vector<8x256xbf16>,
    %c3_i32_225 = arith.constant 3 : i32
    %350 = arith.addi %4, %c3_i32_225 : i32
    %c1_226 = arith.constant 1 : index
    %c0_227 = arith.constant 0 : index
    %351 = arith.index_cast %350 : i32 to index
    %c3_228 = arith.constant 3 : index
    %352 = vector.load %arg6[%c1_226, %c0_227, %351, %c3_228] : memref<2x4x20x20xf32, #tpu.memory_space<vmem>>, vector<1x4x16x16xf32>
    %353 = vector.shape_cast %352 : vector<1x4x16x16xf32> to vector<4x16x16xf32>
    %354 = vector.shape_cast %353 : vector<4x16x16xf32> to vector<4x256xf32>
    %355 = arith.truncf %354 : vector<4x256xf32> to vector<4x256xbf16>
    %356 = tpu.concatenate %355, %5 in 0 : vector<4x256xbf16>, vector<4x256xbf16> -> vector<8x256xbf16>
    %c144_229 = arith.constant 144 : index
    %c256_230 = arith.constant 256 : index
    %357 = vector.load %arg7[%c144_229, %c256_230] : memref<200x512xbf16, #tpu.memory_space<vmem>>, vector<8x256xbf16>
    tpu.vector_store %arg7[%c144_229, %c256_230], %356 {strides = array<i32>} : memref<200x512xbf16, #tpu.memory_space<vmem>>, vector<8x256xbf16>,
    %c3_i32_231 = arith.constant 3 : i32
    %358 = arith.addi %4, %c3_i32_231 : i32
    %c1_232 = arith.constant 1 : index
    %c0_233 = arith.constant 0 : index
    %359 = arith.index_cast %358 : i32 to index
    %c4_234 = arith.constant 4 : index
    %360 = vector.load %arg6[%c1_232, %c0_233, %359, %c4_234] : memref<2x4x20x20xf32, #tpu.memory_space<vmem>>, vector<1x4x16x16xf32>
    %361 = vector.shape_cast %360 : vector<1x4x16x16xf32> to vector<4x16x16xf32>
    %362 = vector.shape_cast %361 : vector<4x16x16xf32> to vector<4x256xf32>
    %363 = arith.truncf %362 : vector<4x256xf32> to vector<4x256xbf16>
    %364 = tpu.concatenate %363, %5 in 0 : vector<4x256xbf16>, vector<4x256xbf16> -> vector<8x256xbf16>
    %c152_235 = arith.constant 152 : index
    %c256_236 = arith.constant 256 : index
    %365 = vector.load %arg7[%c152_235, %c256_236] : memref<200x512xbf16, #tpu.memory_space<vmem>>, vector<8x256xbf16>
    tpu.vector_store %arg7[%c152_235, %c256_236], %364 {strides = array<i32>} : memref<200x512xbf16, #tpu.memory_space<vmem>>, vector<8x256xbf16>,
    %c4_i32_237 = arith.constant 4 : i32
    %366 = arith.addi %4, %c4_i32_237 : i32
    %c1_238 = arith.constant 1 : index
    %c0_239 = arith.constant 0 : index
    %367 = arith.index_cast %366 : i32 to index
    %c0_240 = arith.constant 0 : index
    %368 = vector.load %arg6[%c1_238, %c0_239, %367, %c0_240] : memref<2x4x20x20xf32, #tpu.memory_space<vmem>>, vector<1x4x16x16xf32>
    %369 = vector.shape_cast %368 : vector<1x4x16x16xf32> to vector<4x16x16xf32>
    %370 = vector.shape_cast %369 : vector<4x16x16xf32> to vector<4x256xf32>
    %371 = arith.truncf %370 : vector<4x256xf32> to vector<4x256xbf16>
    %372 = tpu.concatenate %371, %5 in 0 : vector<4x256xbf16>, vector<4x256xbf16> -> vector<8x256xbf16>
    %c160_241 = arith.constant 160 : index
    %c256_242 = arith.constant 256 : index
    %373 = vector.load %arg7[%c160_241, %c256_242] : memref<200x512xbf16, #tpu.memory_space<vmem>>, vector<8x256xbf16>
    tpu.vector_store %arg7[%c160_241, %c256_242], %372 {strides = array<i32>} : memref<200x512xbf16, #tpu.memory_space<vmem>>, vector<8x256xbf16>,
    %c4_i32_243 = arith.constant 4 : i32
    %374 = arith.addi %4, %c4_i32_243 : i32
    %c1_244 = arith.constant 1 : index
    %c0_245 = arith.constant 0 : index
    %375 = arith.index_cast %374 : i32 to index
    %c1_246 = arith.constant 1 : index
    %376 = vector.load %arg6[%c1_244, %c0_245, %375, %c1_246] : memref<2x4x20x20xf32, #tpu.memory_space<vmem>>, vector<1x4x16x16xf32>
    %377 = vector.shape_cast %376 : vector<1x4x16x16xf32> to vector<4x16x16xf32>
    %378 = vector.shape_cast %377 : vector<4x16x16xf32> to vector<4x256xf32>
    %379 = arith.truncf %378 : vector<4x256xf32> to vector<4x256xbf16>
    %380 = tpu.concatenate %379, %5 in 0 : vector<4x256xbf16>, vector<4x256xbf16> -> vector<8x256xbf16>
    %c168_247 = arith.constant 168 : index
    %c256_248 = arith.constant 256 : index
    %381 = vector.load %arg7[%c168_247, %c256_248] : memref<200x512xbf16, #tpu.memory_space<vmem>>, vector<8x256xbf16>
    tpu.vector_store %arg7[%c168_247, %c256_248], %380 {strides = array<i32>} : memref<200x512xbf16, #tpu.memory_space<vmem>>, vector<8x256xbf16>,
    %c4_i32_249 = arith.constant 4 : i32
    %382 = arith.addi %4, %c4_i32_249 : i32
    %c1_250 = arith.constant 1 : index
    %c0_251 = arith.constant 0 : index
    %383 = arith.index_cast %382 : i32 to index
    %c2_252 = arith.constant 2 : index
    %384 = vector.load %arg6[%c1_250, %c0_251, %383, %c2_252] : memref<2x4x20x20xf32, #tpu.memory_space<vmem>>, vector<1x4x16x16xf32>
    %385 = vector.shape_cast %384 : vector<1x4x16x16xf32> to vector<4x16x16xf32>
    %386 = vector.shape_cast %385 : vector<4x16x16xf32> to vector<4x256xf32>
    %387 = arith.truncf %386 : vector<4x256xf32> to vector<4x256xbf16>
    %388 = tpu.concatenate %387, %5 in 0 : vector<4x256xbf16>, vector<4x256xbf16> -> vector<8x256xbf16>
    %c176_253 = arith.constant 176 : index
    %c256_254 = arith.constant 256 : index
    %389 = vector.load %arg7[%c176_253, %c256_254] : memref<200x512xbf16, #tpu.memory_space<vmem>>, vector<8x256xbf16>
    tpu.vector_store %arg7[%c176_253, %c256_254], %388 {strides = array<i32>} : memref<200x512xbf16, #tpu.memory_space<vmem>>, vector<8x256xbf16>,
    %c4_i32_255 = arith.constant 4 : i32
    %390 = arith.addi %4, %c4_i32_255 : i32
    %c1_256 = arith.constant 1 : index
    %c0_257 = arith.constant 0 : index
    %391 = arith.index_cast %390 : i32 to index
    %c3_258 = arith.constant 3 : index
    %392 = vector.load %arg6[%c1_256, %c0_257, %391, %c3_258] : memref<2x4x20x20xf32, #tpu.memory_space<vmem>>, vector<1x4x16x16xf32>
    %393 = vector.shape_cast %392 : vector<1x4x16x16xf32> to vector<4x16x16xf32>
    %394 = vector.shape_cast %393 : vector<4x16x16xf32> to vector<4x256xf32>
    %395 = arith.truncf %394 : vector<4x256xf32> to vector<4x256xbf16>
    %396 = tpu.concatenate %395, %5 in 0 : vector<4x256xbf16>, vector<4x256xbf16> -> vector<8x256xbf16>
    %c184_259 = arith.constant 184 : index
    %c256_260 = arith.constant 256 : index
    %397 = vector.load %arg7[%c184_259, %c256_260] : memref<200x512xbf16, #tpu.memory_space<vmem>>, vector<8x256xbf16>
    tpu.vector_store %arg7[%c184_259, %c256_260], %396 {strides = array<i32>} : memref<200x512xbf16, #tpu.memory_space<vmem>>, vector<8x256xbf16>,
    %c4_i32_261 = arith.constant 4 : i32
    %398 = arith.addi %4, %c4_i32_261 : i32
    %c1_262 = arith.constant 1 : index
    %c0_263 = arith.constant 0 : index
    %399 = arith.index_cast %398 : i32 to index
    %c4_264 = arith.constant 4 : index
    %400 = vector.load %arg6[%c1_262, %c0_263, %399, %c4_264] : memref<2x4x20x20xf32, #tpu.memory_space<vmem>>, vector<1x4x16x16xf32>
    %401 = vector.shape_cast %400 : vector<1x4x16x16xf32> to vector<4x16x16xf32>
    %402 = vector.shape_cast %401 : vector<4x16x16xf32> to vector<4x256xf32>
    %403 = arith.truncf %402 : vector<4x256xf32> to vector<4x256xbf16>
    %404 = tpu.concatenate %403, %5 in 0 : vector<4x256xbf16>, vector<4x256xbf16> -> vector<8x256xbf16>
    %c192_265 = arith.constant 192 : index
    %c256_266 = arith.constant 256 : index
    %405 = vector.load %arg7[%c192_265, %c256_266] : memref<200x512xbf16, #tpu.memory_space<vmem>>, vector<8x256xbf16>
    tpu.vector_store %arg7[%c192_265, %c256_266], %404 {strides = array<i32>} : memref<200x512xbf16, #tpu.memory_space<vmem>>, vector<8x256xbf16>,
    %c0_267 = arith.constant 0 : index
    %c0_268 = arith.constant 0 : index
    %406 = vector.load %arg3[%c0_267, %c0_268] : memref<8x200xbf16, #tpu.memory_space<vmem>>, vector<8x200xbf16>
    %c0_269 = arith.constant 0 : index
    %c0_270 = arith.constant 0 : index
    %407 = vector.load %arg7[%c0_269, %c0_270] : memref<200x512xbf16, #tpu.memory_space<vmem>>, vector<200x512xbf16>
    %cst_271 = arith.constant dense<0.000000e+00> : vector<8x512xf32>
    %408 = tpu.matmul %406, %407, %cst_271 {dimension_numbers = #tpu.dot_dimension_numbers<[1], [0], [0], [1], [0, 0, 1, 1], [], []>} : vector<8x200xbf16>, vector<200x512xbf16>, vector<8x512xf32> -> vector<8x512xf32>
    %c0_272 = arith.constant 0 : index
    %c0_273 = arith.constant 0 : index
    %409 = vector.load %arg4[%c0_272, %c0_273] : memref<8x1xf32, #tpu.memory_space<vmem>>, vector<8x1xf32>
    %410 = vector.broadcast %409 : vector<8x1xf32> to vector<8x512xf32>
    %411 = arith.addf %408, %410 : vector<8x512xf32>
    %cst_274 = arith.constant 0.000000e+00 : f32
    %412 = vector.broadcast %cst_274 : f32 to vector<8x512xf32>
    %413 = arith.maximumf %411, %412 : vector<8x512xf32>
    %414 = vector.extract_strided_slice %413 {offsets = [0, 0], sizes = [8, 256], strides = [1, 1]} : vector<8x512xf32> to vector<8x256xf32>
    %c0_275 = arith.constant 0 : index
    %c0_276 = arith.constant 0 : index
    %c0_277 = arith.constant 0 : index
    %415 = vector.load %arg5[%c0_275, %c0_276, %c0_277] : memref<2x8x256xf32, #tpu.memory_space<vmem>>, vector<1x8x256xf32>
    %416 = vector.shape_cast %415 : vector<1x8x256xf32> to vector<8x256xf32>
    %417 = vector.shape_cast %414 : vector<8x256xf32> to vector<1x8x256xf32>
    tpu.vector_store %arg5[%c0_275, %c0_276, %c0_277], %417 {strides = array<i32>} : memref<2x8x256xf32, #tpu.memory_space<vmem>>, vector<1x8x256xf32>,
    %418 = vector.extract_strided_slice %413 {offsets = [0, 256], sizes = [8, 256], strides = [1, 1]} : vector<8x512xf32> to vector<8x256xf32>
    %c1_278 = arith.constant 1 : index
    %c0_279 = arith.constant 0 : index
    %c0_280 = arith.constant 0 : index
    %419 = vector.load %arg5[%c1_278, %c0_279, %c0_280] : memref<2x8x256xf32, #tpu.memory_space<vmem>>, vector<1x8x256xf32>
    %420 = vector.shape_cast %419 : vector<1x8x256xf32> to vector<8x256xf32>
    %421 = vector.shape_cast %418 : vector<8x256xf32> to vector<1x8x256xf32>
    tpu.vector_store %arg5[%c1_278, %c0_279, %c0_280], %421 {strides = array<i32>} : memref<2x8x256xf32, #tpu.memory_space<vmem>>, vector<1x8x256xf32>,
    return
  }
  func.func @transform_0(%arg0: i32, %arg1: i32) -> (i32, i32, i32, i32) {
    %c0_i32 = arith.constant 0 : i32
    %c0_i32_0 = arith.constant 0 : i32
    %c0_i32_1 = arith.constant 0 : i32
    %c0_i32_2 = arith.constant 0 : i32
    return %arg0, %c0_i32, %c0_i32_0, %c0_i32_1 : i32, i32, i32, i32
  }
  func.func @transform_1(%arg0: i32, %arg1: i32) -> (i32, i32) {
    %c0_i32 = arith.constant 0 : i32
    %c0_i32_0 = arith.constant 0 : i32
    %c0_i32_1 = arith.constant 0 : i32
    return %c0_i32, %c0_i32_0 : i32, i32
  }
  func.func @transform_2(%arg0: i32, %arg1: i32) -> (i32, i32) {
    %c0_i32 = arith.constant 0 : i32
    %c0_i32_0 = arith.constant 0 : i32
    %c0_i32_1 = arith.constant 0 : i32
    return %c0_i32, %c0_i32_0 : i32, i32
  }
  func.func @transform_3(%arg0: i32, %arg1: i32) -> (i32, i32, i32) {
    %c0_i32 = arith.constant 0 : i32
    %c0_i32_0 = arith.constant 0 : i32
    return %arg0, %c0_i32, %arg1 : i32, i32, i32
  }
}

</mosaic_0001>

<llo_original>
// kernel: multi_scale_block.1
$region0: #{multi_scale_block.1}
  #allocation0 [shape = 'u32[]', space=smem, size = 0x4, offset = 0x4, fixed_abs, tag = 'smem constant byte address 0x4 - core index']
  #allocation1 [shape = 'u32[72,128]{1,0:T(1,128)}', space=vmem, size = 0x9000, scoped, tag = 'internal scratch']
  #allocation2 [shape = 'f32[2,4,20,20]{3,2,1,0:T(8,128)}', space=vmem, size = 0x18000, scoped, tag = 'scratch operand']
  #allocation3 [shape = 'bf16[200,512]{1,0:T(8,128)(2,1)}', space=vmem, size = 0x32000, scoped, tag = 'scratch operand']
  %s0 = inlined_call_operand.hbm [shape: f32[2,4,16,16], index: 0, kind: input, shape index: {}]
  %s1 = inlined_call_operand.vmem [shape: bf16[8,200], index: 1, kind: input, shape index: {}]
  %s2 = inlined_call_operand.vmem [shape: f32[8,1], index: 2, kind: input, shape index: {}]
  %s3 = inlined_call_operand.vmem [shape: f32[2,8,256], index: 3, kind: output, shape index: {}]
  %s4 = sld [smem:[#allocation0]]
  $region30: #{multi_scale_block.1} parent=0
    _
  %s6 = ssub.s32 1, %s4
  %s7 = scalar_select 0, %s6, %s4
  $region1: #{multi_scale_block.1} parent=0
    #allocation4 [shape = 'u8[65536]{0}', space=vmem, size = 0x10000, scoped, tag = 'input window, operand 0, single buffered']
    #allocation5 [shape = 's32[1]{0}', space=sflag, size = 0x4, scoped, tag = 'scoped memory for multi_scale_block.1']
    %8 = vsyncpa [#allocation5], 0
    // Predicated region
    $region2: #{multi_scale_block.1} parent=1 // pred_check
      _
    $region3: #{multi_scale_block.1} parent=1 // pred_check_branch
      %10 = sbr.rel (0) target = $region5
    $region4: #{multi_scale_block.1} parent=1 // pred_region
      %12 = vsyncadd [#allocation5], 0
      %s13 = sshll.u32 %s0, 4
      %s14 = int_to_ptr.hbm [resolvable:$true] %s13
      %s15 = sshll.u32 [#allocation4], 4
      %s16 = int_to_ptr.vmem [resolvable:$true] %s15
      %21 = dma.hbm_to_vmem [thread:$0]  %s14, 2048, %s16, [#allocation5], 128, 128, 8
    $region5: #{multi_scale_block.1} parent=1 // pred_fallthru
      _
    // Predicated region
    $region6: #{multi_scale_block.1} parent=1 // pred_check
      _
    $region7: #{multi_scale_block.1} parent=1 // pred_check_branch
      %23 = sbr.rel (0) target = $region9
    $region8: #{multi_scale_block.1} parent=1 // pred_region
      _
    $region9: #{multi_scale_block.1} parent=1 // pred_fallthru
      _
    // Predicated region
    $region10: #{multi_scale_block.1} parent=1 // pred_check
      _
    $region11: #{multi_scale_block.1} parent=1 // pred_check_branch
      %25 = sbr.rel (0) target = $region13
    $region12: #{multi_scale_block.1} parent=1 // pred_region
      _
    $region13: #{multi_scale_block.1} parent=1 // pred_fallthru
      _
    // Predicated region
    $region14: #{multi_scale_block.1} parent=1 // pred_check
      _
    $region15: #{multi_scale_block.1} parent=1 // pred_check_branch
      %27 = sbr.rel (0) target = $region17
    $region16: #{multi_scale_block.1} parent=1 // pred_region
      %29 = dma.done [#allocation5], 2048
    $region17: #{multi_scale_block.1} parent=1 // pred_fallthru
      _
    %p31 = scmp.eq.s32.totalorder 0, 0
    // Predicated region
    $region18: #{multi_scale_block.1} parent=1 // pred_check
      %p32 = pneg %p31
    $region19: #{multi_scale_block.1} parent=1 // pred_check_branch
      %34 = sbr.rel (%p32) target = $region21
    $region20: #{multi_scale_block.1} parent=1 // pred_region
      %vm35 = vcmask 162816
      %36 = vst.msk [vmem:[#allocation2] sm:$0xff] %vm35, 0.0
      %37 = vst.msk [vmem:[#allocation2 + $0x8] sm:$0xff] %vm35, 0.0
      %vm38 = vcmask 158720
      %39 = vst.msk [vmem:[#allocation2 + $0x10] sm:$0xf] %vm38, 0.0
      %40 = vst.msk [vmem:[#allocation2 + $0x18] sm:$0xff] %vm35, 0.0
      %41 = vst.msk [vmem:[#allocation2 + $0x20] sm:$0xff] %vm35, 0.0
      %42 = vst.msk [vmem:[#allocation2 + $0x28] sm:$0xf] %vm38, 0.0
      %43 = vst.msk [vmem:[#allocation2 + $0x30] sm:$0xff] %vm35, 0.0
      %44 = vst.msk [vmem:[#allocation2 + $0x38] sm:$0xff] %vm35, 0.0
      %45 = vst.msk [vmem:[#allocation2 + $0x40] sm:$0xf] %vm38, 0.0
      %46 = vst.msk [vmem:[#allocation2 + $0x48] sm:$0xff] %vm35, 0.0
      %47 = vst.msk [vmem:[#allocation2 + $0x50] sm:$0xff] %vm35, 0.0
      %48 = vst.msk [vmem:[#allocation2 + $0x58] sm:$0xf] %vm38, 0.0
      %49 = vst.msk [vmem:[#allocation2 + $0x60] sm:$0xff] %vm35, 0.0
      %50 = vst.msk [vmem:[#allocation2 + $0x68] sm:$0xff] %vm35, 0.0
      %51 = vst.msk [vmem:[#allocation2 + $0x70] sm:$0xf] %vm38, 0.0
      %52 = vst.msk [vmem:[#allocation2 + $0x78] sm:$0xff] %vm35, 0.0
      %53 = vst.msk [vmem:[#allocation2 + $0x80] sm:$0xff] %vm35, 0.0
      %54 = vst.msk [vmem:[#allocation2 + $0x88] sm:$0xf] %vm38, 0.0
      %55 = vst.msk [vmem:[#allocation2 + $0x90] sm:$0xff] %vm35, 0.0
      %56 = vst.msk [vmem:[#allocation2 + $0x98] sm:$0xff] %vm35, 0.0
      %57 = vst.msk [vmem:[#allocation2 + $0xa0] sm:$0xf] %vm38, 0.0
      %58 = vst.msk [vmem:[#allocation2 + $0xa8] sm:$0xff] %vm35, 0.0
      %59 = vst.msk [vmem:[#allocation2 + $0xb0] sm:$0xff] %vm35, 0.0
      %60 = vst.msk [vmem:[#allocation2 + $0xb8] sm:$0xf] %vm38, 0.0
      %v61 = vld [vmem:[#allocation4] sm:$0xff]
      %v62 = vld [vmem:[#allocation4 + $0x8] sm:$0xff]
      %v63 = vld [vmem:[#allocation4 + $0x10] sm:$0xff]
      %v64 = vld [vmem:[#allocation4 + $0x18] sm:$0xff]
      %v65 = vld [vmem:[#allocation4 + $0x20] sm:$0xff]
      %v66 = vld [vmem:[#allocation4 + $0x28] sm:$0xff]
      %v67 = vld [vmem:[#allocation4 + $0x30] sm:$0xff]
      %v68 = vld [vmem:[#allocation4 + $0x38] sm:$0xff]
      %v69 = vld [vmem:[#allocation4 + $0x40] sm:$0xff]
      %v70 = vld [vmem:[#allocation4 + $0x48] sm:$0xff]
      %v71 = vld [vmem:[#allocation4 + $0x50] sm:$0xff]
      %v72 = vld [vmem:[#allocation4 + $0x58] sm:$0xff]
      %v73 = vld [vmem:[#allocation4 + $0x60] sm:$0xff]
      %v74 = vld [vmem:[#allocation4 + $0x68] sm:$0xff]
      %v75 = vld [vmem:[#allocation4 + $0x70] sm:$0xff]
      %v76 = vld [vmem:[#allocation4 + $0x78] sm:$0xff]
      %93 = vrot.lane.b32.xlu0 %v61, 2
      %v94 = vpop.permute.xlu0 %93
      %95 = vrot.lane.b32.xlu0 %v62, 2
      %v96 = vpop.permute.xlu0 %95
      %97 = vrot.lane.b32.xlu0 %v63, 2
      %v98 = vpop.permute.xlu0 %97
      %99 = vrot.lane.b32.xlu0 %v64, 2
      %v100 = vpop.permute.xlu0 %99
      %101 = vrot.lane.b32.xlu0 %v65, 2
      %v102 = vpop.permute.xlu0 %101
      %103 = vrot.lane.b32.xlu0 %v66, 2
      %v104 = vpop.permute.xlu0 %103
      %105 = vrot.lane.b32.xlu0 %v67, 2
      %v106 = vpop.permute.xlu0 %105
      %107 = vrot.lane.b32.xlu0 %v68, 2
      %v108 = vpop.permute.xlu0 %107
      %109 = vrot.lane.b32.xlu0 %v69, 2
      %v110 = vpop.permute.xlu0 %109
      %111 = vrot.lane.b32.xlu0 %v70, 2
      %v112 = vpop.permute.xlu0 %111
      %113 = vrot.lane.b32.xlu0 %v71, 2
      %v114 = vpop.permute.xlu0 %113
      %115 = vrot.lane.b32.xlu0 %v72, 2
      %v116 = vpop.permute.xlu0 %115
      %117 = vrot.lane.b32.xlu0 %v73, 2
      %v118 = vpop.permute.xlu0 %117
      %119 = vrot.lane.b32.xlu0 %v74, 2
      %v120 = vpop.permute.xlu0 %119
      %121 = vrot.lane.b32.xlu0 %v75, 2
      %v122 = vpop.permute.xlu0 %121
      %123 = vrot.lane.b32.xlu0 %v76, 2
      %v124 = vpop.permute.xlu0 %123
      %vm141 = vcmask 146448
      %142 = vst.msk [vmem:[#allocation2 + $0x2] sm:$0xff] %vm141, %v94
      %143 = vst.msk [vmem:[#allocation2 + $0xa] sm:$0xff] %vm141, %v96
      %144 = vst.msk [vmem:[#allocation2 + $0x1a] sm:$0xff] %vm141, %v98
      %145 = vst.msk [vmem:[#allocation2 + $0x22] sm:$0xff] %vm141, %v100
      %146 = vst.msk [vmem:[#allocation2 + $0x32] sm:$0xff] %vm141, %v102
      %147 = vst.msk [vmem:[#allocation2 + $0x3a] sm:$0xff] %vm141, %v104
      %148 = vst.msk [vmem:[#allocation2 + $0x4a] sm:$0xff] %vm141, %v106
      %149 = vst.msk [vmem:[#allocation2 + $0x52] sm:$0xff] %vm141, %v108
      %150 = vst.msk [vmem:[#allocation2 + $0x62] sm:$0xff] %vm141, %v110
      %151 = vst.msk [vmem:[#allocation2 + $0x6a] sm:$0xff] %vm141, %v112
      %152 = vst.msk [vmem:[#allocation2 + $0x7a] sm:$0xff] %vm141, %v114
      %153 = vst.msk [vmem:[#allocation2 + $0x82] sm:$0xff] %vm141, %v116
      %154 = vst.msk [vmem:[#allocation2 + $0x92] sm:$0xff] %vm141, %v118
      %155 = vst.msk [vmem:[#allocation2 + $0x9a] sm:$0xff] %vm141, %v120
      %156 = vst.msk [vmem:[#allocation2 + $0xaa] sm:$0xff] %vm141, %v122
      %157 = vst.msk [vmem:[#allocation2 + $0xb2] sm:$0xff] %vm141, %v124
    $region21: #{multi_scale_block.1} parent=1 // pred_fallthru
      _
    %s158 = smul.u32 0, 16
    %s159 = scalar_lea.vmem [#allocation2], %s158
    %v160 = vld [vmem:[%s159] sm:$0xff]
    %v161 = vld [vmem:[%s159 + $0x8] sm:$0xff]
    %v162 = vld [vmem:[%s159 + $0x18] sm:$0xff]
    %v163 = vld [vmem:[%s159 + $0x20] sm:$0xff]
    %v164 = vld [vmem:[%s159 + $0x30] sm:$0xff]
    %v165 = vld [vmem:[%s159 + $0x38] sm:$0xff]
    %v166 = vld [vmem:[%s159 + $0x48] sm:$0xff]
    %v167 = vld [vmem:[%s159 + $0x50] sm:$0xff]
    %v168 = vrot.slane %v164, 4
    %vm169 = vcmask 1047556
    %v170 = vsel %vm169, %v168, %v160
    %v171 = vrot.slane %v160, 4
    %v172 = vsel %vm169, %v164, %v171
    %v174 = vunpack.c.l.s4 1983009808
    %v175 = vunpack.c.0.s8 %v174
    %v176 = vperm.slane %v170, %v175
    %v178 = vunpack.c.l.s4 1983009808
    %v179 = vunpack.c.0.s8 %v178
    %v180 = vperm.slane %v172, %v179
    %v181 = vrot.slane %v166, 4
    %v182 = vsel %vm169, %v181, %v162
    %v183 = vrot.slane %v162, 4
    %v184 = vsel %vm169, %v166, %v183
    %v186 = vunpack.c.l.s4 1983009808
    %v187 = vunpack.c.0.s8 %v186
    %v188 = vperm.slane %v182, %v187
    %v190 = vunpack.c.l.s4 1983009808
    %v191 = vunpack.c.0.s8 %v190
    %v192 = vperm.slane %v184, %v191
    %v193 = vrot.slane %v188, 4
    %v194 = vsel %vm169, %v193, %v176
    %v195 = vrot.slane %v176, 4
    %v196 = vsel %vm169, %v188, %v195
    %v198 = vunpack.c.l.s4 1934713408
    %v199 = vunpack.c.0.s8 %v198
    %v200 = vperm.slane %v194, %v199
    %v202 = vunpack.c.l.s4 1934713408
    %v203 = vunpack.c.0.s8 %v202
    %v204 = vperm.slane %v196, %v203
    %v205 = vrot.slane %v192, 4
    %v206 = vsel %vm169, %v205, %v180
    %v207 = vrot.slane %v180, 4
    %v208 = vsel %vm169, %v192, %v207
    %v210 = vunpack.c.l.s4 1934713408
    %v211 = vunpack.c.0.s8 %v210
    %v212 = vperm.slane %v206, %v211
    %v214 = vunpack.c.l.s4 1934713408
    %v215 = vunpack.c.0.s8 %v214
    %v216 = vperm.slane %v208, %v215
    %v217 = vrot.slane %v200, 4
    %v218 = vsel %vm169, 0.0, %v217
    %v219 = vrot.slane %v204, 4
    %v220 = vsel %vm169, 0.0, %v219
    %v221 = vrot.slane %v212, 4
    %v222 = vsel %vm169, 0.0, %v221
    %v223 = vrot.slane %v216, 4
    %v224 = vsel %vm169, 0.0, %v223
    %v225 = vrot.slane %v165, 4
    %v226 = vsel %vm169, %v225, %v161
    %v227 = vrot.slane %v161, 4
    %v228 = vsel %vm169, %v165, %v227
    %v230 = vunpack.c.l.s4 1983009808
    %v231 = vunpack.c.0.s8 %v230
    %v232 = vperm.slane %v226, %v231
    %v234 = vunpack.c.l.s4 1983009808
    %v235 = vunpack.c.0.s8 %v234
    %v236 = vperm.slane %v228, %v235
    %v237 = vrot.slane %v167, 4
    %v238 = vsel %vm169, %v237, %v163
    %v239 = vrot.slane %v163, 4
    %v240 = vsel %vm169, %v167, %v239
    %v242 = vunpack.c.l.s4 1983009808
    %v243 = vunpack.c.0.s8 %v242
    %v244 = vperm.slane %v238, %v243
    %v246 = vunpack.c.l.s4 1983009808
    %v247 = vunpack.c.0.s8 %v246
    %v248 = vperm.slane %v240, %v247
    %v249 = vrot.slane %v244, 4
    %v250 = vsel %vm169, %v249, %v232
    %v251 = vrot.slane %v232, 4
    %v252 = vsel %vm169, %v244, %v251
    %v254 = vunpack.c.l.s4 1934713408
    %v255 = vunpack.c.0.s8 %v254
    %v256 = vperm.slane %v250, %v255
    %v258 = vunpack.c.l.s4 1934713408
    %v259 = vunpack.c.0.s8 %v258
    %v260 = vperm.slane %v252, %v259
    %v261 = vrot.slane %v248, 4
    %v262 = vsel %vm169, %v261, %v236
    %v263 = vrot.slane %v236, 4
    %v264 = vsel %vm169, %v248, %v263
    %v266 = vunpack.c.l.s4 1934713408
    %v267 = vunpack.c.0.s8 %v266
    %v268 = vperm.slane %v262, %v267
    %v270 = vunpack.c.l.s4 1934713408
    %v271 = vunpack.c.0.s8 %v270
    %v272 = vperm.slane %v264, %v271
    %v273 = vrot.slane %v256, 4
    %v274 = vsel %vm169, 0.0, %v273
    %v275 = vrot.slane %v260, 4
    %v276 = vsel %vm169, 0.0, %v275
    %v277 = vrot.slane %v268, 4
    %v278 = vsel %vm169, 0.0, %v277
    %v279 = vrot.slane %v272, 4
    %v280 = vsel %vm169, 0.0, %v279
    %282 = vrot.lane.b32.xlu0 %v218, 16
    %v283 = vpop.permute.xlu0 %282
    %286 = vrot.lane.b32.xlu0 %v204, 32
    %v287 = vpop.permute.xlu0 %286
    %290 = vrot.lane.b32.xlu0 %v220, 48
    %v291 = vpop.permute.xlu0 %290
    %294 = vrot.lane.b32.xlu0 %v212, 64
    %v295 = vpop.permute.xlu0 %294
    %298 = vrot.lane.b32.xlu0 %v222, 80
    %v299 = vpop.permute.xlu0 %298
    %302 = vrot.lane.b32.xlu0 %v216, 96
    %v303 = vpop.permute.xlu0 %302
    %306 = vrot.lane.b32.xlu0 %v224, 112
    %v307 = vpop.permute.xlu0 %306
    %310 = vrot.lane.b32.xlu0 %v274, 16
    %v311 = vpop.permute.xlu0 %310
    %314 = vrot.lane.b32.xlu0 %v260, 32
    %v315 = vpop.permute.xlu0 %314
    %318 = vrot.lane.b32.xlu0 %v276, 48
    %v319 = vpop.permute.xlu0 %318
    %322 = vrot.lane.b32.xlu0 %v268, 64
    %v323 = vpop.permute.xlu0 %322
    %326 = vrot.lane.b32.xlu0 %v278, 80
    %v327 = vpop.permute.xlu0 %326
    %330 = vrot.lane.b32.xlu0 %v272, 96
    %v331 = vpop.permute.xlu0 %330
    %334 = vrot.lane.b32.xlu0 %v280, 112
    %v335 = vpop.permute.xlu0 %334
    %vm337 = vcmask 130048
    %v338 = vsel %vm337, %v200, %v283
    %vm339 = vcmask 261120
    %v340 = vsel %vm339, %v338, %v287
    %vm341 = vcmask 392192
    %v342 = vsel %vm341, %v340, %v291
    %vm343 = vcmask 523264
    %v344 = vsel %vm343, %v342, %v295
    %vm345 = vcmask 654336
    %v346 = vsel %vm345, %v344, %v299
    %vm347 = vcmask 785408
    %v348 = vsel %vm347, %v346, %v303
    %vm349 = vcmask 916480
    %v350 = vsel %vm349, %v348, %v307
    %v351 = vsel %vm337, %v256, %v311
    %v352 = vsel %vm339, %v351, %v315
    %v353 = vsel %vm341, %v352, %v319
    %v354 = vsel %vm343, %v353, %v323
    %v355 = vsel %vm345, %v354, %v327
    %v356 = vsel %vm347, %v355, %v331
    %v357 = vsel %vm349, %v356, %v335
    %v358 = vpack.c.bf16 %v357, %v350
    %v360 = vunpack.c.l.b16 %v358
    %v361 = vunpack.c.h.b16 %v358
    %v362 = vpack.c.b16 %v360, %v360
    %v363 = vpack.c.b16 %v361, %v361
    %vm364 = vcmask 1041408
    %v367 = vsel %vm364, %v362, 0
    %v369 = vsel %vm364, %v363, 0
    %v372 = vunpack.c.l.b16 %v367
    %v373 = vunpack.c.l.b16 %v369
    %v374 = vpack.c.b16 %v373, %v372
    %376 = vst [vmem:[#allocation3] sm:$0xff] %v374
    %v377 = vld [vmem:[%s159] sm:$0xff]
    %v378 = vld [vmem:[%s159 + $0x8] sm:$0xff]
    %v379 = vld [vmem:[%s159 + $0x18] sm:$0xff]
    %v380 = vld [vmem:[%s159 + $0x20] sm:$0xff]
    %v381 = vld [vmem:[%s159 + $0x30] sm:$0xff]
    %v382 = vld [vmem:[%s159 + $0x38] sm:$0xff]
    %v383 = vld [vmem:[%s159 + $0x48] sm:$0xff]
    %v384 = vld [vmem:[%s159 + $0x50] sm:$0xff]
    %393 = vrot.lane.b32.xlu0 %v377, 127
    %v394 = vpop.permute.xlu0 %393
    %395 = vrot.lane.b32.xlu0 %v378, 127
    %v396 = vpop.permute.xlu0 %395
    %397 = vrot.lane.b32.xlu0 %v379, 127
    %v398 = vpop.permute.xlu0 %397
    %399 = vrot.lane.b32.xlu0 %v380, 127
    %v400 = vpop.permute.xlu0 %399
    %401 = vrot.lane.b32.xlu0 %v381, 127
    %v402 = vpop.permute.xlu0 %401
    %403 = vrot.lane.b32.xlu0 %v382, 127
    %v404 = vpop.permute.xlu0 %403
    %405 = vrot.lane.b32.xlu0 %v383, 127
    %v406 = vpop.permute.xlu0 %405
    %407 = vrot.lane.b32.xlu0 %v384, 127
    %v408 = vpop.permute.xlu0 %407
    %v417 = vrot.slane %v402, 4
    %v418 = vsel %vm169, %v417, %v394
    %v419 = vrot.slane %v394, 4
    %v420 = vsel %vm169, %v402, %v419
    %v422 = vunpack.c.l.s4 1983009808
    %v423 = vunpack.c.0.s8 %v422
    %v424 = vperm.slane %v418, %v423
    %v426 = vunpack.c.l.s4 1983009808
    %v427 = vunpack.c.0.s8 %v426
    %v428 = vperm.slane %v420, %v427
    %v429 = vrot.slane %v406, 4
    %v430 = vsel %vm169, %v429, %v398
    %v431 = vrot.slane %v398, 4
    %v432 = vsel %vm169, %v406, %v431
    %v434 = vunpack.c.l.s4 1983009808
    %v435 = vunpack.c.0.s8 %v434
    %v436 = vperm.slane %v430, %v435
    %v438 = vunpack.c.l.s4 1983009808
    %v439 = vunpack.c.0.s8 %v438
    %v440 = vperm.slane %v432, %v439
    %v441 = vrot.slane %v436, 4
    %v442 = vsel %vm169, %v441, %v424
    %v443 = vrot.slane %v424, 4
    %v444 = vsel %vm169, %v436, %v443
    %v446 = vunpack.c.l.s4 1934713408
    %v447 = vunpack.c.0.s8 %v446
    %v448 = vperm.slane %v442, %v447
    %v450 = vunpack.c.l.s4 1934713408
    %v451 = vunpack.c.0.s8 %v450
    %v452 = vperm.slane %v444, %v451
    %v453 = vrot.slane %v440, 4
    %v454 = vsel %vm169, %v453, %v428
    %v455 = vrot.slane %v428, 4
    %v456 = vsel %vm169, %v440, %v455
    %v458 = vunpack.c.l.s4 1934713408
    %v459 = vunpack.c.0.s8 %v458
    %v460 = vperm.slane %v454, %v459
    %v462 = vunpack.c.l.s4 1934713408
    %v463 = vunpack.c.0.s8 %v462
    %v464 = vperm.slane %v456, %v463
    %v465 = vrot.slane %v448, 4
    %v466 = vsel %vm169, 0.0, %v465
    %v467 = vrot.slane %v452, 4
    %v468 = vsel %vm169, 0.0, %v467
    %v469 = vrot.slane %v460, 4
    %v470 = vsel %vm169, 0.0, %v469
    %v471 = vrot.slane %v464, 4
    %v472 = vsel %vm169, 0.0, %v471
    %v473 = vrot.slane %v404, 4
    %v474 = vsel %vm169, %v473, %v396
    %v475 = vrot.slane %v396, 4
    %v476 = vsel %vm169, %v404, %v475
    %v478 = vunpack.c.l.s4 1983009808
    %v479 = vunpack.c.0.s8 %v478
    %v480 = vperm.slane %v474, %v479
    %v482 = vunpack.c.l.s4 1983009808
    %v483 = vunpack.c.0.s8 %v482
    %v484 = vperm.slane %v476, %v483
    %v485 = vrot.slane %v408, 4
    %v486 = vsel %vm169, %v485, %v400
    %v487 = vrot.slane %v400, 4
    %v488 = vsel %vm169, %v408, %v487
    %v490 = vunpack.c.l.s4 1983009808
    %v491 = vunpack.c.0.s8 %v490
    %v492 = vperm.slane %v486, %v491
    %v494 = vunpack.c.l.s4 1983009808
    %v495 = vunpack.c.0.s8 %v494
    %v496 = vperm.slane %v488, %v495
    %v497 = vrot.slane %v492, 4
    %v498 = vsel %vm169, %v497, %v480
    %v499 = vrot.slane %v480, 4
    %v500 = vsel %vm169, %v492, %v499
    %v502 = vunpack.c.l.s4 1934713408
    %v503 = vunpack.c.0.s8 %v502
    %v504 = vperm.slane %v498, %v503
    %v506 = vunpack.c.l.s4 1934713408
    %v507 = vunpack.c.0.s8 %v506
    %v508 = vperm.slane %v500, %v507
    %v509 = vrot.slane %v496, 4
    %v510 = vsel %vm169, %v509, %v484
    %v511 = vrot.slane %v484, 4
    %v512 = vsel %vm169, %v496, %v511
    %v514 = vunpack.c.l.s4 1934713408
    %v515 = vunpack.c.0.s8 %v514
    %v516 = vperm.slane %v510, %v515
    %v518 = vunpack.c.l.s4 1934713408
    %v519 = vunpack.c.0.s8 %v518
    %v520 = vperm.slane %v512, %v519
    %v521 = vrot.slane %v504, 4
    %v522 = vsel %vm169, 0.0, %v521
    %v523 = vrot.slane %v508, 4
    %v524 = vsel %vm169, 0.0, %v523
    %v525 = vrot.slane %v516, 4
    %v526 = vsel %vm169, 0.0, %v525
    %v527 = vrot.slane %v520, 4
    %v528 = vsel %vm169, 0.0, %v527
    %530 = vrot.lane.b32.xlu0 %v466, 16
    %v531 = vpop.permute.xlu0 %530
    %534 = vrot.lane.b32.xlu0 %v452, 32
    %v535 = vpop.permute.xlu0 %534
    %538 = vrot.lane.b32.xlu0 %v468, 48
    %v539 = vpop.permute.xlu0 %538
    %542 = vrot.lane.b32.xlu0 %v460, 64
    %v543 = vpop.permute.xlu0 %542
    %546 = vrot.lane.b32.xlu0 %v470, 80
    %v547 = vpop.permute.xlu0 %546
    %550 = vrot.lane.b32.xlu0 %v464, 96
    %v551 = vpop.permute.xlu0 %550
    %554 = vrot.lane.b32.xlu0 %v472, 112
    %v555 = vpop.permute.xlu0 %554
    %558 = vrot.lane.b32.xlu0 %v522, 16
    %v559 = vpop.permute.xlu0 %558
    %562 = vrot.lane.b32.xlu0 %v508, 32
    %v563 = vpop.permute.xlu0 %562
    %566 = vrot.lane.b32.xlu0 %v524, 48
    %v567 = vpop.permute.xlu0 %566
    %570 = vrot.lane.b32.xlu0 %v516, 64
    %v571 = vpop.permute.xlu0 %570
    %574 = vrot.lane.b32.xlu0 %v526, 80
    %v575 = vpop.permute.xlu0 %574
    %578 = vrot.lane.b32.xlu0 %v520, 96
    %v579 = vpop.permute.xlu0 %578
    %582 = vrot.lane.b32.xlu0 %v528, 112
    %v583 = vpop.permute.xlu0 %582
    %v585 = vsel %vm337, %v448, %v531
    %v586 = vsel %vm339, %v585, %v535
    %v587 = vsel %vm341, %v586, %v539
    %v588 = vsel %vm343, %v587, %v543
    %v589 = vsel %vm345, %v588, %v547
    %v590 = vsel %vm347, %v589, %v551
    %v591 = vsel %vm349, %v590, %v555
    %v592 = vsel %vm337, %v504, %v559
    %v593 = vsel %vm339, %v592, %v563
    %v594 = vsel %vm341, %v593, %v567
    %v595 = vsel %vm343, %v594, %v571
    %v596 = vsel %vm345, %v595, %v575
    %v597 = vsel %vm347, %v596, %v579
    %v598 = vsel %vm349, %v597, %v583
    %v599 = vpack.c.bf16 %v598, %v591
    %v601 = vunpack.c.l.b16 %v599
    %v602 = vunpack.c.h.b16 %v599
    %v603 = vpack.c.b16 %v601, %v601
    %v604 = vpack.c.b16 %v602, %v602
    %v606 = vsel %vm364, %v603, 0
    %v608 = vsel %vm364, %v604, 0
    %v611 = vunpack.c.l.b16 %v606
    %v612 = vunpack.c.l.b16 %v608
    %v613 = vpack.c.b16 %v612, %v611
    %615 = vst [vmem:[#allocation3 + $0x10] sm:$0xff] %v613
    %v616 = vld [vmem:[%s159] sm:$0xff]
    %v617 = vld [vmem:[%s159 + $0x8] sm:$0xff]
    %v618 = vld [vmem:[%s159 + $0x18] sm:$0xff]
    %v619 = vld [vmem:[%s159 + $0x20] sm:$0xff]
    %v620 = vld [vmem:[%s159 + $0x30] sm:$0xff]
    %v621 = vld [vmem:[%s159 + $0x38] sm:$0xff]
    %v622 = vld [vmem:[%s159 + $0x48] sm:$0xff]
    %v623 = vld [vmem:[%s159 + $0x50] sm:$0xff]
    %632 = vrot.lane.b32.xlu0 %v616, 126
    %v633 = vpop.permute.xlu0 %632
    %634 = vrot.lane.b32.xlu0 %v617, 126
    %v635 = vpop.permute.xlu0 %634
    %636 = vrot.lane.b32.xlu0 %v618, 126
    %v637 = vpop.permute.xlu0 %636
    %638 = vrot.lane.b32.xlu0 %v619, 126
    %v639 = vpop.permute.xlu0 %638
    %640 = vrot.lane.b32.xlu0 %v620, 126
    %v641 = vpop.permute.xlu0 %640
    %642 = vrot.lane.b32.xlu0 %v621, 126
    %v643 = vpop.permute.xlu0 %642
    %644 = vrot.lane.b32.xlu0 %v622, 126
    %v645 = vpop.permute.xlu0 %644
    %646 = vrot.lane.b32.xlu0 %v623, 126
    %v647 = vpop.permute.xlu0 %646
    %v656 = vrot.slane %v641, 4
    %v657 = vsel %vm169, %v656, %v633
    %v658 = vrot.slane %v633, 4
    %v659 = vsel %vm169, %v641, %v658
    %v661 = vunpack.c.l.s4 1983009808
    %v662 = vunpack.c.0.s8 %v661
    %v663 = vperm.slane %v657, %v662
    %v665 = vunpack.c.l.s4 1983009808
    %v666 = vunpack.c.0.s8 %v665
    %v667 = vperm.slane %v659, %v666
    %v668 = vrot.slane %v645, 4
    %v669 = vsel %vm169, %v668, %v637
    %v670 = vrot.slane %v637, 4
    %v671 = vsel %vm169, %v645, %v670
    %v673 = vunpack.c.l.s4 1983009808
    %v674 = vunpack.c.0.s8 %v673
    %v675 = vperm.slane %v669, %v674
    %v677 = vunpack.c.l.s4 1983009808
    %v678 = vunpack.c.0.s8 %v677
    %v679 = vperm.slane %v671, %v678
    %v680 = vrot.slane %v675, 4
    %v681 = vsel %vm169, %v680, %v663
    %v682 = vrot.slane %v663, 4
    %v683 = vsel %vm169, %v675, %v682
    %v685 = vunpack.c.l.s4 1934713408
    %v686 = vunpack.c.0.s8 %v685
    %v687 = vperm.slane %v681, %v686
    %v689 = vunpack.c.l.s4 1934713408
    %v690 = vunpack.c.0.s8 %v689
    %v691 = vperm.slane %v683, %v690
    %v692 = vrot.slane %v679, 4
    %v693 = vsel %vm169, %v692, %v667
    %v694 = vrot.slane %v667, 4
    %v695 = vsel %vm169, %v679, %v694
    %v697 = vunpack.c.l.s4 1934713408
    %v698 = vunpack.c.0.s8 %v697
    %v699 = vperm.slane %v693, %v698
    %v701 = vunpack.c.l.s4 1934713408
    %v702 = vunpack.c.0.s8 %v701
    %v703 = vperm.slane %v695, %v702
    %v704 = vrot.slane %v687, 4
    %v705 = vsel %vm169, 0.0, %v704
    %v706 = vrot.slane %v691, 4
    %v707 = vsel %vm169, 0.0, %v706
    %v708 = vrot.slane %v699, 4
    %v709 = vsel %vm169, 0.0, %v708
    %v710 = vrot.slane %v703, 4
    %v711 = vsel %vm169, 0.0, %v710
    %v712 = vrot.slane %v643, 4
    %v713 = vsel %vm169, %v712, %v635
    %v714 = vrot.slane %v635, 4
    %v715 = vsel %vm169, %v643, %v714
    %v717 = vunpack.c.l.s4 1983009808
    %v718 = vunpack.c.0.s8 %v717
    %v719 = vperm.slane %v713, %v718
    %v721 = vunpack.c.l.s4 1983009808
    %v722 = vunpack.c.0.s8 %v721
    %v723 = vperm.slane %v715, %v722
    %v724 = vrot.slane %v647, 4
    %v725 = vsel %vm169, %v724, %v639
    %v726 = vrot.slane %v639, 4
    %v727 = vsel %vm169, %v647, %v726
    %v729 = vunpack.c.l.s4 1983009808
    %v730 = vunpack.c.0.s8 %v729
    %v731 = vperm.slane %v725, %v730
    %v733 = vunpack.c.l.s4 1983009808
    %v734 = vunpack.c.0.s8 %v733
    %v735 = vperm.slane %v727, %v734
    %v736 = vrot.slane %v731, 4
    %v737 = vsel %vm169, %v736, %v719
    %v738 = vrot.slane %v719, 4
    %v739 = vsel %vm169, %v731, %v738
    %v741 = vunpack.c.l.s4 1934713408
    %v742 = vunpack.c.0.s8 %v741
    %v743 = vperm.slane %v737, %v742
    %v745 = vunpack.c.l.s4 1934713408
    %v746 = vunpack.c.0.s8 %v745
    %v747 = vperm.slane %v739, %v746
    %v748 = vrot.slane %v735, 4
    %v749 = vsel %vm169, %v748, %v723
    %v750 = vrot.slane %v723, 4
    %v751 = vsel %vm169, %v735, %v750
    %v753 = vunpack.c.l.s4 1934713408
    %v754 = vunpack.c.0.s8 %v753
    %v755 = vperm.slane %v749, %v754
    %v757 = vunpack.c.l.s4 1934713408
    %v758 = vunpack.c.0.s8 %v757
    %v759 = vperm.slane %v751, %v758
    %v760 = vrot.slane %v743, 4
    %v761 = vsel %vm169, 0.0, %v760
    %v762 = vrot.slane %v747, 4
    %v763 = vsel %vm169, 0.0, %v762
    %v764 = vrot.slane %v755, 4
    %v765 = vsel %vm169, 0.0, %v764
    %v766 = vrot.slane %v759, 4
    %v767 = vsel %vm169, 0.0, %v766
    %769 = vrot.lane.b32.xlu0 %v705, 16
    %v770 = vpop.permute.xlu0 %769
    %773 = vrot.lane.b32.xlu0 %v691, 32
    %v774 = vpop.permute.xlu0 %773
    %777 = vrot.lane.b32.xlu0 %v707, 48
    %v778 = vpop.permute.xlu0 %777
    %781 = vrot.lane.b32.xlu0 %v699, 64
    %v782 = vpop.permute.xlu0 %781
    %785 = vrot.lane.b32.xlu0 %v709, 80
    %v786 = vpop.permute.xlu0 %785
    %789 = vrot.lane.b32.xlu0 %v703, 96
    %v790 = vpop.permute.xlu0 %789
    %793 = vrot.lane.b32.xlu0 %v711, 112
    %v794 = vpop.permute.xlu0 %793
    %797 = vrot.lane.b32.xlu0 %v761, 16
    %v798 = vpop.permute.xlu0 %797
    %801 = vrot.lane.b32.xlu0 %v747, 32
    %v802 = vpop.permute.xlu0 %801
    %805 = vrot.lane.b32.xlu0 %v763, 48
    %v806 = vpop.permute.xlu0 %805
    %809 = vrot.lane.b32.xlu0 %v755, 64
    %v810 = vpop.permute.xlu0 %809
    %813 = vrot.lane.b32.xlu0 %v765, 80
    %v814 = vpop.permute.xlu0 %813
    %817 = vrot.lane.b32.xlu0 %v759, 96
    %v818 = vpop.permute.xlu0 %817
    %821 = vrot.lane.b32.xlu0 %v767, 112
    %v822 = vpop.permute.xlu0 %821
    %v824 = vsel %vm337, %v687, %v770
    %v825 = vsel %vm339, %v824, %v774
    %v826 = vsel %vm341, %v825, %v778
    %v827 = vsel %vm343, %v826, %v782
    %v828 = vsel %vm345, %v827, %v786
    %v829 = vsel %vm347, %v828, %v790
    %v830 = vsel %vm349, %v829, %v794
    %v831 = vsel %vm337, %v743, %v798
    %v832 = vsel %vm339, %v831, %v802
    %v833 = vsel %vm341, %v832, %v806
    %v834 = vsel %vm343, %v833, %v810
    %v835 = vsel %vm345, %v834, %v814
    %v836 = vsel %vm347, %v835, %v818
    %v837 = vsel %vm349, %v836, %v822
    %v838 = vpack.c.bf16 %v837, %v830
    %v840 = vunpack.c.l.b16 %v838
    %v841 = vunpack.c.h.b16 %v838
    %v842 = vpack.c.b16 %v840, %v840
    %v843 = vpack.c.b16 %v841, %v841
    %v845 = vsel %vm364, %v842, 0
    %v847 = vsel %vm364, %v843, 0
    %v850 = vunpack.c.l.b16 %v845
    %v851 = vunpack.c.l.b16 %v847
    %v852 = vpack.c.b16 %v851, %v850
    %854 = vst [vmem:[#allocation3 + $0x20] sm:$0xff] %v852
    %v855 = vld [vmem:[%s159] sm:$0xff]
    %v856 = vld [vmem:[%s159 + $0x8] sm:$0xff]
    %v857 = vld [vmem:[%s159 + $0x18] sm:$0xff]
    %v858 = vld [vmem:[%s159 + $0x20] sm:$0xff]
    %v859 = vld [vmem:[%s159 + $0x30] sm:$0xff]
    %v860 = vld [vmem:[%s159 + $0x38] sm:$0xff]
    %v861 = vld [vmem:[%s159 + $0x48] sm:$0xff]
    %v862 = vld [vmem:[%s159 + $0x50] sm:$0xff]
    %871 = vrot.lane.b32.xlu0 %v855, 125
    %v872 = vpop.permute.xlu0 %871
    %873 = vrot.lane.b32.xlu0 %v856, 125
    %v874 = vpop.permute.xlu0 %873
    %875 = vrot.lane.b32.xlu0 %v857, 125
    %v876 = vpop.permute.xlu0 %875
    %877 = vrot.lane.b32.xlu0 %v858, 125
    %v878 = vpop.permute.xlu0 %877
    %879 = vrot.lane.b32.xlu0 %v859, 125
    %v880 = vpop.permute.xlu0 %879
    %881 = vrot.lane.b32.xlu0 %v860, 125
    %v882 = vpop.permute.xlu0 %881
    %883 = vrot.lane.b32.xlu0 %v861, 125
    %v884 = vpop.permute.xlu0 %883
    %885 = vrot.lane.b32.xlu0 %v862, 125
    %v886 = vpop.permute.xlu0 %885
    %v895 = vrot.slane %v880, 4
    %v896 = vsel %vm169, %v895, %v872
    %v897 = vrot.slane %v872, 4
    %v898 = vsel %vm169, %v880, %v897
    %v900 = vunpack.c.l.s4 1983009808
    %v901 = vunpack.c.0.s8 %v900
    %v902 = vperm.slane %v896, %v901
    %v904 = vunpack.c.l.s4 1983009808
    %v905 = vunpack.c.0.s8 %v904
    %v906 = vperm.slane %v898, %v905
    %v907 = vrot.slane %v884, 4
    %v908 = vsel %vm169, %v907, %v876
    %v909 = vrot.slane %v876, 4
    %v910 = vsel %vm169, %v884, %v909
    %v912 = vunpack.c.l.s4 1983009808
    %v913 = vunpack.c.0.s8 %v912
    %v914 = vperm.slane %v908, %v913
    %v916 = vunpack.c.l.s4 1983009808
    %v917 = vunpack.c.0.s8 %v916
    %v918 = vperm.slane %v910, %v917
    %v919 = vrot.slane %v914, 4
    %v920 = vsel %vm169, %v919, %v902
    %v921 = vrot.slane %v902, 4
    %v922 = vsel %vm169, %v914, %v921
    %v924 = vunpack.c.l.s4 1934713408
    %v925 = vunpack.c.0.s8 %v924
    %v926 = vperm.slane %v920, %v925
    %v928 = vunpack.c.l.s4 1934713408
    %v929 = vunpack.c.0.s8 %v928
    %v930 = vperm.slane %v922, %v929
    %v931 = vrot.slane %v918, 4
    %v932 = vsel %vm169, %v931, %v906
    %v933 = vrot.slane %v906, 4
    %v934 = vsel %vm169, %v918, %v933
    %v936 = vunpack.c.l.s4 1934713408
    %v937 = vunpack.c.0.s8 %v936
    %v938 = vperm.slane %v932, %v937
    %v940 = vunpack.c.l.s4 1934713408
    %v941 = vunpack.c.0.s8 %v940
    %v942 = vperm.slane %v934, %v941
    %v943 = vrot.slane %v926, 4
    %v944 = vsel %vm169, 0.0, %v943
    %v945 = vrot.slane %v930, 4
    %v946 = vsel %vm169, 0.0, %v945
    %v947 = vrot.slane %v938, 4
    %v948 = vsel %vm169, 0.0, %v947
    %v949 = vrot.slane %v942, 4
    %v950 = vsel %vm169, 0.0, %v949
    %v951 = vrot.slane %v882, 4
    %v952 = vsel %vm169, %v951, %v874
    %v953 = vrot.slane %v874, 4
    %v954 = vsel %vm169, %v882, %v953
    %v956 = vunpack.c.l.s4 1983009808
    %v957 = vunpack.c.0.s8 %v956
    %v958 = vperm.slane %v952, %v957
    %v960 = vunpack.c.l.s4 1983009808
    %v961 = vunpack.c.0.s8 %v960
    %v962 = vperm.slane %v954, %v961
    %v963 = vrot.slane %v886, 4
    %v964 = vsel %vm169, %v963, %v878
    %v965 = vrot.slane %v878, 4
    %v966 = vsel %vm169, %v886, %v965
    %v968 = vunpack.c.l.s4 1983009808
    %v969 = vunpack.c.0.s8 %v968
    %v970 = vperm.slane %v964, %v969
    %v972 = vunpack.c.l.s4 1983009808
    %v973 = vunpack.c.0.s8 %v972
    %v974 = vperm.slane %v966, %v973
    %v975 = vrot.slane %v970, 4
    %v976 = vsel %vm169, %v975, %v958
    %v977 = vrot.slane %v958, 4
    %v978 = vsel %vm169, %v970, %v977
    %v980 = vunpack.c.l.s4 1934713408
    %v981 = vunpack.c.0.s8 %v980
    %v982 = vperm.slane %v976, %v981
    %v984 = vunpack.c.l.s4 1934713408
    %v985 = vunpack.c.0.s8 %v984
    %v986 = vperm.slane %v978, %v985
    %v987 = vrot.slane %v974, 4
    %v988 = vsel %vm169, %v987, %v962
    %v989 = vrot.slane %v962, 4
    %v990 = vsel %vm169, %v974, %v989
    %v992 = vunpack.c.l.s4 1934713408
    %v993 = vunpack.c.0.s8 %v992
    %v994 = vperm.slane %v988, %v993
    %v996 = vunpack.c.l.s4 1934713408
    %v997 = vunpack.c.0.s8 %v996
    %v998 = vperm.slane %v990, %v997
    %v999 = vrot.slane %v982, 4
    %v1000 = vsel %vm169, 0.0, %v999
    %v1001 = vrot.slane %v986, 4
    %v1002 = vsel %vm169, 0.0, %v1001
    %v1003 = vrot.slane %v994, 4
    %v1004 = vsel %vm169, 0.0, %v1003
    %v1005 = vrot.slane %v998, 4
    %v1006 = vsel %vm169, 0.0, %v1005
    %1008 = vrot.lane.b32.xlu0 %v944, 16
    %v1009 = vpop.permute.xlu0 %1008
    %1012 = vrot.lane.b32.xlu0 %v930, 32
    %v1013 = vpop.permute.xlu0 %1012
    %1016 = vrot.lane.b32.xlu0 %v946, 48
    %v1017 = vpop.permute.xlu0 %1016
    %1020 = vrot.lane.b32.xlu0 %v938, 64
    %v1021 = vpop.permute.xlu0 %1020
    %1024 = vrot.lane.b32.xlu0 %v948, 80
    %v1025 = vpop.permute.xlu0 %1024
    %1028 = vrot.lane.b32.xlu0 %v942, 96
    %v1029 = vpop.permute.xlu0 %1028
    %1032 = vrot.lane.b32.xlu0 %v950, 112
    %v1033 = vpop.permute.xlu0 %1032
    %1036 = vrot.lane.b32.xlu0 %v1000, 16
    %v1037 = vpop.permute.xlu0 %1036
    %1040 = vrot.lane.b32.xlu0 %v986, 32
    %v1041 = vpop.permute.xlu0 %1040
    %1044 = vrot.lane.b32.xlu0 %v1002, 48
    %v1045 = vpop.permute.xlu0 %1044
    %1048 = vrot.lane.b32.xlu0 %v994, 64
    %v1049 = vpop.permute.xlu0 %1048
    %1052 = vrot.lane.b32.xlu0 %v1004, 80
    %v1053 = vpop.permute.xlu0 %1052
    %1056 = vrot.lane.b32.xlu0 %v998, 96
    %v1057 = vpop.permute.xlu0 %1056
    %1060 = vrot.lane.b32.xlu0 %v1006, 112
    %v1061 = vpop.permute.xlu0 %1060
    %v1063 = vsel %vm337, %v926, %v1009
    %v1064 = vsel %vm339, %v1063, %v1013
    %v1065 = vsel %vm341, %v1064, %v1017
    %v1066 = vsel %vm343, %v1065, %v1021
    %v1067 = vsel %vm345, %v1066, %v1025
    %v1068 = vsel %vm347, %v1067, %v1029
    %v1069 = vsel %vm349, %v1068, %v1033
    %v1070 = vsel %vm337, %v982, %v1037
    %v1071 = vsel %vm339, %v1070, %v1041
    %v1072 = vsel %vm341, %v1071, %v1045
    %v1073 = vsel %vm343, %v1072, %v1049
    %v1074 = vsel %vm345, %v1073, %v1053
    %v1075 = vsel %vm347, %v1074, %v1057
    %v1076 = vsel %vm349, %v1075, %v1061
    %v1077 = vpack.c.bf16 %v1076, %v1069
    %v1079 = vunpack.c.l.b16 %v1077
    %v1080 = vunpack.c.h.b16 %v1077
    %v1081 = vpack.c.b16 %v1079, %v1079
    %v1082 = vpack.c.b16 %v1080, %v1080
    %v1084 = vsel %vm364, %v1081, 0
    %v1086 = vsel %vm364, %v1082, 0
    %v1089 = vunpack.c.l.b16 %v1084
    %v1090 = vunpack.c.l.b16 %v1086
    %v1091 = vpack.c.b16 %v1090, %v1089
    %1093 = vst [vmem:[#allocation3 + $0x30] sm:$0xff] %v1091
    %v1094 = vld [vmem:[%s159] sm:$0xff]
    %v1095 = vld [vmem:[%s159 + $0x8] sm:$0xff]
    %v1096 = vld [vmem:[%s159 + $0x18] sm:$0xff]
    %v1097 = vld [vmem:[%s159 + $0x20] sm:$0xff]
    %v1098 = vld [vmem:[%s159 + $0x30] sm:$0xff]
    %v1099 = vld [vmem:[%s159 + $0x38] sm:$0xff]
    %v1100 = vld [vmem:[%s159 + $0x48] sm:$0xff]
    %v1101 = vld [vmem:[%s159 + $0x50] sm:$0xff]
    %1110 = vrot.lane.b32.xlu0 %v1094, 124
    %v1111 = vpop.permute.xlu0 %1110
    %1112 = vrot.lane.b32.xlu0 %v1095, 124
    %v1113 = vpop.permute.xlu0 %1112
    %1114 = vrot.lane.b32.xlu0 %v1096, 124
    %v1115 = vpop.permute.xlu0 %1114
    %1116 = vrot.lane.b32.xlu0 %v1097, 124
    %v1117 = vpop.permute.xlu0 %1116
    %1118 = vrot.lane.b32.xlu0 %v1098, 124
    %v1119 = vpop.permute.xlu0 %1118
    %1120 = vrot.lane.b32.xlu0 %v1099, 124
    %v1121 = vpop.permute.xlu0 %1120
    %1122 = vrot.lane.b32.xlu0 %v1100, 124
    %v1123 = vpop.permute.xlu0 %1122
    %1124 = vrot.lane.b32.xlu0 %v1101, 124
    %v1125 = vpop.permute.xlu0 %1124
    %v1134 = vrot.slane %v1119, 4
    %v1135 = vsel %vm169, %v1134, %v1111
    %v1136 = vrot.slane %v1111, 4
    %v1137 = vsel %vm169, %v1119, %v1136
    %v1139 = vunpack.c.l.s4 1983009808
    %v1140 = vunpack.c.0.s8 %v1139
    %v1141 = vperm.slane %v1135, %v1140
    %v1143 = vunpack.c.l.s4 1983009808
    %v1144 = vunpack.c.0.s8 %v1143
    %v1145 = vperm.slane %v1137, %v1144
    %v1146 = vrot.slane %v1123, 4
    %v1147 = vsel %vm169, %v1146, %v1115
    %v1148 = vrot.slane %v1115, 4
    %v1149 = vsel %vm169, %v1123, %v1148
    %v1151 = vunpack.c.l.s4 1983009808
    %v1152 = vunpack.c.0.s8 %v1151
    %v1153 = vperm.slane %v1147, %v1152
    %v1155 = vunpack.c.l.s4 1983009808
    %v1156 = vunpack.c.0.s8 %v1155
    %v1157 = vperm.slane %v1149, %v1156
    %v1158 = vrot.slane %v1153, 4
    %v1159 = vsel %vm169, %v1158, %v1141
    %v1160 = vrot.slane %v1141, 4
    %v1161 = vsel %vm169, %v1153, %v1160
    %v1163 = vunpack.c.l.s4 1934713408
    %v1164 = vunpack.c.0.s8 %v1163
    %v1165 = vperm.slane %v1159, %v1164
    %v1167 = vunpack.c.l.s4 1934713408
    %v1168 = vunpack.c.0.s8 %v1167
    %v1169 = vperm.slane %v1161, %v1168
    %v1170 = vrot.slane %v1157, 4
    %v1171 = vsel %vm169, %v1170, %v1145
    %v1172 = vrot.slane %v1145, 4
    %v1173 = vsel %vm169, %v1157, %v1172
    %v1175 = vunpack.c.l.s4 1934713408
    %v1176 = vunpack.c.0.s8 %v1175
    %v1177 = vperm.slane %v1171, %v1176
    %v1179 = vunpack.c.l.s4 1934713408
    %v1180 = vunpack.c.0.s8 %v1179
    %v1181 = vperm.slane %v1173, %v1180
    %v1182 = vrot.slane %v1165, 4
    %v1183 = vsel %vm169, 0.0, %v1182
    %v1184 = vrot.slane %v1169, 4
    %v1185 = vsel %vm169, 0.0, %v1184
    %v1186 = vrot.slane %v1177, 4
    %v1187 = vsel %vm169, 0.0, %v1186
    %v1188 = vrot.slane %v1181, 4
    %v1189 = vsel %vm169, 0.0, %v1188
    %v1190 = vrot.slane %v1121, 4
    %v1191 = vsel %vm169, %v1190, %v1113
    %v1192 = vrot.slane %v1113, 4
    %v1193 = vsel %vm169, %v1121, %v1192
    %v1195 = vunpack.c.l.s4 1983009808
    %v1196 = vunpack.c.0.s8 %v1195
    %v1197 = vperm.slane %v1191, %v1196
    %v1199 = vunpack.c.l.s4 1983009808
    %v1200 = vunpack.c.0.s8 %v1199
    %v1201 = vperm.slane %v1193, %v1200
    %v1202 = vrot.slane %v1125, 4
    %v1203 = vsel %vm169, %v1202, %v1117
    %v1204 = vrot.slane %v1117, 4
    %v1205 = vsel %vm169, %v1125, %v1204
    %v1207 = vunpack.c.l.s4 1983009808
    %v1208 = vunpack.c.0.s8 %v1207
    %v1209 = vperm.slane %v1203, %v1208
    %v1211 = vunpack.c.l.s4 1983009808
    %v1212 = vunpack.c.0.s8 %v1211
    %v1213 = vperm.slane %v1205, %v1212
    %v1214 = vrot.slane %v1209, 4
    %v1215 = vsel %vm169, %v1214, %v1197
    %v1216 = vrot.slane %v1197, 4
    %v1217 = vsel %vm169, %v1209, %v1216
    %v1219 = vunpack.c.l.s4 1934713408
    %v1220 = vunpack.c.0.s8 %v1219
    %v1221 = vperm.slane %v1215, %v1220
    %v1223 = vunpack.c.l.s4 1934713408
    %v1224 = vunpack.c.0.s8 %v1223
    %v1225 = vperm.slane %v1217, %v1224
    %v1226 = vrot.slane %v1213, 4
    %v1227 = vsel %vm169, %v1226, %v1201
    %v1228 = vrot.slane %v1201, 4
    %v1229 = vsel %vm169, %v1213, %v1228
    %v1231 = vunpack.c.l.s4 1934713408
    %v1232 = vunpack.c.0.s8 %v1231
    %v1233 = vperm.slane %v1227, %v1232
    %v1235 = vunpack.c.l.s4 1934713408
    %v1236 = vunpack.c.0.s8 %v1235
    %v1237 = vperm.slane %v1229, %v1236
    %v1238 = vrot.slane %v1221, 4
    %v1239 = vsel %vm169, 0.0, %v1238
    %v1240 = vrot.slane %v1225, 4
    %v1241 = vsel %vm169, 0.0, %v1240
    %v1242 = vrot.slane %v1233, 4
    %v1243 = vsel %vm169, 0.0, %v1242
    %v1244 = vrot.slane %v1237, 4
    %v1245 = vsel %vm169, 0.0, %v1244
    %1247 = vrot.lane.b32.xlu0 %v1183, 16
    %v1248 = vpop.permute.xlu0 %1247
    %1251 = vrot.lane.b32.xlu0 %v1169, 32
    %v1252 = vpop.permute.xlu0 %1251
    %1255 = vrot.lane.b32.xlu0 %v1185, 48
    %v1256 = vpop.permute.xlu0 %1255
    %1259 = vrot.lane.b32.xlu0 %v1177, 64
    %v1260 = vpop.permute.xlu0 %1259
    %1263 = vrot.lane.b32.xlu0 %v1187, 80
    %v1264 = vpop.permute.xlu0 %1263
    %1267 = vrot.lane.b32.xlu0 %v1181, 96
    %v1268 = vpop.permute.xlu0 %1267
    %1271 = vrot.lane.b32.xlu0 %v1189, 112
    %v1272 = vpop.permute.xlu0 %1271
    %1275 = vrot.lane.b32.xlu0 %v1239, 16
    %v1276 = vpop.permute.xlu0 %1275
    %1279 = vrot.lane.b32.xlu0 %v1225, 32
    %v1280 = vpop.permute.xlu0 %1279
    %1283 = vrot.lane.b32.xlu0 %v1241, 48
    %v1284 = vpop.permute.xlu0 %1283
    %1287 = vrot.lane.b32.xlu0 %v1233, 64
    %v1288 = vpop.permute.xlu0 %1287
    %1291 = vrot.lane.b32.xlu0 %v1243, 80
    %v1292 = vpop.permute.xlu0 %1291
    %1295 = vrot.lane.b32.xlu0 %v1237, 96
    %v1296 = vpop.permute.xlu0 %1295
    %1299 = vrot.lane.b32.xlu0 %v1245, 112
    %v1300 = vpop.permute.xlu0 %1299
    %v1302 = vsel %vm337, %v1165, %v1248
    %v1303 = vsel %vm339, %v1302, %v1252
    %v1304 = vsel %vm341, %v1303, %v1256
    %v1305 = vsel %vm343, %v1304, %v1260
    %v1306 = vsel %vm345, %v1305, %v1264
    %v1307 = vsel %vm347, %v1306, %v1268
    %v1308 = vsel %vm349, %v1307, %v1272
    %v1309 = vsel %vm337, %v1221, %v1276
    %v1310 = vsel %vm339, %v1309, %v1280
    %v1311 = vsel %vm341, %v1310, %v1284
    %v1312 = vsel %vm343, %v1311, %v1288
    %v1313 = vsel %vm345, %v1312, %v1292
    %v1314 = vsel %vm347, %v1313, %v1296
    %v1315 = vsel %vm349, %v1314, %v1300
    %v1316 = vpack.c.bf16 %v1315, %v1308
    %v1318 = vunpack.c.l.b16 %v1316
    %v1319 = vunpack.c.h.b16 %v1316
    %v1320 = vpack.c.b16 %v1318, %v1318
    %v1321 = vpack.c.b16 %v1319, %v1319
    %v1323 = vsel %vm364, %v1320, 0
    %v1325 = vsel %vm364, %v1321, 0
    %v1328 = vunpack.c.l.b16 %v1323
    %v1329 = vunpack.c.l.b16 %v1325
    %v1330 = vpack.c.b16 %v1329, %v1328
    %1332 = vst [vmem:[#allocation3 + $0x40] sm:$0xff] %v1330
    %s1333 = sadd.s32 %s158, 1
    %s1334 = scalar_lea.vmem [#allocation2], %s1333
    %v1335 = vld [vmem:[%s1334] sm:$0xff]
    %v1336 = vld [vmem:[%s1334 + $0x8] sm:$0xff]
    %v1337 = vld [vmem:[%s1334 + $0x18] sm:$0xff]
    %v1338 = vld [vmem:[%s1334 + $0x20] sm:$0xff]
    %v1339 = vld [vmem:[%s1334 + $0x30] sm:$0xff]
    %v1340 = vld [vmem:[%s1334 + $0x38] sm:$0xff]
    %v1341 = vld [vmem:[%s1334 + $0x48] sm:$0xff]
    %v1342 = vld [vmem:[%s1334 + $0x50] sm:$0xff]
    %v1343 = vrot.slane %v1339, 4
    %v1344 = vsel %vm169, %v1343, %v1335
    %v1345 = vrot.slane %v1335, 4
    %v1346 = vsel %vm169, %v1339, %v1345
    %v1348 = vunpack.c.l.s4 1983009808
    %v1349 = vunpack.c.0.s8 %v1348
    %v1350 = vperm.slane %v1344, %v1349
    %v1352 = vunpack.c.l.s4 1983009808
    %v1353 = vunpack.c.0.s8 %v1352
    %v1354 = vperm.slane %v1346, %v1353
    %v1355 = vrot.slane %v1341, 4
    %v1356 = vsel %vm169, %v1355, %v1337
    %v1357 = vrot.slane %v1337, 4
    %v1358 = vsel %vm169, %v1341, %v1357
    %v1360 = vunpack.c.l.s4 1983009808
    %v1361 = vunpack.c.0.s8 %v1360
    %v1362 = vperm.slane %v1356, %v1361
    %v1364 = vunpack.c.l.s4 1983009808
    %v1365 = vunpack.c.0.s8 %v1364
    %v1366 = vperm.slane %v1358, %v1365
    %v1367 = vrot.slane %v1362, 4
    %v1368 = vsel %vm169, %v1367, %v1350
    %v1369 = vrot.slane %v1350, 4
    %v1370 = vsel %vm169, %v1362, %v1369
    %v1372 = vunpack.c.l.s4 1934713408
    %v1373 = vunpack.c.0.s8 %v1372
    %v1374 = vperm.slane %v1368, %v1373
    %v1376 = vunpack.c.l.s4 1934713408
    %v1377 = vunpack.c.0.s8 %v1376
    %v1378 = vperm.slane %v1370, %v1377
    %v1379 = vrot.slane %v1366, 4
    %v1380 = vsel %vm169, %v1379, %v1354
    %v1381 = vrot.slane %v1354, 4
    %v1382 = vsel %vm169, %v1366, %v1381
    %v1384 = vunpack.c.l.s4 1934713408
    %v1385 = vunpack.c.0.s8 %v1384
    %v1386 = vperm.slane %v1380, %v1385
    %v1388 = vunpack.c.l.s4 1934713408
    %v1389 = vunpack.c.0.s8 %v1388
    %v1390 = vperm.slane %v1382, %v1389
    %v1391 = vrot.slane %v1374, 4
    %v1392 = vsel %vm169, 0.0, %v1391
    %v1393 = vrot.slane %v1378, 4
    %v1394 = vsel %vm169, 0.0, %v1393
    %v1395 = vrot.slane %v1386, 4
    %v1396 = vsel %vm169, 0.0, %v1395
    %v1397 = vrot.slane %v1390, 4
    %v1398 = vsel %vm169, 0.0, %v1397
    %v1399 = vrot.slane %v1340, 4
    %v1400 = vsel %vm169, %v1399, %v1336
    %v1401 = vrot.slane %v1336, 4
    %v1402 = vsel %vm169, %v1340, %v1401
    %v1404 = vunpack.c.l.s4 1983009808
    %v1405 = vunpack.c.0.s8 %v1404
    %v1406 = vperm.slane %v1400, %v1405
    %v1408 = vunpack.c.l.s4 1983009808
    %v1409 = vunpack.c.0.s8 %v1408
    %v1410 = vperm.slane %v1402, %v1409
    %v1411 = vrot.slane %v1342, 4
    %v1412 = vsel %vm169, %v1411, %v1338
    %v1413 = vrot.slane %v1338, 4
    %v1414 = vsel %vm169, %v1342, %v1413
    %v1416 = vunpack.c.l.s4 1983009808
    %v1417 = vunpack.c.0.s8 %v1416
    %v1418 = vperm.slane %v1412, %v1417
    %v1420 = vunpack.c.l.s4 1983009808
    %v1421 = vunpack.c.0.s8 %v1420
    %v1422 = vperm.slane %v1414, %v1421
    %v1423 = vrot.slane %v1418, 4
    %v1424 = vsel %vm169, %v1423, %v1406
    %v1425 = vrot.slane %v1406, 4
    %v1426 = vsel %vm169, %v1418, %v1425
    %v1428 = vunpack.c.l.s4 1934713408
    %v1429 = vunpack.c.0.s8 %v1428
    %v1430 = vperm.slane %v1424, %v1429
    %v1432 = vunpack.c.l.s4 1934713408
    %v1433 = vunpack.c.0.s8 %v1432
    %v1434 = vperm.slane %v1426, %v1433
    %v1435 = vrot.slane %v1422, 4
    %v1436 = vsel %vm169, %v1435, %v1410
    %v1437 = vrot.slane %v1410, 4
    %v1438 = vsel %vm169, %v1422, %v1437
    %v1440 = vunpack.c.l.s4 1934713408
    %v1441 = vunpack.c.0.s8 %v1440
    %v1442 = vperm.slane %v1436, %v1441
    %v1444 = vunpack.c.l.s4 1934713408
    %v1445 = vunpack.c.0.s8 %v1444
    %v1446 = vperm.slane %v1438, %v1445
    %v1447 = vrot.slane %v1430, 4
    %v1448 = vsel %vm169, 0.0, %v1447
    %v1449 = vrot.slane %v1434, 4
    %v1450 = vsel %vm169, 0.0, %v1449
    %v1451 = vrot.slane %v1442, 4
    %v1452 = vsel %vm169, 0.0, %v1451
    %v1453 = vrot.slane %v1446, 4
    %v1454 = vsel %vm169, 0.0, %v1453
    %1456 = vrot.lane.b32.xlu0 %v1392, 16
    %v1457 = vpop.permute.xlu0 %1456
    %1460 = vrot.lane.b32.xlu0 %v1378, 32
    %v1461 = vpop.permute.xlu0 %1460
    %1464 = vrot.lane.b32.xlu0 %v1394, 48
    %v1465 = vpop.permute.xlu0 %1464
    %1468 = vrot.lane.b32.xlu0 %v1386, 64
    %v1469 = vpop.permute.xlu0 %1468
    %1472 = vrot.lane.b32.xlu0 %v1396, 80
    %v1473 = vpop.permute.xlu0 %1472
    %1476 = vrot.lane.b32.xlu0 %v1390, 96
    %v1477 = vpop.permute.xlu0 %1476
    %1480 = vrot.lane.b32.xlu0 %v1398, 112
    %v1481 = vpop.permute.xlu0 %1480
    %1484 = vrot.lane.b32.xlu0 %v1448, 16
    %v1485 = vpop.permute.xlu0 %1484
    %1488 = vrot.lane.b32.xlu0 %v1434, 32
    %v1489 = vpop.permute.xlu0 %1488
    %1492 = vrot.lane.b32.xlu0 %v1450, 48
    %v1493 = vpop.permute.xlu0 %1492
    %1496 = vrot.lane.b32.xlu0 %v1442, 64
    %v1497 = vpop.permute.xlu0 %1496
    %1500 = vrot.lane.b32.xlu0 %v1452, 80
    %v1501 = vpop.permute.xlu0 %1500
    %1504 = vrot.lane.b32.xlu0 %v1446, 96
    %v1505 = vpop.permute.xlu0 %1504
    %1508 = vrot.lane.b32.xlu0 %v1454, 112
    %v1509 = vpop.permute.xlu0 %1508
    %v1511 = vsel %vm337, %v1374, %v1457
    %v1512 = vsel %vm339, %v1511, %v1461
    %v1513 = vsel %vm341, %v1512, %v1465
    %v1514 = vsel %vm343, %v1513, %v1469
    %v1515 = vsel %vm345, %v1514, %v1473
    %v1516 = vsel %vm347, %v1515, %v1477
    %v1517 = vsel %vm349, %v1516, %v1481
    %v1518 = vsel %vm337, %v1430, %v1485
    %v1519 = vsel %vm339, %v1518, %v1489
    %v1520 = vsel %vm341, %v1519, %v1493
    %v1521 = vsel %vm343, %v1520, %v1497
    %v1522 = vsel %vm345, %v1521, %v1501
    %v1523 = vsel %vm347, %v1522, %v1505
    %v1524 = vsel %vm349, %v1523, %v1509
    %v1525 = vpack.c.bf16 %v1524, %v1517
    %v1527 = vunpack.c.l.b16 %v1525
    %v1528 = vunpack.c.h.b16 %v1525
    %v1529 = vpack.c.b16 %v1527, %v1527
    %v1530 = vpack.c.b16 %v1528, %v1528
    %v1532 = vsel %vm364, %v1529, 0
    %v1534 = vsel %vm364, %v1530, 0
    %v1537 = vunpack.c.l.b16 %v1532
    %v1538 = vunpack.c.l.b16 %v1534
    %v1539 = vpack.c.b16 %v1538, %v1537
    %1541 = vst [vmem:[#allocation3 + $0x50] sm:$0xff] %v1539
    %v1542 = vld [vmem:[%s1334] sm:$0xff]
    %v1543 = vld [vmem:[%s1334 + $0x8] sm:$0xff]
    %v1544 = vld [vmem:[%s1334 + $0x18] sm:$0xff]
    %v1545 = vld [vmem:[%s1334 + $0x20] sm:$0xff]
    %v1546 = vld [vmem:[%s1334 + $0x30] sm:$0xff]
    %v1547 = vld [vmem:[%s1334 + $0x38] sm:$0xff]
    %v1548 = vld [vmem:[%s1334 + $0x48] sm:$0xff]
    %v1549 = vld [vmem:[%s1334 + $0x50] sm:$0xff]
    %1558 = vrot.lane.b32.xlu0 %v1542, 127
    %v1559 = vpop.permute.xlu0 %1558
    %1560 = vrot.lane.b32.xlu0 %v1543, 127
    %v1561 = vpop.permute.xlu0 %1560
    %1562 = vrot.lane.b32.xlu0 %v1544, 127
    %v1563 = vpop.permute.xlu0 %1562
    %1564 = vrot.lane.b32.xlu0 %v1545, 127
    %v1565 = vpop.permute.xlu0 %1564
    %1566 = vrot.lane.b32.xlu0 %v1546, 127
    %v1567 = vpop.permute.xlu0 %1566
    %1568 = vrot.lane.b32.xlu0 %v1547, 127
    %v1569 = vpop.permute.xlu0 %1568
    %1570 = vrot.lane.b32.xlu0 %v1548, 127
    %v1571 = vpop.permute.xlu0 %1570
    %1572 = vrot.lane.b32.xlu0 %v1549, 127
    %v1573 = vpop.permute.xlu0 %1572
    %v1582 = vrot.slane %v1567, 4
    %v1583 = vsel %vm169, %v1582, %v1559
    %v1584 = vrot.slane %v1559, 4
    %v1585 = vsel %vm169, %v1567, %v1584
    %v1587 = vunpack.c.l.s4 1983009808
    %v1588 = vunpack.c.0.s8 %v1587
    %v1589 = vperm.slane %v1583, %v1588
    %v1591 = vunpack.c.l.s4 1983009808
    %v1592 = vunpack.c.0.s8 %v1591
    %v1593 = vperm.slane %v1585, %v1592
    %v1594 = vrot.slane %v1571, 4
    %v1595 = vsel %vm169, %v1594, %v1563
    %v1596 = vrot.slane %v1563, 4
    %v1597 = vsel %vm169, %v1571, %v1596
    %v1599 = vunpack.c.l.s4 1983009808
    %v1600 = vunpack.c.0.s8 %v1599
    %v1601 = vperm.slane %v1595, %v1600
    %v1603 = vunpack.c.l.s4 1983009808
    %v1604 = vunpack.c.0.s8 %v1603
    %v1605 = vperm.slane %v1597, %v1604
    %v1606 = vrot.slane %v1601, 4
    %v1607 = vsel %vm169, %v1606, %v1589
    %v1608 = vrot.slane %v1589, 4
    %v1609 = vsel %vm169, %v1601, %v1608
    %v1611 = vunpack.c.l.s4 1934713408
    %v1612 = vunpack.c.0.s8 %v1611
    %v1613 = vperm.slane %v1607, %v1612
    %v1615 = vunpack.c.l.s4 1934713408
    %v1616 = vunpack.c.0.s8 %v1615
    %v1617 = vperm.slane %v1609, %v1616
    %v1618 = vrot.slane %v1605, 4
    %v1619 = vsel %vm169, %v1618, %v1593
    %v1620 = vrot.slane %v1593, 4
    %v1621 = vsel %vm169, %v1605, %v1620
    %v1623 = vunpack.c.l.s4 1934713408
    %v1624 = vunpack.c.0.s8 %v1623
    %v1625 = vperm.slane %v1619, %v1624
    %v1627 = vunpack.c.l.s4 1934713408
    %v1628 = vunpack.c.0.s8 %v1627
    %v1629 = vperm.slane %v1621, %v1628
    %v1630 = vrot.slane %v1613, 4
    %v1631 = vsel %vm169, 0.0, %v1630
    %v1632 = vrot.slane %v1617, 4
    %v1633 = vsel %vm169, 0.0, %v1632
    %v1634 = vrot.slane %v1625, 4
    %v1635 = vsel %vm169, 0.0, %v1634
    %v1636 = vrot.slane %v1629, 4
    %v1637 = vsel %vm169, 0.0, %v1636
    %v1638 = vrot.slane %v1569, 4
    %v1639 = vsel %vm169, %v1638, %v1561
    %v1640 = vrot.slane %v1561, 4
    %v1641 = vsel %vm169, %v1569, %v1640
    %v1643 = vunpack.c.l.s4 1983009808
    %v1644 = vunpack.c.0.s8 %v1643
    %v1645 = vperm.slane %v1639, %v1644
    %v1647 = vunpack.c.l.s4 1983009808
    %v1648 = vunpack.c.0.s8 %v1647
    %v1649 = vperm.slane %v1641, %v1648
    %v1650 = vrot.slane %v1573, 4
    %v1651 = vsel %vm169, %v1650, %v1565
    %v1652 = vrot.slane %v1565, 4
    %v1653 = vsel %vm169, %v1573, %v1652
    %v1655 = vunpack.c.l.s4 1983009808
    %v1656 = vunpack.c.0.s8 %v1655
    %v1657 = vperm.slane %v1651, %v1656
    %v1659 = vunpack.c.l.s4 1983009808
    %v1660 = vunpack.c.0.s8 %v1659
    %v1661 = vperm.slane %v1653, %v1660
    %v1662 = vrot.slane %v1657, 4
    %v1663 = vsel %vm169, %v1662, %v1645
    %v1664 = vrot.slane %v1645, 4
    %v1665 = vsel %vm169, %v1657, %v1664
    %v1667 = vunpack.c.l.s4 1934713408
    %v1668 = vunpack.c.0.s8 %v1667
    %v1669 = vperm.slane %v1663, %v1668
    %v1671 = vunpack.c.l.s4 1934713408
    %v1672 = vunpack.c.0.s8 %v1671
    %v1673 = vperm.slane %v1665, %v1672
    %v1674 = vrot.slane %v1661, 4
    %v1675 = vsel %vm169, %v1674, %v1649
    %v1676 = vrot.slane %v1649, 4
    %v1677 = vsel %vm169, %v1661, %v1676
    %v1679 = vunpack.c.l.s4 1934713408
    %v1680 = vunpack.c.0.s8 %v1679
    %v1681 = vperm.slane %v1675, %v1680
    %v1683 = vunpack.c.l.s4 1934713408
    %v1684 = vunpack.c.0.s8 %v1683
    %v1685 = vperm.slane %v1677, %v1684
    %v1686 = vrot.slane %v1669, 4
    %v1687 = vsel %vm169, 0.0, %v1686
    %v1688 = vrot.slane %v1673, 4
    %v1689 = vsel %vm169, 0.0, %v1688
    %v1690 = vrot.slane %v1681, 4
    %v1691 = vsel %vm169, 0.0, %v1690
    %v1692 = vrot.slane %v1685, 4
    %v1693 = vsel %vm169, 0.0, %v1692
    %1695 = vrot.lane.b32.xlu0 %v1631, 16
    %v1696 = vpop.permute.xlu0 %1695
    %1699 = vrot.lane.b32.xlu0 %v1617, 32
    %v1700 = vpop.permute.xlu0 %1699
    %1703 = vrot.lane.b32.xlu0 %v1633, 48
    %v1704 = vpop.permute.xlu0 %1703
    %1707 = vrot.lane.b32.xlu0 %v1625, 64
    %v1708 = vpop.permute.xlu0 %1707
    %1711 = vrot.lane.b32.xlu0 %v1635, 80
    %v1712 = vpop.permute.xlu0 %1711
    %1715 = vrot.lane.b32.xlu0 %v1629, 96
    %v1716 = vpop.permute.xlu0 %1715
    %1719 = vrot.lane.b32.xlu0 %v1637, 112
    %v1720 = vpop.permute.xlu0 %1719
    %1723 = vrot.lane.b32.xlu0 %v1687, 16
    %v1724 = vpop.permute.xlu0 %1723
    %1727 = vrot.lane.b32.xlu0 %v1673, 32
    %v1728 = vpop.permute.xlu0 %1727
    %1731 = vrot.lane.b32.xlu0 %v1689, 48
    %v1732 = vpop.permute.xlu0 %1731
    %1735 = vrot.lane.b32.xlu0 %v1681, 64
    %v1736 = vpop.permute.xlu0 %1735
    %1739 = vrot.lane.b32.xlu0 %v1691, 80
    %v1740 = vpop.permute.xlu0 %1739
    %1743 = vrot.lane.b32.xlu0 %v1685, 96
    %v1744 = vpop.permute.xlu0 %1743
    %1747 = vrot.lane.b32.xlu0 %v1693, 112
    %v1748 = vpop.permute.xlu0 %1747
    %v1750 = vsel %vm337, %v1613, %v1696
    %v1751 = vsel %vm339, %v1750, %v1700
    %v1752 = vsel %vm341, %v1751, %v1704
    %v1753 = vsel %vm343, %v1752, %v1708
    %v1754 = vsel %vm345, %v1753, %v1712
    %v1755 = vsel %vm347, %v1754, %v1716
    %v1756 = vsel %vm349, %v1755, %v1720
    %v1757 = vsel %vm337, %v1669, %v1724
    %v1758 = vsel %vm339, %v1757, %v1728
    %v1759 = vsel %vm341, %v1758, %v1732
    %v1760 = vsel %vm343, %v1759, %v1736
    %v1761 = vsel %vm345, %v1760, %v1740
    %v1762 = vsel %vm347, %v1761, %v1744
    %v1763 = vsel %vm349, %v1762, %v1748
    %v1764 = vpack.c.bf16 %v1763, %v1756
    %v1766 = vunpack.c.l.b16 %v1764
    %v1767 = vunpack.c.h.b16 %v1764
    %v1768 = vpack.c.b16 %v1766, %v1766
    %v1769 = vpack.c.b16 %v1767, %v1767
    %v1771 = vsel %vm364, %v1768, 0
    %v1773 = vsel %vm364, %v1769, 0
    %v1776 = vunpack.c.l.b16 %v1771
    %v1777 = vunpack.c.l.b16 %v1773
    %v1778 = vpack.c.b16 %v1777, %v1776
    %1780 = vst [vmem:[#allocation3 + $0x60] sm:$0xff] %v1778
    %v1781 = vld [vmem:[%s1334] sm:$0xff]
    %v1782 = vld [vmem:[%s1334 + $0x8] sm:$0xff]
    %v1783 = vld [vmem:[%s1334 + $0x18] sm:$0xff]
    %v1784 = vld [vmem:[%s1334 + $0x20] sm:$0xff]
    %v1785 = vld [vmem:[%s1334 + $0x30] sm:$0xff]
    %v1786 = vld [vmem:[%s1334 + $0x38] sm:$0xff]
    %v1787 = vld [vmem:[%s1334 + $0x48] sm:$0xff]
    %v1788 = vld [vmem:[%s1334 + $0x50] sm:$0xff]
    %1797 = vrot.lane.b32.xlu0 %v1781, 126
    %v1798 = vpop.permute.xlu0 %1797
    %1799 = vrot.lane.b32.xlu0 %v1782, 126
    %v1800 = vpop.permute.xlu0 %1799
    %1801 = vrot.lane.b32.xlu0 %v1783, 126
    %v1802 = vpop.permute.xlu0 %1801
    %1803 = vrot.lane.b32.xlu0 %v1784, 126
    %v1804 = vpop.permute.xlu0 %1803
    %1805 = vrot.lane.b32.xlu0 %v1785, 126
    %v1806 = vpop.permute.xlu0 %1805
    %1807 = vrot.lane.b32.xlu0 %v1786, 126
    %v1808 = vpop.permute.xlu0 %1807
    %1809 = vrot.lane.b32.xlu0 %v1787, 126
    %v1810 = vpop.permute.xlu0 %1809
    %1811 = vrot.lane.b32.xlu0 %v1788, 126
    %v1812 = vpop.permute.xlu0 %1811
    %v1821 = vrot.slane %v1806, 4
    %v1822 = vsel %vm169, %v1821, %v1798
    %v1823 = vrot.slane %v1798, 4
    %v1824 = vsel %vm169, %v1806, %v1823
    %v1826 = vunpack.c.l.s4 1983009808
    %v1827 = vunpack.c.0.s8 %v1826
    %v1828 = vperm.slane %v1822, %v1827
    %v1830 = vunpack.c.l.s4 1983009808
    %v1831 = vunpack.c.0.s8 %v1830
    %v1832 = vperm.slane %v1824, %v1831
    %v1833 = vrot.slane %v1810, 4
    %v1834 = vsel %vm169, %v1833, %v1802
    %v1835 = vrot.slane %v1802, 4
    %v1836 = vsel %vm169, %v1810, %v1835
    %v1838 = vunpack.c.l.s4 1983009808
    %v1839 = vunpack.c.0.s8 %v1838
    %v1840 = vperm.slane %v1834, %v1839
    %v1842 = vunpack.c.l.s4 1983009808
    %v1843 = vunpack.c.0.s8 %v1842
    %v1844 = vperm.slane %v1836, %v1843
    %v1845 = vrot.slane %v1840, 4
    %v1846 = vsel %vm169, %v1845, %v1828
    %v1847 = vrot.slane %v1828, 4
    %v1848 = vsel %vm169, %v1840, %v1847
    %v1850 = vunpack.c.l.s4 1934713408
    %v1851 = vunpack.c.0.s8 %v1850
    %v1852 = vperm.slane %v1846, %v1851
    %v1854 = vunpack.c.l.s4 1934713408
    %v1855 = vunpack.c.0.s8 %v1854
    %v1856 = vperm.slane %v1848, %v1855
    %v1857 = vrot.slane %v1844, 4
    %v1858 = vsel %vm169, %v1857, %v1832
    %v1859 = vrot.slane %v1832, 4
    %v1860 = vsel %vm169, %v1844, %v1859
    %v1862 = vunpack.c.l.s4 1934713408
    %v1863 = vunpack.c.0.s8 %v1862
    %v1864 = vperm.slane %v1858, %v1863
    %v1866 = vunpack.c.l.s4 1934713408
    %v1867 = vunpack.c.0.s8 %v1866
    %v1868 = vperm.slane %v1860, %v1867
    %v1869 = vrot.slane %v1852, 4
    %v1870 = vsel %vm169, 0.0, %v1869
    %v1871 = vrot.slane %v1856, 4
    %v1872 = vsel %vm169, 0.0, %v1871
    %v1873 = vrot.slane %v1864, 4
    %v1874 = vsel %vm169, 0.0, %v1873
    %v1875 = vrot.slane %v1868, 4
    %v1876 = vsel %vm169, 0.0, %v1875
    %v1877 = vrot.slane %v1808, 4
    %v1878 = vsel %vm169, %v1877, %v1800
    %v1879 = vrot.slane %v1800, 4
    %v1880 = vsel %vm169, %v1808, %v1879
    %v1882 = vunpack.c.l.s4 1983009808
    %v1883 = vunpack.c.0.s8 %v1882
    %v1884 = vperm.slane %v1878, %v1883
    %v1886 = vunpack.c.l.s4 1983009808
    %v1887 = vunpack.c.0.s8 %v1886
    %v1888 = vperm.slane %v1880, %v1887
    %v1889 = vrot.slane %v1812, 4
    %v1890 = vsel %vm169, %v1889, %v1804
    %v1891 = vrot.slane %v1804, 4
    %v1892 = vsel %vm169, %v1812, %v1891
    %v1894 = vunpack.c.l.s4 1983009808
    %v1895 = vunpack.c.0.s8 %v1894
    %v1896 = vperm.slane %v1890, %v1895
    %v1898 = vunpack.c.l.s4 1983009808
    %v1899 = vunpack.c.0.s8 %v1898
    %v1900 = vperm.slane %v1892, %v1899
    %v1901 = vrot.slane %v1896, 4
    %v1902 = vsel %vm169, %v1901, %v1884
    %v1903 = vrot.slane %v1884, 4
    %v1904 = vsel %vm169, %v1896, %v1903
    %v1906 = vunpack.c.l.s4 1934713408
    %v1907 = vunpack.c.0.s8 %v1906
    %v1908 = vperm.slane %v1902, %v1907
    %v1910 = vunpack.c.l.s4 1934713408
    %v1911 = vunpack.c.0.s8 %v1910
    %v1912 = vperm.slane %v1904, %v1911
    %v1913 = vrot.slane %v1900, 4
    %v1914 = vsel %vm169, %v1913, %v1888
    %v1915 = vrot.slane %v1888, 4
    %v1916 = vsel %vm169, %v1900, %v1915
    %v1918 = vunpack.c.l.s4 1934713408
    %v1919 = vunpack.c.0.s8 %v1918
    %v1920 = vperm.slane %v1914, %v1919
    %v1922 = vunpack.c.l.s4 1934713408
    %v1923 = vunpack.c.0.s8 %v1922
    %v1924 = vperm.slane %v1916, %v1923
    %v1925 = vrot.slane %v1908, 4
    %v1926 = vsel %vm169, 0.0, %v1925
    %v1927 = vrot.slane %v1912, 4
    %v1928 = vsel %vm169, 0.0, %v1927
    %v1929 = vrot.slane %v1920, 4
    %v1930 = vsel %vm169, 0.0, %v1929
    %v1931 = vrot.slane %v1924, 4
    %v1932 = vsel %vm169, 0.0, %v1931
    %1934 = vrot.lane.b32.xlu0 %v1870, 16
    %v1935 = vpop.permute.xlu0 %1934
    %1938 = vrot.lane.b32.xlu0 %v1856, 32
    %v1939 = vpop.permute.xlu0 %1938
    %1942 = vrot.lane.b32.xlu0 %v1872, 48
    %v1943 = vpop.permute.xlu0 %1942
    %1946 = vrot.lane.b32.xlu0 %v1864, 64
    %v1947 = vpop.permute.xlu0 %1946
    %1950 = vrot.lane.b32.xlu0 %v1874, 80
    %v1951 = vpop.permute.xlu0 %1950
    %1954 = vrot.lane.b32.xlu0 %v1868, 96
    %v1955 = vpop.permute.xlu0 %1954
    %1958 = vrot.lane.b32.xlu0 %v1876, 112
    %v1959 = vpop.permute.xlu0 %1958
    %1962 = vrot.lane.b32.xlu0 %v1926, 16
    %v1963 = vpop.permute.xlu0 %1962
    %1966 = vrot.lane.b32.xlu0 %v1912, 32
    %v1967 = vpop.permute.xlu0 %1966
    %1970 = vrot.lane.b32.xlu0 %v1928, 48
    %v1971 = vpop.permute.xlu0 %1970
    %1974 = vrot.lane.b32.xlu0 %v1920, 64
    %v1975 = vpop.permute.xlu0 %1974
    %1978 = vrot.lane.b32.xlu0 %v1930, 80
    %v1979 = vpop.permute.xlu0 %1978
    %1982 = vrot.lane.b32.xlu0 %v1924, 96
    %v1983 = vpop.permute.xlu0 %1982
    %1986 = vrot.lane.b32.xlu0 %v1932, 112
    %v1987 = vpop.permute.xlu0 %1986
    %v1989 = vsel %vm337, %v1852, %v1935
    %v1990 = vsel %vm339, %v1989, %v1939
    %v1991 = vsel %vm341, %v1990, %v1943
    %v1992 = vsel %vm343, %v1991, %v1947
    %v1993 = vsel %vm345, %v1992, %v1951
    %v1994 = vsel %vm347, %v1993, %v1955
    %v1995 = vsel %vm349, %v1994, %v1959
    %v1996 = vsel %vm337, %v1908, %v1963
    %v1997 = vsel %vm339, %v1996, %v1967
    %v1998 = vsel %vm341, %v1997, %v1971
    %v1999 = vsel %vm343, %v1998, %v1975
    %v2000 = vsel %vm345, %v1999, %v1979
    %v2001 = vsel %vm347, %v2000, %v1983
    %v2002 = vsel %vm349, %v2001, %v1987
    %v2003 = vpack.c.bf16 %v2002, %v1995
    %v2005 = vunpack.c.l.b16 %v2003
    %v2006 = vunpack.c.h.b16 %v2003
    %v2007 = vpack.c.b16 %v2005, %v2005
    %v2008 = vpack.c.b16 %v2006, %v2006
    %v2010 = vsel %vm364, %v2007, 0
    %v2012 = vsel %vm364, %v2008, 0
    %v2015 = vunpack.c.l.b16 %v2010
    %v2016 = vunpack.c.l.b16 %v2012
    %v2017 = vpack.c.b16 %v2016, %v2015
    %2019 = vst [vmem:[#allocation3 + $0x70] sm:$0xff] %v2017
    %v2020 = vld [vmem:[%s1334] sm:$0xff]
    %v2021 = vld [vmem:[%s1334 + $0x8] sm:$0xff]
    %v2022 = vld [vmem:[%s1334 + $0x18] sm:$0xff]
    %v2023 = vld [vmem:[%s1334 + $0x20] sm:$0xff]
    %v2024 = vld [vmem:[%s1334 + $0x30] sm:$0xff]
    %v2025 = vld [vmem:[%s1334 + $0x38] sm:$0xff]
    %v2026 = vld [vmem:[%s1334 + $0x48] sm:$0xff]
    %v2027 = vld [vmem:[%s1334 + $0x50] sm:$0xff]
    %2036 = vrot.lane.b32.xlu0 %v2020, 125
    %v2037 = vpop.permute.xlu0 %2036
    %2038 = vrot.lane.b32.xlu0 %v2021, 125
    %v2039 = vpop.permute.xlu0 %2038
    %2040 = vrot.lane.b32.xlu0 %v2022, 125
    %v2041 = vpop.permute.xlu0 %2040
    %2042 = vrot.lane.b32.xlu0 %v2023, 125
    %v2043 = vpop.permute.xlu0 %2042
    %2044 = vrot.lane.b32.xlu0 %v2024, 125
    %v2045 = vpop.permute.xlu0 %2044
    %2046 = vrot.lane.b32.xlu0 %v2025, 125
    %v2047 = vpop.permute.xlu0 %2046
    %2048 = vrot.lane.b32.xlu0 %v2026, 125
    %v2049 = vpop.permute.xlu0 %2048
    %2050 = vrot.lane.b32.xlu0 %v2027, 125
    %v2051 = vpop.permute.xlu0 %2050
    %v2060 = vrot.slane %v2045, 4
    %v2061 = vsel %vm169, %v2060, %v2037
    %v2062 = vrot.slane %v2037, 4
    %v2063 = vsel %vm169, %v2045, %v2062
    %v2065 = vunpack.c.l.s4 1983009808
    %v2066 = vunpack.c.0.s8 %v2065
    %v2067 = vperm.slane %v2061, %v2066
    %v2069 = vunpack.c.l.s4 1983009808
    %v2070 = vunpack.c.0.s8 %v2069
    %v2071 = vperm.slane %v2063, %v2070
    %v2072 = vrot.slane %v2049, 4
    %v2073 = vsel %vm169, %v2072, %v2041
    %v2074 = vrot.slane %v2041, 4
    %v2075 = vsel %vm169, %v2049, %v2074
    %v2077 = vunpack.c.l.s4 1983009808
    %v2078 = vunpack.c.0.s8 %v2077
    %v2079 = vperm.slane %v2073, %v2078
    %v2081 = vunpack.c.l.s4 1983009808
    %v2082 = vunpack.c.0.s8 %v2081
    %v2083 = vperm.slane %v2075, %v2082
    %v2084 = vrot.slane %v2079, 4
    %v2085 = vsel %vm169, %v2084, %v2067
    %v2086 = vrot.slane %v2067, 4
    %v2087 = vsel %vm169, %v2079, %v2086
    %v2089 = vunpack.c.l.s4 1934713408
    %v2090 = vunpack.c.0.s8 %v2089
    %v2091 = vperm.slane %v2085, %v2090
    %v2093 = vunpack.c.l.s4 1934713408
    %v2094 = vunpack.c.0.s8 %v2093
    %v2095 = vperm.slane %v2087, %v2094
    %v2096 = vrot.slane %v2083, 4
    %v2097 = vsel %vm169, %v2096, %v2071
    %v2098 = vrot.slane %v2071, 4
    %v2099 = vsel %vm169, %v2083, %v2098
    %v2101 = vunpack.c.l.s4 1934713408
    %v2102 = vunpack.c.0.s8 %v2101
    %v2103 = vperm.slane %v2097, %v2102
    %v2105 = vunpack.c.l.s4 1934713408
    %v2106 = vunpack.c.0.s8 %v2105
    %v2107 = vperm.slane %v2099, %v2106
    %v2108 = vrot.slane %v2091, 4
    %v2109 = vsel %vm169, 0.0, %v2108
    %v2110 = vrot.slane %v2095, 4
    %v2111 = vsel %vm169, 0.0, %v2110
    %v2112 = vrot.slane %v2103, 4
    %v2113 = vsel %vm169, 0.0, %v2112
    %v2114 = vrot.slane %v2107, 4
    %v2115 = vsel %vm169, 0.0, %v2114
    %v2116 = vrot.slane %v2047, 4
    %v2117 = vsel %vm169, %v2116, %v2039
    %v2118 = vrot.slane %v2039, 4
    %v2119 = vsel %vm169, %v2047, %v2118
    %v2121 = vunpack.c.l.s4 1983009808
    %v2122 = vunpack.c.0.s8 %v2121
    %v2123 = vperm.slane %v2117, %v2122
    %v2125 = vunpack.c.l.s4 1983009808
    %v2126 = vunpack.c.0.s8 %v2125
    %v2127 = vperm.slane %v2119, %v2126
    %v2128 = vrot.slane %v2051, 4
    %v2129 = vsel %vm169, %v2128, %v2043
    %v2130 = vrot.slane %v2043, 4
    %v2131 = vsel %vm169, %v2051, %v2130
    %v2133 = vunpack.c.l.s4 1983009808
    %v2134 = vunpack.c.0.s8 %v2133
    %v2135 = vperm.slane %v2129, %v2134
    %v2137 = vunpack.c.l.s4 1983009808
    %v2138 = vunpack.c.0.s8 %v2137
    %v2139 = vperm.slane %v2131, %v2138
    %v2140 = vrot.slane %v2135, 4
    %v2141 = vsel %vm169, %v2140, %v2123
    %v2142 = vrot.slane %v2123, 4
    %v2143 = vsel %vm169, %v2135, %v2142
    %v2145 = vunpack.c.l.s4 1934713408
    %v2146 = vunpack.c.0.s8 %v2145
    %v2147 = vperm.slane %v2141, %v2146
    %v2149 = vunpack.c.l.s4 1934713408
    %v2150 = vunpack.c.0.s8 %v2149
    %v2151 = vperm.slane %v2143, %v2150
    %v2152 = vrot.slane %v2139, 4
    %v2153 = vsel %vm169, %v2152, %v2127
    %v2154 = vrot.slane %v2127, 4
    %v2155 = vsel %vm169, %v2139, %v2154
    %v2157 = vunpack.c.l.s4 1934713408
    %v2158 = vunpack.c.0.s8 %v2157
    %v2159 = vperm.slane %v2153, %v2158
    %v2161 = vunpack.c.l.s4 1934713408
    %v2162 = vunpack.c.0.s8 %v2161
    %v2163 = vperm.slane %v2155, %v2162
    %v2164 = vrot.slane %v2147, 4
    %v2165 = vsel %vm169, 0.0, %v2164
    %v2166 = vrot.slane %v2151, 4
    %v2167 = vsel %vm169, 0.0, %v2166
    %v2168 = vrot.slane %v2159, 4
    %v2169 = vsel %vm169, 0.0, %v2168
    %v2170 = vrot.slane %v2163, 4
    %v2171 = vsel %vm169, 0.0, %v2170
    %2173 = vrot.lane.b32.xlu0 %v2109, 16
    %v2174 = vpop.permute.xlu0 %2173
    %2177 = vrot.lane.b32.xlu0 %v2095, 32
    %v2178 = vpop.permute.xlu0 %2177
    %2181 = vrot.lane.b32.xlu0 %v2111, 48
    %v2182 = vpop.permute.xlu0 %2181
    %2185 = vrot.lane.b32.xlu0 %v2103, 64
    %v2186 = vpop.permute.xlu0 %2185
    %2189 = vrot.lane.b32.xlu0 %v2113, 80
    %v2190 = vpop.permute.xlu0 %2189
    %2193 = vrot.lane.b32.xlu0 %v2107, 96
    %v2194 = vpop.permute.xlu0 %2193
    %2197 = vrot.lane.b32.xlu0 %v2115, 112
    %v2198 = vpop.permute.xlu0 %2197
    %2201 = vrot.lane.b32.xlu0 %v2165, 16
    %v2202 = vpop.permute.xlu0 %2201
    %2205 = vrot.lane.b32.xlu0 %v2151, 32
    %v2206 = vpop.permute.xlu0 %2205
    %2209 = vrot.lane.b32.xlu0 %v2167, 48
    %v2210 = vpop.permute.xlu0 %2209
    %2213 = vrot.lane.b32.xlu0 %v2159, 64
    %v2214 = vpop.permute.xlu0 %2213
    %2217 = vrot.lane.b32.xlu0 %v2169, 80
    %v2218 = vpop.permute.xlu0 %2217
    %2221 = vrot.lane.b32.xlu0 %v2163, 96
    %v2222 = vpop.permute.xlu0 %2221
    %2225 = vrot.lane.b32.xlu0 %v2171, 112
    %v2226 = vpop.permute.xlu0 %2225
    %v2228 = vsel %vm337, %v2091, %v2174
    %v2229 = vsel %vm339, %v2228, %v2178
    %v2230 = vsel %vm341, %v2229, %v2182
    %v2231 = vsel %vm343, %v2230, %v2186
    %v2232 = vsel %vm345, %v2231, %v2190
    %v2233 = vsel %vm347, %v2232, %v2194
    %v2234 = vsel %vm349, %v2233, %v2198
    %v2235 = vsel %vm337, %v2147, %v2202
    %v2236 = vsel %vm339, %v2235, %v2206
    %v2237 = vsel %vm341, %v2236, %v2210
    %v2238 = vsel %vm343, %v2237, %v2214
    %v2239 = vsel %vm345, %v2238, %v2218
    %v2240 = vsel %vm347, %v2239, %v2222
    %v2241 = vsel %vm349, %v2240, %v2226
    %v2242 = vpack.c.bf16 %v2241, %v2234
    %v2244 = vunpack.c.l.b16 %v2242
    %v2245 = vunpack.c.h.b16 %v2242
    %v2246 = vpack.c.b16 %v2244, %v2244
    %v2247 = vpack.c.b16 %v2245, %v2245
    %v2249 = vsel %vm364, %v2246, 0
    %v2251 = vsel %vm364, %v2247, 0
    %v2254 = vunpack.c.l.b16 %v2249
    %v2255 = vunpack.c.l.b16 %v2251
    %v2256 = vpack.c.b16 %v2255, %v2254
    %2258 = vst [vmem:[#allocation3 + $0x80] sm:$0xff] %v2256
    %v2259 = vld [vmem:[%s1334] sm:$0xff]
    %v2260 = vld [vmem:[%s1334 + $0x8] sm:$0xff]
    %v2261 = vld [vmem:[%s1334 + $0x18] sm:$0xff]
    %v2262 = vld [vmem:[%s1334 + $0x20] sm:$0xff]
    %v2263 = vld [vmem:[%s1334 + $0x30] sm:$0xff]
    %v2264 = vld [vmem:[%s1334 + $0x38] sm:$0xff]
    %v2265 = vld [vmem:[%s1334 + $0x48] sm:$0xff]
    %v2266 = vld [vmem:[%s1334 + $0x50] sm:$0xff]
    %2275 = vrot.lane.b32.xlu0 %v2259, 124
    %v2276 = vpop.permute.xlu0 %2275
    %2277 = vrot.lane.b32.xlu0 %v2260, 124
    %v2278 = vpop.permute.xlu0 %2277
    %2279 = vrot.lane.b32.xlu0 %v2261, 124
    %v2280 = vpop.permute.xlu0 %2279
    %2281 = vrot.lane.b32.xlu0 %v2262, 124
    %v2282 = vpop.permute.xlu0 %2281
    %2283 = vrot.lane.b32.xlu0 %v2263, 124
    %v2284 = vpop.permute.xlu0 %2283
    %2285 = vrot.lane.b32.xlu0 %v2264, 124
    %v2286 = vpop.permute.xlu0 %2285
    %2287 = vrot.lane.b32.xlu0 %v2265, 124
    %v2288 = vpop.permute.xlu0 %2287
    %2289 = vrot.lane.b32.xlu0 %v2266, 124
    %v2290 = vpop.permute.xlu0 %2289
    %v2299 = vrot.slane %v2284, 4
    %v2300 = vsel %vm169, %v2299, %v2276
    %v2301 = vrot.slane %v2276, 4
    %v2302 = vsel %vm169, %v2284, %v2301
    %v2304 = vunpack.c.l.s4 1983009808
    %v2305 = vunpack.c.0.s8 %v2304
    %v2306 = vperm.slane %v2300, %v2305
    %v2308 = vunpack.c.l.s4 1983009808
    %v2309 = vunpack.c.0.s8 %v2308
    %v2310 = vperm.slane %v2302, %v2309
    %v2311 = vrot.slane %v2288, 4
    %v2312 = vsel %vm169, %v2311, %v2280
    %v2313 = vrot.slane %v2280, 4
    %v2314 = vsel %vm169, %v2288, %v2313
    %v2316 = vunpack.c.l.s4 1983009808
    %v2317 = vunpack.c.0.s8 %v2316
    %v2318 = vperm.slane %v2312, %v2317
    %v2320 = vunpack.c.l.s4 1983009808
    %v2321 = vunpack.c.0.s8 %v2320
    %v2322 = vperm.slane %v2314, %v2321
    %v2323 = vrot.slane %v2318, 4
    %v2324 = vsel %vm169, %v2323, %v2306
    %v2325 = vrot.slane %v2306, 4
    %v2326 = vsel %vm169, %v2318, %v2325
    %v2328 = vunpack.c.l.s4 1934713408
    %v2329 = vunpack.c.0.s8 %v2328
    %v2330 = vperm.slane %v2324, %v2329
    %v2332 = vunpack.c.l.s4 1934713408
    %v2333 = vunpack.c.0.s8 %v2332
    %v2334 = vperm.slane %v2326, %v2333
    %v2335 = vrot.slane %v2322, 4
    %v2336 = vsel %vm169, %v2335, %v2310
    %v2337 = vrot.slane %v2310, 4
    %v2338 = vsel %vm169, %v2322, %v2337
    %v2340 = vunpack.c.l.s4 1934713408
    %v2341 = vunpack.c.0.s8 %v2340
    %v2342 = vperm.slane %v2336, %v2341
    %v2344 = vunpack.c.l.s4 1934713408
    %v2345 = vunpack.c.0.s8 %v2344
    %v2346 = vperm.slane %v2338, %v2345
    %v2347 = vrot.slane %v2330, 4
    %v2348 = vsel %vm169, 0.0, %v2347
    %v2349 = vrot.slane %v2334, 4
    %v2350 = vsel %vm169, 0.0, %v2349
    %v2351 = vrot.slane %v2342, 4
    %v2352 = vsel %vm169, 0.0, %v2351
    %v2353 = vrot.slane %v2346, 4
    %v2354 = vsel %vm169, 0.0, %v2353
    %v2355 = vrot.slane %v2286, 4
    %v2356 = vsel %vm169, %v2355, %v2278
    %v2357 = vrot.slane %v2278, 4
    %v2358 = vsel %vm169, %v2286, %v2357
    %v2360 = vunpack.c.l.s4 1983009808
    %v2361 = vunpack.c.0.s8 %v2360
    %v2362 = vperm.slane %v2356, %v2361
    %v2364 = vunpack.c.l.s4 1983009808
    %v2365 = vunpack.c.0.s8 %v2364
    %v2366 = vperm.slane %v2358, %v2365
    %v2367 = vrot.slane %v2290, 4
    %v2368 = vsel %vm169, %v2367, %v2282
    %v2369 = vrot.slane %v2282, 4
    %v2370 = vsel %vm169, %v2290, %v2369
    %v2372 = vunpack.c.l.s4 1983009808
    %v2373 = vunpack.c.0.s8 %v2372
    %v2374 = vperm.slane %v2368, %v2373
    %v2376 = vunpack.c.l.s4 1983009808
    %v2377 = vunpack.c.0.s8 %v2376
    %v2378 = vperm.slane %v2370, %v2377
    %v2379 = vrot.slane %v2374, 4
    %v2380 = vsel %vm169, %v2379, %v2362
    %v2381 = vrot.slane %v2362, 4
    %v2382 = vsel %vm169, %v2374, %v2381
    %v2384 = vunpack.c.l.s4 1934713408
    %v2385 = vunpack.c.0.s8 %v2384
    %v2386 = vperm.slane %v2380, %v2385
    %v2388 = vunpack.c.l.s4 1934713408
    %v2389 = vunpack.c.0.s8 %v2388
    %v2390 = vperm.slane %v2382, %v2389
    %v2391 = vrot.slane %v2378, 4
    %v2392 = vsel %vm169, %v2391, %v2366
    %v2393 = vrot.slane %v2366, 4
    %v2394 = vsel %vm169, %v2378, %v2393
    %v2396 = vunpack.c.l.s4 1934713408
    %v2397 = vunpack.c.0.s8 %v2396
    %v2398 = vperm.slane %v2392, %v2397
    %v2400 = vunpack.c.l.s4 1934713408
    %v2401 = vunpack.c.0.s8 %v2400
    %v2402 = vperm.slane %v2394, %v2401
    %v2403 = vrot.slane %v2386, 4
    %v2404 = vsel %vm169, 0.0, %v2403
    %v2405 = vrot.slane %v2390, 4
    %v2406 = vsel %vm169, 0.0, %v2405
    %v2407 = vrot.slane %v2398, 4
    %v2408 = vsel %vm169, 0.0, %v2407
    %v2409 = vrot.slane %v2402, 4
    %v2410 = vsel %vm169, 0.0, %v2409
    %2412 = vrot.lane.b32.xlu0 %v2348, 16
    %v2413 = vpop.permute.xlu0 %2412
    %2416 = vrot.lane.b32.xlu0 %v2334, 32
    %v2417 = vpop.permute.xlu0 %2416
    %2420 = vrot.lane.b32.xlu0 %v2350, 48
    %v2421 = vpop.permute.xlu0 %2420
    %2424 = vrot.lane.b32.xlu0 %v2342, 64
    %v2425 = vpop.permute.xlu0 %2424
    %2428 = vrot.lane.b32.xlu0 %v2352, 80
    %v2429 = vpop.permute.xlu0 %2428
    %2432 = vrot.lane.b32.xlu0 %v2346, 96
    %v2433 = vpop.permute.xlu0 %2432
    %2436 = vrot.lane.b32.xlu0 %v2354, 112
    %v2437 = vpop.permute.xlu0 %2436
    %2440 = vrot.lane.b32.xlu0 %v2404, 16
    %v2441 = vpop.permute.xlu0 %2440
    %2444 = vrot.lane.b32.xlu0 %v2390, 32
    %v2445 = vpop.permute.xlu0 %2444
    %2448 = vrot.lane.b32.xlu0 %v2406, 48
    %v2449 = vpop.permute.xlu0 %2448
    %2452 = vrot.lane.b32.xlu0 %v2398, 64
    %v2453 = vpop.permute.xlu0 %2452
    %2456 = vrot.lane.b32.xlu0 %v2408, 80
    %v2457 = vpop.permute.xlu0 %2456
    %2460 = vrot.lane.b32.xlu0 %v2402, 96
    %v2461 = vpop.permute.xlu0 %2460
    %2464 = vrot.lane.b32.xlu0 %v2410, 112
    %v2465 = vpop.permute.xlu0 %2464
    %v2467 = vsel %vm337, %v2330, %v2413
    %v2468 = vsel %vm339, %v2467, %v2417
    %v2469 = vsel %vm341, %v2468, %v2421
    %v2470 = vsel %vm343, %v2469, %v2425
    %v2471 = vsel %vm345, %v2470, %v2429
    %v2472 = vsel %vm347, %v2471, %v2433
    %v2473 = vsel %vm349, %v2472, %v2437
    %v2474 = vsel %vm337, %v2386, %v2441
    %v2475 = vsel %vm339, %v2474, %v2445
    %v2476 = vsel %vm341, %v2475, %v2449
    %v2477 = vsel %vm343, %v2476, %v2453
    %v2478 = vsel %vm345, %v2477, %v2457
    %v2479 = vsel %vm347, %v2478, %v2461
    %v2480 = vsel %vm349, %v2479, %v2465
    %v2481 = vpack.c.bf16 %v2480, %v2473
    %v2483 = vunpack.c.l.b16 %v2481
    %v2484 = vunpack.c.h.b16 %v2481
    %v2485 = vpack.c.b16 %v2483, %v2483
    %v2486 = vpack.c.b16 %v2484, %v2484
    %v2488 = vsel %vm364, %v2485, 0
    %v2490 = vsel %vm364, %v2486, 0
    %v2493 = vunpack.c.l.b16 %v2488
    %v2494 = vunpack.c.l.b16 %v2490
    %v2495 = vpack.c.b16 %v2494, %v2493
    %2497 = vst [vmem:[#allocation3 + $0x90] sm:$0xff] %v2495
    %s2498 = sadd.s32 %s158, 2
    %s2499 = scalar_lea.vmem [#allocation2], %s2498
    %v2500 = vld [vmem:[%s2499] sm:$0xff]
    %v2501 = vld [vmem:[%s2499 + $0x8] sm:$0xff]
    %v2502 = vld [vmem:[%s2499 + $0x18] sm:$0xff]
    %v2503 = vld [vmem:[%s2499 + $0x20] sm:$0xff]
    %v2504 = vld [vmem:[%s2499 + $0x30] sm:$0xff]
    %v2505 = vld [vmem:[%s2499 + $0x38] sm:$0xff]
    %v2506 = vld [vmem:[%s2499 + $0x48] sm:$0xff]
    %v2507 = vld [vmem:[%s2499 + $0x50] sm:$0xff]
    %v2508 = vrot.slane %v2504, 4
    %v2509 = vsel %vm169, %v2508, %v2500
    %v2510 = vrot.slane %v2500, 4
    %v2511 = vsel %vm169, %v2504, %v2510
    %v2513 = vunpack.c.l.s4 1983009808
    %v2514 = vunpack.c.0.s8 %v2513
    %v2515 = vperm.slane %v2509, %v2514
    %v2517 = vunpack.c.l.s4 1983009808
    %v2518 = vunpack.c.0.s8 %v2517
    %v2519 = vperm.slane %v2511, %v2518
    %v2520 = vrot.slane %v2506, 4
    %v2521 = vsel %vm169, %v2520, %v2502
    %v2522 = vrot.slane %v2502, 4
    %v2523 = vsel %vm169, %v2506, %v2522
    %v2525 = vunpack.c.l.s4 1983009808
    %v2526 = vunpack.c.0.s8 %v2525
    %v2527 = vperm.slane %v2521, %v2526
    %v2529 = vunpack.c.l.s4 1983009808
    %v2530 = vunpack.c.0.s8 %v2529
    %v2531 = vperm.slane %v2523, %v2530
    %v2532 = vrot.slane %v2527, 4
    %v2533 = vsel %vm169, %v2532, %v2515
    %v2534 = vrot.slane %v2515, 4
    %v2535 = vsel %vm169, %v2527, %v2534
    %v2537 = vunpack.c.l.s4 1934713408
    %v2538 = vunpack.c.0.s8 %v2537
    %v2539 = vperm.slane %v2533, %v2538
    %v2541 = vunpack.c.l.s4 1934713408
    %v2542 = vunpack.c.0.s8 %v2541
    %v2543 = vperm.slane %v2535, %v2542
    %v2544 = vrot.slane %v2531, 4
    %v2545 = vsel %vm169, %v2544, %v2519
    %v2546 = vrot.slane %v2519, 4
    %v2547 = vsel %vm169, %v2531, %v2546
    %v2549 = vunpack.c.l.s4 1934713408
    %v2550 = vunpack.c.0.s8 %v2549
    %v2551 = vperm.slane %v2545, %v2550
    %v2553 = vunpack.c.l.s4 1934713408
    %v2554 = vunpack.c.0.s8 %v2553
    %v2555 = vperm.slane %v2547, %v2554
    %v2556 = vrot.slane %v2539, 4
    %v2557 = vsel %vm169, 0.0, %v2556
    %v2558 = vrot.slane %v2543, 4
    %v2559 = vsel %vm169, 0.0, %v2558
    %v2560 = vrot.slane %v2551, 4
    %v2561 = vsel %vm169, 0.0, %v2560
    %v2562 = vrot.slane %v2555, 4
    %v2563 = vsel %vm169, 0.0, %v2562
    %v2564 = vrot.slane %v2505, 4
    %v2565 = vsel %vm169, %v2564, %v2501
    %v2566 = vrot.slane %v2501, 4
    %v2567 = vsel %vm169, %v2505, %v2566
    %v2569 = vunpack.c.l.s4 1983009808
    %v2570 = vunpack.c.0.s8 %v2569
    %v2571 = vperm.slane %v2565, %v2570
    %v2573 = vunpack.c.l.s4 1983009808
    %v2574 = vunpack.c.0.s8 %v2573
    %v2575 = vperm.slane %v2567, %v2574
    %v2576 = vrot.slane %v2507, 4
    %v2577 = vsel %vm169, %v2576, %v2503
    %v2578 = vrot.slane %v2503, 4
    %v2579 = vsel %vm169, %v2507, %v2578
    %v2581 = vunpack.c.l.s4 1983009808
    %v2582 = vunpack.c.0.s8 %v2581
    %v2583 = vperm.slane %v2577, %v2582
    %v2585 = vunpack.c.l.s4 1983009808
    %v2586 = vunpack.c.0.s8 %v2585
    %v2587 = vperm.slane %v2579, %v2586
    %v2588 = vrot.slane %v2583, 4
    %v2589 = vsel %vm169, %v2588, %v2571
    %v2590 = vrot.slane %v2571, 4
    %v2591 = vsel %vm169, %v2583, %v2590
    %v2593 = vunpack.c.l.s4 1934713408
    %v2594 = vunpack.c.0.s8 %v2593
    %v2595 = vperm.slane %v2589, %v2594
    %v2597 = vunpack.c.l.s4 1934713408
    %v2598 = vunpack.c.0.s8 %v2597
    %v2599 = vperm.slane %v2591, %v2598
    %v2600 = vrot.slane %v2587, 4
    %v2601 = vsel %vm169, %v2600, %v2575
    %v2602 = vrot.slane %v2575, 4
    %v2603 = vsel %vm169, %v2587, %v2602
    %v2605 = vunpack.c.l.s4 1934713408
    %v2606 = vunpack.c.0.s8 %v2605
    %v2607 = vperm.slane %v2601, %v2606
    %v2609 = vunpack.c.l.s4 1934713408
    %v2610 = vunpack.c.0.s8 %v2609
    %v2611 = vperm.slane %v2603, %v2610
    %v2612 = vrot.slane %v2595, 4
    %v2613 = vsel %vm169, 0.0, %v2612
    %v2614 = vrot.slane %v2599, 4
    %v2615 = vsel %vm169, 0.0, %v2614
    %v2616 = vrot.slane %v2607, 4
    %v2617 = vsel %vm169, 0.0, %v2616
    %v2618 = vrot.slane %v2611, 4
    %v2619 = vsel %vm169, 0.0, %v2618
    %2621 = vrot.lane.b32.xlu0 %v2557, 16
    %v2622 = vpop.permute.xlu0 %2621
    %2625 = vrot.lane.b32.xlu0 %v2543, 32
    %v2626 = vpop.permute.xlu0 %2625
    %2629 = vrot.lane.b32.xlu0 %v2559, 48
    %v2630 = vpop.permute.xlu0 %2629
    %2633 = vrot.lane.b32.xlu0 %v2551, 64
    %v2634 = vpop.permute.xlu0 %2633
    %2637 = vrot.lane.b32.xlu0 %v2561, 80
    %v2638 = vpop.permute.xlu0 %2637
    %2641 = vrot.lane.b32.xlu0 %v2555, 96
    %v2642 = vpop.permute.xlu0 %2641
    %2645 = vrot.lane.b32.xlu0 %v2563, 112
    %v2646 = vpop.permute.xlu0 %2645
    %2649 = vrot.lane.b32.xlu0 %v2613, 16
    %v2650 = vpop.permute.xlu0 %2649
    %2653 = vrot.lane.b32.xlu0 %v2599, 32
    %v2654 = vpop.permute.xlu0 %2653
    %2657 = vrot.lane.b32.xlu0 %v2615, 48
    %v2658 = vpop.permute.xlu0 %2657
    %2661 = vrot.lane.b32.xlu0 %v2607, 64
    %v2662 = vpop.permute.xlu0 %2661
    %2665 = vrot.lane.b32.xlu0 %v2617, 80
    %v2666 = vpop.permute.xlu0 %2665
    %2669 = vrot.lane.b32.xlu0 %v2611, 96
    %v2670 = vpop.permute.xlu0 %2669
    %2673 = vrot.lane.b32.xlu0 %v2619, 112
    %v2674 = vpop.permute.xlu0 %2673
    %v2676 = vsel %vm337, %v2539, %v2622
    %v2677 = vsel %vm339, %v2676, %v2626
    %v2678 = vsel %vm341, %v2677, %v2630
    %v2679 = vsel %vm343, %v2678, %v2634
    %v2680 = vsel %vm345, %v2679, %v2638
    %v2681 = vsel %vm347, %v2680, %v2642
    %v2682 = vsel %vm349, %v2681, %v2646
    %v2683 = vsel %vm337, %v2595, %v2650
    %v2684 = vsel %vm339, %v2683, %v2654
    %v2685 = vsel %vm341, %v2684, %v2658
    %v2686 = vsel %vm343, %v2685, %v2662
    %v2687 = vsel %vm345, %v2686, %v2666
    %v2688 = vsel %vm347, %v2687, %v2670
    %v2689 = vsel %vm349, %v2688, %v2674
    %v2690 = vpack.c.bf16 %v2689, %v2682
    %v2692 = vunpack.c.l.b16 %v2690
    %v2693 = vunpack.c.h.b16 %v2690
    %v2694 = vpack.c.b16 %v2692, %v2692
    %v2695 = vpack.c.b16 %v2693, %v2693
    %v2697 = vsel %vm364, %v2694, 0
    %v2699 = vsel %vm364, %v2695, 0
    %v2702 = vunpack.c.l.b16 %v2697
    %v2703 = vunpack.c.l.b16 %v2699
    %v2704 = vpack.c.b16 %v2703, %v2702
    %2706 = vst [vmem:[#allocation3 + $0xa0] sm:$0xff] %v2704
    %v2707 = vld [vmem:[%s2499] sm:$0xff]
    %v2708 = vld [vmem:[%s2499 + $0x8] sm:$0xff]
    %v2709 = vld [vmem:[%s2499 + $0x18] sm:$0xff]
    %v2710 = vld [vmem:[%s2499 + $0x20] sm:$0xff]
    %v2711 = vld [vmem:[%s2499 + $0x30] sm:$0xff]
    %v2712 = vld [vmem:[%s2499 + $0x38] sm:$0xff]
    %v2713 = vld [vmem:[%s2499 + $0x48] sm:$0xff]
    %v2714 = vld [vmem:[%s2499 + $0x50] sm:$0xff]
    %2723 = vrot.lane.b32.xlu0 %v2707, 127
    %v2724 = vpop.permute.xlu0 %2723
    %2725 = vrot.lane.b32.xlu0 %v2708, 127
    %v2726 = vpop.permute.xlu0 %2725
    %2727 = vrot.lane.b32.xlu0 %v2709, 127
    %v2728 = vpop.permute.xlu0 %2727
    %2729 = vrot.lane.b32.xlu0 %v2710, 127
    %v2730 = vpop.permute.xlu0 %2729
    %2731 = vrot.lane.b32.xlu0 %v2711, 127
    %v2732 = vpop.permute.xlu0 %2731
    %2733 = vrot.lane.b32.xlu0 %v2712, 127
    %v2734 = vpop.permute.xlu0 %2733
    %2735 = vrot.lane.b32.xlu0 %v2713, 127
    %v2736 = vpop.permute.xlu0 %2735
    %2737 = vrot.lane.b32.xlu0 %v2714, 127
    %v2738 = vpop.permute.xlu0 %2737
    %v2747 = vrot.slane %v2732, 4
    %v2748 = vsel %vm169, %v2747, %v2724
    %v2749 = vrot.slane %v2724, 4
    %v2750 = vsel %vm169, %v2732, %v2749
    %v2752 = vunpack.c.l.s4 1983009808
    %v2753 = vunpack.c.0.s8 %v2752
    %v2754 = vperm.slane %v2748, %v2753
    %v2756 = vunpack.c.l.s4 1983009808
    %v2757 = vunpack.c.0.s8 %v2756
    %v2758 = vperm.slane %v2750, %v2757
    %v2759 = vrot.slane %v2736, 4
    %v2760 = vsel %vm169, %v2759, %v2728
    %v2761 = vrot.slane %v2728, 4
    %v2762 = vsel %vm169, %v2736, %v2761
    %v2764 = vunpack.c.l.s4 1983009808
    %v2765 = vunpack.c.0.s8 %v2764
    %v2766 = vperm.slane %v2760, %v2765
    %v2768 = vunpack.c.l.s4 1983009808
    %v2769 = vunpack.c.0.s8 %v2768
    %v2770 = vperm.slane %v2762, %v2769
    %v2771 = vrot.slane %v2766, 4
    %v2772 = vsel %vm169, %v2771, %v2754
    %v2773 = vrot.slane %v2754, 4
    %v2774 = vsel %vm169, %v2766, %v2773
    %v2776 = vunpack.c.l.s4 1934713408
    %v2777 = vunpack.c.0.s8 %v2776
    %v2778 = vperm.slane %v2772, %v2777
    %v2780 = vunpack.c.l.s4 1934713408
    %v2781 = vunpack.c.0.s8 %v2780
    %v2782 = vperm.slane %v2774, %v2781
    %v2783 = vrot.slane %v2770, 4
    %v2784 = vsel %vm169, %v2783, %v2758
    %v2785 = vrot.slane %v2758, 4
    %v2786 = vsel %vm169, %v2770, %v2785
    %v2788 = vunpack.c.l.s4 1934713408
    %v2789 = vunpack.c.0.s8 %v2788
    %v2790 = vperm.slane %v2784, %v2789
    %v2792 = vunpack.c.l.s4 1934713408
    %v2793 = vunpack.c.0.s8 %v2792
    %v2794 = vperm.slane %v2786, %v2793
    %v2795 = vrot.slane %v2778, 4
    %v2796 = vsel %vm169, 0.0, %v2795
    %v2797 = vrot.slane %v2782, 4
    %v2798 = vsel %vm169, 0.0, %v2797
    %v2799 = vrot.slane %v2790, 4
    %v2800 = vsel %vm169, 0.0, %v2799
    %v2801 = vrot.slane %v2794, 4
    %v2802 = vsel %vm169, 0.0, %v2801
    %v2803 = vrot.slane %v2734, 4
    %v2804 = vsel %vm169, %v2803, %v2726
    %v2805 = vrot.slane %v2726, 4
    %v2806 = vsel %vm169, %v2734, %v2805
    %v2808 = vunpack.c.l.s4 1983009808
    %v2809 = vunpack.c.0.s8 %v2808
    %v2810 = vperm.slane %v2804, %v2809
    %v2812 = vunpack.c.l.s4 1983009808
    %v2813 = vunpack.c.0.s8 %v2812
    %v2814 = vperm.slane %v2806, %v2813
    %v2815 = vrot.slane %v2738, 4
    %v2816 = vsel %vm169, %v2815, %v2730
    %v2817 = vrot.slane %v2730, 4
    %v2818 = vsel %vm169, %v2738, %v2817
    %v2820 = vunpack.c.l.s4 1983009808
    %v2821 = vunpack.c.0.s8 %v2820
    %v2822 = vperm.slane %v2816, %v2821
    %v2824 = vunpack.c.l.s4 1983009808
    %v2825 = vunpack.c.0.s8 %v2824
    %v2826 = vperm.slane %v2818, %v2825
    %v2827 = vrot.slane %v2822, 4
    %v2828 = vsel %vm169, %v2827, %v2810
    %v2829 = vrot.slane %v2810, 4
    %v2830 = vsel %vm169, %v2822, %v2829
    %v2832 = vunpack.c.l.s4 1934713408
    %v2833 = vunpack.c.0.s8 %v2832
    %v2834 = vperm.slane %v2828, %v2833
    %v2836 = vunpack.c.l.s4 1934713408
    %v2837 = vunpack.c.0.s8 %v2836
    %v2838 = vperm.slane %v2830, %v2837
    %v2839 = vrot.slane %v2826, 4
    %v2840 = vsel %vm169, %v2839, %v2814
    %v2841 = vrot.slane %v2814, 4
    %v2842 = vsel %vm169, %v2826, %v2841
    %v2844 = vunpack.c.l.s4 1934713408
    %v2845 = vunpack.c.0.s8 %v2844
    %v2846 = vperm.slane %v2840, %v2845
    %v2848 = vunpack.c.l.s4 1934713408
    %v2849 = vunpack.c.0.s8 %v2848
    %v2850 = vperm.slane %v2842, %v2849
    %v2851 = vrot.slane %v2834, 4
    %v2852 = vsel %vm169, 0.0, %v2851
    %v2853 = vrot.slane %v2838, 4
    %v2854 = vsel %vm169, 0.0, %v2853
    %v2855 = vrot.slane %v2846, 4
    %v2856 = vsel %vm169, 0.0, %v2855
    %v2857 = vrot.slane %v2850, 4
    %v2858 = vsel %vm169, 0.0, %v2857
    %2860 = vrot.lane.b32.xlu0 %v2796, 16
    %v2861 = vpop.permute.xlu0 %2860
    %2864 = vrot.lane.b32.xlu0 %v2782, 32
    %v2865 = vpop.permute.xlu0 %2864
    %2868 = vrot.lane.b32.xlu0 %v2798, 48
    %v2869 = vpop.permute.xlu0 %2868
    %2872 = vrot.lane.b32.xlu0 %v2790, 64
    %v2873 = vpop.permute.xlu0 %2872
    %2876 = vrot.lane.b32.xlu0 %v2800, 80
    %v2877 = vpop.permute.xlu0 %2876
    %2880 = vrot.lane.b32.xlu0 %v2794, 96
    %v2881 = vpop.permute.xlu0 %2880
    %2884 = vrot.lane.b32.xlu0 %v2802, 112
    %v2885 = vpop.permute.xlu0 %2884
    %2888 = vrot.lane.b32.xlu0 %v2852, 16
    %v2889 = vpop.permute.xlu0 %2888
    %2892 = vrot.lane.b32.xlu0 %v2838, 32
    %v2893 = vpop.permute.xlu0 %2892
    %2896 = vrot.lane.b32.xlu0 %v2854, 48
    %v2897 = vpop.permute.xlu0 %2896
    %2900 = vrot.lane.b32.xlu0 %v2846, 64
    %v2901 = vpop.permute.xlu0 %2900
    %2904 = vrot.lane.b32.xlu0 %v2856, 80
    %v2905 = vpop.permute.xlu0 %2904
    %2908 = vrot.lane.b32.xlu0 %v2850, 96
    %v2909 = vpop.permute.xlu0 %2908
    %2912 = vrot.lane.b32.xlu0 %v2858, 112
    %v2913 = vpop.permute.xlu0 %2912
    %v2915 = vsel %vm337, %v2778, %v2861
    %v2916 = vsel %vm339, %v2915, %v2865
    %v2917 = vsel %vm341, %v2916, %v2869
    %v2918 = vsel %vm343, %v2917, %v2873
    %v2919 = vsel %vm345, %v2918, %v2877
    %v2920 = vsel %vm347, %v2919, %v2881
    %v2921 = vsel %vm349, %v2920, %v2885
    %v2922 = vsel %vm337, %v2834, %v2889
    %v2923 = vsel %vm339, %v2922, %v2893
    %v2924 = vsel %vm341, %v2923, %v2897
    %v2925 = vsel %vm343, %v2924, %v2901
    %v2926 = vsel %vm345, %v2925, %v2905
    %v2927 = vsel %vm347, %v2926, %v2909
    %v2928 = vsel %vm349, %v2927, %v2913
    %v2929 = vpack.c.bf16 %v2928, %v2921
    %v2931 = vunpack.c.l.b16 %v2929
    %v2932 = vunpack.c.h.b16 %v2929
    %v2933 = vpack.c.b16 %v2931, %v2931
    %v2934 = vpack.c.b16 %v2932, %v2932
    %v2936 = vsel %vm364, %v2933, 0
    %v2938 = vsel %vm364, %v2934, 0
    %v2941 = vunpack.c.l.b16 %v2936
    %v2942 = vunpack.c.l.b16 %v2938
    %v2943 = vpack.c.b16 %v2942, %v2941
    %2945 = vst [vmem:[#allocation3 + $0xb0] sm:$0xff] %v2943
    %v2946 = vld [vmem:[%s2499] sm:$0xff]
    %v2947 = vld [vmem:[%s2499 + $0x8] sm:$0xff]
    %v2948 = vld [vmem:[%s2499 + $0x18] sm:$0xff]
    %v2949 = vld [vmem:[%s2499 + $0x20] sm:$0xff]
    %v2950 = vld [vmem:[%s2499 + $0x30] sm:$0xff]
    %v2951 = vld [vmem:[%s2499 + $0x38] sm:$0xff]
    %v2952 = vld [vmem:[%s2499 + $0x48] sm:$0xff]
    %v2953 = vld [vmem:[%s2499 + $0x50] sm:$0xff]
    %2962 = vrot.lane.b32.xlu0 %v2946, 126
    %v2963 = vpop.permute.xlu0 %2962
    %2964 = vrot.lane.b32.xlu0 %v2947, 126
    %v2965 = vpop.permute.xlu0 %2964
    %2966 = vrot.lane.b32.xlu0 %v2948, 126
    %v2967 = vpop.permute.xlu0 %2966
    %2968 = vrot.lane.b32.xlu0 %v2949, 126
    %v2969 = vpop.permute.xlu0 %2968
    %2970 = vrot.lane.b32.xlu0 %v2950, 126
    %v2971 = vpop.permute.xlu0 %2970
    %2972 = vrot.lane.b32.xlu0 %v2951, 126
    %v2973 = vpop.permute.xlu0 %2972
    %2974 = vrot.lane.b32.xlu0 %v2952, 126
    %v2975 = vpop.permute.xlu0 %2974
    %2976 = vrot.lane.b32.xlu0 %v2953, 126
    %v2977 = vpop.permute.xlu0 %2976
    %v2986 = vrot.slane %v2971, 4
    %v2987 = vsel %vm169, %v2986, %v2963
    %v2988 = vrot.slane %v2963, 4
    %v2989 = vsel %vm169, %v2971, %v2988
    %v2991 = vunpack.c.l.s4 1983009808
    %v2992 = vunpack.c.0.s8 %v2991
    %v2993 = vperm.slane %v2987, %v2992
    %v2995 = vunpack.c.l.s4 1983009808
    %v2996 = vunpack.c.0.s8 %v2995
    %v2997 = vperm.slane %v2989, %v2996
    %v2998 = vrot.slane %v2975, 4
    %v2999 = vsel %vm169, %v2998, %v2967
    %v3000 = vrot.slane %v2967, 4
    %v3001 = vsel %vm169, %v2975, %v3000
    %v3003 = vunpack.c.l.s4 1983009808
    %v3004 = vunpack.c.0.s8 %v3003
    %v3005 = vperm.slane %v2999, %v3004
    %v3007 = vunpack.c.l.s4 1983009808
    %v3008 = vunpack.c.0.s8 %v3007
    %v3009 = vperm.slane %v3001, %v3008
    %v3010 = vrot.slane %v3005, 4
    %v3011 = vsel %vm169, %v3010, %v2993
    %v3012 = vrot.slane %v2993, 4
    %v3013 = vsel %vm169, %v3005, %v3012
    %v3015 = vunpack.c.l.s4 1934713408
    %v3016 = vunpack.c.0.s8 %v3015
    %v3017 = vperm.slane %v3011, %v3016
    %v3019 = vunpack.c.l.s4 1934713408
    %v3020 = vunpack.c.0.s8 %v3019
    %v3021 = vperm.slane %v3013, %v3020
    %v3022 = vrot.slane %v3009, 4
    %v3023 = vsel %vm169, %v3022, %v2997
    %v3024 = vrot.slane %v2997, 4
    %v3025 = vsel %vm169, %v3009, %v3024
    %v3027 = vunpack.c.l.s4 1934713408
    %v3028 = vunpack.c.0.s8 %v3027
    %v3029 = vperm.slane %v3023, %v3028
    %v3031 = vunpack.c.l.s4 1934713408
    %v3032 = vunpack.c.0.s8 %v3031
    %v3033 = vperm.slane %v3025, %v3032
    %v3034 = vrot.slane %v3017, 4
    %v3035 = vsel %vm169, 0.0, %v3034
    %v3036 = vrot.slane %v3021, 4
    %v3037 = vsel %vm169, 0.0, %v3036
    %v3038 = vrot.slane %v3029, 4
    %v3039 = vsel %vm169, 0.0, %v3038
    %v3040 = vrot.slane %v3033, 4
    %v3041 = vsel %vm169, 0.0, %v3040
    %v3042 = vrot.slane %v2973, 4
    %v3043 = vsel %vm169, %v3042, %v2965
    %v3044 = vrot.slane %v2965, 4
    %v3045 = vsel %vm169, %v2973, %v3044
    %v3047 = vunpack.c.l.s4 1983009808
    %v3048 = vunpack.c.0.s8 %v3047
    %v3049 = vperm.slane %v3043, %v3048
    %v3051 = vunpack.c.l.s4 1983009808
    %v3052 = vunpack.c.0.s8 %v3051
    %v3053 = vperm.slane %v3045, %v3052
    %v3054 = vrot.slane %v2977, 4
    %v3055 = vsel %vm169, %v3054, %v2969
    %v3056 = vrot.slane %v2969, 4
    %v3057 = vsel %vm169, %v2977, %v3056
    %v3059 = vunpack.c.l.s4 1983009808
    %v3060 = vunpack.c.0.s8 %v3059
    %v3061 = vperm.slane %v3055, %v3060
    %v3063 = vunpack.c.l.s4 1983009808
    %v3064 = vunpack.c.0.s8 %v3063
    %v3065 = vperm.slane %v3057, %v3064
    %v3066 = vrot.slane %v3061, 4
    %v3067 = vsel %vm169, %v3066, %v3049
    %v3068 = vrot.slane %v3049, 4
    %v3069 = vsel %vm169, %v3061, %v3068
    %v3071 = vunpack.c.l.s4 1934713408
    %v3072 = vunpack.c.0.s8 %v3071
    %v3073 = vperm.slane %v3067, %v3072
    %v3075 = vunpack.c.l.s4 1934713408
    %v3076 = vunpack.c.0.s8 %v3075
    %v3077 = vperm.slane %v3069, %v3076
    %v3078 = vrot.slane %v3065, 4
    %v3079 = vsel %vm169, %v3078, %v3053
    %v3080 = vrot.slane %v3053, 4
    %v3081 = vsel %vm169, %v3065, %v3080
    %v3083 = vunpack.c.l.s4 1934713408
    %v3084 = vunpack.c.0.s8 %v3083
    %v3085 = vperm.slane %v3079, %v3084
    %v3087 = vunpack.c.l.s4 1934713408
    %v3088 = vunpack.c.0.s8 %v3087
    %v3089 = vperm.slane %v3081, %v3088
    %v3090 = vrot.slane %v3073, 4
    %v3091 = vsel %vm169, 0.0, %v3090
    %v3092 = vrot.slane %v3077, 4
    %v3093 = vsel %vm169, 0.0, %v3092
    %v3094 = vrot.slane %v3085, 4
    %v3095 = vsel %vm169, 0.0, %v3094
    %v3096 = vrot.slane %v3089, 4
    %v3097 = vsel %vm169, 0.0, %v3096
    %3099 = vrot.lane.b32.xlu0 %v3035, 16
    %v3100 = vpop.permute.xlu0 %3099
    %3103 = vrot.lane.b32.xlu0 %v3021, 32
    %v3104 = vpop.permute.xlu0 %3103
    %3107 = vrot.lane.b32.xlu0 %v3037, 48
    %v3108 = vpop.permute.xlu0 %3107
    %3111 = vrot.lane.b32.xlu0 %v3029, 64
    %v3112 = vpop.permute.xlu0 %3111
    %3115 = vrot.lane.b32.xlu0 %v3039, 80
    %v3116 = vpop.permute.xlu0 %3115
    %3119 = vrot.lane.b32.xlu0 %v3033, 96
    %v3120 = vpop.permute.xlu0 %3119
    %3123 = vrot.lane.b32.xlu0 %v3041, 112
    %v3124 = vpop.permute.xlu0 %3123
    %3127 = vrot.lane.b32.xlu0 %v3091, 16
    %v3128 = vpop.permute.xlu0 %3127
    %3131 = vrot.lane.b32.xlu0 %v3077, 32
    %v3132 = vpop.permute.xlu0 %3131
    %3135 = vrot.lane.b32.xlu0 %v3093, 48
    %v3136 = vpop.permute.xlu0 %3135
    %3139 = vrot.lane.b32.xlu0 %v3085, 64
    %v3140 = vpop.permute.xlu0 %3139
    %3143 = vrot.lane.b32.xlu0 %v3095, 80
    %v3144 = vpop.permute.xlu0 %3143
    %3147 = vrot.lane.b32.xlu0 %v3089, 96
    %v3148 = vpop.permute.xlu0 %3147
    %3151 = vrot.lane.b32.xlu0 %v3097, 112
    %v3152 = vpop.permute.xlu0 %3151
    %v3154 = vsel %vm337, %v3017, %v3100
    %v3155 = vsel %vm339, %v3154, %v3104
    %v3156 = vsel %vm341, %v3155, %v3108
    %v3157 = vsel %vm343, %v3156, %v3112
    %v3158 = vsel %vm345, %v3157, %v3116
    %v3159 = vsel %vm347, %v3158, %v3120
    %v3160 = vsel %vm349, %v3159, %v3124
    %v3161 = vsel %vm337, %v3073, %v3128
    %v3162 = vsel %vm339, %v3161, %v3132
    %v3163 = vsel %vm341, %v3162, %v3136
    %v3164 = vsel %vm343, %v3163, %v3140
    %v3165 = vsel %vm345, %v3164, %v3144
    %v3166 = vsel %vm347, %v3165, %v3148
    %v3167 = vsel %vm349, %v3166, %v3152
    %v3168 = vpack.c.bf16 %v3167, %v3160
    %v3170 = vunpack.c.l.b16 %v3168
    %v3171 = vunpack.c.h.b16 %v3168
    %v3172 = vpack.c.b16 %v3170, %v3170
    %v3173 = vpack.c.b16 %v3171, %v3171
    %v3175 = vsel %vm364, %v3172, 0
    %v3177 = vsel %vm364, %v3173, 0
    %v3180 = vunpack.c.l.b16 %v3175
    %v3181 = vunpack.c.l.b16 %v3177
    %v3182 = vpack.c.b16 %v3181, %v3180
    %3184 = vst [vmem:[#allocation3 + $0xc0] sm:$0xff] %v3182
    %v3185 = vld [vmem:[%s2499] sm:$0xff]
    %v3186 = vld [vmem:[%s2499 + $0x8] sm:$0xff]
    %v3187 = vld [vmem:[%s2499 + $0x18] sm:$0xff]
    %v3188 = vld [vmem:[%s2499 + $0x20] sm:$0xff]
    %v3189 = vld [vmem:[%s2499 + $0x30] sm:$0xff]
    %v3190 = vld [vmem:[%s2499 + $0x38] sm:$0xff]
    %v3191 = vld [vmem:[%s2499 + $0x48] sm:$0xff]
    %v3192 = vld [vmem:[%s2499 + $0x50] sm:$0xff]
    %3201 = vrot.lane.b32.xlu0 %v3185, 125
    %v3202 = vpop.permute.xlu0 %3201
    %3203 = vrot.lane.b32.xlu0 %v3186, 125
    %v3204 = vpop.permute.xlu0 %3203
    %3205 = vrot.lane.b32.xlu0 %v3187, 125
    %v3206 = vpop.permute.xlu0 %3205
    %3207 = vrot.lane.b32.xlu0 %v3188, 125
    %v3208 = vpop.permute.xlu0 %3207
    %3209 = vrot.lane.b32.xlu0 %v3189, 125
    %v3210 = vpop.permute.xlu0 %3209
    %3211 = vrot.lane.b32.xlu0 %v3190, 125
    %v3212 = vpop.permute.xlu0 %3211
    %3213 = vrot.lane.b32.xlu0 %v3191, 125
    %v3214 = vpop.permute.xlu0 %3213
    %3215 = vrot.lane.b32.xlu0 %v3192, 125
    %v3216 = vpop.permute.xlu0 %3215
    %v3225 = vrot.slane %v3210, 4
    %v3226 = vsel %vm169, %v3225, %v3202
    %v3227 = vrot.slane %v3202, 4
    %v3228 = vsel %vm169, %v3210, %v3227
    %v3230 = vunpack.c.l.s4 1983009808
    %v3231 = vunpack.c.0.s8 %v3230
    %v3232 = vperm.slane %v3226, %v3231
    %v3234 = vunpack.c.l.s4 1983009808
    %v3235 = vunpack.c.0.s8 %v3234
    %v3236 = vperm.slane %v3228, %v3235
    %v3237 = vrot.slane %v3214, 4
    %v3238 = vsel %vm169, %v3237, %v3206
    %v3239 = vrot.slane %v3206, 4
    %v3240 = vsel %vm169, %v3214, %v3239
    %v3242 = vunpack.c.l.s4 1983009808
    %v3243 = vunpack.c.0.s8 %v3242
    %v3244 = vperm.slane %v3238, %v3243
    %v3246 = vunpack.c.l.s4 1983009808
    %v3247 = vunpack.c.0.s8 %v3246
    %v3248 = vperm.slane %v3240, %v3247
    %v3249 = vrot.slane %v3244, 4
    %v3250 = vsel %vm169, %v3249, %v3232
    %v3251 = vrot.slane %v3232, 4
    %v3252 = vsel %vm169, %v3244, %v3251
    %v3254 = vunpack.c.l.s4 1934713408
    %v3255 = vunpack.c.0.s8 %v3254
    %v3256 = vperm.slane %v3250, %v3255
    %v3258 = vunpack.c.l.s4 1934713408
    %v3259 = vunpack.c.0.s8 %v3258
    %v3260 = vperm.slane %v3252, %v3259
    %v3261 = vrot.slane %v3248, 4
    %v3262 = vsel %vm169, %v3261, %v3236
    %v3263 = vrot.slane %v3236, 4
    %v3264 = vsel %vm169, %v3248, %v3263
    %v3266 = vunpack.c.l.s4 1934713408
    %v3267 = vunpack.c.0.s8 %v3266
    %v3268 = vperm.slane %v3262, %v3267
    %v3270 = vunpack.c.l.s4 1934713408
    %v3271 = vunpack.c.0.s8 %v3270
    %v3272 = vperm.slane %v3264, %v3271
    %v3273 = vrot.slane %v3256, 4
    %v3274 = vsel %vm169, 0.0, %v3273
    %v3275 = vrot.slane %v3260, 4
    %v3276 = vsel %vm169, 0.0, %v3275
    %v3277 = vrot.slane %v3268, 4
    %v3278 = vsel %vm169, 0.0, %v3277
    %v3279 = vrot.slane %v3272, 4
    %v3280 = vsel %vm169, 0.0, %v3279
    %v3281 = vrot.slane %v3212, 4
    %v3282 = vsel %vm169, %v3281, %v3204
    %v3283 = vrot.slane %v3204, 4
    %v3284 = vsel %vm169, %v3212, %v3283
    %v3286 = vunpack.c.l.s4 1983009808
    %v3287 = vunpack.c.0.s8 %v3286
    %v3288 = vperm.slane %v3282, %v3287
    %v3290 = vunpack.c.l.s4 1983009808
    %v3291 = vunpack.c.0.s8 %v3290
    %v3292 = vperm.slane %v3284, %v3291
    %v3293 = vrot.slane %v3216, 4
    %v3294 = vsel %vm169, %v3293, %v3208
    %v3295 = vrot.slane %v3208, 4
    %v3296 = vsel %vm169, %v3216, %v3295
    %v3298 = vunpack.c.l.s4 1983009808
    %v3299 = vunpack.c.0.s8 %v3298
    %v3300 = vperm.slane %v3294, %v3299
    %v3302 = vunpack.c.l.s4 1983009808
    %v3303 = vunpack.c.0.s8 %v3302
    %v3304 = vperm.slane %v3296, %v3303
    %v3305 = vrot.slane %v3300, 4
    %v3306 = vsel %vm169, %v3305, %v3288
    %v3307 = vrot.slane %v3288, 4
    %v3308 = vsel %vm169, %v3300, %v3307
    %v3310 = vunpack.c.l.s4 1934713408
    %v3311 = vunpack.c.0.s8 %v3310
    %v3312 = vperm.slane %v3306, %v3311
    %v3314 = vunpack.c.l.s4 1934713408
    %v3315 = vunpack.c.0.s8 %v3314
    %v3316 = vperm.slane %v3308, %v3315
    %v3317 = vrot.slane %v3304, 4
    %v3318 = vsel %vm169, %v3317, %v3292
    %v3319 = vrot.slane %v3292, 4
    %v3320 = vsel %vm169, %v3304, %v3319
    %v3322 = vunpack.c.l.s4 1934713408
    %v3323 = vunpack.c.0.s8 %v3322
    %v3324 = vperm.slane %v3318, %v3323
    %v3326 = vunpack.c.l.s4 1934713408
    %v3327 = vunpack.c.0.s8 %v3326
    %v3328 = vperm.slane %v3320, %v3327
    %v3329 = vrot.slane %v3312, 4
    %v3330 = vsel %vm169, 0.0, %v3329
    %v3331 = vrot.slane %v3316, 4
    %v3332 = vsel %vm169, 0.0, %v3331
    %v3333 = vrot.slane %v3324, 4
    %v3334 = vsel %vm169, 0.0, %v3333
    %v3335 = vrot.slane %v3328, 4
    %v3336 = vsel %vm169, 0.0, %v3335
    %3338 = vrot.lane.b32.xlu0 %v3274, 16
    %v3339 = vpop.permute.xlu0 %3338
    %3342 = vrot.lane.b32.xlu0 %v3260, 32
    %v3343 = vpop.permute.xlu0 %3342
    %3346 = vrot.lane.b32.xlu0 %v3276, 48
    %v3347 = vpop.permute.xlu0 %3346
    %3350 = vrot.lane.b32.xlu0 %v3268, 64
    %v3351 = vpop.permute.xlu0 %3350
    %3354 = vrot.lane.b32.xlu0 %v3278, 80
    %v3355 = vpop.permute.xlu0 %3354
    %3358 = vrot.lane.b32.xlu0 %v3272, 96
    %v3359 = vpop.permute.xlu0 %3358
    %3362 = vrot.lane.b32.xlu0 %v3280, 112
    %v3363 = vpop.permute.xlu0 %3362
    %3366 = vrot.lane.b32.xlu0 %v3330, 16
    %v3367 = vpop.permute.xlu0 %3366
    %3370 = vrot.lane.b32.xlu0 %v3316, 32
    %v3371 = vpop.permute.xlu0 %3370
    %3374 = vrot.lane.b32.xlu0 %v3332, 48
    %v3375 = vpop.permute.xlu0 %3374
    %3378 = vrot.lane.b32.xlu0 %v3324, 64
    %v3379 = vpop.permute.xlu0 %3378
    %3382 = vrot.lane.b32.xlu0 %v3334, 80
    %v3383 = vpop.permute.xlu0 %3382
    %3386 = vrot.lane.b32.xlu0 %v3328, 96
    %v3387 = vpop.permute.xlu0 %3386
    %3390 = vrot.lane.b32.xlu0 %v3336, 112
    %v3391 = vpop.permute.xlu0 %3390
    %v3393 = vsel %vm337, %v3256, %v3339
    %v3394 = vsel %vm339, %v3393, %v3343
    %v3395 = vsel %vm341, %v3394, %v3347
    %v3396 = vsel %vm343, %v3395, %v3351
    %v3397 = vsel %vm345, %v3396, %v3355
    %v3398 = vsel %vm347, %v3397, %v3359
    %v3399 = vsel %vm349, %v3398, %v3363
    %v3400 = vsel %vm337, %v3312, %v3367
    %v3401 = vsel %vm339, %v3400, %v3371
    %v3402 = vsel %vm341, %v3401, %v3375
    %v3403 = vsel %vm343, %v3402, %v3379
    %v3404 = vsel %vm345, %v3403, %v3383
    %v3405 = vsel %vm347, %v3404, %v3387
    %v3406 = vsel %vm349, %v3405, %v3391
    %v3407 = vpack.c.bf16 %v3406, %v3399
    %v3409 = vunpack.c.l.b16 %v3407
    %v3410 = vunpack.c.h.b16 %v3407
    %v3411 = vpack.c.b16 %v3409, %v3409
    %v3412 = vpack.c.b16 %v3410, %v3410
    %v3414 = vsel %vm364, %v3411, 0
    %v3416 = vsel %vm364, %v3412, 0
    %v3419 = vunpack.c.l.b16 %v3414
    %v3420 = vunpack.c.l.b16 %v3416
    %v3421 = vpack.c.b16 %v3420, %v3419
    %3423 = vst [vmem:[#allocation3 + $0xd0] sm:$0xff] %v3421
    %v3424 = vld [vmem:[%s2499] sm:$0xff]
    %v3425 = vld [vmem:[%s2499 + $0x8] sm:$0xff]
    %v3426 = vld [vmem:[%s2499 + $0x18] sm:$0xff]
    %v3427 = vld [vmem:[%s2499 + $0x20] sm:$0xff]
    %v3428 = vld [vmem:[%s2499 + $0x30] sm:$0xff]
    %v3429 = vld [vmem:[%s2499 + $0x38] sm:$0xff]
    %v3430 = vld [vmem:[%s2499 + $0x48] sm:$0xff]
    %v3431 = vld [vmem:[%s2499 + $0x50] sm:$0xff]
    %3440 = vrot.lane.b32.xlu0 %v3424, 124
    %v3441 = vpop.permute.xlu0 %3440
    %3442 = vrot.lane.b32.xlu0 %v3425, 124
    %v3443 = vpop.permute.xlu0 %3442
    %3444 = vrot.lane.b32.xlu0 %v3426, 124
    %v3445 = vpop.permute.xlu0 %3444
    %3446 = vrot.lane.b32.xlu0 %v3427, 124
    %v3447 = vpop.permute.xlu0 %3446
    %3448 = vrot.lane.b32.xlu0 %v3428, 124
    %v3449 = vpop.permute.xlu0 %3448
    %3450 = vrot.lane.b32.xlu0 %v3429, 124
    %v3451 = vpop.permute.xlu0 %3450
    %3452 = vrot.lane.b32.xlu0 %v3430, 124
    %v3453 = vpop.permute.xlu0 %3452
    %3454 = vrot.lane.b32.xlu0 %v3431, 124
    %v3455 = vpop.permute.xlu0 %3454
    %v3464 = vrot.slane %v3449, 4
    %v3465 = vsel %vm169, %v3464, %v3441
    %v3466 = vrot.slane %v3441, 4
    %v3467 = vsel %vm169, %v3449, %v3466
    %v3469 = vunpack.c.l.s4 1983009808
    %v3470 = vunpack.c.0.s8 %v3469
    %v3471 = vperm.slane %v3465, %v3470
    %v3473 = vunpack.c.l.s4 1983009808
    %v3474 = vunpack.c.0.s8 %v3473
    %v3475 = vperm.slane %v3467, %v3474
    %v3476 = vrot.slane %v3453, 4
    %v3477 = vsel %vm169, %v3476, %v3445
    %v3478 = vrot.slane %v3445, 4
    %v3479 = vsel %vm169, %v3453, %v3478
    %v3481 = vunpack.c.l.s4 1983009808
    %v3482 = vunpack.c.0.s8 %v3481
    %v3483 = vperm.slane %v3477, %v3482
    %v3485 = vunpack.c.l.s4 1983009808
    %v3486 = vunpack.c.0.s8 %v3485
    %v3487 = vperm.slane %v3479, %v3486
    %v3488 = vrot.slane %v3483, 4
    %v3489 = vsel %vm169, %v3488, %v3471
    %v3490 = vrot.slane %v3471, 4
    %v3491 = vsel %vm169, %v3483, %v3490
    %v3493 = vunpack.c.l.s4 1934713408
    %v3494 = vunpack.c.0.s8 %v3493
    %v3495 = vperm.slane %v3489, %v3494
    %v3497 = vunpack.c.l.s4 1934713408
    %v3498 = vunpack.c.0.s8 %v3497
    %v3499 = vperm.slane %v3491, %v3498
    %v3500 = vrot.slane %v3487, 4
    %v3501 = vsel %vm169, %v3500, %v3475
    %v3502 = vrot.slane %v3475, 4
    %v3503 = vsel %vm169, %v3487, %v3502
    %v3505 = vunpack.c.l.s4 1934713408
    %v3506 = vunpack.c.0.s8 %v3505
    %v3507 = vperm.slane %v3501, %v3506
    %v3509 = vunpack.c.l.s4 1934713408
    %v3510 = vunpack.c.0.s8 %v3509
    %v3511 = vperm.slane %v3503, %v3510
    %v3512 = vrot.slane %v3495, 4
    %v3513 = vsel %vm169, 0.0, %v3512
    %v3514 = vrot.slane %v3499, 4
    %v3515 = vsel %vm169, 0.0, %v3514
    %v3516 = vrot.slane %v3507, 4
    %v3517 = vsel %vm169, 0.0, %v3516
    %v3518 = vrot.slane %v3511, 4
    %v3519 = vsel %vm169, 0.0, %v3518
    %v3520 = vrot.slane %v3451, 4
    %v3521 = vsel %vm169, %v3520, %v3443
    %v3522 = vrot.slane %v3443, 4
    %v3523 = vsel %vm169, %v3451, %v3522
    %v3525 = vunpack.c.l.s4 1983009808
    %v3526 = vunpack.c.0.s8 %v3525
    %v3527 = vperm.slane %v3521, %v3526
    %v3529 = vunpack.c.l.s4 1983009808
    %v3530 = vunpack.c.0.s8 %v3529
    %v3531 = vperm.slane %v3523, %v3530
    %v3532 = vrot.slane %v3455, 4
    %v3533 = vsel %vm169, %v3532, %v3447
    %v3534 = vrot.slane %v3447, 4
    %v3535 = vsel %vm169, %v3455, %v3534
    %v3537 = vunpack.c.l.s4 1983009808
    %v3538 = vunpack.c.0.s8 %v3537
    %v3539 = vperm.slane %v3533, %v3538
    %v3541 = vunpack.c.l.s4 1983009808
    %v3542 = vunpack.c.0.s8 %v3541
    %v3543 = vperm.slane %v3535, %v3542
    %v3544 = vrot.slane %v3539, 4
    %v3545 = vsel %vm169, %v3544, %v3527
    %v3546 = vrot.slane %v3527, 4
    %v3547 = vsel %vm169, %v3539, %v3546
    %v3549 = vunpack.c.l.s4 1934713408
    %v3550 = vunpack.c.0.s8 %v3549
    %v3551 = vperm.slane %v3545, %v3550
    %v3553 = vunpack.c.l.s4 1934713408
    %v3554 = vunpack.c.0.s8 %v3553
    %v3555 = vperm.slane %v3547, %v3554
    %v3556 = vrot.slane %v3543, 4
    %v3557 = vsel %vm169, %v3556, %v3531
    %v3558 = vrot.slane %v3531, 4
    %v3559 = vsel %vm169, %v3543, %v3558
    %v3561 = vunpack.c.l.s4 1934713408
    %v3562 = vunpack.c.0.s8 %v3561
    %v3563 = vperm.slane %v3557, %v3562
    %v3565 = vunpack.c.l.s4 1934713408
    %v3566 = vunpack.c.0.s8 %v3565
    %v3567 = vperm.slane %v3559, %v3566
    %v3568 = vrot.slane %v3551, 4
    %v3569 = vsel %vm169, 0.0, %v3568
    %v3570 = vrot.slane %v3555, 4
    %v3571 = vsel %vm169, 0.0, %v3570
    %v3572 = vrot.slane %v3563, 4
    %v3573 = vsel %vm169, 0.0, %v3572
    %v3574 = vrot.slane %v3567, 4
    %v3575 = vsel %vm169, 0.0, %v3574
    %3577 = vrot.lane.b32.xlu0 %v3513, 16
    %v3578 = vpop.permute.xlu0 %3577
    %3581 = vrot.lane.b32.xlu0 %v3499, 32
    %v3582 = vpop.permute.xlu0 %3581
    %3585 = vrot.lane.b32.xlu0 %v3515, 48
    %v3586 = vpop.permute.xlu0 %3585
    %3589 = vrot.lane.b32.xlu0 %v3507, 64
    %v3590 = vpop.permute.xlu0 %3589
    %3593 = vrot.lane.b32.xlu0 %v3517, 80
    %v3594 = vpop.permute.xlu0 %3593
    %3597 = vrot.lane.b32.xlu0 %v3511, 96
    %v3598 = vpop.permute.xlu0 %3597
    %3601 = vrot.lane.b32.xlu0 %v3519, 112
    %v3602 = vpop.permute.xlu0 %3601
    %3605 = vrot.lane.b32.xlu0 %v3569, 16
    %v3606 = vpop.permute.xlu0 %3605
    %3609 = vrot.lane.b32.xlu0 %v3555, 32
    %v3610 = vpop.permute.xlu0 %3609
    %3613 = vrot.lane.b32.xlu0 %v3571, 48
    %v3614 = vpop.permute.xlu0 %3613
    %3617 = vrot.lane.b32.xlu0 %v3563, 64
    %v3618 = vpop.permute.xlu0 %3617
    %3621 = vrot.lane.b32.xlu0 %v3573, 80
    %v3622 = vpop.permute.xlu0 %3621
    %3625 = vrot.lane.b32.xlu0 %v3567, 96
    %v3626 = vpop.permute.xlu0 %3625
    %3629 = vrot.lane.b32.xlu0 %v3575, 112
    %v3630 = vpop.permute.xlu0 %3629
    %v3632 = vsel %vm337, %v3495, %v3578
    %v3633 = vsel %vm339, %v3632, %v3582
    %v3634 = vsel %vm341, %v3633, %v3586
    %v3635 = vsel %vm343, %v3634, %v3590
    %v3636 = vsel %vm345, %v3635, %v3594
    %v3637 = vsel %vm347, %v3636, %v3598
    %v3638 = vsel %vm349, %v3637, %v3602
    %v3639 = vsel %vm337, %v3551, %v3606
    %v3640 = vsel %vm339, %v3639, %v3610
    %v3641 = vsel %vm341, %v3640, %v3614
    %v3642 = vsel %vm343, %v3641, %v3618
    %v3643 = vsel %vm345, %v3642, %v3622
    %v3644 = vsel %vm347, %v3643, %v3626
    %v3645 = vsel %vm349, %v3644, %v3630
    %v3646 = vpack.c.bf16 %v3645, %v3638
    %v3648 = vunpack.c.l.b16 %v3646
    %v3649 = vunpack.c.h.b16 %v3646
    %v3650 = vpack.c.b16 %v3648, %v3648
    %v3651 = vpack.c.b16 %v3649, %v3649
    %v3653 = vsel %vm364, %v3650, 0
    %v3655 = vsel %vm364, %v3651, 0
    %v3658 = vunpack.c.l.b16 %v3653
    %v3659 = vunpack.c.l.b16 %v3655
    %v3660 = vpack.c.b16 %v3659, %v3658
    %3662 = vst [vmem:[#allocation3 + $0xe0] sm:$0xff] %v3660
    %s3663 = sadd.s32 %s158, 3
    %s3664 = scalar_lea.vmem [#allocation2], %s3663
    %v3665 = vld [vmem:[%s3664] sm:$0xff]
    %v3666 = vld [vmem:[%s3664 + $0x8] sm:$0xff]
    %v3667 = vld [vmem:[%s3664 + $0x18] sm:$0xff]
    %v3668 = vld [vmem:[%s3664 + $0x20] sm:$0xff]
    %v3669 = vld [vmem:[%s3664 + $0x30] sm:$0xff]
    %v3670 = vld [vmem:[%s3664 + $0x38] sm:$0xff]
    %v3671 = vld [vmem:[%s3664 + $0x48] sm:$0xff]
    %v3672 = vld [vmem:[%s3664 + $0x50] sm:$0xff]
    %v3673 = vrot.slane %v3669, 4
    %v3674 = vsel %vm169, %v3673, %v3665
    %v3675 = vrot.slane %v3665, 4
    %v3676 = vsel %vm169, %v3669, %v3675
    %v3678 = vunpack.c.l.s4 1983009808
    %v3679 = vunpack.c.0.s8 %v3678
    %v3680 = vperm.slane %v3674, %v3679
    %v3682 = vunpack.c.l.s4 1983009808
    %v3683 = vunpack.c.0.s8 %v3682
    %v3684 = vperm.slane %v3676, %v3683
    %v3685 = vrot.slane %v3671, 4
    %v3686 = vsel %vm169, %v3685, %v3667
    %v3687 = vrot.slane %v3667, 4
    %v3688 = vsel %vm169, %v3671, %v3687
    %v3690 = vunpack.c.l.s4 1983009808
    %v3691 = vunpack.c.0.s8 %v3690
    %v3692 = vperm.slane %v3686, %v3691
    %v3694 = vunpack.c.l.s4 1983009808
    %v3695 = vunpack.c.0.s8 %v3694
    %v3696 = vperm.slane %v3688, %v3695
    %v3697 = vrot.slane %v3692, 4
    %v3698 = vsel %vm169, %v3697, %v3680
    %v3699 = vrot.slane %v3680, 4
    %v3700 = vsel %vm169, %v3692, %v3699
    %v3702 = vunpack.c.l.s4 1934713408
    %v3703 = vunpack.c.0.s8 %v3702
    %v3704 = vperm.slane %v3698, %v3703
    %v3706 = vunpack.c.l.s4 1934713408
    %v3707 = vunpack.c.0.s8 %v3706
    %v3708 = vperm.slane %v3700, %v3707
    %v3709 = vrot.slane %v3696, 4
    %v3710 = vsel %vm169, %v3709, %v3684
    %v3711 = vrot.slane %v3684, 4
    %v3712 = vsel %vm169, %v3696, %v3711
    %v3714 = vunpack.c.l.s4 1934713408
    %v3715 = vunpack.c.0.s8 %v3714
    %v3716 = vperm.slane %v3710, %v3715
    %v3718 = vunpack.c.l.s4 1934713408
    %v3719 = vunpack.c.0.s8 %v3718
    %v3720 = vperm.slane %v3712, %v3719
    %v3721 = vrot.slane %v3704, 4
    %v3722 = vsel %vm169, 0.0, %v3721
    %v3723 = vrot.slane %v3708, 4
    %v3724 = vsel %vm169, 0.0, %v3723
    %v3725 = vrot.slane %v3716, 4
    %v3726 = vsel %vm169, 0.0, %v3725
    %v3727 = vrot.slane %v3720, 4
    %v3728 = vsel %vm169, 0.0, %v3727
    %v3729 = vrot.slane %v3670, 4
    %v3730 = vsel %vm169, %v3729, %v3666
    %v3731 = vrot.slane %v3666, 4
    %v3732 = vsel %vm169, %v3670, %v3731
    %v3734 = vunpack.c.l.s4 1983009808
    %v3735 = vunpack.c.0.s8 %v3734
    %v3736 = vperm.slane %v3730, %v3735
    %v3738 = vunpack.c.l.s4 1983009808
    %v3739 = vunpack.c.0.s8 %v3738
    %v3740 = vperm.slane %v3732, %v3739
    %v3741 = vrot.slane %v3672, 4
    %v3742 = vsel %vm169, %v3741, %v3668
    %v3743 = vrot.slane %v3668, 4
    %v3744 = vsel %vm169, %v3672, %v3743
    %v3746 = vunpack.c.l.s4 1983009808
    %v3747 = vunpack.c.0.s8 %v3746
    %v3748 = vperm.slane %v3742, %v3747
    %v3750 = vunpack.c.l.s4 1983009808
    %v3751 = vunpack.c.0.s8 %v3750
    %v3752 = vperm.slane %v3744, %v3751
    %v3753 = vrot.slane %v3748, 4
    %v3754 = vsel %vm169, %v3753, %v3736
    %v3755 = vrot.slane %v3736, 4
    %v3756 = vsel %vm169, %v3748, %v3755
    %v3758 = vunpack.c.l.s4 1934713408
    %v3759 = vunpack.c.0.s8 %v3758
    %v3760 = vperm.slane %v3754, %v3759
    %v3762 = vunpack.c.l.s4 1934713408
    %v3763 = vunpack.c.0.s8 %v3762
    %v3764 = vperm.slane %v3756, %v3763
    %v3765 = vrot.slane %v3752, 4
    %v3766 = vsel %vm169, %v3765, %v3740
    %v3767 = vrot.slane %v3740, 4
    %v3768 = vsel %vm169, %v3752, %v3767
    %v3770 = vunpack.c.l.s4 1934713408
    %v3771 = vunpack.c.0.s8 %v3770
    %v3772 = vperm.slane %v3766, %v3771
    %v3774 = vunpack.c.l.s4 1934713408
    %v3775 = vunpack.c.0.s8 %v3774
    %v3776 = vperm.slane %v3768, %v3775
    %v3777 = vrot.slane %v3760, 4
    %v3778 = vsel %vm169, 0.0, %v3777
    %v3779 = vrot.slane %v3764, 4
    %v3780 = vsel %vm169, 0.0, %v3779
    %v3781 = vrot.slane %v3772, 4
    %v3782 = vsel %vm169, 0.0, %v3781
    %v3783 = vrot.slane %v3776, 4
    %v3784 = vsel %vm169, 0.0, %v3783
    %3786 = vrot.lane.b32.xlu0 %v3722, 16
    %v3787 = vpop.permute.xlu0 %3786
    %3790 = vrot.lane.b32.xlu0 %v3708, 32
    %v3791 = vpop.permute.xlu0 %3790
    %3794 = vrot.lane.b32.xlu0 %v3724, 48
    %v3795 = vpop.permute.xlu0 %3794
    %3798 = vrot.lane.b32.xlu0 %v3716, 64
    %v3799 = vpop.permute.xlu0 %3798
    %3802 = vrot.lane.b32.xlu0 %v3726, 80
    %v3803 = vpop.permute.xlu0 %3802
    %3806 = vrot.lane.b32.xlu0 %v3720, 96
    %v3807 = vpop.permute.xlu0 %3806
    %3810 = vrot.lane.b32.xlu0 %v3728, 112
    %v3811 = vpop.permute.xlu0 %3810
    %3814 = vrot.lane.b32.xlu0 %v3778, 16
    %v3815 = vpop.permute.xlu0 %3814
    %3818 = vrot.lane.b32.xlu0 %v3764, 32
    %v3819 = vpop.permute.xlu0 %3818
    %3822 = vrot.lane.b32.xlu0 %v3780, 48
    %v3823 = vpop.permute.xlu0 %3822
    %3826 = vrot.lane.b32.xlu0 %v3772, 64
    %v3827 = vpop.permute.xlu0 %3826
    %3830 = vrot.lane.b32.xlu0 %v3782, 80
    %v3831 = vpop.permute.xlu0 %3830
    %3834 = vrot.lane.b32.xlu0 %v3776, 96
    %v3835 = vpop.permute.xlu0 %3834
    %3838 = vrot.lane.b32.xlu0 %v3784, 112
    %v3839 = vpop.permute.xlu0 %3838
    %v3841 = vsel %vm337, %v3704, %v3787
    %v3842 = vsel %vm339, %v3841, %v3791
    %v3843 = vsel %vm341, %v3842, %v3795
    %v3844 = vsel %vm343, %v3843, %v3799
    %v3845 = vsel %vm345, %v3844, %v3803
    %v3846 = vsel %vm347, %v3845, %v3807
    %v3847 = vsel %vm349, %v3846, %v3811
    %v3848 = vsel %vm337, %v3760, %v3815
    %v3849 = vsel %vm339, %v3848, %v3819
    %v3850 = vsel %vm341, %v3849, %v3823
    %v3851 = vsel %vm343, %v3850, %v3827
    %v3852 = vsel %vm345, %v3851, %v3831
    %v3853 = vsel %vm347, %v3852, %v3835
    %v3854 = vsel %vm349, %v3853, %v3839
    %v3855 = vpack.c.bf16 %v3854, %v3847
    %v3857 = vunpack.c.l.b16 %v3855
    %v3858 = vunpack.c.h.b16 %v3855
    %v3859 = vpack.c.b16 %v3857, %v3857
    %v3860 = vpack.c.b16 %v3858, %v3858
    %v3862 = vsel %vm364, %v3859, 0
    %v3864 = vsel %vm364, %v3860, 0
    %v3867 = vunpack.c.l.b16 %v3862
    %v3868 = vunpack.c.l.b16 %v3864
    %v3869 = vpack.c.b16 %v3868, %v3867
    %3871 = vst [vmem:[#allocation3 + $0xf0] sm:$0xff] %v3869
    %v3872 = vld [vmem:[%s3664] sm:$0xff]
    %v3873 = vld [vmem:[%s3664 + $0x8] sm:$0xff]
    %v3874 = vld [vmem:[%s3664 + $0x18] sm:$0xff]
    %v3875 = vld [vmem:[%s3664 + $0x20] sm:$0xff]
    %v3876 = vld [vmem:[%s3664 + $0x30] sm:$0xff]
    %v3877 = vld [vmem:[%s3664 + $0x38] sm:$0xff]
    %v3878 = vld [vmem:[%s3664 + $0x48] sm:$0xff]
    %v3879 = vld [vmem:[%s3664 + $0x50] sm:$0xff]
    %3888 = vrot.lane.b32.xlu0 %v3872, 127
    %v3889 = vpop.permute.xlu0 %3888
    %3890 = vrot.lane.b32.xlu0 %v3873, 127
    %v3891 = vpop.permute.xlu0 %3890
    %3892 = vrot.lane.b32.xlu0 %v3874, 127
    %v3893 = vpop.permute.xlu0 %3892
    %3894 = vrot.lane.b32.xlu0 %v3875, 127
    %v3895 = vpop.permute.xlu0 %3894
    %3896 = vrot.lane.b32.xlu0 %v3876, 127
    %v3897 = vpop.permute.xlu0 %3896
    %3898 = vrot.lane.b32.xlu0 %v3877, 127
    %v3899 = vpop.permute.xlu0 %3898
    %3900 = vrot.lane.b32.xlu0 %v3878, 127
    %v3901 = vpop.permute.xlu0 %3900
    %3902 = vrot.lane.b32.xlu0 %v3879, 127
    %v3903 = vpop.permute.xlu0 %3902
    %v3912 = vrot.slane %v3897, 4
    %v3913 = vsel %vm169, %v3912, %v3889
    %v3914 = vrot.slane %v3889, 4
    %v3915 = vsel %vm169, %v3897, %v3914
    %v3917 = vunpack.c.l.s4 1983009808
    %v3918 = vunpack.c.0.s8 %v3917
    %v3919 = vperm.slane %v3913, %v3918
    %v3921 = vunpack.c.l.s4 1983009808
    %v3922 = vunpack.c.0.s8 %v3921
    %v3923 = vperm.slane %v3915, %v3922
    %v3924 = vrot.slane %v3901, 4
    %v3925 = vsel %vm169, %v3924, %v3893
    %v3926 = vrot.slane %v3893, 4
    %v3927 = vsel %vm169, %v3901, %v3926
    %v3929 = vunpack.c.l.s4 1983009808
    %v3930 = vunpack.c.0.s8 %v3929
    %v3931 = vperm.slane %v3925, %v3930
    %v3933 = vunpack.c.l.s4 1983009808
    %v3934 = vunpack.c.0.s8 %v3933
    %v3935 = vperm.slane %v3927, %v3934
    %v3936 = vrot.slane %v3931, 4
    %v3937 = vsel %vm169, %v3936, %v3919
    %v3938 = vrot.slane %v3919, 4
    %v3939 = vsel %vm169, %v3931, %v3938
    %v3941 = vunpack.c.l.s4 1934713408
    %v3942 = vunpack.c.0.s8 %v3941
    %v3943 = vperm.slane %v3937, %v3942
    %v3945 = vunpack.c.l.s4 1934713408
    %v3946 = vunpack.c.0.s8 %v3945
    %v3947 = vperm.slane %v3939, %v3946
    %v3948 = vrot.slane %v3935, 4
    %v3949 = vsel %vm169, %v3948, %v3923
    %v3950 = vrot.slane %v3923, 4
    %v3951 = vsel %vm169, %v3935, %v3950
    %v3953 = vunpack.c.l.s4 1934713408
    %v3954 = vunpack.c.0.s8 %v3953
    %v3955 = vperm.slane %v3949, %v3954
    %v3957 = vunpack.c.l.s4 1934713408
    %v3958 = vunpack.c.0.s8 %v3957
    %v3959 = vperm.slane %v3951, %v3958
    %v3960 = vrot.slane %v3943, 4
    %v3961 = vsel %vm169, 0.0, %v3960
    %v3962 = vrot.slane %v3947, 4
    %v3963 = vsel %vm169, 0.0, %v3962
    %v3964 = vrot.slane %v3955, 4
    %v3965 = vsel %vm169, 0.0, %v3964
    %v3966 = vrot.slane %v3959, 4
    %v3967 = vsel %vm169, 0.0, %v3966
    %v3968 = vrot.slane %v3899, 4
    %v3969 = vsel %vm169, %v3968, %v3891
    %v3970 = vrot.slane %v3891, 4
    %v3971 = vsel %vm169, %v3899, %v3970
    %v3973 = vunpack.c.l.s4 1983009808
    %v3974 = vunpack.c.0.s8 %v3973
    %v3975 = vperm.slane %v3969, %v3974
    %v3977 = vunpack.c.l.s4 1983009808
    %v3978 = vunpack.c.0.s8 %v3977
    %v3979 = vperm.slane %v3971, %v3978
    %v3980 = vrot.slane %v3903, 4
    %v3981 = vsel %vm169, %v3980, %v3895
    %v3982 = vrot.slane %v3895, 4
    %v3983 = vsel %vm169, %v3903, %v3982
    %v3985 = vunpack.c.l.s4 1983009808
    %v3986 = vunpack.c.0.s8 %v3985
    %v3987 = vperm.slane %v3981, %v3986
    %v3989 = vunpack.c.l.s4 1983009808
    %v3990 = vunpack.c.0.s8 %v3989
    %v3991 = vperm.slane %v3983, %v3990
    %v3992 = vrot.slane %v3987, 4
    %v3993 = vsel %vm169, %v3992, %v3975
    %v3994 = vrot.slane %v3975, 4
    %v3995 = vsel %vm169, %v3987, %v3994
    %v3997 = vunpack.c.l.s4 1934713408
    %v3998 = vunpack.c.0.s8 %v3997
    %v3999 = vperm.slane %v3993, %v3998
    %v4001 = vunpack.c.l.s4 1934713408
    %v4002 = vunpack.c.0.s8 %v4001
    %v4003 = vperm.slane %v3995, %v4002
    %v4004 = vrot.slane %v3991, 4
    %v4005 = vsel %vm169, %v4004, %v3979
    %v4006 = vrot.slane %v3979, 4
    %v4007 = vsel %vm169, %v3991, %v4006
    %v4009 = vunpack.c.l.s4 1934713408
    %v4010 = vunpack.c.0.s8 %v4009
    %v4011 = vperm.slane %v4005, %v4010
    %v4013 = vunpack.c.l.s4 1934713408
    %v4014 = vunpack.c.0.s8 %v4013
    %v4015 = vperm.slane %v4007, %v4014
    %v4016 = vrot.slane %v3999, 4
    %v4017 = vsel %vm169, 0.0, %v4016
    %v4018 = vrot.slane %v4003, 4
    %v4019 = vsel %vm169, 0.0, %v4018
    %v4020 = vrot.slane %v4011, 4
    %v4021 = vsel %vm169, 0.0, %v4020
    %v4022 = vrot.slane %v4015, 4
    %v4023 = vsel %vm169, 0.0, %v4022
    %4025 = vrot.lane.b32.xlu0 %v3961, 16
    %v4026 = vpop.permute.xlu0 %4025
    %4029 = vrot.lane.b32.xlu0 %v3947, 32
    %v4030 = vpop.permute.xlu0 %4029
    %4033 = vrot.lane.b32.xlu0 %v3963, 48
    %v4034 = vpop.permute.xlu0 %4033
    %4037 = vrot.lane.b32.xlu0 %v3955, 64
    %v4038 = vpop.permute.xlu0 %4037
    %4041 = vrot.lane.b32.xlu0 %v3965, 80
    %v4042 = vpop.permute.xlu0 %4041
    %4045 = vrot.lane.b32.xlu0 %v3959, 96
    %v4046 = vpop.permute.xlu0 %4045
    %4049 = vrot.lane.b32.xlu0 %v3967, 112
    %v4050 = vpop.permute.xlu0 %4049
    %4053 = vrot.lane.b32.xlu0 %v4017, 16
    %v4054 = vpop.permute.xlu0 %4053
    %4057 = vrot.lane.b32.xlu0 %v4003, 32
    %v4058 = vpop.permute.xlu0 %4057
    %4061 = vrot.lane.b32.xlu0 %v4019, 48
    %v4062 = vpop.permute.xlu0 %4061
    %4065 = vrot.lane.b32.xlu0 %v4011, 64
    %v4066 = vpop.permute.xlu0 %4065
    %4069 = vrot.lane.b32.xlu0 %v4021, 80
    %v4070 = vpop.permute.xlu0 %4069
    %4073 = vrot.lane.b32.xlu0 %v4015, 96
    %v4074 = vpop.permute.xlu0 %4073
    %4077 = vrot.lane.b32.xlu0 %v4023, 112
    %v4078 = vpop.permute.xlu0 %4077
    %v4080 = vsel %vm337, %v3943, %v4026
    %v4081 = vsel %vm339, %v4080, %v4030
    %v4082 = vsel %vm341, %v4081, %v4034
    %v4083 = vsel %vm343, %v4082, %v4038
    %v4084 = vsel %vm345, %v4083, %v4042
    %v4085 = vsel %vm347, %v4084, %v4046
    %v4086 = vsel %vm349, %v4085, %v4050
    %v4087 = vsel %vm337, %v3999, %v4054
    %v4088 = vsel %vm339, %v4087, %v4058
    %v4089 = vsel %vm341, %v4088, %v4062
    %v4090 = vsel %vm343, %v4089, %v4066
    %v4091 = vsel %vm345, %v4090, %v4070
    %v4092 = vsel %vm347, %v4091, %v4074
    %v4093 = vsel %vm349, %v4092, %v4078
    %v4094 = vpack.c.bf16 %v4093, %v4086
    %v4096 = vunpack.c.l.b16 %v4094
    %v4097 = vunpack.c.h.b16 %v4094
    %v4098 = vpack.c.b16 %v4096, %v4096
    %v4099 = vpack.c.b16 %v4097, %v4097
    %v4101 = vsel %vm364, %v4098, 0
    %v4103 = vsel %vm364, %v4099, 0
    %v4106 = vunpack.c.l.b16 %v4101
    %v4107 = vunpack.c.l.b16 %v4103
    %v4108 = vpack.c.b16 %v4107, %v4106
    %4110 = vst [vmem:[#allocation3 + $0x100] sm:$0xff] %v4108
    %v4111 = vld [vmem:[%s3664] sm:$0xff]
    %v4112 = vld [vmem:[%s3664 + $0x8] sm:$0xff]
    %v4113 = vld [vmem:[%s3664 + $0x18] sm:$0xff]
    %v4114 = vld [vmem:[%s3664 + $0x20] sm:$0xff]
    %v4115 = vld [vmem:[%s3664 + $0x30] sm:$0xff]
    %v4116 = vld [vmem:[%s3664 + $0x38] sm:$0xff]
    %v4117 = vld [vmem:[%s3664 + $0x48] sm:$0xff]
    %v4118 = vld [vmem:[%s3664 + $0x50] sm:$0xff]
    %4127 = vrot.lane.b32.xlu0 %v4111, 126
    %v4128 = vpop.permute.xlu0 %4127
    %4129 = vrot.lane.b32.xlu0 %v4112, 126
    %v4130 = vpop.permute.xlu0 %4129
    %4131 = vrot.lane.b32.xlu0 %v4113, 126
    %v4132 = vpop.permute.xlu0 %4131
    %4133 = vrot.lane.b32.xlu0 %v4114, 126
    %v4134 = vpop.permute.xlu0 %4133
    %4135 = vrot.lane.b32.xlu0 %v4115, 126
    %v4136 = vpop.permute.xlu0 %4135
    %4137 = vrot.lane.b32.xlu0 %v4116, 126
    %v4138 = vpop.permute.xlu0 %4137
    %4139 = vrot.lane.b32.xlu0 %v4117, 126
    %v4140 = vpop.permute.xlu0 %4139
    %4141 = vrot.lane.b32.xlu0 %v4118, 126
    %v4142 = vpop.permute.xlu0 %4141
    %v4151 = vrot.slane %v4136, 4
    %v4152 = vsel %vm169, %v4151, %v4128
    %v4153 = vrot.slane %v4128, 4
    %v4154 = vsel %vm169, %v4136, %v4153
    %v4156 = vunpack.c.l.s4 1983009808
    %v4157 = vunpack.c.0.s8 %v4156
    %v4158 = vperm.slane %v4152, %v4157
    %v4160 = vunpack.c.l.s4 1983009808
    %v4161 = vunpack.c.0.s8 %v4160
    %v4162 = vperm.slane %v4154, %v4161
    %v4163 = vrot.slane %v4140, 4
    %v4164 = vsel %vm169, %v4163, %v4132
    %v4165 = vrot.slane %v4132, 4
    %v4166 = vsel %vm169, %v4140, %v4165
    %v4168 = vunpack.c.l.s4 1983009808
    %v4169 = vunpack.c.0.s8 %v4168
    %v4170 = vperm.slane %v4164, %v4169
    %v4172 = vunpack.c.l.s4 1983009808
    %v4173 = vunpack.c.0.s8 %v4172
    %v4174 = vperm.slane %v4166, %v4173
    %v4175 = vrot.slane %v4170, 4
    %v4176 = vsel %vm169, %v4175, %v4158
    %v4177 = vrot.slane %v4158, 4
    %v4178 = vsel %vm169, %v4170, %v4177
    %v4180 = vunpack.c.l.s4 1934713408
    %v4181 = vunpack.c.0.s8 %v4180
    %v4182 = vperm.slane %v4176, %v4181
    %v4184 = vunpack.c.l.s4 1934713408
    %v4185 = vunpack.c.0.s8 %v4184
    %v4186 = vperm.slane %v4178, %v4185
    %v4187 = vrot.slane %v4174, 4
    %v4188 = vsel %vm169, %v4187, %v4162
    %v4189 = vrot.slane %v4162, 4
    %v4190 = vsel %vm169, %v4174, %v4189
    %v4192 = vunpack.c.l.s4 1934713408
    %v4193 = vunpack.c.0.s8 %v4192
    %v4194 = vperm.slane %v4188, %v4193
    %v4196 = vunpack.c.l.s4 1934713408
    %v4197 = vunpack.c.0.s8 %v4196
    %v4198 = vperm.slane %v4190, %v4197
    %v4199 = vrot.slane %v4182, 4
    %v4200 = vsel %vm169, 0.0, %v4199
    %v4201 = vrot.slane %v4186, 4
    %v4202 = vsel %vm169, 0.0, %v4201
    %v4203 = vrot.slane %v4194, 4
    %v4204 = vsel %vm169, 0.0, %v4203
    %v4205 = vrot.slane %v4198, 4
    %v4206 = vsel %vm169, 0.0, %v4205
    %v4207 = vrot.slane %v4138, 4
    %v4208 = vsel %vm169, %v4207, %v4130
    %v4209 = vrot.slane %v4130, 4
    %v4210 = vsel %vm169, %v4138, %v4209
    %v4212 = vunpack.c.l.s4 1983009808
    %v4213 = vunpack.c.0.s8 %v4212
    %v4214 = vperm.slane %v4208, %v4213
    %v4216 = vunpack.c.l.s4 1983009808
    %v4217 = vunpack.c.0.s8 %v4216
    %v4218 = vperm.slane %v4210, %v4217
    %v4219 = vrot.slane %v4142, 4
    %v4220 = vsel %vm169, %v4219, %v4134
    %v4221 = vrot.slane %v4134, 4
    %v4222 = vsel %vm169, %v4142, %v4221
    %v4224 = vunpack.c.l.s4 1983009808
    %v4225 = vunpack.c.0.s8 %v4224
    %v4226 = vperm.slane %v4220, %v4225
    %v4228 = vunpack.c.l.s4 1983009808
    %v4229 = vunpack.c.0.s8 %v4228
    %v4230 = vperm.slane %v4222, %v4229
    %v4231 = vrot.slane %v4226, 4
    %v4232 = vsel %vm169, %v4231, %v4214
    %v4233 = vrot.slane %v4214, 4
    %v4234 = vsel %vm169, %v4226, %v4233
    %v4236 = vunpack.c.l.s4 1934713408
    %v4237 = vunpack.c.0.s8 %v4236
    %v4238 = vperm.slane %v4232, %v4237
    %v4240 = vunpack.c.l.s4 1934713408
    %v4241 = vunpack.c.0.s8 %v4240
    %v4242 = vperm.slane %v4234, %v4241
    %v4243 = vrot.slane %v4230, 4
    %v4244 = vsel %vm169, %v4243, %v4218
    %v4245 = vrot.slane %v4218, 4
    %v4246 = vsel %vm169, %v4230, %v4245
    %v4248 = vunpack.c.l.s4 1934713408
    %v4249 = vunpack.c.0.s8 %v4248
    %v4250 = vperm.slane %v4244, %v4249
    %v4252 = vunpack.c.l.s4 1934713408
    %v4253 = vunpack.c.0.s8 %v4252
    %v4254 = vperm.slane %v4246, %v4253
    %v4255 = vrot.slane %v4238, 4
    %v4256 = vsel %vm169, 0.0, %v4255
    %v4257 = vrot.slane %v4242, 4
    %v4258 = vsel %vm169, 0.0, %v4257
    %v4259 = vrot.slane %v4250, 4
    %v4260 = vsel %vm169, 0.0, %v4259
    %v4261 = vrot.slane %v4254, 4
    %v4262 = vsel %vm169, 0.0, %v4261
    %4264 = vrot.lane.b32.xlu0 %v4200, 16
    %v4265 = vpop.permute.xlu0 %4264
    %4268 = vrot.lane.b32.xlu0 %v4186, 32
    %v4269 = vpop.permute.xlu0 %4268
    %4272 = vrot.lane.b32.xlu0 %v4202, 48
    %v4273 = vpop.permute.xlu0 %4272
    %4276 = vrot.lane.b32.xlu0 %v4194, 64
    %v4277 = vpop.permute.xlu0 %4276
    %4280 = vrot.lane.b32.xlu0 %v4204, 80
    %v4281 = vpop.permute.xlu0 %4280
    %4284 = vrot.lane.b32.xlu0 %v4198, 96
    %v4285 = vpop.permute.xlu0 %4284
    %4288 = vrot.lane.b32.xlu0 %v4206, 112
    %v4289 = vpop.permute.xlu0 %4288
    %4292 = vrot.lane.b32.xlu0 %v4256, 16
    %v4293 = vpop.permute.xlu0 %4292
    %4296 = vrot.lane.b32.xlu0 %v4242, 32
    %v4297 = vpop.permute.xlu0 %4296
    %4300 = vrot.lane.b32.xlu0 %v4258, 48
    %v4301 = vpop.permute.xlu0 %4300
    %4304 = vrot.lane.b32.xlu0 %v4250, 64
    %v4305 = vpop.permute.xlu0 %4304
    %4308 = vrot.lane.b32.xlu0 %v4260, 80
    %v4309 = vpop.permute.xlu0 %4308
    %4312 = vrot.lane.b32.xlu0 %v4254, 96
    %v4313 = vpop.permute.xlu0 %4312
    %4316 = vrot.lane.b32.xlu0 %v4262, 112
    %v4317 = vpop.permute.xlu0 %4316
    %v4319 = vsel %vm337, %v4182, %v4265
    %v4320 = vsel %vm339, %v4319, %v4269
    %v4321 = vsel %vm341, %v4320, %v4273
    %v4322 = vsel %vm343, %v4321, %v4277
    %v4323 = vsel %vm345, %v4322, %v4281
    %v4324 = vsel %vm347, %v4323, %v4285
    %v4325 = vsel %vm349, %v4324, %v4289
    %v4326 = vsel %vm337, %v4238, %v4293
    %v4327 = vsel %vm339, %v4326, %v4297
    %v4328 = vsel %vm341, %v4327, %v4301
    %v4329 = vsel %vm343, %v4328, %v4305
    %v4330 = vsel %vm345, %v4329, %v4309
    %v4331 = vsel %vm347, %v4330, %v4313
    %v4332 = vsel %vm349, %v4331, %v4317
    %v4333 = vpack.c.bf16 %v4332, %v4325
    %v4335 = vunpack.c.l.b16 %v4333
    %v4336 = vunpack.c.h.b16 %v4333
    %v4337 = vpack.c.b16 %v4335, %v4335
    %v4338 = vpack.c.b16 %v4336, %v4336
    %v4340 = vsel %vm364, %v4337, 0
    %v4342 = vsel %vm364, %v4338, 0
    %v4345 = vunpack.c.l.b16 %v4340
    %v4346 = vunpack.c.l.b16 %v4342
    %v4347 = vpack.c.b16 %v4346, %v4345
    %4349 = vst [vmem:[#allocation3 + $0x110] sm:$0xff] %v4347
    %v4350 = vld [vmem:[%s3664] sm:$0xff]
    %v4351 = vld [vmem:[%s3664 + $0x8] sm:$0xff]
    %v4352 = vld [vmem:[%s3664 + $0x18] sm:$0xff]
    %v4353 = vld [vmem:[%s3664 + $0x20] sm:$0xff]
    %v4354 = vld [vmem:[%s3664 + $0x30] sm:$0xff]
    %v4355 = vld [vmem:[%s3664 + $0x38] sm:$0xff]
    %v4356 = vld [vmem:[%s3664 + $0x48] sm:$0xff]
    %v4357 = vld [vmem:[%s3664 + $0x50] sm:$0xff]
    %4366 = vrot.lane.b32.xlu0 %v4350, 125
    %v4367 = vpop.permute.xlu0 %4366
    %4368 = vrot.lane.b32.xlu0 %v4351, 125
    %v4369 = vpop.permute.xlu0 %4368
    %4370 = vrot.lane.b32.xlu0 %v4352, 125
    %v4371 = vpop.permute.xlu0 %4370
    %4372 = vrot.lane.b32.xlu0 %v4353, 125
    %v4373 = vpop.permute.xlu0 %4372
    %4374 = vrot.lane.b32.xlu0 %v4354, 125
    %v4375 = vpop.permute.xlu0 %4374
    %4376 = vrot.lane.b32.xlu0 %v4355, 125
    %v4377 = vpop.permute.xlu0 %4376
    %4378 = vrot.lane.b32.xlu0 %v4356, 125
    %v4379 = vpop.permute.xlu0 %4378
    %4380 = vrot.lane.b32.xlu0 %v4357, 125
    %v4381 = vpop.permute.xlu0 %4380
    %v4390 = vrot.slane %v4375, 4
    %v4391 = vsel %vm169, %v4390, %v4367
    %v4392 = vrot.slane %v4367, 4
    %v4393 = vsel %vm169, %v4375, %v4392
    %v4395 = vunpack.c.l.s4 1983009808
    %v4396 = vunpack.c.0.s8 %v4395
    %v4397 = vperm.slane %v4391, %v4396
    %v4399 = vunpack.c.l.s4 1983009808
    %v4400 = vunpack.c.0.s8 %v4399
    %v4401 = vperm.slane %v4393, %v4400
    %v4402 = vrot.slane %v4379, 4
    %v4403 = vsel %vm169, %v4402, %v4371
    %v4404 = vrot.slane %v4371, 4
    %v4405 = vsel %vm169, %v4379, %v4404
    %v4407 = vunpack.c.l.s4 1983009808
    %v4408 = vunpack.c.0.s8 %v4407
    %v4409 = vperm.slane %v4403, %v4408
    %v4411 = vunpack.c.l.s4 1983009808
    %v4412 = vunpack.c.0.s8 %v4411
    %v4413 = vperm.slane %v4405, %v4412
    %v4414 = vrot.slane %v4409, 4
    %v4415 = vsel %vm169, %v4414, %v4397
    %v4416 = vrot.slane %v4397, 4
    %v4417 = vsel %vm169, %v4409, %v4416
    %v4419 = vunpack.c.l.s4 1934713408
    %v4420 = vunpack.c.0.s8 %v4419
    %v4421 = vperm.slane %v4415, %v4420
    %v4423 = vunpack.c.l.s4 1934713408
    %v4424 = vunpack.c.0.s8 %v4423
    %v4425 = vperm.slane %v4417, %v4424
    %v4426 = vrot.slane %v4413, 4
    %v4427 = vsel %vm169, %v4426, %v4401
    %v4428 = vrot.slane %v4401, 4
    %v4429 = vsel %vm169, %v4413, %v4428
    %v4431 = vunpack.c.l.s4 1934713408
    %v4432 = vunpack.c.0.s8 %v4431
    %v4433 = vperm.slane %v4427, %v4432
    %v4435 = vunpack.c.l.s4 1934713408
    %v4436 = vunpack.c.0.s8 %v4435
    %v4437 = vperm.slane %v4429, %v4436
    %v4438 = vrot.slane %v4421, 4
    %v4439 = vsel %vm169, 0.0, %v4438
    %v4440 = vrot.slane %v4425, 4
    %v4441 = vsel %vm169, 0.0, %v4440
    %v4442 = vrot.slane %v4433, 4
    %v4443 = vsel %vm169, 0.0, %v4442
    %v4444 = vrot.slane %v4437, 4
    %v4445 = vsel %vm169, 0.0, %v4444
    %v4446 = vrot.slane %v4377, 4
    %v4447 = vsel %vm169, %v4446, %v4369
    %v4448 = vrot.slane %v4369, 4
    %v4449 = vsel %vm169, %v4377, %v4448
    %v4451 = vunpack.c.l.s4 1983009808
    %v4452 = vunpack.c.0.s8 %v4451
    %v4453 = vperm.slane %v4447, %v4452
    %v4455 = vunpack.c.l.s4 1983009808
    %v4456 = vunpack.c.0.s8 %v4455
    %v4457 = vperm.slane %v4449, %v4456
    %v4458 = vrot.slane %v4381, 4
    %v4459 = vsel %vm169, %v4458, %v4373
    %v4460 = vrot.slane %v4373, 4
    %v4461 = vsel %vm169, %v4381, %v4460
    %v4463 = vunpack.c.l.s4 1983009808
    %v4464 = vunpack.c.0.s8 %v4463
    %v4465 = vperm.slane %v4459, %v4464
    %v4467 = vunpack.c.l.s4 1983009808
    %v4468 = vunpack.c.0.s8 %v4467
    %v4469 = vperm.slane %v4461, %v4468
    %v4470 = vrot.slane %v4465, 4
    %v4471 = vsel %vm169, %v4470, %v4453
    %v4472 = vrot.slane %v4453, 4
    %v4473 = vsel %vm169, %v4465, %v4472
    %v4475 = vunpack.c.l.s4 1934713408
    %v4476 = vunpack.c.0.s8 %v4475
    %v4477 = vperm.slane %v4471, %v4476
    %v4479 = vunpack.c.l.s4 1934713408
    %v4480 = vunpack.c.0.s8 %v4479
    %v4481 = vperm.slane %v4473, %v4480
    %v4482 = vrot.slane %v4469, 4
    %v4483 = vsel %vm169, %v4482, %v4457
    %v4484 = vrot.slane %v4457, 4
    %v4485 = vsel %vm169, %v4469, %v4484
    %v4487 = vunpack.c.l.s4 1934713408
    %v4488 = vunpack.c.0.s8 %v4487
    %v4489 = vperm.slane %v4483, %v4488
    %v4491 = vunpack.c.l.s4 1934713408
    %v4492 = vunpack.c.0.s8 %v4491
    %v4493 = vperm.slane %v4485, %v4492
    %v4494 = vrot.slane %v4477, 4
    %v4495 = vsel %vm169, 0.0, %v4494
    %v4496 = vrot.slane %v4481, 4
    %v4497 = vsel %vm169, 0.0, %v4496
    %v4498 = vrot.slane %v4489, 4
    %v4499 = vsel %vm169, 0.0, %v4498
    %v4500 = vrot.slane %v4493, 4
    %v4501 = vsel %vm169, 0.0, %v4500
    %4503 = vrot.lane.b32.xlu0 %v4439, 16
    %v4504 = vpop.permute.xlu0 %4503
    %4507 = vrot.lane.b32.xlu0 %v4425, 32
    %v4508 = vpop.permute.xlu0 %4507
    %4511 = vrot.lane.b32.xlu0 %v4441, 48
    %v4512 = vpop.permute.xlu0 %4511
    %4515 = vrot.lane.b32.xlu0 %v4433, 64
    %v4516 = vpop.permute.xlu0 %4515
    %4519 = vrot.lane.b32.xlu0 %v4443, 80
    %v4520 = vpop.permute.xlu0 %4519
    %4523 = vrot.lane.b32.xlu0 %v4437, 96
    %v4524 = vpop.permute.xlu0 %4523
    %4527 = vrot.lane.b32.xlu0 %v4445, 112
    %v4528 = vpop.permute.xlu0 %4527
    %4531 = vrot.lane.b32.xlu0 %v4495, 16
    %v4532 = vpop.permute.xlu0 %4531
    %4535 = vrot.lane.b32.xlu0 %v4481, 32
    %v4536 = vpop.permute.xlu0 %4535
    %4539 = vrot.lane.b32.xlu0 %v4497, 48
    %v4540 = vpop.permute.xlu0 %4539
    %4543 = vrot.lane.b32.xlu0 %v4489, 64
    %v4544 = vpop.permute.xlu0 %4543
    %4547 = vrot.lane.b32.xlu0 %v4499, 80
    %v4548 = vpop.permute.xlu0 %4547
    %4551 = vrot.lane.b32.xlu0 %v4493, 96
    %v4552 = vpop.permute.xlu0 %4551
    %4555 = vrot.lane.b32.xlu0 %v4501, 112
    %v4556 = vpop.permute.xlu0 %4555
    %v4558 = vsel %vm337, %v4421, %v4504
    %v4559 = vsel %vm339, %v4558, %v4508
    %v4560 = vsel %vm341, %v4559, %v4512
    %v4561 = vsel %vm343, %v4560, %v4516
    %v4562 = vsel %vm345, %v4561, %v4520
    %v4563 = vsel %vm347, %v4562, %v4524
    %v4564 = vsel %vm349, %v4563, %v4528
    %v4565 = vsel %vm337, %v4477, %v4532
    %v4566 = vsel %vm339, %v4565, %v4536
    %v4567 = vsel %vm341, %v4566, %v4540
    %v4568 = vsel %vm343, %v4567, %v4544
    %v4569 = vsel %vm345, %v4568, %v4548
    %v4570 = vsel %vm347, %v4569, %v4552
    %v4571 = vsel %vm349, %v4570, %v4556
    %v4572 = vpack.c.bf16 %v4571, %v4564
    %v4574 = vunpack.c.l.b16 %v4572
    %v4575 = vunpack.c.h.b16 %v4572
    %v4576 = vpack.c.b16 %v4574, %v4574
    %v4577 = vpack.c.b16 %v4575, %v4575
    %v4579 = vsel %vm364, %v4576, 0
    %v4581 = vsel %vm364, %v4577, 0
    %v4584 = vunpack.c.l.b16 %v4579
    %v4585 = vunpack.c.l.b16 %v4581
    %v4586 = vpack.c.b16 %v4585, %v4584
    %4588 = vst [vmem:[#allocation3 + $0x120] sm:$0xff] %v4586
    %v4589 = vld [vmem:[%s3664] sm:$0xff]
    %v4590 = vld [vmem:[%s3664 + $0x8] sm:$0xff]
    %v4591 = vld [vmem:[%s3664 + $0x18] sm:$0xff]
    %v4592 = vld [vmem:[%s3664 + $0x20] sm:$0xff]
    %v4593 = vld [vmem:[%s3664 + $0x30] sm:$0xff]
    %v4594 = vld [vmem:[%s3664 + $0x38] sm:$0xff]
    %v4595 = vld [vmem:[%s3664 + $0x48] sm:$0xff]
    %v4596 = vld [vmem:[%s3664 + $0x50] sm:$0xff]
    %4605 = vrot.lane.b32.xlu0 %v4589, 124
    %v4606 = vpop.permute.xlu0 %4605
    %4607 = vrot.lane.b32.xlu0 %v4590, 124
    %v4608 = vpop.permute.xlu0 %4607
    %4609 = vrot.lane.b32.xlu0 %v4591, 124
    %v4610 = vpop.permute.xlu0 %4609
    %4611 = vrot.lane.b32.xlu0 %v4592, 124
    %v4612 = vpop.permute.xlu0 %4611
    %4613 = vrot.lane.b32.xlu0 %v4593, 124
    %v4614 = vpop.permute.xlu0 %4613
    %4615 = vrot.lane.b32.xlu0 %v4594, 124
    %v4616 = vpop.permute.xlu0 %4615
    %4617 = vrot.lane.b32.xlu0 %v4595, 124
    %v4618 = vpop.permute.xlu0 %4617
    %4619 = vrot.lane.b32.xlu0 %v4596, 124
    %v4620 = vpop.permute.xlu0 %4619
    %v4629 = vrot.slane %v4614, 4
    %v4630 = vsel %vm169, %v4629, %v4606
    %v4631 = vrot.slane %v4606, 4
    %v4632 = vsel %vm169, %v4614, %v4631
    %v4634 = vunpack.c.l.s4 1983009808
    %v4635 = vunpack.c.0.s8 %v4634
    %v4636 = vperm.slane %v4630, %v4635
    %v4638 = vunpack.c.l.s4 1983009808
    %v4639 = vunpack.c.0.s8 %v4638
    %v4640 = vperm.slane %v4632, %v4639
    %v4641 = vrot.slane %v4618, 4
    %v4642 = vsel %vm169, %v4641, %v4610
    %v4643 = vrot.slane %v4610, 4
    %v4644 = vsel %vm169, %v4618, %v4643
    %v4646 = vunpack.c.l.s4 1983009808
    %v4647 = vunpack.c.0.s8 %v4646
    %v4648 = vperm.slane %v4642, %v4647
    %v4650 = vunpack.c.l.s4 1983009808
    %v4651 = vunpack.c.0.s8 %v4650
    %v4652 = vperm.slane %v4644, %v4651
    %v4653 = vrot.slane %v4648, 4
    %v4654 = vsel %vm169, %v4653, %v4636
    %v4655 = vrot.slane %v4636, 4
    %v4656 = vsel %vm169, %v4648, %v4655
    %v4658 = vunpack.c.l.s4 1934713408
    %v4659 = vunpack.c.0.s8 %v4658
    %v4660 = vperm.slane %v4654, %v4659
    %v4662 = vunpack.c.l.s4 1934713408
    %v4663 = vunpack.c.0.s8 %v4662
    %v4664 = vperm.slane %v4656, %v4663
    %v4665 = vrot.slane %v4652, 4
    %v4666 = vsel %vm169, %v4665, %v4640
    %v4667 = vrot.slane %v4640, 4
    %v4668 = vsel %vm169, %v4652, %v4667
    %v4670 = vunpack.c.l.s4 1934713408
    %v4671 = vunpack.c.0.s8 %v4670
    %v4672 = vperm.slane %v4666, %v4671
    %v4674 = vunpack.c.l.s4 1934713408
    %v4675 = vunpack.c.0.s8 %v4674
    %v4676 = vperm.slane %v4668, %v4675
    %v4677 = vrot.slane %v4660, 4
    %v4678 = vsel %vm169, 0.0, %v4677
    %v4679 = vrot.slane %v4664, 4
    %v4680 = vsel %vm169, 0.0, %v4679
    %v4681 = vrot.slane %v4672, 4
    %v4682 = vsel %vm169, 0.0, %v4681
    %v4683 = vrot.slane %v4676, 4
    %v4684 = vsel %vm169, 0.0, %v4683
    %v4685 = vrot.slane %v4616, 4
    %v4686 = vsel %vm169, %v4685, %v4608
    %v4687 = vrot.slane %v4608, 4
    %v4688 = vsel %vm169, %v4616, %v4687
    %v4690 = vunpack.c.l.s4 1983009808
    %v4691 = vunpack.c.0.s8 %v4690
    %v4692 = vperm.slane %v4686, %v4691
    %v4694 = vunpack.c.l.s4 1983009808
    %v4695 = vunpack.c.0.s8 %v4694
    %v4696 = vperm.slane %v4688, %v4695
    %v4697 = vrot.slane %v4620, 4
    %v4698 = vsel %vm169, %v4697, %v4612
    %v4699 = vrot.slane %v4612, 4
    %v4700 = vsel %vm169, %v4620, %v4699
    %v4702 = vunpack.c.l.s4 1983009808
    %v4703 = vunpack.c.0.s8 %v4702
    %v4704 = vperm.slane %v4698, %v4703
    %v4706 = vunpack.c.l.s4 1983009808
    %v4707 = vunpack.c.0.s8 %v4706
    %v4708 = vperm.slane %v4700, %v4707
    %v4709 = vrot.slane %v4704, 4
    %v4710 = vsel %vm169, %v4709, %v4692
    %v4711 = vrot.slane %v4692, 4
    %v4712 = vsel %vm169, %v4704, %v4711
    %v4714 = vunpack.c.l.s4 1934713408
    %v4715 = vunpack.c.0.s8 %v4714
    %v4716 = vperm.slane %v4710, %v4715
    %v4718 = vunpack.c.l.s4 1934713408
    %v4719 = vunpack.c.0.s8 %v4718
    %v4720 = vperm.slane %v4712, %v4719
    %v4721 = vrot.slane %v4708, 4
    %v4722 = vsel %vm169, %v4721, %v4696
    %v4723 = vrot.slane %v4696, 4
    %v4724 = vsel %vm169, %v4708, %v4723
    %v4726 = vunpack.c.l.s4 1934713408
    %v4727 = vunpack.c.0.s8 %v4726
    %v4728 = vperm.slane %v4722, %v4727
    %v4730 = vunpack.c.l.s4 1934713408
    %v4731 = vunpack.c.0.s8 %v4730
    %v4732 = vperm.slane %v4724, %v4731
    %v4733 = vrot.slane %v4716, 4
    %v4734 = vsel %vm169, 0.0, %v4733
    %v4735 = vrot.slane %v4720, 4
    %v4736 = vsel %vm169, 0.0, %v4735
    %v4737 = vrot.slane %v4728, 4
    %v4738 = vsel %vm169, 0.0, %v4737
    %v4739 = vrot.slane %v4732, 4
    %v4740 = vsel %vm169, 0.0, %v4739
    %4742 = vrot.lane.b32.xlu0 %v4678, 16
    %v4743 = vpop.permute.xlu0 %4742
    %4746 = vrot.lane.b32.xlu0 %v4664, 32
    %v4747 = vpop.permute.xlu0 %4746
    %4750 = vrot.lane.b32.xlu0 %v4680, 48
    %v4751 = vpop.permute.xlu0 %4750
    %4754 = vrot.lane.b32.xlu0 %v4672, 64
    %v4755 = vpop.permute.xlu0 %4754
    %4758 = vrot.lane.b32.xlu0 %v4682, 80
    %v4759 = vpop.permute.xlu0 %4758
    %4762 = vrot.lane.b32.xlu0 %v4676, 96
    %v4763 = vpop.permute.xlu0 %4762
    %4766 = vrot.lane.b32.xlu0 %v4684, 112
    %v4767 = vpop.permute.xlu0 %4766
    %4770 = vrot.lane.b32.xlu0 %v4734, 16
    %v4771 = vpop.permute.xlu0 %4770
    %4774 = vrot.lane.b32.xlu0 %v4720, 32
    %v4775 = vpop.permute.xlu0 %4774
    %4778 = vrot.lane.b32.xlu0 %v4736, 48
    %v4779 = vpop.permute.xlu0 %4778
    %4782 = vrot.lane.b32.xlu0 %v4728, 64
    %v4783 = vpop.permute.xlu0 %4782
    %4786 = vrot.lane.b32.xlu0 %v4738, 80
    %v4787 = vpop.permute.xlu0 %4786
    %4790 = vrot.lane.b32.xlu0 %v4732, 96
    %v4791 = vpop.permute.xlu0 %4790
    %4794 = vrot.lane.b32.xlu0 %v4740, 112
    %v4795 = vpop.permute.xlu0 %4794
    %v4797 = vsel %vm337, %v4660, %v4743
    %v4798 = vsel %vm339, %v4797, %v4747
    %v4799 = vsel %vm341, %v4798, %v4751
    %v4800 = vsel %vm343, %v4799, %v4755
    %v4801 = vsel %vm345, %v4800, %v4759
    %v4802 = vsel %vm347, %v4801, %v4763
    %v4803 = vsel %vm349, %v4802, %v4767
    %v4804 = vsel %vm337, %v4716, %v4771
    %v4805 = vsel %vm339, %v4804, %v4775
    %v4806 = vsel %vm341, %v4805, %v4779
    %v4807 = vsel %vm343, %v4806, %v4783
    %v4808 = vsel %vm345, %v4807, %v4787
    %v4809 = vsel %vm347, %v4808, %v4791
    %v4810 = vsel %vm349, %v4809, %v4795
    %v4811 = vpack.c.bf16 %v4810, %v4803
    %v4813 = vunpack.c.l.b16 %v4811
    %v4814 = vunpack.c.h.b16 %v4811
    %v4815 = vpack.c.b16 %v4813, %v4813
    %v4816 = vpack.c.b16 %v4814, %v4814
    %v4818 = vsel %vm364, %v4815, 0
    %v4820 = vsel %vm364, %v4816, 0
    %v4823 = vunpack.c.l.b16 %v4818
    %v4824 = vunpack.c.l.b16 %v4820
    %v4825 = vpack.c.b16 %v4824, %v4823
    %4827 = vst [vmem:[#allocation3 + $0x130] sm:$0xff] %v4825
    %s4828 = sadd.s32 %s158, 4
    %s4829 = scalar_lea.vmem [#allocation2], %s4828
    %v4830 = vld [vmem:[%s4829] sm:$0xff]
    %v4831 = vld [vmem:[%s4829 + $0x8] sm:$0xff]
    %v4832 = vld [vmem:[%s4829 + $0x18] sm:$0xff]
    %v4833 = vld [vmem:[%s4829 + $0x20] sm:$0xff]
    %v4834 = vld [vmem:[%s4829 + $0x30] sm:$0xff]
    %v4835 = vld [vmem:[%s4829 + $0x38] sm:$0xff]
    %v4836 = vld [vmem:[%s4829 + $0x48] sm:$0xff]
    %v4837 = vld [vmem:[%s4829 + $0x50] sm:$0xff]
    %v4838 = vrot.slane %v4834, 4
    %v4839 = vsel %vm169, %v4838, %v4830
    %v4840 = vrot.slane %v4830, 4
    %v4841 = vsel %vm169, %v4834, %v4840
    %v4843 = vunpack.c.l.s4 1983009808
    %v4844 = vunpack.c.0.s8 %v4843
    %v4845 = vperm.slane %v4839, %v4844
    %v4847 = vunpack.c.l.s4 1983009808
    %v4848 = vunpack.c.0.s8 %v4847
    %v4849 = vperm.slane %v4841, %v4848
    %v4850 = vrot.slane %v4836, 4
    %v4851 = vsel %vm169, %v4850, %v4832
    %v4852 = vrot.slane %v4832, 4
    %v4853 = vsel %vm169, %v4836, %v4852
    %v4855 = vunpack.c.l.s4 1983009808
    %v4856 = vunpack.c.0.s8 %v4855
    %v4857 = vperm.slane %v4851, %v4856
    %v4859 = vunpack.c.l.s4 1983009808
    %v4860 = vunpack.c.0.s8 %v4859
    %v4861 = vperm.slane %v4853, %v4860
    %v4862 = vrot.slane %v4857, 4
    %v4863 = vsel %vm169, %v4862, %v4845
    %v4864 = vrot.slane %v4845, 4
    %v4865 = vsel %vm169, %v4857, %v4864
    %v4867 = vunpack.c.l.s4 1934713408
    %v4868 = vunpack.c.0.s8 %v4867
    %v4869 = vperm.slane %v4863, %v4868
    %v4871 = vunpack.c.l.s4 1934713408
    %v4872 = vunpack.c.0.s8 %v4871
    %v4873 = vperm.slane %v4865, %v4872
    %v4874 = vrot.slane %v4861, 4
    %v4875 = vsel %vm169, %v4874, %v4849
    %v4876 = vrot.slane %v4849, 4
    %v4877 = vsel %vm169, %v4861, %v4876
    %v4879 = vunpack.c.l.s4 1934713408
    %v4880 = vunpack.c.0.s8 %v4879
    %v4881 = vperm.slane %v4875, %v4880
    %v4883 = vunpack.c.l.s4 1934713408
    %v4884 = vunpack.c.0.s8 %v4883
    %v4885 = vperm.slane %v4877, %v4884
    %v4886 = vrot.slane %v4869, 4
    %v4887 = vsel %vm169, 0.0, %v4886
    %v4888 = vrot.slane %v4873, 4
    %v4889 = vsel %vm169, 0.0, %v4888
    %v4890 = vrot.slane %v4881, 4
    %v4891 = vsel %vm169, 0.0, %v4890
    %v4892 = vrot.slane %v4885, 4
    %v4893 = vsel %vm169, 0.0, %v4892
    %v4894 = vrot.slane %v4835, 4
    %v4895 = vsel %vm169, %v4894, %v4831
    %v4896 = vrot.slane %v4831, 4
    %v4897 = vsel %vm169, %v4835, %v4896
    %v4899 = vunpack.c.l.s4 1983009808
    %v4900 = vunpack.c.0.s8 %v4899
    %v4901 = vperm.slane %v4895, %v4900
    %v4903 = vunpack.c.l.s4 1983009808
    %v4904 = vunpack.c.0.s8 %v4903
    %v4905 = vperm.slane %v4897, %v4904
    %v4906 = vrot.slane %v4837, 4
    %v4907 = vsel %vm169, %v4906, %v4833
    %v4908 = vrot.slane %v4833, 4
    %v4909 = vsel %vm169, %v4837, %v4908
    %v4911 = vunpack.c.l.s4 1983009808
    %v4912 = vunpack.c.0.s8 %v4911
    %v4913 = vperm.slane %v4907, %v4912
    %v4915 = vunpack.c.l.s4 1983009808
    %v4916 = vunpack.c.0.s8 %v4915
    %v4917 = vperm.slane %v4909, %v4916
    %v4918 = vrot.slane %v4913, 4
    %v4919 = vsel %vm169, %v4918, %v4901
    %v4920 = vrot.slane %v4901, 4
    %v4921 = vsel %vm169, %v4913, %v4920
    %v4923 = vunpack.c.l.s4 1934713408
    %v4924 = vunpack.c.0.s8 %v4923
    %v4925 = vperm.slane %v4919, %v4924
    %v4927 = vunpack.c.l.s4 1934713408
    %v4928 = vunpack.c.0.s8 %v4927
    %v4929 = vperm.slane %v4921, %v4928
    %v4930 = vrot.slane %v4917, 4
    %v4931 = vsel %vm169, %v4930, %v4905
    %v4932 = vrot.slane %v4905, 4
    %v4933 = vsel %vm169, %v4917, %v4932
    %v4935 = vunpack.c.l.s4 1934713408
    %v4936 = vunpack.c.0.s8 %v4935
    %v4937 = vperm.slane %v4931, %v4936
    %v4939 = vunpack.c.l.s4 1934713408
    %v4940 = vunpack.c.0.s8 %v4939
    %v4941 = vperm.slane %v4933, %v4940
    %v4942 = vrot.slane %v4925, 4
    %v4943 = vsel %vm169, 0.0, %v4942
    %v4944 = vrot.slane %v4929, 4
    %v4945 = vsel %vm169, 0.0, %v4944
    %v4946 = vrot.slane %v4937, 4
    %v4947 = vsel %vm169, 0.0, %v4946
    %v4948 = vrot.slane %v4941, 4
    %v4949 = vsel %vm169, 0.0, %v4948
    %4951 = vrot.lane.b32.xlu0 %v4887, 16
    %v4952 = vpop.permute.xlu0 %4951
    %4955 = vrot.lane.b32.xlu0 %v4873, 32
    %v4956 = vpop.permute.xlu0 %4955
    %4959 = vrot.lane.b32.xlu0 %v4889, 48
    %v4960 = vpop.permute.xlu0 %4959
    %4963 = vrot.lane.b32.xlu0 %v4881, 64
    %v4964 = vpop.permute.xlu0 %4963
    %4967 = vrot.lane.b32.xlu0 %v4891, 80
    %v4968 = vpop.permute.xlu0 %4967
    %4971 = vrot.lane.b32.xlu0 %v4885, 96
    %v4972 = vpop.permute.xlu0 %4971
    %4975 = vrot.lane.b32.xlu0 %v4893, 112
    %v4976 = vpop.permute.xlu0 %4975
    %4979 = vrot.lane.b32.xlu0 %v4943, 16
    %v4980 = vpop.permute.xlu0 %4979
    %4983 = vrot.lane.b32.xlu0 %v4929, 32
    %v4984 = vpop.permute.xlu0 %4983
    %4987 = vrot.lane.b32.xlu0 %v4945, 48
    %v4988 = vpop.permute.xlu0 %4987
    %4991 = vrot.lane.b32.xlu0 %v4937, 64
    %v4992 = vpop.permute.xlu0 %4991
    %4995 = vrot.lane.b32.xlu0 %v4947, 80
    %v4996 = vpop.permute.xlu0 %4995
    %4999 = vrot.lane.b32.xlu0 %v4941, 96
    %v5000 = vpop.permute.xlu0 %4999
    %5003 = vrot.lane.b32.xlu0 %v4949, 112
    %v5004 = vpop.permute.xlu0 %5003
    %v5006 = vsel %vm337, %v4869, %v4952
    %v5007 = vsel %vm339, %v5006, %v4956
    %v5008 = vsel %vm341, %v5007, %v4960
    %v5009 = vsel %vm343, %v5008, %v4964
    %v5010 = vsel %vm345, %v5009, %v4968
    %v5011 = vsel %vm347, %v5010, %v4972
    %v5012 = vsel %vm349, %v5011, %v4976
    %v5013 = vsel %vm337, %v4925, %v4980
    %v5014 = vsel %vm339, %v5013, %v4984
    %v5015 = vsel %vm341, %v5014, %v4988
    %v5016 = vsel %vm343, %v5015, %v4992
    %v5017 = vsel %vm345, %v5016, %v4996
    %v5018 = vsel %vm347, %v5017, %v5000
    %v5019 = vsel %vm349, %v5018, %v5004
    %v5020 = vpack.c.bf16 %v5019, %v5012
    %v5022 = vunpack.c.l.b16 %v5020
    %v5023 = vunpack.c.h.b16 %v5020
    %v5024 = vpack.c.b16 %v5022, %v5022
    %v5025 = vpack.c.b16 %v5023, %v5023
    %v5027 = vsel %vm364, %v5024, 0
    %v5029 = vsel %vm364, %v5025, 0
    %v5032 = vunpack.c.l.b16 %v5027
    %v5033 = vunpack.c.l.b16 %v5029
    %v5034 = vpack.c.b16 %v5033, %v5032
    %5036 = vst [vmem:[#allocation3 + $0x140] sm:$0xff] %v5034
    %v5037 = vld [vmem:[%s4829] sm:$0xff]
    %v5038 = vld [vmem:[%s4829 + $0x8] sm:$0xff]
    %v5039 = vld [vmem:[%s4829 + $0x18] sm:$0xff]
    %v5040 = vld [vmem:[%s4829 + $0x20] sm:$0xff]
    %v5041 = vld [vmem:[%s4829 + $0x30] sm:$0xff]
    %v5042 = vld [vmem:[%s4829 + $0x38] sm:$0xff]
    %v5043 = vld [vmem:[%s4829 + $0x48] sm:$0xff]
    %v5044 = vld [vmem:[%s4829 + $0x50] sm:$0xff]
    %5053 = vrot.lane.b32.xlu0 %v5037, 127
    %v5054 = vpop.permute.xlu0 %5053
    %5055 = vrot.lane.b32.xlu0 %v5038, 127
    %v5056 = vpop.permute.xlu0 %5055
    %5057 = vrot.lane.b32.xlu0 %v5039, 127
    %v5058 = vpop.permute.xlu0 %5057
    %5059 = vrot.lane.b32.xlu0 %v5040, 127
    %v5060 = vpop.permute.xlu0 %5059
    %5061 = vrot.lane.b32.xlu0 %v5041, 127
    %v5062 = vpop.permute.xlu0 %5061
    %5063 = vrot.lane.b32.xlu0 %v5042, 127
    %v5064 = vpop.permute.xlu0 %5063
    %5065 = vrot.lane.b32.xlu0 %v5043, 127
    %v5066 = vpop.permute.xlu0 %5065
    %5067 = vrot.lane.b32.xlu0 %v5044, 127
    %v5068 = vpop.permute.xlu0 %5067
    %v5077 = vrot.slane %v5062, 4
    %v5078 = vsel %vm169, %v5077, %v5054
    %v5079 = vrot.slane %v5054, 4
    %v5080 = vsel %vm169, %v5062, %v5079
    %v5082 = vunpack.c.l.s4 1983009808
    %v5083 = vunpack.c.0.s8 %v5082
    %v5084 = vperm.slane %v5078, %v5083
    %v5086 = vunpack.c.l.s4 1983009808
    %v5087 = vunpack.c.0.s8 %v5086
    %v5088 = vperm.slane %v5080, %v5087
    %v5089 = vrot.slane %v5066, 4
    %v5090 = vsel %vm169, %v5089, %v5058
    %v5091 = vrot.slane %v5058, 4
    %v5092 = vsel %vm169, %v5066, %v5091
    %v5094 = vunpack.c.l.s4 1983009808
    %v5095 = vunpack.c.0.s8 %v5094
    %v5096 = vperm.slane %v5090, %v5095
    %v5098 = vunpack.c.l.s4 1983009808
    %v5099 = vunpack.c.0.s8 %v5098
    %v5100 = vperm.slane %v5092, %v5099
    %v5101 = vrot.slane %v5096, 4
    %v5102 = vsel %vm169, %v5101, %v5084
    %v5103 = vrot.slane %v5084, 4
    %v5104 = vsel %vm169, %v5096, %v5103
    %v5106 = vunpack.c.l.s4 1934713408
    %v5107 = vunpack.c.0.s8 %v5106
    %v5108 = vperm.slane %v5102, %v5107
    %v5110 = vunpack.c.l.s4 1934713408
    %v5111 = vunpack.c.0.s8 %v5110
    %v5112 = vperm.slane %v5104, %v5111
    %v5113 = vrot.slane %v5100, 4
    %v5114 = vsel %vm169, %v5113, %v5088
    %v5115 = vrot.slane %v5088, 4
    %v5116 = vsel %vm169, %v5100, %v5115
    %v5118 = vunpack.c.l.s4 1934713408
    %v5119 = vunpack.c.0.s8 %v5118
    %v5120 = vperm.slane %v5114, %v5119
    %v5122 = vunpack.c.l.s4 1934713408
    %v5123 = vunpack.c.0.s8 %v5122
    %v5124 = vperm.slane %v5116, %v5123
    %v5125 = vrot.slane %v5108, 4
    %v5126 = vsel %vm169, 0.0, %v5125
    %v5127 = vrot.slane %v5112, 4
    %v5128 = vsel %vm169, 0.0, %v5127
    %v5129 = vrot.slane %v5120, 4
    %v5130 = vsel %vm169, 0.0, %v5129
    %v5131 = vrot.slane %v5124, 4
    %v5132 = vsel %vm169, 0.0, %v5131
    %v5133 = vrot.slane %v5064, 4
    %v5134 = vsel %vm169, %v5133, %v5056
    %v5135 = vrot.slane %v5056, 4
    %v5136 = vsel %vm169, %v5064, %v5135
    %v5138 = vunpack.c.l.s4 1983009808
    %v5139 = vunpack.c.0.s8 %v5138
    %v5140 = vperm.slane %v5134, %v5139
    %v5142 = vunpack.c.l.s4 1983009808
    %v5143 = vunpack.c.0.s8 %v5142
    %v5144 = vperm.slane %v5136, %v5143
    %v5145 = vrot.slane %v5068, 4
    %v5146 = vsel %vm169, %v5145, %v5060
    %v5147 = vrot.slane %v5060, 4
    %v5148 = vsel %vm169, %v5068, %v5147
    %v5150 = vunpack.c.l.s4 1983009808
    %v5151 = vunpack.c.0.s8 %v5150
    %v5152 = vperm.slane %v5146, %v5151
    %v5154 = vunpack.c.l.s4 1983009808
    %v5155 = vunpack.c.0.s8 %v5154
    %v5156 = vperm.slane %v5148, %v5155
    %v5157 = vrot.slane %v5152, 4
    %v5158 = vsel %vm169, %v5157, %v5140
    %v5159 = vrot.slane %v5140, 4
    %v5160 = vsel %vm169, %v5152, %v5159
    %v5162 = vunpack.c.l.s4 1934713408
    %v5163 = vunpack.c.0.s8 %v5162
    %v5164 = vperm.slane %v5158, %v5163
    %v5166 = vunpack.c.l.s4 1934713408
    %v5167 = vunpack.c.0.s8 %v5166
    %v5168 = vperm.slane %v5160, %v5167
    %v5169 = vrot.slane %v5156, 4
    %v5170 = vsel %vm169, %v5169, %v5144
    %v5171 = vrot.slane %v5144, 4
    %v5172 = vsel %vm169, %v5156, %v5171
    %v5174 = vunpack.c.l.s4 1934713408
    %v5175 = vunpack.c.0.s8 %v5174
    %v5176 = vperm.slane %v5170, %v5175
    %v5178 = vunpack.c.l.s4 1934713408
    %v5179 = vunpack.c.0.s8 %v5178
    %v5180 = vperm.slane %v5172, %v5179
    %v5181 = vrot.slane %v5164, 4
    %v5182 = vsel %vm169, 0.0, %v5181
    %v5183 = vrot.slane %v5168, 4
    %v5184 = vsel %vm169, 0.0, %v5183
    %v5185 = vrot.slane %v5176, 4
    %v5186 = vsel %vm169, 0.0, %v5185
    %v5187 = vrot.slane %v5180, 4
    %v5188 = vsel %vm169, 0.0, %v5187
    %5190 = vrot.lane.b32.xlu0 %v5126, 16
    %v5191 = vpop.permute.xlu0 %5190
    %5194 = vrot.lane.b32.xlu0 %v5112, 32
    %v5195 = vpop.permute.xlu0 %5194
    %5198 = vrot.lane.b32.xlu0 %v5128, 48
    %v5199 = vpop.permute.xlu0 %5198
    %5202 = vrot.lane.b32.xlu0 %v5120, 64
    %v5203 = vpop.permute.xlu0 %5202
    %5206 = vrot.lane.b32.xlu0 %v5130, 80
    %v5207 = vpop.permute.xlu0 %5206
    %5210 = vrot.lane.b32.xlu0 %v5124, 96
    %v5211 = vpop.permute.xlu0 %5210
    %5214 = vrot.lane.b32.xlu0 %v5132, 112
    %v5215 = vpop.permute.xlu0 %5214
    %5218 = vrot.lane.b32.xlu0 %v5182, 16
    %v5219 = vpop.permute.xlu0 %5218
    %5222 = vrot.lane.b32.xlu0 %v5168, 32
    %v5223 = vpop.permute.xlu0 %5222
    %5226 = vrot.lane.b32.xlu0 %v5184, 48
    %v5227 = vpop.permute.xlu0 %5226
    %5230 = vrot.lane.b32.xlu0 %v5176, 64
    %v5231 = vpop.permute.xlu0 %5230
    %5234 = vrot.lane.b32.xlu0 %v5186, 80
    %v5235 = vpop.permute.xlu0 %5234
    %5238 = vrot.lane.b32.xlu0 %v5180, 96
    %v5239 = vpop.permute.xlu0 %5238
    %5242 = vrot.lane.b32.xlu0 %v5188, 112
    %v5243 = vpop.permute.xlu0 %5242
    %v5245 = vsel %vm337, %v5108, %v5191
    %v5246 = vsel %vm339, %v5245, %v5195
    %v5247 = vsel %vm341, %v5246, %v5199
    %v5248 = vsel %vm343, %v5247, %v5203
    %v5249 = vsel %vm345, %v5248, %v5207
    %v5250 = vsel %vm347, %v5249, %v5211
    %v5251 = vsel %vm349, %v5250, %v5215
    %v5252 = vsel %vm337, %v5164, %v5219
    %v5253 = vsel %vm339, %v5252, %v5223
    %v5254 = vsel %vm341, %v5253, %v5227
    %v5255 = vsel %vm343, %v5254, %v5231
    %v5256 = vsel %vm345, %v5255, %v5235
    %v5257 = vsel %vm347, %v5256, %v5239
    %v5258 = vsel %vm349, %v5257, %v5243
    %v5259 = vpack.c.bf16 %v5258, %v5251
    %v5261 = vunpack.c.l.b16 %v5259
    %v5262 = vunpack.c.h.b16 %v5259
    %v5263 = vpack.c.b16 %v5261, %v5261
    %v5264 = vpack.c.b16 %v5262, %v5262
    %v5266 = vsel %vm364, %v5263, 0
    %v5268 = vsel %vm364, %v5264, 0
    %v5271 = vunpack.c.l.b16 %v5266
    %v5272 = vunpack.c.l.b16 %v5268
    %v5273 = vpack.c.b16 %v5272, %v5271
    %5275 = vst [vmem:[#allocation3 + $0x150] sm:$0xff] %v5273
    %v5276 = vld [vmem:[%s4829] sm:$0xff]
    %v5277 = vld [vmem:[%s4829 + $0x8] sm:$0xff]
    %v5278 = vld [vmem:[%s4829 + $0x18] sm:$0xff]
    %v5279 = vld [vmem:[%s4829 + $0x20] sm:$0xff]
    %v5280 = vld [vmem:[%s4829 + $0x30] sm:$0xff]
    %v5281 = vld [vmem:[%s4829 + $0x38] sm:$0xff]
    %v5282 = vld [vmem:[%s4829 + $0x48] sm:$0xff]
    %v5283 = vld [vmem:[%s4829 + $0x50] sm:$0xff]
    %5292 = vrot.lane.b32.xlu0 %v5276, 126
    %v5293 = vpop.permute.xlu0 %5292
    %5294 = vrot.lane.b32.xlu0 %v5277, 126
    %v5295 = vpop.permute.xlu0 %5294
    %5296 = vrot.lane.b32.xlu0 %v5278, 126
    %v5297 = vpop.permute.xlu0 %5296
    %5298 = vrot.lane.b32.xlu0 %v5279, 126
    %v5299 = vpop.permute.xlu0 %5298
    %5300 = vrot.lane.b32.xlu0 %v5280, 126
    %v5301 = vpop.permute.xlu0 %5300
    %5302 = vrot.lane.b32.xlu0 %v5281, 126
    %v5303 = vpop.permute.xlu0 %5302
    %5304 = vrot.lane.b32.xlu0 %v5282, 126
    %v5305 = vpop.permute.xlu0 %5304
    %5306 = vrot.lane.b32.xlu0 %v5283, 126
    %v5307 = vpop.permute.xlu0 %5306
    %v5316 = vrot.slane %v5301, 4
    %v5317 = vsel %vm169, %v5316, %v5293
    %v5318 = vrot.slane %v5293, 4
    %v5319 = vsel %vm169, %v5301, %v5318
    %v5321 = vunpack.c.l.s4 1983009808
    %v5322 = vunpack.c.0.s8 %v5321
    %v5323 = vperm.slane %v5317, %v5322
    %v5325 = vunpack.c.l.s4 1983009808
    %v5326 = vunpack.c.0.s8 %v5325
    %v5327 = vperm.slane %v5319, %v5326
    %v5328 = vrot.slane %v5305, 4
    %v5329 = vsel %vm169, %v5328, %v5297
    %v5330 = vrot.slane %v5297, 4
    %v5331 = vsel %vm169, %v5305, %v5330
    %v5333 = vunpack.c.l.s4 1983009808
    %v5334 = vunpack.c.0.s8 %v5333
    %v5335 = vperm.slane %v5329, %v5334
    %v5337 = vunpack.c.l.s4 1983009808
    %v5338 = vunpack.c.0.s8 %v5337
    %v5339 = vperm.slane %v5331, %v5338
    %v5340 = vrot.slane %v5335, 4
    %v5341 = vsel %vm169, %v5340, %v5323
    %v5342 = vrot.slane %v5323, 4
    %v5343 = vsel %vm169, %v5335, %v5342
    %v5345 = vunpack.c.l.s4 1934713408
    %v5346 = vunpack.c.0.s8 %v5345
    %v5347 = vperm.slane %v5341, %v5346
    %v5349 = vunpack.c.l.s4 1934713408
    %v5350 = vunpack.c.0.s8 %v5349
    %v5351 = vperm.slane %v5343, %v5350
    %v5352 = vrot.slane %v5339, 4
    %v5353 = vsel %vm169, %v5352, %v5327
    %v5354 = vrot.slane %v5327, 4
    %v5355 = vsel %vm169, %v5339, %v5354
    %v5357 = vunpack.c.l.s4 1934713408
    %v5358 = vunpack.c.0.s8 %v5357
    %v5359 = vperm.slane %v5353, %v5358
    %v5361 = vunpack.c.l.s4 1934713408
    %v5362 = vunpack.c.0.s8 %v5361
    %v5363 = vperm.slane %v5355, %v5362
    %v5364 = vrot.slane %v5347, 4
    %v5365 = vsel %vm169, 0.0, %v5364
    %v5366 = vrot.slane %v5351, 4
    %v5367 = vsel %vm169, 0.0, %v5366
    %v5368 = vrot.slane %v5359, 4
    %v5369 = vsel %vm169, 0.0, %v5368
    %v5370 = vrot.slane %v5363, 4
    %v5371 = vsel %vm169, 0.0, %v5370
    %v5372 = vrot.slane %v5303, 4
    %v5373 = vsel %vm169, %v5372, %v5295
    %v5374 = vrot.slane %v5295, 4
    %v5375 = vsel %vm169, %v5303, %v5374
    %v5377 = vunpack.c.l.s4 1983009808
    %v5378 = vunpack.c.0.s8 %v5377
    %v5379 = vperm.slane %v5373, %v5378
    %v5381 = vunpack.c.l.s4 1983009808
    %v5382 = vunpack.c.0.s8 %v5381
    %v5383 = vperm.slane %v5375, %v5382
    %v5384 = vrot.slane %v5307, 4
    %v5385 = vsel %vm169, %v5384, %v5299
    %v5386 = vrot.slane %v5299, 4
    %v5387 = vsel %vm169, %v5307, %v5386
    %v5389 = vunpack.c.l.s4 1983009808
    %v5390 = vunpack.c.0.s8 %v5389
    %v5391 = vperm.slane %v5385, %v5390
    %v5393 = vunpack.c.l.s4 1983009808
    %v5394 = vunpack.c.0.s8 %v5393
    %v5395 = vperm.slane %v5387, %v5394
    %v5396 = vrot.slane %v5391, 4
    %v5397 = vsel %vm169, %v5396, %v5379
    %v5398 = vrot.slane %v5379, 4
    %v5399 = vsel %vm169, %v5391, %v5398
    %v5401 = vunpack.c.l.s4 1934713408
    %v5402 = vunpack.c.0.s8 %v5401
    %v5403 = vperm.slane %v5397, %v5402
    %v5405 = vunpack.c.l.s4 1934713408
    %v5406 = vunpack.c.0.s8 %v5405
    %v5407 = vperm.slane %v5399, %v5406
    %v5408 = vrot.slane %v5395, 4
    %v5409 = vsel %vm169, %v5408, %v5383
    %v5410 = vrot.slane %v5383, 4
    %v5411 = vsel %vm169, %v5395, %v5410
    %v5413 = vunpack.c.l.s4 1934713408
    %v5414 = vunpack.c.0.s8 %v5413
    %v5415 = vperm.slane %v5409, %v5414
    %v5417 = vunpack.c.l.s4 1934713408
    %v5418 = vunpack.c.0.s8 %v5417
    %v5419 = vperm.slane %v5411, %v5418
    %v5420 = vrot.slane %v5403, 4
    %v5421 = vsel %vm169, 0.0, %v5420
    %v5422 = vrot.slane %v5407, 4
    %v5423 = vsel %vm169, 0.0, %v5422
    %v5424 = vrot.slane %v5415, 4
    %v5425 = vsel %vm169, 0.0, %v5424
    %v5426 = vrot.slane %v5419, 4
    %v5427 = vsel %vm169, 0.0, %v5426
    %5429 = vrot.lane.b32.xlu0 %v5365, 16
    %v5430 = vpop.permute.xlu0 %5429
    %5433 = vrot.lane.b32.xlu0 %v5351, 32
    %v5434 = vpop.permute.xlu0 %5433
    %5437 = vrot.lane.b32.xlu0 %v5367, 48
    %v5438 = vpop.permute.xlu0 %5437
    %5441 = vrot.lane.b32.xlu0 %v5359, 64
    %v5442 = vpop.permute.xlu0 %5441
    %5445 = vrot.lane.b32.xlu0 %v5369, 80
    %v5446 = vpop.permute.xlu0 %5445
    %5449 = vrot.lane.b32.xlu0 %v5363, 96
    %v5450 = vpop.permute.xlu0 %5449
    %5453 = vrot.lane.b32.xlu0 %v5371, 112
    %v5454 = vpop.permute.xlu0 %5453
    %5457 = vrot.lane.b32.xlu0 %v5421, 16
    %v5458 = vpop.permute.xlu0 %5457
    %5461 = vrot.lane.b32.xlu0 %v5407, 32
    %v5462 = vpop.permute.xlu0 %5461
    %5465 = vrot.lane.b32.xlu0 %v5423, 48
    %v5466 = vpop.permute.xlu0 %5465
    %5469 = vrot.lane.b32.xlu0 %v5415, 64
    %v5470 = vpop.permute.xlu0 %5469
    %5473 = vrot.lane.b32.xlu0 %v5425, 80
    %v5474 = vpop.permute.xlu0 %5473
    %5477 = vrot.lane.b32.xlu0 %v5419, 96
    %v5478 = vpop.permute.xlu0 %5477
    %5481 = vrot.lane.b32.xlu0 %v5427, 112
    %v5482 = vpop.permute.xlu0 %5481
    %v5484 = vsel %vm337, %v5347, %v5430
    %v5485 = vsel %vm339, %v5484, %v5434
    %v5486 = vsel %vm341, %v5485, %v5438
    %v5487 = vsel %vm343, %v5486, %v5442
    %v5488 = vsel %vm345, %v5487, %v5446
    %v5489 = vsel %vm347, %v5488, %v5450
    %v5490 = vsel %vm349, %v5489, %v5454
    %v5491 = vsel %vm337, %v5403, %v5458
    %v5492 = vsel %vm339, %v5491, %v5462
    %v5493 = vsel %vm341, %v5492, %v5466
    %v5494 = vsel %vm343, %v5493, %v5470
    %v5495 = vsel %vm345, %v5494, %v5474
    %v5496 = vsel %vm347, %v5495, %v5478
    %v5497 = vsel %vm349, %v5496, %v5482
    %v5498 = vpack.c.bf16 %v5497, %v5490
    %v5500 = vunpack.c.l.b16 %v5498
    %v5501 = vunpack.c.h.b16 %v5498
    %v5502 = vpack.c.b16 %v5500, %v5500
    %v5503 = vpack.c.b16 %v5501, %v5501
    %v5505 = vsel %vm364, %v5502, 0
    %v5507 = vsel %vm364, %v5503, 0
    %v5510 = vunpack.c.l.b16 %v5505
    %v5511 = vunpack.c.l.b16 %v5507
    %v5512 = vpack.c.b16 %v5511, %v5510
    %5514 = vst [vmem:[#allocation3 + $0x160] sm:$0xff] %v5512
    %v5515 = vld [vmem:[%s4829] sm:$0xff]
    %v5516 = vld [vmem:[%s4829 + $0x8] sm:$0xff]
    %v5517 = vld [vmem:[%s4829 + $0x18] sm:$0xff]
    %v5518 = vld [vmem:[%s4829 + $0x20] sm:$0xff]
    %v5519 = vld [vmem:[%s4829 + $0x30] sm:$0xff]
    %v5520 = vld [vmem:[%s4829 + $0x38] sm:$0xff]
    %v5521 = vld [vmem:[%s4829 + $0x48] sm:$0xff]
    %v5522 = vld [vmem:[%s4829 + $0x50] sm:$0xff]
    %5531 = vrot.lane.b32.xlu0 %v5515, 125
    %v5532 = vpop.permute.xlu0 %5531
    %5533 = vrot.lane.b32.xlu0 %v5516, 125
    %v5534 = vpop.permute.xlu0 %5533
    %5535 = vrot.lane.b32.xlu0 %v5517, 125
    %v5536 = vpop.permute.xlu0 %5535
    %5537 = vrot.lane.b32.xlu0 %v5518, 125
    %v5538 = vpop.permute.xlu0 %5537
    %5539 = vrot.lane.b32.xlu0 %v5519, 125
    %v5540 = vpop.permute.xlu0 %5539
    %5541 = vrot.lane.b32.xlu0 %v5520, 125
    %v5542 = vpop.permute.xlu0 %5541
    %5543 = vrot.lane.b32.xlu0 %v5521, 125
    %v5544 = vpop.permute.xlu0 %5543
    %5545 = vrot.lane.b32.xlu0 %v5522, 125
    %v5546 = vpop.permute.xlu0 %5545
    %v5555 = vrot.slane %v5540, 4
    %v5556 = vsel %vm169, %v5555, %v5532
    %v5557 = vrot.slane %v5532, 4
    %v5558 = vsel %vm169, %v5540, %v5557
    %v5560 = vunpack.c.l.s4 1983009808
    %v5561 = vunpack.c.0.s8 %v5560
    %v5562 = vperm.slane %v5556, %v5561
    %v5564 = vunpack.c.l.s4 1983009808
    %v5565 = vunpack.c.0.s8 %v5564
    %v5566 = vperm.slane %v5558, %v5565
    %v5567 = vrot.slane %v5544, 4
    %v5568 = vsel %vm169, %v5567, %v5536
    %v5569 = vrot.slane %v5536, 4
    %v5570 = vsel %vm169, %v5544, %v5569
    %v5572 = vunpack.c.l.s4 1983009808
    %v5573 = vunpack.c.0.s8 %v5572
    %v5574 = vperm.slane %v5568, %v5573
    %v5576 = vunpack.c.l.s4 1983009808
    %v5577 = vunpack.c.0.s8 %v5576
    %v5578 = vperm.slane %v5570, %v5577
    %v5579 = vrot.slane %v5574, 4
    %v5580 = vsel %vm169, %v5579, %v5562
    %v5581 = vrot.slane %v5562, 4
    %v5582 = vsel %vm169, %v5574, %v5581
    %v5584 = vunpack.c.l.s4 1934713408
    %v5585 = vunpack.c.0.s8 %v5584
    %v5586 = vperm.slane %v5580, %v5585
    %v5588 = vunpack.c.l.s4 1934713408
    %v5589 = vunpack.c.0.s8 %v5588
    %v5590 = vperm.slane %v5582, %v5589
    %v5591 = vrot.slane %v5578, 4
    %v5592 = vsel %vm169, %v5591, %v5566
    %v5593 = vrot.slane %v5566, 4
    %v5594 = vsel %vm169, %v5578, %v5593
    %v5596 = vunpack.c.l.s4 1934713408
    %v5597 = vunpack.c.0.s8 %v5596
    %v5598 = vperm.slane %v5592, %v5597
    %v5600 = vunpack.c.l.s4 1934713408
    %v5601 = vunpack.c.0.s8 %v5600
    %v5602 = vperm.slane %v5594, %v5601
    %v5603 = vrot.slane %v5586, 4
    %v5604 = vsel %vm169, 0.0, %v5603
    %v5605 = vrot.slane %v5590, 4
    %v5606 = vsel %vm169, 0.0, %v5605
    %v5607 = vrot.slane %v5598, 4
    %v5608 = vsel %vm169, 0.0, %v5607
    %v5609 = vrot.slane %v5602, 4
    %v5610 = vsel %vm169, 0.0, %v5609
    %v5611 = vrot.slane %v5542, 4
    %v5612 = vsel %vm169, %v5611, %v5534
    %v5613 = vrot.slane %v5534, 4
    %v5614 = vsel %vm169, %v5542, %v5613
    %v5616 = vunpack.c.l.s4 1983009808
    %v5617 = vunpack.c.0.s8 %v5616
    %v5618 = vperm.slane %v5612, %v5617
    %v5620 = vunpack.c.l.s4 1983009808
    %v5621 = vunpack.c.0.s8 %v5620
    %v5622 = vperm.slane %v5614, %v5621
    %v5623 = vrot.slane %v5546, 4
    %v5624 = vsel %vm169, %v5623, %v5538
    %v5625 = vrot.slane %v5538, 4
    %v5626 = vsel %vm169, %v5546, %v5625
    %v5628 = vunpack.c.l.s4 1983009808
    %v5629 = vunpack.c.0.s8 %v5628
    %v5630 = vperm.slane %v5624, %v5629
    %v5632 = vunpack.c.l.s4 1983009808
    %v5633 = vunpack.c.0.s8 %v5632
    %v5634 = vperm.slane %v5626, %v5633
    %v5635 = vrot.slane %v5630, 4
    %v5636 = vsel %vm169, %v5635, %v5618
    %v5637 = vrot.slane %v5618, 4
    %v5638 = vsel %vm169, %v5630, %v5637
    %v5640 = vunpack.c.l.s4 1934713408
    %v5641 = vunpack.c.0.s8 %v5640
    %v5642 = vperm.slane %v5636, %v5641
    %v5644 = vunpack.c.l.s4 1934713408
    %v5645 = vunpack.c.0.s8 %v5644
    %v5646 = vperm.slane %v5638, %v5645
    %v5647 = vrot.slane %v5634, 4
    %v5648 = vsel %vm169, %v5647, %v5622
    %v5649 = vrot.slane %v5622, 4
    %v5650 = vsel %vm169, %v5634, %v5649
    %v5652 = vunpack.c.l.s4 1934713408
    %v5653 = vunpack.c.0.s8 %v5652
    %v5654 = vperm.slane %v5648, %v5653
    %v5656 = vunpack.c.l.s4 1934713408
    %v5657 = vunpack.c.0.s8 %v5656
    %v5658 = vperm.slane %v5650, %v5657
    %v5659 = vrot.slane %v5642, 4
    %v5660 = vsel %vm169, 0.0, %v5659
    %v5661 = vrot.slane %v5646, 4
    %v5662 = vsel %vm169, 0.0, %v5661
    %v5663 = vrot.slane %v5654, 4
    %v5664 = vsel %vm169, 0.0, %v5663
    %v5665 = vrot.slane %v5658, 4
    %v5666 = vsel %vm169, 0.0, %v5665
    %5668 = vrot.lane.b32.xlu0 %v5604, 16
    %v5669 = vpop.permute.xlu0 %5668
    %5672 = vrot.lane.b32.xlu0 %v5590, 32
    %v5673 = vpop.permute.xlu0 %5672
    %5676 = vrot.lane.b32.xlu0 %v5606, 48
    %v5677 = vpop.permute.xlu0 %5676
    %5680 = vrot.lane.b32.xlu0 %v5598, 64
    %v5681 = vpop.permute.xlu0 %5680
    %5684 = vrot.lane.b32.xlu0 %v5608, 80
    %v5685 = vpop.permute.xlu0 %5684
    %5688 = vrot.lane.b32.xlu0 %v5602, 96
    %v5689 = vpop.permute.xlu0 %5688
    %5692 = vrot.lane.b32.xlu0 %v5610, 112
    %v5693 = vpop.permute.xlu0 %5692
    %5696 = vrot.lane.b32.xlu0 %v5660, 16
    %v5697 = vpop.permute.xlu0 %5696
    %5700 = vrot.lane.b32.xlu0 %v5646, 32
    %v5701 = vpop.permute.xlu0 %5700
    %5704 = vrot.lane.b32.xlu0 %v5662, 48
    %v5705 = vpop.permute.xlu0 %5704
    %5708 = vrot.lane.b32.xlu0 %v5654, 64
    %v5709 = vpop.permute.xlu0 %5708
    %5712 = vrot.lane.b32.xlu0 %v5664, 80
    %v5713 = vpop.permute.xlu0 %5712
    %5716 = vrot.lane.b32.xlu0 %v5658, 96
    %v5717 = vpop.permute.xlu0 %5716
    %5720 = vrot.lane.b32.xlu0 %v5666, 112
    %v5721 = vpop.permute.xlu0 %5720
    %v5723 = vsel %vm337, %v5586, %v5669
    %v5724 = vsel %vm339, %v5723, %v5673
    %v5725 = vsel %vm341, %v5724, %v5677
    %v5726 = vsel %vm343, %v5725, %v5681
    %v5727 = vsel %vm345, %v5726, %v5685
    %v5728 = vsel %vm347, %v5727, %v5689
    %v5729 = vsel %vm349, %v5728, %v5693
    %v5730 = vsel %vm337, %v5642, %v5697
    %v5731 = vsel %vm339, %v5730, %v5701
    %v5732 = vsel %vm341, %v5731, %v5705
    %v5733 = vsel %vm343, %v5732, %v5709
    %v5734 = vsel %vm345, %v5733, %v5713
    %v5735 = vsel %vm347, %v5734, %v5717
    %v5736 = vsel %vm349, %v5735, %v5721
    %v5737 = vpack.c.bf16 %v5736, %v5729
    %v5739 = vunpack.c.l.b16 %v5737
    %v5740 = vunpack.c.h.b16 %v5737
    %v5741 = vpack.c.b16 %v5739, %v5739
    %v5742 = vpack.c.b16 %v5740, %v5740
    %v5744 = vsel %vm364, %v5741, 0
    %v5746 = vsel %vm364, %v5742, 0
    %v5749 = vunpack.c.l.b16 %v5744
    %v5750 = vunpack.c.l.b16 %v5746
    %v5751 = vpack.c.b16 %v5750, %v5749
    %5753 = vst [vmem:[#allocation3 + $0x170] sm:$0xff] %v5751
    %v5754 = vld [vmem:[%s4829] sm:$0xff]
    %v5755 = vld [vmem:[%s4829 + $0x8] sm:$0xff]
    %v5756 = vld [vmem:[%s4829 + $0x18] sm:$0xff]
    %v5757 = vld [vmem:[%s4829 + $0x20] sm:$0xff]
    %v5758 = vld [vmem:[%s4829 + $0x30] sm:$0xff]
    %v5759 = vld [vmem:[%s4829 + $0x38] sm:$0xff]
    %v5760 = vld [vmem:[%s4829 + $0x48] sm:$0xff]
    %v5761 = vld [vmem:[%s4829 + $0x50] sm:$0xff]
    %5770 = vrot.lane.b32.xlu0 %v5754, 124
    %v5771 = vpop.permute.xlu0 %5770
    %5772 = vrot.lane.b32.xlu0 %v5755, 124
    %v5773 = vpop.permute.xlu0 %5772
    %5774 = vrot.lane.b32.xlu0 %v5756, 124
    %v5775 = vpop.permute.xlu0 %5774
    %5776 = vrot.lane.b32.xlu0 %v5757, 124
    %v5777 = vpop.permute.xlu0 %5776
    %5778 = vrot.lane.b32.xlu0 %v5758, 124
    %v5779 = vpop.permute.xlu0 %5778
    %5780 = vrot.lane.b32.xlu0 %v5759, 124
    %v5781 = vpop.permute.xlu0 %5780
    %5782 = vrot.lane.b32.xlu0 %v5760, 124
    %v5783 = vpop.permute.xlu0 %5782
    %5784 = vrot.lane.b32.xlu0 %v5761, 124
    %v5785 = vpop.permute.xlu0 %5784
    %v5794 = vrot.slane %v5779, 4
    %v5795 = vsel %vm169, %v5794, %v5771
    %v5796 = vrot.slane %v5771, 4
    %v5797 = vsel %vm169, %v5779, %v5796
    %v5799 = vunpack.c.l.s4 1983009808
    %v5800 = vunpack.c.0.s8 %v5799
    %v5801 = vperm.slane %v5795, %v5800
    %v5803 = vunpack.c.l.s4 1983009808
    %v5804 = vunpack.c.0.s8 %v5803
    %v5805 = vperm.slane %v5797, %v5804
    %v5806 = vrot.slane %v5783, 4
    %v5807 = vsel %vm169, %v5806, %v5775
    %v5808 = vrot.slane %v5775, 4
    %v5809 = vsel %vm169, %v5783, %v5808
    %v5811 = vunpack.c.l.s4 1983009808
    %v5812 = vunpack.c.0.s8 %v5811
    %v5813 = vperm.slane %v5807, %v5812
    %v5815 = vunpack.c.l.s4 1983009808
    %v5816 = vunpack.c.0.s8 %v5815
    %v5817 = vperm.slane %v5809, %v5816
    %v5818 = vrot.slane %v5813, 4
    %v5819 = vsel %vm169, %v5818, %v5801
    %v5820 = vrot.slane %v5801, 4
    %v5821 = vsel %vm169, %v5813, %v5820
    %v5823 = vunpack.c.l.s4 1934713408
    %v5824 = vunpack.c.0.s8 %v5823
    %v5825 = vperm.slane %v5819, %v5824
    %v5827 = vunpack.c.l.s4 1934713408
    %v5828 = vunpack.c.0.s8 %v5827
    %v5829 = vperm.slane %v5821, %v5828
    %v5830 = vrot.slane %v5817, 4
    %v5831 = vsel %vm169, %v5830, %v5805
    %v5832 = vrot.slane %v5805, 4
    %v5833 = vsel %vm169, %v5817, %v5832
    %v5835 = vunpack.c.l.s4 1934713408
    %v5836 = vunpack.c.0.s8 %v5835
    %v5837 = vperm.slane %v5831, %v5836
    %v5839 = vunpack.c.l.s4 1934713408
    %v5840 = vunpack.c.0.s8 %v5839
    %v5841 = vperm.slane %v5833, %v5840
    %v5842 = vrot.slane %v5825, 4
    %v5843 = vsel %vm169, 0.0, %v5842
    %v5844 = vrot.slane %v5829, 4
    %v5845 = vsel %vm169, 0.0, %v5844
    %v5846 = vrot.slane %v5837, 4
    %v5847 = vsel %vm169, 0.0, %v5846
    %v5848 = vrot.slane %v5841, 4
    %v5849 = vsel %vm169, 0.0, %v5848
    %v5850 = vrot.slane %v5781, 4
    %v5851 = vsel %vm169, %v5850, %v5773
    %v5852 = vrot.slane %v5773, 4
    %v5853 = vsel %vm169, %v5781, %v5852
    %v5855 = vunpack.c.l.s4 1983009808
    %v5856 = vunpack.c.0.s8 %v5855
    %v5857 = vperm.slane %v5851, %v5856
    %v5859 = vunpack.c.l.s4 1983009808
    %v5860 = vunpack.c.0.s8 %v5859
    %v5861 = vperm.slane %v5853, %v5860
    %v5862 = vrot.slane %v5785, 4
    %v5863 = vsel %vm169, %v5862, %v5777
    %v5864 = vrot.slane %v5777, 4
    %v5865 = vsel %vm169, %v5785, %v5864
    %v5867 = vunpack.c.l.s4 1983009808
    %v5868 = vunpack.c.0.s8 %v5867
    %v5869 = vperm.slane %v5863, %v5868
    %v5871 = vunpack.c.l.s4 1983009808
    %v5872 = vunpack.c.0.s8 %v5871
    %v5873 = vperm.slane %v5865, %v5872
    %v5874 = vrot.slane %v5869, 4
    %v5875 = vsel %vm169, %v5874, %v5857
    %v5876 = vrot.slane %v5857, 4
    %v5877 = vsel %vm169, %v5869, %v5876
    %v5879 = vunpack.c.l.s4 1934713408
    %v5880 = vunpack.c.0.s8 %v5879
    %v5881 = vperm.slane %v5875, %v5880
    %v5883 = vunpack.c.l.s4 1934713408
    %v5884 = vunpack.c.0.s8 %v5883
    %v5885 = vperm.slane %v5877, %v5884
    %v5886 = vrot.slane %v5873, 4
    %v5887 = vsel %vm169, %v5886, %v5861
    %v5888 = vrot.slane %v5861, 4
    %v5889 = vsel %vm169, %v5873, %v5888
    %v5891 = vunpack.c.l.s4 1934713408
    %v5892 = vunpack.c.0.s8 %v5891
    %v5893 = vperm.slane %v5887, %v5892
    %v5895 = vunpack.c.l.s4 1934713408
    %v5896 = vunpack.c.0.s8 %v5895
    %v5897 = vperm.slane %v5889, %v5896
    %v5898 = vrot.slane %v5881, 4
    %v5899 = vsel %vm169, 0.0, %v5898
    %v5900 = vrot.slane %v5885, 4
    %v5901 = vsel %vm169, 0.0, %v5900
    %v5902 = vrot.slane %v5893, 4
    %v5903 = vsel %vm169, 0.0, %v5902
    %v5904 = vrot.slane %v5897, 4
    %v5905 = vsel %vm169, 0.0, %v5904
    %5907 = vrot.lane.b32.xlu0 %v5843, 16
    %v5908 = vpop.permute.xlu0 %5907
    %5911 = vrot.lane.b32.xlu0 %v5829, 32
    %v5912 = vpop.permute.xlu0 %5911
    %5915 = vrot.lane.b32.xlu0 %v5845, 48
    %v5916 = vpop.permute.xlu0 %5915
    %5919 = vrot.lane.b32.xlu0 %v5837, 64
    %v5920 = vpop.permute.xlu0 %5919
    %5923 = vrot.lane.b32.xlu0 %v5847, 80
    %v5924 = vpop.permute.xlu0 %5923
    %5927 = vrot.lane.b32.xlu0 %v5841, 96
    %v5928 = vpop.permute.xlu0 %5927
    %5931 = vrot.lane.b32.xlu0 %v5849, 112
    %v5932 = vpop.permute.xlu0 %5931
    %5935 = vrot.lane.b32.xlu0 %v5899, 16
    %v5936 = vpop.permute.xlu0 %5935
    %5939 = vrot.lane.b32.xlu0 %v5885, 32
    %v5940 = vpop.permute.xlu0 %5939
    %5943 = vrot.lane.b32.xlu0 %v5901, 48
    %v5944 = vpop.permute.xlu0 %5943
    %5947 = vrot.lane.b32.xlu0 %v5893, 64
    %v5948 = vpop.permute.xlu0 %5947
    %5951 = vrot.lane.b32.xlu0 %v5903, 80
    %v5952 = vpop.permute.xlu0 %5951
    %5955 = vrot.lane.b32.xlu0 %v5897, 96
    %v5956 = vpop.permute.xlu0 %5955
    %5959 = vrot.lane.b32.xlu0 %v5905, 112
    %v5960 = vpop.permute.xlu0 %5959
    %v5962 = vsel %vm337, %v5825, %v5908
    %v5963 = vsel %vm339, %v5962, %v5912
    %v5964 = vsel %vm341, %v5963, %v5916
    %v5965 = vsel %vm343, %v5964, %v5920
    %v5966 = vsel %vm345, %v5965, %v5924
    %v5967 = vsel %vm347, %v5966, %v5928
    %v5968 = vsel %vm349, %v5967, %v5932
    %v5969 = vsel %vm337, %v5881, %v5936
    %v5970 = vsel %vm339, %v5969, %v5940
    %v5971 = vsel %vm341, %v5970, %v5944
    %v5972 = vsel %vm343, %v5971, %v5948
    %v5973 = vsel %vm345, %v5972, %v5952
    %v5974 = vsel %vm347, %v5973, %v5956
    %v5975 = vsel %vm349, %v5974, %v5960
    %v5976 = vpack.c.bf16 %v5975, %v5968
    %v5978 = vunpack.c.l.b16 %v5976
    %v5979 = vunpack.c.h.b16 %v5976
    %v5980 = vpack.c.b16 %v5978, %v5978
    %v5981 = vpack.c.b16 %v5979, %v5979
    %v5983 = vsel %vm364, %v5980, 0
    %v5985 = vsel %vm364, %v5981, 0
    %v5988 = vunpack.c.l.b16 %v5983
    %v5989 = vunpack.c.l.b16 %v5985
    %v5990 = vpack.c.b16 %v5989, %v5988
    %5992 = vst [vmem:[#allocation3 + $0x180] sm:$0xff] %v5990
    %s5993 = sadd.s32 %s158, 96
    %s5994 = scalar_lea.vmem [#allocation2], %s5993
    %v5995 = vld [vmem:[%s5994] sm:$0xff]
    %v5996 = vld [vmem:[%s5994 + $0x8] sm:$0xff]
    %v5997 = vld [vmem:[%s5994 + $0x18] sm:$0xff]
    %v5998 = vld [vmem:[%s5994 + $0x20] sm:$0xff]
    %v5999 = vld [vmem:[%s5994 + $0x30] sm:$0xff]
    %v6000 = vld [vmem:[%s5994 + $0x38] sm:$0xff]
    %v6001 = vld [vmem:[%s5994 + $0x48] sm:$0xff]
    %v6002 = vld [vmem:[%s5994 + $0x50] sm:$0xff]
    %v6003 = vrot.slane %v5999, 4
    %v6004 = vsel %vm169, %v6003, %v5995
    %v6005 = vrot.slane %v5995, 4
    %v6006 = vsel %vm169, %v5999, %v6005
    %v6008 = vunpack.c.l.s4 1983009808
    %v6009 = vunpack.c.0.s8 %v6008
    %v6010 = vperm.slane %v6004, %v6009
    %v6012 = vunpack.c.l.s4 1983009808
    %v6013 = vunpack.c.0.s8 %v6012
    %v6014 = vperm.slane %v6006, %v6013
    %v6015 = vrot.slane %v6001, 4
    %v6016 = vsel %vm169, %v6015, %v5997
    %v6017 = vrot.slane %v5997, 4
    %v6018 = vsel %vm169, %v6001, %v6017
    %v6020 = vunpack.c.l.s4 1983009808
    %v6021 = vunpack.c.0.s8 %v6020
    %v6022 = vperm.slane %v6016, %v6021
    %v6024 = vunpack.c.l.s4 1983009808
    %v6025 = vunpack.c.0.s8 %v6024
    %v6026 = vperm.slane %v6018, %v6025
    %v6027 = vrot.slane %v6022, 4
    %v6028 = vsel %vm169, %v6027, %v6010
    %v6029 = vrot.slane %v6010, 4
    %v6030 = vsel %vm169, %v6022, %v6029
    %v6032 = vunpack.c.l.s4 1934713408
    %v6033 = vunpack.c.0.s8 %v6032
    %v6034 = vperm.slane %v6028, %v6033
    %v6036 = vunpack.c.l.s4 1934713408
    %v6037 = vunpack.c.0.s8 %v6036
    %v6038 = vperm.slane %v6030, %v6037
    %v6039 = vrot.slane %v6026, 4
    %v6040 = vsel %vm169, %v6039, %v6014
    %v6041 = vrot.slane %v6014, 4
    %v6042 = vsel %vm169, %v6026, %v6041
    %v6044 = vunpack.c.l.s4 1934713408
    %v6045 = vunpack.c.0.s8 %v6044
    %v6046 = vperm.slane %v6040, %v6045
    %v6048 = vunpack.c.l.s4 1934713408
    %v6049 = vunpack.c.0.s8 %v6048
    %v6050 = vperm.slane %v6042, %v6049
    %v6051 = vrot.slane %v6034, 4
    %v6052 = vsel %vm169, 0.0, %v6051
    %v6053 = vrot.slane %v6038, 4
    %v6054 = vsel %vm169, 0.0, %v6053
    %v6055 = vrot.slane %v6046, 4
    %v6056 = vsel %vm169, 0.0, %v6055
    %v6057 = vrot.slane %v6050, 4
    %v6058 = vsel %vm169, 0.0, %v6057
    %v6059 = vrot.slane %v6000, 4
    %v6060 = vsel %vm169, %v6059, %v5996
    %v6061 = vrot.slane %v5996, 4
    %v6062 = vsel %vm169, %v6000, %v6061
    %v6064 = vunpack.c.l.s4 1983009808
    %v6065 = vunpack.c.0.s8 %v6064
    %v6066 = vperm.slane %v6060, %v6065
    %v6068 = vunpack.c.l.s4 1983009808
    %v6069 = vunpack.c.0.s8 %v6068
    %v6070 = vperm.slane %v6062, %v6069
    %v6071 = vrot.slane %v6002, 4
    %v6072 = vsel %vm169, %v6071, %v5998
    %v6073 = vrot.slane %v5998, 4
    %v6074 = vsel %vm169, %v6002, %v6073
    %v6076 = vunpack.c.l.s4 1983009808
    %v6077 = vunpack.c.0.s8 %v6076
    %v6078 = vperm.slane %v6072, %v6077
    %v6080 = vunpack.c.l.s4 1983009808
    %v6081 = vunpack.c.0.s8 %v6080
    %v6082 = vperm.slane %v6074, %v6081
    %v6083 = vrot.slane %v6078, 4
    %v6084 = vsel %vm169, %v6083, %v6066
    %v6085 = vrot.slane %v6066, 4
    %v6086 = vsel %vm169, %v6078, %v6085
    %v6088 = vunpack.c.l.s4 1934713408
    %v6089 = vunpack.c.0.s8 %v6088
    %v6090 = vperm.slane %v6084, %v6089
    %v6092 = vunpack.c.l.s4 1934713408
    %v6093 = vunpack.c.0.s8 %v6092
    %v6094 = vperm.slane %v6086, %v6093
    %v6095 = vrot.slane %v6082, 4
    %v6096 = vsel %vm169, %v6095, %v6070
    %v6097 = vrot.slane %v6070, 4
    %v6098 = vsel %vm169, %v6082, %v6097
    %v6100 = vunpack.c.l.s4 1934713408
    %v6101 = vunpack.c.0.s8 %v6100
    %v6102 = vperm.slane %v6096, %v6101
    %v6104 = vunpack.c.l.s4 1934713408
    %v6105 = vunpack.c.0.s8 %v6104
    %v6106 = vperm.slane %v6098, %v6105
    %v6107 = vrot.slane %v6090, 4
    %v6108 = vsel %vm169, 0.0, %v6107
    %v6109 = vrot.slane %v6094, 4
    %v6110 = vsel %vm169, 0.0, %v6109
    %v6111 = vrot.slane %v6102, 4
    %v6112 = vsel %vm169, 0.0, %v6111
    %v6113 = vrot.slane %v6106, 4
    %v6114 = vsel %vm169, 0.0, %v6113
    %6116 = vrot.lane.b32.xlu0 %v6052, 16
    %v6117 = vpop.permute.xlu0 %6116
    %6120 = vrot.lane.b32.xlu0 %v6038, 32
    %v6121 = vpop.permute.xlu0 %6120
    %6124 = vrot.lane.b32.xlu0 %v6054, 48
    %v6125 = vpop.permute.xlu0 %6124
    %6128 = vrot.lane.b32.xlu0 %v6046, 64
    %v6129 = vpop.permute.xlu0 %6128
    %6132 = vrot.lane.b32.xlu0 %v6056, 80
    %v6133 = vpop.permute.xlu0 %6132
    %6136 = vrot.lane.b32.xlu0 %v6050, 96
    %v6137 = vpop.permute.xlu0 %6136
    %6140 = vrot.lane.b32.xlu0 %v6058, 112
    %v6141 = vpop.permute.xlu0 %6140
    %6144 = vrot.lane.b32.xlu0 %v6108, 16
    %v6145 = vpop.permute.xlu0 %6144
    %6148 = vrot.lane.b32.xlu0 %v6094, 32
    %v6149 = vpop.permute.xlu0 %6148
    %6152 = vrot.lane.b32.xlu0 %v6110, 48
    %v6153 = vpop.permute.xlu0 %6152
    %6156 = vrot.lane.b32.xlu0 %v6102, 64
    %v6157 = vpop.permute.xlu0 %6156
    %6160 = vrot.lane.b32.xlu0 %v6112, 80
    %v6161 = vpop.permute.xlu0 %6160
    %6164 = vrot.lane.b32.xlu0 %v6106, 96
    %v6165 = vpop.permute.xlu0 %6164
    %6168 = vrot.lane.b32.xlu0 %v6114, 112
    %v6169 = vpop.permute.xlu0 %6168
    %v6171 = vsel %vm337, %v6034, %v6117
    %v6172 = vsel %vm339, %v6171, %v6121
    %v6173 = vsel %vm341, %v6172, %v6125
    %v6174 = vsel %vm343, %v6173, %v6129
    %v6175 = vsel %vm345, %v6174, %v6133
    %v6176 = vsel %vm347, %v6175, %v6137
    %v6177 = vsel %vm349, %v6176, %v6141
    %v6178 = vsel %vm337, %v6090, %v6145
    %v6179 = vsel %vm339, %v6178, %v6149
    %v6180 = vsel %vm341, %v6179, %v6153
    %v6181 = vsel %vm343, %v6180, %v6157
    %v6182 = vsel %vm345, %v6181, %v6161
    %v6183 = vsel %vm347, %v6182, %v6165
    %v6184 = vsel %vm349, %v6183, %v6169
    %v6185 = vpack.c.bf16 %v6184, %v6177
    %v6187 = vunpack.c.l.b16 %v6185
    %v6188 = vunpack.c.h.b16 %v6185
    %v6189 = vpack.c.b16 %v6187, %v6187
    %v6190 = vpack.c.b16 %v6188, %v6188
    %v6192 = vsel %vm364, %v6189, 0
    %v6194 = vsel %vm364, %v6190, 0
    %v6197 = vunpack.c.l.b16 %v6192
    %v6198 = vunpack.c.l.b16 %v6194
    %v6199 = vpack.c.b16 %v6198, %v6197
    %6201 = vst [vmem:[#allocation3 + $0x8] sm:$0xff] %v6199
    %v6202 = vld [vmem:[%s5994] sm:$0xff]
    %v6203 = vld [vmem:[%s5994 + $0x8] sm:$0xff]
    %v6204 = vld [vmem:[%s5994 + $0x18] sm:$0xff]
    %v6205 = vld [vmem:[%s5994 + $0x20] sm:$0xff]
    %v6206 = vld [vmem:[%s5994 + $0x30] sm:$0xff]
    %v6207 = vld [vmem:[%s5994 + $0x38] sm:$0xff]
    %v6208 = vld [vmem:[%s5994 + $0x48] sm:$0xff]
    %v6209 = vld [vmem:[%s5994 + $0x50] sm:$0xff]
    %6218 = vrot.lane.b32.xlu0 %v6202, 127
    %v6219 = vpop.permute.xlu0 %6218
    %6220 = vrot.lane.b32.xlu0 %v6203, 127
    %v6221 = vpop.permute.xlu0 %6220
    %6222 = vrot.lane.b32.xlu0 %v6204, 127
    %v6223 = vpop.permute.xlu0 %6222
    %6224 = vrot.lane.b32.xlu0 %v6205, 127
    %v6225 = vpop.permute.xlu0 %6224
    %6226 = vrot.lane.b32.xlu0 %v6206, 127
    %v6227 = vpop.permute.xlu0 %6226
    %6228 = vrot.lane.b32.xlu0 %v6207, 127
    %v6229 = vpop.permute.xlu0 %6228
    %6230 = vrot.lane.b32.xlu0 %v6208, 127
    %v6231 = vpop.permute.xlu0 %6230
    %6232 = vrot.lane.b32.xlu0 %v6209, 127
    %v6233 = vpop.permute.xlu0 %6232
    %v6242 = vrot.slane %v6227, 4
    %v6243 = vsel %vm169, %v6242, %v6219
    %v6244 = vrot.slane %v6219, 4
    %v6245 = vsel %vm169, %v6227, %v6244
    %v6247 = vunpack.c.l.s4 1983009808
    %v6248 = vunpack.c.0.s8 %v6247
    %v6249 = vperm.slane %v6243, %v6248
    %v6251 = vunpack.c.l.s4 1983009808
    %v6252 = vunpack.c.0.s8 %v6251
    %v6253 = vperm.slane %v6245, %v6252
    %v6254 = vrot.slane %v6231, 4
    %v6255 = vsel %vm169, %v6254, %v6223
    %v6256 = vrot.slane %v6223, 4
    %v6257 = vsel %vm169, %v6231, %v6256
    %v6259 = vunpack.c.l.s4 1983009808
    %v6260 = vunpack.c.0.s8 %v6259
    %v6261 = vperm.slane %v6255, %v6260
    %v6263 = vunpack.c.l.s4 1983009808
    %v6264 = vunpack.c.0.s8 %v6263
    %v6265 = vperm.slane %v6257, %v6264
    %v6266 = vrot.slane %v6261, 4
    %v6267 = vsel %vm169, %v6266, %v6249
    %v6268 = vrot.slane %v6249, 4
    %v6269 = vsel %vm169, %v6261, %v6268
    %v6271 = vunpack.c.l.s4 1934713408
    %v6272 = vunpack.c.0.s8 %v6271
    %v6273 = vperm.slane %v6267, %v6272
    %v6275 = vunpack.c.l.s4 1934713408
    %v6276 = vunpack.c.0.s8 %v6275
    %v6277 = vperm.slane %v6269, %v6276
    %v6278 = vrot.slane %v6265, 4
    %v6279 = vsel %vm169, %v6278, %v6253
    %v6280 = vrot.slane %v6253, 4
    %v6281 = vsel %vm169, %v6265, %v6280
    %v6283 = vunpack.c.l.s4 1934713408
    %v6284 = vunpack.c.0.s8 %v6283
    %v6285 = vperm.slane %v6279, %v6284
    %v6287 = vunpack.c.l.s4 1934713408
    %v6288 = vunpack.c.0.s8 %v6287
    %v6289 = vperm.slane %v6281, %v6288
    %v6290 = vrot.slane %v6273, 4
    %v6291 = vsel %vm169, 0.0, %v6290
    %v6292 = vrot.slane %v6277, 4
    %v6293 = vsel %vm169, 0.0, %v6292
    %v6294 = vrot.slane %v6285, 4
    %v6295 = vsel %vm169, 0.0, %v6294
    %v6296 = vrot.slane %v6289, 4
    %v6297 = vsel %vm169, 0.0, %v6296
    %v6298 = vrot.slane %v6229, 4
    %v6299 = vsel %vm169, %v6298, %v6221
    %v6300 = vrot.slane %v6221, 4
    %v6301 = vsel %vm169, %v6229, %v6300
    %v6303 = vunpack.c.l.s4 1983009808
    %v6304 = vunpack.c.0.s8 %v6303
    %v6305 = vperm.slane %v6299, %v6304
    %v6307 = vunpack.c.l.s4 1983009808
    %v6308 = vunpack.c.0.s8 %v6307
    %v6309 = vperm.slane %v6301, %v6308
    %v6310 = vrot.slane %v6233, 4
    %v6311 = vsel %vm169, %v6310, %v6225
    %v6312 = vrot.slane %v6225, 4
    %v6313 = vsel %vm169, %v6233, %v6312
    %v6315 = vunpack.c.l.s4 1983009808
    %v6316 = vunpack.c.0.s8 %v6315
    %v6317 = vperm.slane %v6311, %v6316
    %v6319 = vunpack.c.l.s4 1983009808
    %v6320 = vunpack.c.0.s8 %v6319
    %v6321 = vperm.slane %v6313, %v6320
    %v6322 = vrot.slane %v6317, 4
    %v6323 = vsel %vm169, %v6322, %v6305
    %v6324 = vrot.slane %v6305, 4
    %v6325 = vsel %vm169, %v6317, %v6324
    %v6327 = vunpack.c.l.s4 1934713408
    %v6328 = vunpack.c.0.s8 %v6327
    %v6329 = vperm.slane %v6323, %v6328
    %v6331 = vunpack.c.l.s4 1934713408
    %v6332 = vunpack.c.0.s8 %v6331
    %v6333 = vperm.slane %v6325, %v6332
    %v6334 = vrot.slane %v6321, 4
    %v6335 = vsel %vm169, %v6334, %v6309
    %v6336 = vrot.slane %v6309, 4
    %v6337 = vsel %vm169, %v6321, %v6336
    %v6339 = vunpack.c.l.s4 1934713408
    %v6340 = vunpack.c.0.s8 %v6339
    %v6341 = vperm.slane %v6335, %v6340
    %v6343 = vunpack.c.l.s4 1934713408
    %v6344 = vunpack.c.0.s8 %v6343
    %v6345 = vperm.slane %v6337, %v6344
    %v6346 = vrot.slane %v6329, 4
    %v6347 = vsel %vm169, 0.0, %v6346
    %v6348 = vrot.slane %v6333, 4
    %v6349 = vsel %vm169, 0.0, %v6348
    %v6350 = vrot.slane %v6341, 4
    %v6351 = vsel %vm169, 0.0, %v6350
    %v6352 = vrot.slane %v6345, 4
    %v6353 = vsel %vm169, 0.0, %v6352
    %6355 = vrot.lane.b32.xlu0 %v6291, 16
    %v6356 = vpop.permute.xlu0 %6355
    %6359 = vrot.lane.b32.xlu0 %v6277, 32
    %v6360 = vpop.permute.xlu0 %6359
    %6363 = vrot.lane.b32.xlu0 %v6293, 48
    %v6364 = vpop.permute.xlu0 %6363
    %6367 = vrot.lane.b32.xlu0 %v6285, 64
    %v6368 = vpop.permute.xlu0 %6367
    %6371 = vrot.lane.b32.xlu0 %v6295, 80
    %v6372 = vpop.permute.xlu0 %6371
    %6375 = vrot.lane.b32.xlu0 %v6289, 96
    %v6376 = vpop.permute.xlu0 %6375
    %6379 = vrot.lane.b32.xlu0 %v6297, 112
    %v6380 = vpop.permute.xlu0 %6379
    %6383 = vrot.lane.b32.xlu0 %v6347, 16
    %v6384 = vpop.permute.xlu0 %6383
    %6387 = vrot.lane.b32.xlu0 %v6333, 32
    %v6388 = vpop.permute.xlu0 %6387
    %6391 = vrot.lane.b32.xlu0 %v6349, 48
    %v6392 = vpop.permute.xlu0 %6391
    %6395 = vrot.lane.b32.xlu0 %v6341, 64
    %v6396 = vpop.permute.xlu0 %6395
    %6399 = vrot.lane.b32.xlu0 %v6351, 80
    %v6400 = vpop.permute.xlu0 %6399
    %6403 = vrot.lane.b32.xlu0 %v6345, 96
    %v6404 = vpop.permute.xlu0 %6403
    %6407 = vrot.lane.b32.xlu0 %v6353, 112
    %v6408 = vpop.permute.xlu0 %6407
    %v6410 = vsel %vm337, %v6273, %v6356
    %v6411 = vsel %vm339, %v6410, %v6360
    %v6412 = vsel %vm341, %v6411, %v6364
    %v6413 = vsel %vm343, %v6412, %v6368
    %v6414 = vsel %vm345, %v6413, %v6372
    %v6415 = vsel %vm347, %v6414, %v6376
    %v6416 = vsel %vm349, %v6415, %v6380
    %v6417 = vsel %vm337, %v6329, %v6384
    %v6418 = vsel %vm339, %v6417, %v6388
    %v6419 = vsel %vm341, %v6418, %v6392
    %v6420 = vsel %vm343, %v6419, %v6396
    %v6421 = vsel %vm345, %v6420, %v6400
    %v6422 = vsel %vm347, %v6421, %v6404
    %v6423 = vsel %vm349, %v6422, %v6408
    %v6424 = vpack.c.bf16 %v6423, %v6416
    %v6426 = vunpack.c.l.b16 %v6424
    %v6427 = vunpack.c.h.b16 %v6424
    %v6428 = vpack.c.b16 %v6426, %v6426
    %v6429 = vpack.c.b16 %v6427, %v6427
    %v6431 = vsel %vm364, %v6428, 0
    %v6433 = vsel %vm364, %v6429, 0
    %v6436 = vunpack.c.l.b16 %v6431
    %v6437 = vunpack.c.l.b16 %v6433
    %v6438 = vpack.c.b16 %v6437, %v6436
    %6440 = vst [vmem:[#allocation3 + $0x18] sm:$0xff] %v6438
    %v6441 = vld [vmem:[%s5994] sm:$0xff]
    %v6442 = vld [vmem:[%s5994 + $0x8] sm:$0xff]
    %v6443 = vld [vmem:[%s5994 + $0x18] sm:$0xff]
    %v6444 = vld [vmem:[%s5994 + $0x20] sm:$0xff]
    %v6445 = vld [vmem:[%s5994 + $0x30] sm:$0xff]
    %v6446 = vld [vmem:[%s5994 + $0x38] sm:$0xff]
    %v6447 = vld [vmem:[%s5994 + $0x48] sm:$0xff]
    %v6448 = vld [vmem:[%s5994 + $0x50] sm:$0xff]
    %6457 = vrot.lane.b32.xlu0 %v6441, 126
    %v6458 = vpop.permute.xlu0 %6457
    %6459 = vrot.lane.b32.xlu0 %v6442, 126
    %v6460 = vpop.permute.xlu0 %6459
    %6461 = vrot.lane.b32.xlu0 %v6443, 126
    %v6462 = vpop.permute.xlu0 %6461
    %6463 = vrot.lane.b32.xlu0 %v6444, 126
    %v6464 = vpop.permute.xlu0 %6463
    %6465 = vrot.lane.b32.xlu0 %v6445, 126
    %v6466 = vpop.permute.xlu0 %6465
    %6467 = vrot.lane.b32.xlu0 %v6446, 126
    %v6468 = vpop.permute.xlu0 %6467
    %6469 = vrot.lane.b32.xlu0 %v6447, 126
    %v6470 = vpop.permute.xlu0 %6469
    %6471 = vrot.lane.b32.xlu0 %v6448, 126
    %v6472 = vpop.permute.xlu0 %6471
    %v6481 = vrot.slane %v6466, 4
    %v6482 = vsel %vm169, %v6481, %v6458
    %v6483 = vrot.slane %v6458, 4
    %v6484 = vsel %vm169, %v6466, %v6483
    %v6486 = vunpack.c.l.s4 1983009808
    %v6487 = vunpack.c.0.s8 %v6486
    %v6488 = vperm.slane %v6482, %v6487
    %v6490 = vunpack.c.l.s4 1983009808
    %v6491 = vunpack.c.0.s8 %v6490
    %v6492 = vperm.slane %v6484, %v6491
    %v6493 = vrot.slane %v6470, 4
    %v6494 = vsel %vm169, %v6493, %v6462
    %v6495 = vrot.slane %v6462, 4
    %v6496 = vsel %vm169, %v6470, %v6495
    %v6498 = vunpack.c.l.s4 1983009808
    %v6499 = vunpack.c.0.s8 %v6498
    %v6500 = vperm.slane %v6494, %v6499
    %v6502 = vunpack.c.l.s4 1983009808
    %v6503 = vunpack.c.0.s8 %v6502
    %v6504 = vperm.slane %v6496, %v6503
    %v6505 = vrot.slane %v6500, 4
    %v6506 = vsel %vm169, %v6505, %v6488
    %v6507 = vrot.slane %v6488, 4
    %v6508 = vsel %vm169, %v6500, %v6507
    %v6510 = vunpack.c.l.s4 1934713408
    %v6511 = vunpack.c.0.s8 %v6510
    %v6512 = vperm.slane %v6506, %v6511
    %v6514 = vunpack.c.l.s4 1934713408
    %v6515 = vunpack.c.0.s8 %v6514
    %v6516 = vperm.slane %v6508, %v6515
    %v6517 = vrot.slane %v6504, 4
    %v6518 = vsel %vm169, %v6517, %v6492
    %v6519 = vrot.slane %v6492, 4
    %v6520 = vsel %vm169, %v6504, %v6519
    %v6522 = vunpack.c.l.s4 1934713408
    %v6523 = vunpack.c.0.s8 %v6522
    %v6524 = vperm.slane %v6518, %v6523
    %v6526 = vunpack.c.l.s4 1934713408
    %v6527 = vunpack.c.0.s8 %v6526
    %v6528 = vperm.slane %v6520, %v6527
    %v6529 = vrot.slane %v6512, 4
    %v6530 = vsel %vm169, 0.0, %v6529
    %v6531 = vrot.slane %v6516, 4
    %v6532 = vsel %vm169, 0.0, %v6531
    %v6533 = vrot.slane %v6524, 4
    %v6534 = vsel %vm169, 0.0, %v6533
    %v6535 = vrot.slane %v6528, 4
    %v6536 = vsel %vm169, 0.0, %v6535
    %v6537 = vrot.slane %v6468, 4
    %v6538 = vsel %vm169, %v6537, %v6460
    %v6539 = vrot.slane %v6460, 4
    %v6540 = vsel %vm169, %v6468, %v6539
    %v6542 = vunpack.c.l.s4 1983009808
    %v6543 = vunpack.c.0.s8 %v6542
    %v6544 = vperm.slane %v6538, %v6543
    %v6546 = vunpack.c.l.s4 1983009808
    %v6547 = vunpack.c.0.s8 %v6546
    %v6548 = vperm.slane %v6540, %v6547
    %v6549 = vrot.slane %v6472, 4
    %v6550 = vsel %vm169, %v6549, %v6464
    %v6551 = vrot.slane %v6464, 4
    %v6552 = vsel %vm169, %v6472, %v6551
    %v6554 = vunpack.c.l.s4 1983009808
    %v6555 = vunpack.c.0.s8 %v6554
    %v6556 = vperm.slane %v6550, %v6555
    %v6558 = vunpack.c.l.s4 1983009808
    %v6559 = vunpack.c.0.s8 %v6558
    %v6560 = vperm.slane %v6552, %v6559
    %v6561 = vrot.slane %v6556, 4
    %v6562 = vsel %vm169, %v6561, %v6544
    %v6563 = vrot.slane %v6544, 4
    %v6564 = vsel %vm169, %v6556, %v6563
    %v6566 = vunpack.c.l.s4 1934713408
    %v6567 = vunpack.c.0.s8 %v6566
    %v6568 = vperm.slane %v6562, %v6567
    %v6570 = vunpack.c.l.s4 1934713408
    %v6571 = vunpack.c.0.s8 %v6570
    %v6572 = vperm.slane %v6564, %v6571
    %v6573 = vrot.slane %v6560, 4
    %v6574 = vsel %vm169, %v6573, %v6548
    %v6575 = vrot.slane %v6548, 4
    %v6576 = vsel %vm169, %v6560, %v6575
    %v6578 = vunpack.c.l.s4 1934713408
    %v6579 = vunpack.c.0.s8 %v6578
    %v6580 = vperm.slane %v6574, %v6579
    %v6582 = vunpack.c.l.s4 1934713408
    %v6583 = vunpack.c.0.s8 %v6582
    %v6584 = vperm.slane %v6576, %v6583
    %v6585 = vrot.slane %v6568, 4
    %v6586 = vsel %vm169, 0.0, %v6585
    %v6587 = vrot.slane %v6572, 4
    %v6588 = vsel %vm169, 0.0, %v6587
    %v6589 = vrot.slane %v6580, 4
    %v6590 = vsel %vm169, 0.0, %v6589
    %v6591 = vrot.slane %v6584, 4
    %v6592 = vsel %vm169, 0.0, %v6591
    %6594 = vrot.lane.b32.xlu0 %v6530, 16
    %v6595 = vpop.permute.xlu0 %6594
    %6598 = vrot.lane.b32.xlu0 %v6516, 32
    %v6599 = vpop.permute.xlu0 %6598
    %6602 = vrot.lane.b32.xlu0 %v6532, 48
    %v6603 = vpop.permute.xlu0 %6602
    %6606 = vrot.lane.b32.xlu0 %v6524, 64
    %v6607 = vpop.permute.xlu0 %6606
    %6610 = vrot.lane.b32.xlu0 %v6534, 80
    %v6611 = vpop.permute.xlu0 %6610
    %6614 = vrot.lane.b32.xlu0 %v6528, 96
    %v6615 = vpop.permute.xlu0 %6614
    %6618 = vrot.lane.b32.xlu0 %v6536, 112
    %v6619 = vpop.permute.xlu0 %6618
    %6622 = vrot.lane.b32.xlu0 %v6586, 16
    %v6623 = vpop.permute.xlu0 %6622
    %6626 = vrot.lane.b32.xlu0 %v6572, 32
    %v6627 = vpop.permute.xlu0 %6626
    %6630 = vrot.lane.b32.xlu0 %v6588, 48
    %v6631 = vpop.permute.xlu0 %6630
    %6634 = vrot.lane.b32.xlu0 %v6580, 64
    %v6635 = vpop.permute.xlu0 %6634
    %6638 = vrot.lane.b32.xlu0 %v6590, 80
    %v6639 = vpop.permute.xlu0 %6638
    %6642 = vrot.lane.b32.xlu0 %v6584, 96
    %v6643 = vpop.permute.xlu0 %6642
    %6646 = vrot.lane.b32.xlu0 %v6592, 112
    %v6647 = vpop.permute.xlu0 %6646
    %v6649 = vsel %vm337, %v6512, %v6595
    %v6650 = vsel %vm339, %v6649, %v6599
    %v6651 = vsel %vm341, %v6650, %v6603
    %v6652 = vsel %vm343, %v6651, %v6607
    %v6653 = vsel %vm345, %v6652, %v6611
    %v6654 = vsel %vm347, %v6653, %v6615
    %v6655 = vsel %vm349, %v6654, %v6619
    %v6656 = vsel %vm337, %v6568, %v6623
    %v6657 = vsel %vm339, %v6656, %v6627
    %v6658 = vsel %vm341, %v6657, %v6631
    %v6659 = vsel %vm343, %v6658, %v6635
    %v6660 = vsel %vm345, %v6659, %v6639
    %v6661 = vsel %vm347, %v6660, %v6643
    %v6662 = vsel %vm349, %v6661, %v6647
    %v6663 = vpack.c.bf16 %v6662, %v6655
    %v6665 = vunpack.c.l.b16 %v6663
    %v6666 = vunpack.c.h.b16 %v6663
    %v6667 = vpack.c.b16 %v6665, %v6665
    %v6668 = vpack.c.b16 %v6666, %v6666
    %v6670 = vsel %vm364, %v6667, 0
    %v6672 = vsel %vm364, %v6668, 0
    %v6675 = vunpack.c.l.b16 %v6670
    %v6676 = vunpack.c.l.b16 %v6672
    %v6677 = vpack.c.b16 %v6676, %v6675
    %6679 = vst [vmem:[#allocation3 + $0x28] sm:$0xff] %v6677
    %v6680 = vld [vmem:[%s5994] sm:$0xff]
    %v6681 = vld [vmem:[%s5994 + $0x8] sm:$0xff]
    %v6682 = vld [vmem:[%s5994 + $0x18] sm:$0xff]
    %v6683 = vld [vmem:[%s5994 + $0x20] sm:$0xff]
    %v6684 = vld [vmem:[%s5994 + $0x30] sm:$0xff]
    %v6685 = vld [vmem:[%s5994 + $0x38] sm:$0xff]
    %v6686 = vld [vmem:[%s5994 + $0x48] sm:$0xff]
    %v6687 = vld [vmem:[%s5994 + $0x50] sm:$0xff]
    %6696 = vrot.lane.b32.xlu0 %v6680, 125
    %v6697 = vpop.permute.xlu0 %6696
    %6698 = vrot.lane.b32.xlu0 %v6681, 125
    %v6699 = vpop.permute.xlu0 %6698
    %6700 = vrot.lane.b32.xlu0 %v6682, 125
    %v6701 = vpop.permute.xlu0 %6700
    %6702 = vrot.lane.b32.xlu0 %v6683, 125
    %v6703 = vpop.permute.xlu0 %6702
    %6704 = vrot.lane.b32.xlu0 %v6684, 125
    %v6705 = vpop.permute.xlu0 %6704
    %6706 = vrot.lane.b32.xlu0 %v6685, 125
    %v6707 = vpop.permute.xlu0 %6706
    %6708 = vrot.lane.b32.xlu0 %v6686, 125
    %v6709 = vpop.permute.xlu0 %6708
    %6710 = vrot.lane.b32.xlu0 %v6687, 125
    %v6711 = vpop.permute.xlu0 %6710
    %v6720 = vrot.slane %v6705, 4
    %v6721 = vsel %vm169, %v6720, %v6697
    %v6722 = vrot.slane %v6697, 4
    %v6723 = vsel %vm169, %v6705, %v6722
    %v6725 = vunpack.c.l.s4 1983009808
    %v6726 = vunpack.c.0.s8 %v6725
    %v6727 = vperm.slane %v6721, %v6726
    %v6729 = vunpack.c.l.s4 1983009808
    %v6730 = vunpack.c.0.s8 %v6729
    %v6731 = vperm.slane %v6723, %v6730
    %v6732 = vrot.slane %v6709, 4
    %v6733 = vsel %vm169, %v6732, %v6701
    %v6734 = vrot.slane %v6701, 4
    %v6735 = vsel %vm169, %v6709, %v6734
    %v6737 = vunpack.c.l.s4 1983009808
    %v6738 = vunpack.c.0.s8 %v6737
    %v6739 = vperm.slane %v6733, %v6738
    %v6741 = vunpack.c.l.s4 1983009808
    %v6742 = vunpack.c.0.s8 %v6741
    %v6743 = vperm.slane %v6735, %v6742
    %v6744 = vrot.slane %v6739, 4
    %v6745 = vsel %vm169, %v6744, %v6727
    %v6746 = vrot.slane %v6727, 4
    %v6747 = vsel %vm169, %v6739, %v6746
    %v6749 = vunpack.c.l.s4 1934713408
    %v6750 = vunpack.c.0.s8 %v6749
    %v6751 = vperm.slane %v6745, %v6750
    %v6753 = vunpack.c.l.s4 1934713408
    %v6754 = vunpack.c.0.s8 %v6753
    %v6755 = vperm.slane %v6747, %v6754
    %v6756 = vrot.slane %v6743, 4
    %v6757 = vsel %vm169, %v6756, %v6731
    %v6758 = vrot.slane %v6731, 4
    %v6759 = vsel %vm169, %v6743, %v6758
    %v6761 = vunpack.c.l.s4 1934713408
    %v6762 = vunpack.c.0.s8 %v6761
    %v6763 = vperm.slane %v6757, %v6762
    %v6765 = vunpack.c.l.s4 1934713408
    %v6766 = vunpack.c.0.s8 %v6765
    %v6767 = vperm.slane %v6759, %v6766
    %v6768 = vrot.slane %v6751, 4
    %v6769 = vsel %vm169, 0.0, %v6768
    %v6770 = vrot.slane %v6755, 4
    %v6771 = vsel %vm169, 0.0, %v6770
    %v6772 = vrot.slane %v6763, 4
    %v6773 = vsel %vm169, 0.0, %v6772
    %v6774 = vrot.slane %v6767, 4
    %v6775 = vsel %vm169, 0.0, %v6774
    %v6776 = vrot.slane %v6707, 4
    %v6777 = vsel %vm169, %v6776, %v6699
    %v6778 = vrot.slane %v6699, 4
    %v6779 = vsel %vm169, %v6707, %v6778
    %v6781 = vunpack.c.l.s4 1983009808
    %v6782 = vunpack.c.0.s8 %v6781
    %v6783 = vperm.slane %v6777, %v6782
    %v6785 = vunpack.c.l.s4 1983009808
    %v6786 = vunpack.c.0.s8 %v6785
    %v6787 = vperm.slane %v6779, %v6786
    %v6788 = vrot.slane %v6711, 4
    %v6789 = vsel %vm169, %v6788, %v6703
    %v6790 = vrot.slane %v6703, 4
    %v6791 = vsel %vm169, %v6711, %v6790
    %v6793 = vunpack.c.l.s4 1983009808
    %v6794 = vunpack.c.0.s8 %v6793
    %v6795 = vperm.slane %v6789, %v6794
    %v6797 = vunpack.c.l.s4 1983009808
    %v6798 = vunpack.c.0.s8 %v6797
    %v6799 = vperm.slane %v6791, %v6798
    %v6800 = vrot.slane %v6795, 4
    %v6801 = vsel %vm169, %v6800, %v6783
    %v6802 = vrot.slane %v6783, 4
    %v6803 = vsel %vm169, %v6795, %v6802
    %v6805 = vunpack.c.l.s4 1934713408
    %v6806 = vunpack.c.0.s8 %v6805
    %v6807 = vperm.slane %v6801, %v6806
    %v6809 = vunpack.c.l.s4 1934713408
    %v6810 = vunpack.c.0.s8 %v6809
    %v6811 = vperm.slane %v6803, %v6810
    %v6812 = vrot.slane %v6799, 4
    %v6813 = vsel %vm169, %v6812, %v6787
    %v6814 = vrot.slane %v6787, 4
    %v6815 = vsel %vm169, %v6799, %v6814
    %v6817 = vunpack.c.l.s4 1934713408
    %v6818 = vunpack.c.0.s8 %v6817
    %v6819 = vperm.slane %v6813, %v6818
    %v6821 = vunpack.c.l.s4 1934713408
    %v6822 = vunpack.c.0.s8 %v6821
    %v6823 = vperm.slane %v6815, %v6822
    %v6824 = vrot.slane %v6807, 4
    %v6825 = vsel %vm169, 0.0, %v6824
    %v6826 = vrot.slane %v6811, 4
    %v6827 = vsel %vm169, 0.0, %v6826
    %v6828 = vrot.slane %v6819, 4
    %v6829 = vsel %vm169, 0.0, %v6828
    %v6830 = vrot.slane %v6823, 4
    %v6831 = vsel %vm169, 0.0, %v6830
    %6833 = vrot.lane.b32.xlu0 %v6769, 16
    %v6834 = vpop.permute.xlu0 %6833
    %6837 = vrot.lane.b32.xlu0 %v6755, 32
    %v6838 = vpop.permute.xlu0 %6837
    %6841 = vrot.lane.b32.xlu0 %v6771, 48
    %v6842 = vpop.permute.xlu0 %6841
    %6845 = vrot.lane.b32.xlu0 %v6763, 64
    %v6846 = vpop.permute.xlu0 %6845
    %6849 = vrot.lane.b32.xlu0 %v6773, 80
    %v6850 = vpop.permute.xlu0 %6849
    %6853 = vrot.lane.b32.xlu0 %v6767, 96
    %v6854 = vpop.permute.xlu0 %6853
    %6857 = vrot.lane.b32.xlu0 %v6775, 112
    %v6858 = vpop.permute.xlu0 %6857
    %6861 = vrot.lane.b32.xlu0 %v6825, 16
    %v6862 = vpop.permute.xlu0 %6861
    %6865 = vrot.lane.b32.xlu0 %v6811, 32
    %v6866 = vpop.permute.xlu0 %6865
    %6869 = vrot.lane.b32.xlu0 %v6827, 48
    %v6870 = vpop.permute.xlu0 %6869
    %6873 = vrot.lane.b32.xlu0 %v6819, 64
    %v6874 = vpop.permute.xlu0 %6873
    %6877 = vrot.lane.b32.xlu0 %v6829, 80
    %v6878 = vpop.permute.xlu0 %6877
    %6881 = vrot.lane.b32.xlu0 %v6823, 96
    %v6882 = vpop.permute.xlu0 %6881
    %6885 = vrot.lane.b32.xlu0 %v6831, 112
    %v6886 = vpop.permute.xlu0 %6885
    %v6888 = vsel %vm337, %v6751, %v6834
    %v6889 = vsel %vm339, %v6888, %v6838
    %v6890 = vsel %vm341, %v6889, %v6842
    %v6891 = vsel %vm343, %v6890, %v6846
    %v6892 = vsel %vm345, %v6891, %v6850
    %v6893 = vsel %vm347, %v6892, %v6854
    %v6894 = vsel %vm349, %v6893, %v6858
    %v6895 = vsel %vm337, %v6807, %v6862
    %v6896 = vsel %vm339, %v6895, %v6866
    %v6897 = vsel %vm341, %v6896, %v6870
    %v6898 = vsel %vm343, %v6897, %v6874
    %v6899 = vsel %vm345, %v6898, %v6878
    %v6900 = vsel %vm347, %v6899, %v6882
    %v6901 = vsel %vm349, %v6900, %v6886
    %v6902 = vpack.c.bf16 %v6901, %v6894
    %v6904 = vunpack.c.l.b16 %v6902
    %v6905 = vunpack.c.h.b16 %v6902
    %v6906 = vpack.c.b16 %v6904, %v6904
    %v6907 = vpack.c.b16 %v6905, %v6905
    %v6909 = vsel %vm364, %v6906, 0
    %v6911 = vsel %vm364, %v6907, 0
    %v6914 = vunpack.c.l.b16 %v6909
    %v6915 = vunpack.c.l.b16 %v6911
    %v6916 = vpack.c.b16 %v6915, %v6914
    %6918 = vst [vmem:[#allocation3 + $0x38] sm:$0xff] %v6916
    %v6919 = vld [vmem:[%s5994] sm:$0xff]
    %v6920 = vld [vmem:[%s5994 + $0x8] sm:$0xff]
    %v6921 = vld [vmem:[%s5994 + $0x18] sm:$0xff]
    %v6922 = vld [vmem:[%s5994 + $0x20] sm:$0xff]
    %v6923 = vld [vmem:[%s5994 + $0x30] sm:$0xff]
    %v6924 = vld [vmem:[%s5994 + $0x38] sm:$0xff]
    %v6925 = vld [vmem:[%s5994 + $0x48] sm:$0xff]
    %v6926 = vld [vmem:[%s5994 + $0x50] sm:$0xff]
    %6935 = vrot.lane.b32.xlu0 %v6919, 124
    %v6936 = vpop.permute.xlu0 %6935
    %6937 = vrot.lane.b32.xlu0 %v6920, 124
    %v6938 = vpop.permute.xlu0 %6937
    %6939 = vrot.lane.b32.xlu0 %v6921, 124
    %v6940 = vpop.permute.xlu0 %6939
    %6941 = vrot.lane.b32.xlu0 %v6922, 124
    %v6942 = vpop.permute.xlu0 %6941
    %6943 = vrot.lane.b32.xlu0 %v6923, 124
    %v6944 = vpop.permute.xlu0 %6943
    %6945 = vrot.lane.b32.xlu0 %v6924, 124
    %v6946 = vpop.permute.xlu0 %6945
    %6947 = vrot.lane.b32.xlu0 %v6925, 124
    %v6948 = vpop.permute.xlu0 %6947
    %6949 = vrot.lane.b32.xlu0 %v6926, 124
    %v6950 = vpop.permute.xlu0 %6949
    %v6959 = vrot.slane %v6944, 4
    %v6960 = vsel %vm169, %v6959, %v6936
    %v6961 = vrot.slane %v6936, 4
    %v6962 = vsel %vm169, %v6944, %v6961
    %v6964 = vunpack.c.l.s4 1983009808
    %v6965 = vunpack.c.0.s8 %v6964
    %v6966 = vperm.slane %v6960, %v6965
    %v6968 = vunpack.c.l.s4 1983009808
    %v6969 = vunpack.c.0.s8 %v6968
    %v6970 = vperm.slane %v6962, %v6969
    %v6971 = vrot.slane %v6948, 4
    %v6972 = vsel %vm169, %v6971, %v6940
    %v6973 = vrot.slane %v6940, 4
    %v6974 = vsel %vm169, %v6948, %v6973
    %v6976 = vunpack.c.l.s4 1983009808
    %v6977 = vunpack.c.0.s8 %v6976
    %v6978 = vperm.slane %v6972, %v6977
    %v6980 = vunpack.c.l.s4 1983009808
    %v6981 = vunpack.c.0.s8 %v6980
    %v6982 = vperm.slane %v6974, %v6981
    %v6983 = vrot.slane %v6978, 4
    %v6984 = vsel %vm169, %v6983, %v6966
    %v6985 = vrot.slane %v6966, 4
    %v6986 = vsel %vm169, %v6978, %v6985
    %v6988 = vunpack.c.l.s4 1934713408
    %v6989 = vunpack.c.0.s8 %v6988
    %v6990 = vperm.slane %v6984, %v6989
    %v6992 = vunpack.c.l.s4 1934713408
    %v6993 = vunpack.c.0.s8 %v6992
    %v6994 = vperm.slane %v6986, %v6993
    %v6995 = vrot.slane %v6982, 4
    %v6996 = vsel %vm169, %v6995, %v6970
    %v6997 = vrot.slane %v6970, 4
    %v6998 = vsel %vm169, %v6982, %v6997
    %v7000 = vunpack.c.l.s4 1934713408
    %v7001 = vunpack.c.0.s8 %v7000
    %v7002 = vperm.slane %v6996, %v7001
    %v7004 = vunpack.c.l.s4 1934713408
    %v7005 = vunpack.c.0.s8 %v7004
    %v7006 = vperm.slane %v6998, %v7005
    %v7007 = vrot.slane %v6990, 4
    %v7008 = vsel %vm169, 0.0, %v7007
    %v7009 = vrot.slane %v6994, 4
    %v7010 = vsel %vm169, 0.0, %v7009
    %v7011 = vrot.slane %v7002, 4
    %v7012 = vsel %vm169, 0.0, %v7011
    %v7013 = vrot.slane %v7006, 4
    %v7014 = vsel %vm169, 0.0, %v7013
    %v7015 = vrot.slane %v6946, 4
    %v7016 = vsel %vm169, %v7015, %v6938
    %v7017 = vrot.slane %v6938, 4
    %v7018 = vsel %vm169, %v6946, %v7017
    %v7020 = vunpack.c.l.s4 1983009808
    %v7021 = vunpack.c.0.s8 %v7020
    %v7022 = vperm.slane %v7016, %v7021
    %v7024 = vunpack.c.l.s4 1983009808
    %v7025 = vunpack.c.0.s8 %v7024
    %v7026 = vperm.slane %v7018, %v7025
    %v7027 = vrot.slane %v6950, 4
    %v7028 = vsel %vm169, %v7027, %v6942
    %v7029 = vrot.slane %v6942, 4
    %v7030 = vsel %vm169, %v6950, %v7029
    %v7032 = vunpack.c.l.s4 1983009808
    %v7033 = vunpack.c.0.s8 %v7032
    %v7034 = vperm.slane %v7028, %v7033
    %v7036 = vunpack.c.l.s4 1983009808
    %v7037 = vunpack.c.0.s8 %v7036
    %v7038 = vperm.slane %v7030, %v7037
    %v7039 = vrot.slane %v7034, 4
    %v7040 = vsel %vm169, %v7039, %v7022
    %v7041 = vrot.slane %v7022, 4
    %v7042 = vsel %vm169, %v7034, %v7041
    %v7044 = vunpack.c.l.s4 1934713408
    %v7045 = vunpack.c.0.s8 %v7044
    %v7046 = vperm.slane %v7040, %v7045
    %v7048 = vunpack.c.l.s4 1934713408
    %v7049 = vunpack.c.0.s8 %v7048
    %v7050 = vperm.slane %v7042, %v7049
    %v7051 = vrot.slane %v7038, 4
    %v7052 = vsel %vm169, %v7051, %v7026
    %v7053 = vrot.slane %v7026, 4
    %v7054 = vsel %vm169, %v7038, %v7053
    %v7056 = vunpack.c.l.s4 1934713408
    %v7057 = vunpack.c.0.s8 %v7056
    %v7058 = vperm.slane %v7052, %v7057
    %v7060 = vunpack.c.l.s4 1934713408
    %v7061 = vunpack.c.0.s8 %v7060
    %v7062 = vperm.slane %v7054, %v7061
    %v7063 = vrot.slane %v7046, 4
    %v7064 = vsel %vm169, 0.0, %v7063
    %v7065 = vrot.slane %v7050, 4
    %v7066 = vsel %vm169, 0.0, %v7065
    %v7067 = vrot.slane %v7058, 4
    %v7068 = vsel %vm169, 0.0, %v7067
    %v7069 = vrot.slane %v7062, 4
    %v7070 = vsel %vm169, 0.0, %v7069
    %7072 = vrot.lane.b32.xlu0 %v7008, 16
    %v7073 = vpop.permute.xlu0 %7072
    %7076 = vrot.lane.b32.xlu0 %v6994, 32
    %v7077 = vpop.permute.xlu0 %7076
    %7080 = vrot.lane.b32.xlu0 %v7010, 48
    %v7081 = vpop.permute.xlu0 %7080
    %7084 = vrot.lane.b32.xlu0 %v7002, 64
    %v7085 = vpop.permute.xlu0 %7084
    %7088 = vrot.lane.b32.xlu0 %v7012, 80
    %v7089 = vpop.permute.xlu0 %7088
    %7092 = vrot.lane.b32.xlu0 %v7006, 96
    %v7093 = vpop.permute.xlu0 %7092
    %7096 = vrot.lane.b32.xlu0 %v7014, 112
    %v7097 = vpop.permute.xlu0 %7096
    %7100 = vrot.lane.b32.xlu0 %v7064, 16
    %v7101 = vpop.permute.xlu0 %7100
    %7104 = vrot.lane.b32.xlu0 %v7050, 32
    %v7105 = vpop.permute.xlu0 %7104
    %7108 = vrot.lane.b32.xlu0 %v7066, 48
    %v7109 = vpop.permute.xlu0 %7108
    %7112 = vrot.lane.b32.xlu0 %v7058, 64
    %v7113 = vpop.permute.xlu0 %7112
    %7116 = vrot.lane.b32.xlu0 %v7068, 80
    %v7117 = vpop.permute.xlu0 %7116
    %7120 = vrot.lane.b32.xlu0 %v7062, 96
    %v7121 = vpop.permute.xlu0 %7120
    %7124 = vrot.lane.b32.xlu0 %v7070, 112
    %v7125 = vpop.permute.xlu0 %7124
    %v7127 = vsel %vm337, %v6990, %v7073
    %v7128 = vsel %vm339, %v7127, %v7077
    %v7129 = vsel %vm341, %v7128, %v7081
    %v7130 = vsel %vm343, %v7129, %v7085
    %v7131 = vsel %vm345, %v7130, %v7089
    %v7132 = vsel %vm347, %v7131, %v7093
    %v7133 = vsel %vm349, %v7132, %v7097
    %v7134 = vsel %vm337, %v7046, %v7101
    %v7135 = vsel %vm339, %v7134, %v7105
    %v7136 = vsel %vm341, %v7135, %v7109
    %v7137 = vsel %vm343, %v7136, %v7113
    %v7138 = vsel %vm345, %v7137, %v7117
    %v7139 = vsel %vm347, %v7138, %v7121
    %v7140 = vsel %vm349, %v7139, %v7125
    %v7141 = vpack.c.bf16 %v7140, %v7133
    %v7143 = vunpack.c.l.b16 %v7141
    %v7144 = vunpack.c.h.b16 %v7141
    %v7145 = vpack.c.b16 %v7143, %v7143
    %v7146 = vpack.c.b16 %v7144, %v7144
    %v7148 = vsel %vm364, %v7145, 0
    %v7150 = vsel %vm364, %v7146, 0
    %v7153 = vunpack.c.l.b16 %v7148
    %v7154 = vunpack.c.l.b16 %v7150
    %v7155 = vpack.c.b16 %v7154, %v7153
    %7157 = vst [vmem:[#allocation3 + $0x48] sm:$0xff] %v7155
    %s7158 = sadd.s32 %s1333, 96
    %s7159 = scalar_lea.vmem [#allocation2], %s7158
    %v7160 = vld [vmem:[%s7159] sm:$0xff]
    %v7161 = vld [vmem:[%s7159 + $0x8] sm:$0xff]
    %v7162 = vld [vmem:[%s7159 + $0x18] sm:$0xff]
    %v7163 = vld [vmem:[%s7159 + $0x20] sm:$0xff]
    %v7164 = vld [vmem:[%s7159 + $0x30] sm:$0xff]
    %v7165 = vld [vmem:[%s7159 + $0x38] sm:$0xff]
    %v7166 = vld [vmem:[%s7159 + $0x48] sm:$0xff]
    %v7167 = vld [vmem:[%s7159 + $0x50] sm:$0xff]
    %v7168 = vrot.slane %v7164, 4
    %v7169 = vsel %vm169, %v7168, %v7160
    %v7170 = vrot.slane %v7160, 4
    %v7171 = vsel %vm169, %v7164, %v7170
    %v7173 = vunpack.c.l.s4 1983009808
    %v7174 = vunpack.c.0.s8 %v7173
    %v7175 = vperm.slane %v7169, %v7174
    %v7177 = vunpack.c.l.s4 1983009808
    %v7178 = vunpack.c.0.s8 %v7177
    %v7179 = vperm.slane %v7171, %v7178
    %v7180 = vrot.slane %v7166, 4
    %v7181 = vsel %vm169, %v7180, %v7162
    %v7182 = vrot.slane %v7162, 4
    %v7183 = vsel %vm169, %v7166, %v7182
    %v7185 = vunpack.c.l.s4 1983009808
    %v7186 = vunpack.c.0.s8 %v7185
    %v7187 = vperm.slane %v7181, %v7186
    %v7189 = vunpack.c.l.s4 1983009808
    %v7190 = vunpack.c.0.s8 %v7189
    %v7191 = vperm.slane %v7183, %v7190
    %v7192 = vrot.slane %v7187, 4
    %v7193 = vsel %vm169, %v7192, %v7175
    %v7194 = vrot.slane %v7175, 4
    %v7195 = vsel %vm169, %v7187, %v7194
    %v7197 = vunpack.c.l.s4 1934713408
    %v7198 = vunpack.c.0.s8 %v7197
    %v7199 = vperm.slane %v7193, %v7198
    %v7201 = vunpack.c.l.s4 1934713408
    %v7202 = vunpack.c.0.s8 %v7201
    %v7203 = vperm.slane %v7195, %v7202
    %v7204 = vrot.slane %v7191, 4
    %v7205 = vsel %vm169, %v7204, %v7179
    %v7206 = vrot.slane %v7179, 4
    %v7207 = vsel %vm169, %v7191, %v7206
    %v7209 = vunpack.c.l.s4 1934713408
    %v7210 = vunpack.c.0.s8 %v7209
    %v7211 = vperm.slane %v7205, %v7210
    %v7213 = vunpack.c.l.s4 1934713408
    %v7214 = vunpack.c.0.s8 %v7213
    %v7215 = vperm.slane %v7207, %v7214
    %v7216 = vrot.slane %v7199, 4
    %v7217 = vsel %vm169, 0.0, %v7216
    %v7218 = vrot.slane %v7203, 4
    %v7219 = vsel %vm169, 0.0, %v7218
    %v7220 = vrot.slane %v7211, 4
    %v7221 = vsel %vm169, 0.0, %v7220
    %v7222 = vrot.slane %v7215, 4
    %v7223 = vsel %vm169, 0.0, %v7222
    %v7224 = vrot.slane %v7165, 4
    %v7225 = vsel %vm169, %v7224, %v7161
    %v7226 = vrot.slane %v7161, 4
    %v7227 = vsel %vm169, %v7165, %v7226
    %v7229 = vunpack.c.l.s4 1983009808
    %v7230 = vunpack.c.0.s8 %v7229
    %v7231 = vperm.slane %v7225, %v7230
    %v7233 = vunpack.c.l.s4 1983009808
    %v7234 = vunpack.c.0.s8 %v7233
    %v7235 = vperm.slane %v7227, %v7234
    %v7236 = vrot.slane %v7167, 4
    %v7237 = vsel %vm169, %v7236, %v7163
    %v7238 = vrot.slane %v7163, 4
    %v7239 = vsel %vm169, %v7167, %v7238
    %v7241 = vunpack.c.l.s4 1983009808
    %v7242 = vunpack.c.0.s8 %v7241
    %v7243 = vperm.slane %v7237, %v7242
    %v7245 = vunpack.c.l.s4 1983009808
    %v7246 = vunpack.c.0.s8 %v7245
    %v7247 = vperm.slane %v7239, %v7246
    %v7248 = vrot.slane %v7243, 4
    %v7249 = vsel %vm169, %v7248, %v7231
    %v7250 = vrot.slane %v7231, 4
    %v7251 = vsel %vm169, %v7243, %v7250
    %v7253 = vunpack.c.l.s4 1934713408
    %v7254 = vunpack.c.0.s8 %v7253
    %v7255 = vperm.slane %v7249, %v7254
    %v7257 = vunpack.c.l.s4 1934713408
    %v7258 = vunpack.c.0.s8 %v7257
    %v7259 = vperm.slane %v7251, %v7258
    %v7260 = vrot.slane %v7247, 4
    %v7261 = vsel %vm169, %v7260, %v7235
    %v7262 = vrot.slane %v7235, 4
    %v7263 = vsel %vm169, %v7247, %v7262
    %v7265 = vunpack.c.l.s4 1934713408
    %v7266 = vunpack.c.0.s8 %v7265
    %v7267 = vperm.slane %v7261, %v7266
    %v7269 = vunpack.c.l.s4 1934713408
    %v7270 = vunpack.c.0.s8 %v7269
    %v7271 = vperm.slane %v7263, %v7270
    %v7272 = vrot.slane %v7255, 4
    %v7273 = vsel %vm169, 0.0, %v7272
    %v7274 = vrot.slane %v7259, 4
    %v7275 = vsel %vm169, 0.0, %v7274
    %v7276 = vrot.slane %v7267, 4
    %v7277 = vsel %vm169, 0.0, %v7276
    %v7278 = vrot.slane %v7271, 4
    %v7279 = vsel %vm169, 0.0, %v7278
    %7281 = vrot.lane.b32.xlu0 %v7217, 16
    %v7282 = vpop.permute.xlu0 %7281
    %7285 = vrot.lane.b32.xlu0 %v7203, 32
    %v7286 = vpop.permute.xlu0 %7285
    %7289 = vrot.lane.b32.xlu0 %v7219, 48
    %v7290 = vpop.permute.xlu0 %7289
    %7293 = vrot.lane.b32.xlu0 %v7211, 64
    %v7294 = vpop.permute.xlu0 %7293
    %7297 = vrot.lane.b32.xlu0 %v7221, 80
    %v7298 = vpop.permute.xlu0 %7297
    %7301 = vrot.lane.b32.xlu0 %v7215, 96
    %v7302 = vpop.permute.xlu0 %7301
    %7305 = vrot.lane.b32.xlu0 %v7223, 112
    %v7306 = vpop.permute.xlu0 %7305
    %7309 = vrot.lane.b32.xlu0 %v7273, 16
    %v7310 = vpop.permute.xlu0 %7309
    %7313 = vrot.lane.b32.xlu0 %v7259, 32
    %v7314 = vpop.permute.xlu0 %7313
    %7317 = vrot.lane.b32.xlu0 %v7275, 48
    %v7318 = vpop.permute.xlu0 %7317
    %7321 = vrot.lane.b32.xlu0 %v7267, 64
    %v7322 = vpop.permute.xlu0 %7321
    %7325 = vrot.lane.b32.xlu0 %v7277, 80
    %v7326 = vpop.permute.xlu0 %7325
    %7329 = vrot.lane.b32.xlu0 %v7271, 96
    %v7330 = vpop.permute.xlu0 %7329
    %7333 = vrot.lane.b32.xlu0 %v7279, 112
    %v7334 = vpop.permute.xlu0 %7333
    %v7336 = vsel %vm337, %v7199, %v7282
    %v7337 = vsel %vm339, %v7336, %v7286
    %v7338 = vsel %vm341, %v7337, %v7290
    %v7339 = vsel %vm343, %v7338, %v7294
    %v7340 = vsel %vm345, %v7339, %v7298
    %v7341 = vsel %vm347, %v7340, %v7302
    %v7342 = vsel %vm349, %v7341, %v7306
    %v7343 = vsel %vm337, %v7255, %v7310
    %v7344 = vsel %vm339, %v7343, %v7314
    %v7345 = vsel %vm341, %v7344, %v7318
    %v7346 = vsel %vm343, %v7345, %v7322
    %v7347 = vsel %vm345, %v7346, %v7326
    %v7348 = vsel %vm347, %v7347, %v7330
    %v7349 = vsel %vm349, %v7348, %v7334
    %v7350 = vpack.c.bf16 %v7349, %v7342
    %v7352 = vunpack.c.l.b16 %v7350
    %v7353 = vunpack.c.h.b16 %v7350
    %v7354 = vpack.c.b16 %v7352, %v7352
    %v7355 = vpack.c.b16 %v7353, %v7353
    %v7357 = vsel %vm364, %v7354, 0
    %v7359 = vsel %vm364, %v7355, 0
    %v7362 = vunpack.c.l.b16 %v7357
    %v7363 = vunpack.c.l.b16 %v7359
    %v7364 = vpack.c.b16 %v7363, %v7362
    %7366 = vst [vmem:[#allocation3 + $0x58] sm:$0xff] %v7364
    %v7367 = vld [vmem:[%s7159] sm:$0xff]
    %v7368 = vld [vmem:[%s7159 + $0x8] sm:$0xff]
    %v7369 = vld [vmem:[%s7159 + $0x18] sm:$0xff]
    %v7370 = vld [vmem:[%s7159 + $0x20] sm:$0xff]
    %v7371 = vld [vmem:[%s7159 + $0x30] sm:$0xff]
    %v7372 = vld [vmem:[%s7159 + $0x38] sm:$0xff]
    %v7373 = vld [vmem:[%s7159 + $0x48] sm:$0xff]
    %v7374 = vld [vmem:[%s7159 + $0x50] sm:$0xff]
    %7383 = vrot.lane.b32.xlu0 %v7367, 127
    %v7384 = vpop.permute.xlu0 %7383
    %7385 = vrot.lane.b32.xlu0 %v7368, 127
    %v7386 = vpop.permute.xlu0 %7385
    %7387 = vrot.lane.b32.xlu0 %v7369, 127
    %v7388 = vpop.permute.xlu0 %7387
    %7389 = vrot.lane.b32.xlu0 %v7370, 127
    %v7390 = vpop.permute.xlu0 %7389
    %7391 = vrot.lane.b32.xlu0 %v7371, 127
    %v7392 = vpop.permute.xlu0 %7391
    %7393 = vrot.lane.b32.xlu0 %v7372, 127
    %v7394 = vpop.permute.xlu0 %7393
    %7395 = vrot.lane.b32.xlu0 %v7373, 127
    %v7396 = vpop.permute.xlu0 %7395
    %7397 = vrot.lane.b32.xlu0 %v7374, 127
    %v7398 = vpop.permute.xlu0 %7397
    %v7407 = vrot.slane %v7392, 4
    %v7408 = vsel %vm169, %v7407, %v7384
    %v7409 = vrot.slane %v7384, 4
    %v7410 = vsel %vm169, %v7392, %v7409
    %v7412 = vunpack.c.l.s4 1983009808
    %v7413 = vunpack.c.0.s8 %v7412
    %v7414 = vperm.slane %v7408, %v7413
    %v7416 = vunpack.c.l.s4 1983009808
    %v7417 = vunpack.c.0.s8 %v7416
    %v7418 = vperm.slane %v7410, %v7417
    %v7419 = vrot.slane %v7396, 4
    %v7420 = vsel %vm169, %v7419, %v7388
    %v7421 = vrot.slane %v7388, 4
    %v7422 = vsel %vm169, %v7396, %v7421
    %v7424 = vunpack.c.l.s4 1983009808
    %v7425 = vunpack.c.0.s8 %v7424
    %v7426 = vperm.slane %v7420, %v7425
    %v7428 = vunpack.c.l.s4 1983009808
    %v7429 = vunpack.c.0.s8 %v7428
    %v7430 = vperm.slane %v7422, %v7429
    %v7431 = vrot.slane %v7426, 4
    %v7432 = vsel %vm169, %v7431, %v7414
    %v7433 = vrot.slane %v7414, 4
    %v7434 = vsel %vm169, %v7426, %v7433
    %v7436 = vunpack.c.l.s4 1934713408
    %v7437 = vunpack.c.0.s8 %v7436
    %v7438 = vperm.slane %v7432, %v7437
    %v7440 = vunpack.c.l.s4 1934713408
    %v7441 = vunpack.c.0.s8 %v7440
    %v7442 = vperm.slane %v7434, %v7441
    %v7443 = vrot.slane %v7430, 4
    %v7444 = vsel %vm169, %v7443, %v7418
    %v7445 = vrot.slane %v7418, 4
    %v7446 = vsel %vm169, %v7430, %v7445
    %v7448 = vunpack.c.l.s4 1934713408
    %v7449 = vunpack.c.0.s8 %v7448
    %v7450 = vperm.slane %v7444, %v7449
    %v7452 = vunpack.c.l.s4 1934713408
    %v7453 = vunpack.c.0.s8 %v7452
    %v7454 = vperm.slane %v7446, %v7453
    %v7455 = vrot.slane %v7438, 4
    %v7456 = vsel %vm169, 0.0, %v7455
    %v7457 = vrot.slane %v7442, 4
    %v7458 = vsel %vm169, 0.0, %v7457
    %v7459 = vrot.slane %v7450, 4
    %v7460 = vsel %vm169, 0.0, %v7459
    %v7461 = vrot.slane %v7454, 4
    %v7462 = vsel %vm169, 0.0, %v7461
    %v7463 = vrot.slane %v7394, 4
    %v7464 = vsel %vm169, %v7463, %v7386
    %v7465 = vrot.slane %v7386, 4
    %v7466 = vsel %vm169, %v7394, %v7465
    %v7468 = vunpack.c.l.s4 1983009808
    %v7469 = vunpack.c.0.s8 %v7468
    %v7470 = vperm.slane %v7464, %v7469
    %v7472 = vunpack.c.l.s4 1983009808
    %v7473 = vunpack.c.0.s8 %v7472
    %v7474 = vperm.slane %v7466, %v7473
    %v7475 = vrot.slane %v7398, 4
    %v7476 = vsel %vm169, %v7475, %v7390
    %v7477 = vrot.slane %v7390, 4
    %v7478 = vsel %vm169, %v7398, %v7477
    %v7480 = vunpack.c.l.s4 1983009808
    %v7481 = vunpack.c.0.s8 %v7480
    %v7482 = vperm.slane %v7476, %v7481
    %v7484 = vunpack.c.l.s4 1983009808
    %v7485 = vunpack.c.0.s8 %v7484
    %v7486 = vperm.slane %v7478, %v7485
    %v7487 = vrot.slane %v7482, 4
    %v7488 = vsel %vm169, %v7487, %v7470
    %v7489 = vrot.slane %v7470, 4
    %v7490 = vsel %vm169, %v7482, %v7489
    %v7492 = vunpack.c.l.s4 1934713408
    %v7493 = vunpack.c.0.s8 %v7492
    %v7494 = vperm.slane %v7488, %v7493
    %v7496 = vunpack.c.l.s4 1934713408
    %v7497 = vunpack.c.0.s8 %v7496
    %v7498 = vperm.slane %v7490, %v7497
    %v7499 = vrot.slane %v7486, 4
    %v7500 = vsel %vm169, %v7499, %v7474
    %v7501 = vrot.slane %v7474, 4
    %v7502 = vsel %vm169, %v7486, %v7501
    %v7504 = vunpack.c.l.s4 1934713408
    %v7505 = vunpack.c.0.s8 %v7504
    %v7506 = vperm.slane %v7500, %v7505
    %v7508 = vunpack.c.l.s4 1934713408
    %v7509 = vunpack.c.0.s8 %v7508
    %v7510 = vperm.slane %v7502, %v7509
    %v7511 = vrot.slane %v7494, 4
    %v7512 = vsel %vm169, 0.0, %v7511
    %v7513 = vrot.slane %v7498, 4
    %v7514 = vsel %vm169, 0.0, %v7513
    %v7515 = vrot.slane %v7506, 4
    %v7516 = vsel %vm169, 0.0, %v7515
    %v7517 = vrot.slane %v7510, 4
    %v7518 = vsel %vm169, 0.0, %v7517
    %7520 = vrot.lane.b32.xlu0 %v7456, 16
    %v7521 = vpop.permute.xlu0 %7520
    %7524 = vrot.lane.b32.xlu0 %v7442, 32
    %v7525 = vpop.permute.xlu0 %7524
    %7528 = vrot.lane.b32.xlu0 %v7458, 48
    %v7529 = vpop.permute.xlu0 %7528
    %7532 = vrot.lane.b32.xlu0 %v7450, 64
    %v7533 = vpop.permute.xlu0 %7532
    %7536 = vrot.lane.b32.xlu0 %v7460, 80
    %v7537 = vpop.permute.xlu0 %7536
    %7540 = vrot.lane.b32.xlu0 %v7454, 96
    %v7541 = vpop.permute.xlu0 %7540
    %7544 = vrot.lane.b32.xlu0 %v7462, 112
    %v7545 = vpop.permute.xlu0 %7544
    %7548 = vrot.lane.b32.xlu0 %v7512, 16
    %v7549 = vpop.permute.xlu0 %7548
    %7552 = vrot.lane.b32.xlu0 %v7498, 32
    %v7553 = vpop.permute.xlu0 %7552
    %7556 = vrot.lane.b32.xlu0 %v7514, 48
    %v7557 = vpop.permute.xlu0 %7556
    %7560 = vrot.lane.b32.xlu0 %v7506, 64
    %v7561 = vpop.permute.xlu0 %7560
    %7564 = vrot.lane.b32.xlu0 %v7516, 80
    %v7565 = vpop.permute.xlu0 %7564
    %7568 = vrot.lane.b32.xlu0 %v7510, 96
    %v7569 = vpop.permute.xlu0 %7568
    %7572 = vrot.lane.b32.xlu0 %v7518, 112
    %v7573 = vpop.permute.xlu0 %7572
    %v7575 = vsel %vm337, %v7438, %v7521
    %v7576 = vsel %vm339, %v7575, %v7525
    %v7577 = vsel %vm341, %v7576, %v7529
    %v7578 = vsel %vm343, %v7577, %v7533
    %v7579 = vsel %vm345, %v7578, %v7537
    %v7580 = vsel %vm347, %v7579, %v7541
    %v7581 = vsel %vm349, %v7580, %v7545
    %v7582 = vsel %vm337, %v7494, %v7549
    %v7583 = vsel %vm339, %v7582, %v7553
    %v7584 = vsel %vm341, %v7583, %v7557
    %v7585 = vsel %vm343, %v7584, %v7561
    %v7586 = vsel %vm345, %v7585, %v7565
    %v7587 = vsel %vm347, %v7586, %v7569
    %v7588 = vsel %vm349, %v7587, %v7573
    %v7589 = vpack.c.bf16 %v7588, %v7581
    %v7591 = vunpack.c.l.b16 %v7589
    %v7592 = vunpack.c.h.b16 %v7589
    %v7593 = vpack.c.b16 %v7591, %v7591
    %v7594 = vpack.c.b16 %v7592, %v7592
    %v7596 = vsel %vm364, %v7593, 0
    %v7598 = vsel %vm364, %v7594, 0
    %v7601 = vunpack.c.l.b16 %v7596
    %v7602 = vunpack.c.l.b16 %v7598
    %v7603 = vpack.c.b16 %v7602, %v7601
    %7605 = vst [vmem:[#allocation3 + $0x68] sm:$0xff] %v7603
    %v7606 = vld [vmem:[%s7159] sm:$0xff]
    %v7607 = vld [vmem:[%s7159 + $0x8] sm:$0xff]
    %v7608 = vld [vmem:[%s7159 + $0x18] sm:$0xff]
    %v7609 = vld [vmem:[%s7159 + $0x20] sm:$0xff]
    %v7610 = vld [vmem:[%s7159 + $0x30] sm:$0xff]
    %v7611 = vld [vmem:[%s7159 + $0x38] sm:$0xff]
    %v7612 = vld [vmem:[%s7159 + $0x48] sm:$0xff]
    %v7613 = vld [vmem:[%s7159 + $0x50] sm:$0xff]
    %7622 = vrot.lane.b32.xlu0 %v7606, 126
    %v7623 = vpop.permute.xlu0 %7622
    %7624 = vrot.lane.b32.xlu0 %v7607, 126
    %v7625 = vpop.permute.xlu0 %7624
    %7626 = vrot.lane.b32.xlu0 %v7608, 126
    %v7627 = vpop.permute.xlu0 %7626
    %7628 = vrot.lane.b32.xlu0 %v7609, 126
    %v7629 = vpop.permute.xlu0 %7628
    %7630 = vrot.lane.b32.xlu0 %v7610, 126
    %v7631 = vpop.permute.xlu0 %7630
    %7632 = vrot.lane.b32.xlu0 %v7611, 126
    %v7633 = vpop.permute.xlu0 %7632
    %7634 = vrot.lane.b32.xlu0 %v7612, 126
    %v7635 = vpop.permute.xlu0 %7634
    %7636 = vrot.lane.b32.xlu0 %v7613, 126
    %v7637 = vpop.permute.xlu0 %7636
    %v7646 = vrot.slane %v7631, 4
    %v7647 = vsel %vm169, %v7646, %v7623
    %v7648 = vrot.slane %v7623, 4
    %v7649 = vsel %vm169, %v7631, %v7648
    %v7651 = vunpack.c.l.s4 1983009808
    %v7652 = vunpack.c.0.s8 %v7651
    %v7653 = vperm.slane %v7647, %v7652
    %v7655 = vunpack.c.l.s4 1983009808
    %v7656 = vunpack.c.0.s8 %v7655
    %v7657 = vperm.slane %v7649, %v7656
    %v7658 = vrot.slane %v7635, 4
    %v7659 = vsel %vm169, %v7658, %v7627
    %v7660 = vrot.slane %v7627, 4
    %v7661 = vsel %vm169, %v7635, %v7660
    %v7663 = vunpack.c.l.s4 1983009808
    %v7664 = vunpack.c.0.s8 %v7663
    %v7665 = vperm.slane %v7659, %v7664
    %v7667 = vunpack.c.l.s4 1983009808
    %v7668 = vunpack.c.0.s8 %v7667
    %v7669 = vperm.slane %v7661, %v7668
    %v7670 = vrot.slane %v7665, 4
    %v7671 = vsel %vm169, %v7670, %v7653
    %v7672 = vrot.slane %v7653, 4
    %v7673 = vsel %vm169, %v7665, %v7672
    %v7675 = vunpack.c.l.s4 1934713408
    %v7676 = vunpack.c.0.s8 %v7675
    %v7677 = vperm.slane %v7671, %v7676
    %v7679 = vunpack.c.l.s4 1934713408
    %v7680 = vunpack.c.0.s8 %v7679
    %v7681 = vperm.slane %v7673, %v7680
    %v7682 = vrot.slane %v7669, 4
    %v7683 = vsel %vm169, %v7682, %v7657
    %v7684 = vrot.slane %v7657, 4
    %v7685 = vsel %vm169, %v7669, %v7684
    %v7687 = vunpack.c.l.s4 1934713408
    %v7688 = vunpack.c.0.s8 %v7687
    %v7689 = vperm.slane %v7683, %v7688
    %v7691 = vunpack.c.l.s4 1934713408
    %v7692 = vunpack.c.0.s8 %v7691
    %v7693 = vperm.slane %v7685, %v7692
    %v7694 = vrot.slane %v7677, 4
    %v7695 = vsel %vm169, 0.0, %v7694
    %v7696 = vrot.slane %v7681, 4
    %v7697 = vsel %vm169, 0.0, %v7696
    %v7698 = vrot.slane %v7689, 4
    %v7699 = vsel %vm169, 0.0, %v7698
    %v7700 = vrot.slane %v7693, 4
    %v7701 = vsel %vm169, 0.0, %v7700
    %v7702 = vrot.slane %v7633, 4
    %v7703 = vsel %vm169, %v7702, %v7625
    %v7704 = vrot.slane %v7625, 4
    %v7705 = vsel %vm169, %v7633, %v7704
    %v7707 = vunpack.c.l.s4 1983009808
    %v7708 = vunpack.c.0.s8 %v7707
    %v7709 = vperm.slane %v7703, %v7708
    %v7711 = vunpack.c.l.s4 1983009808
    %v7712 = vunpack.c.0.s8 %v7711
    %v7713 = vperm.slane %v7705, %v7712
    %v7714 = vrot.slane %v7637, 4
    %v7715 = vsel %vm169, %v7714, %v7629
    %v7716 = vrot.slane %v7629, 4
    %v7717 = vsel %vm169, %v7637, %v7716
    %v7719 = vunpack.c.l.s4 1983009808
    %v7720 = vunpack.c.0.s8 %v7719
    %v7721 = vperm.slane %v7715, %v7720
    %v7723 = vunpack.c.l.s4 1983009808
    %v7724 = vunpack.c.0.s8 %v7723
    %v7725 = vperm.slane %v7717, %v7724
    %v7726 = vrot.slane %v7721, 4
    %v7727 = vsel %vm169, %v7726, %v7709
    %v7728 = vrot.slane %v7709, 4
    %v7729 = vsel %vm169, %v7721, %v7728
    %v7731 = vunpack.c.l.s4 1934713408
    %v7732 = vunpack.c.0.s8 %v7731
    %v7733 = vperm.slane %v7727, %v7732
    %v7735 = vunpack.c.l.s4 1934713408
    %v7736 = vunpack.c.0.s8 %v7735
    %v7737 = vperm.slane %v7729, %v7736
    %v7738 = vrot.slane %v7725, 4
    %v7739 = vsel %vm169, %v7738, %v7713
    %v7740 = vrot.slane %v7713, 4
    %v7741 = vsel %vm169, %v7725, %v7740
    %v7743 = vunpack.c.l.s4 1934713408
    %v7744 = vunpack.c.0.s8 %v7743
    %v7745 = vperm.slane %v7739, %v7744
    %v7747 = vunpack.c.l.s4 1934713408
    %v7748 = vunpack.c.0.s8 %v7747
    %v7749 = vperm.slane %v7741, %v7748
    %v7750 = vrot.slane %v7733, 4
    %v7751 = vsel %vm169, 0.0, %v7750
    %v7752 = vrot.slane %v7737, 4
    %v7753 = vsel %vm169, 0.0, %v7752
    %v7754 = vrot.slane %v7745, 4
    %v7755 = vsel %vm169, 0.0, %v7754
    %v7756 = vrot.slane %v7749, 4
    %v7757 = vsel %vm169, 0.0, %v7756
    %7759 = vrot.lane.b32.xlu0 %v7695, 16
    %v7760 = vpop.permute.xlu0 %7759
    %7763 = vrot.lane.b32.xlu0 %v7681, 32
    %v7764 = vpop.permute.xlu0 %7763
    %7767 = vrot.lane.b32.xlu0 %v7697, 48
    %v7768 = vpop.permute.xlu0 %7767
    %7771 = vrot.lane.b32.xlu0 %v7689, 64
    %v7772 = vpop.permute.xlu0 %7771
    %7775 = vrot.lane.b32.xlu0 %v7699, 80
    %v7776 = vpop.permute.xlu0 %7775
    %7779 = vrot.lane.b32.xlu0 %v7693, 96
    %v7780 = vpop.permute.xlu0 %7779
    %7783 = vrot.lane.b32.xlu0 %v7701, 112
    %v7784 = vpop.permute.xlu0 %7783
    %7787 = vrot.lane.b32.xlu0 %v7751, 16
    %v7788 = vpop.permute.xlu0 %7787
    %7791 = vrot.lane.b32.xlu0 %v7737, 32
    %v7792 = vpop.permute.xlu0 %7791
    %7795 = vrot.lane.b32.xlu0 %v7753, 48
    %v7796 = vpop.permute.xlu0 %7795
    %7799 = vrot.lane.b32.xlu0 %v7745, 64
    %v7800 = vpop.permute.xlu0 %7799
    %7803 = vrot.lane.b32.xlu0 %v7755, 80
    %v7804 = vpop.permute.xlu0 %7803
    %7807 = vrot.lane.b32.xlu0 %v7749, 96
    %v7808 = vpop.permute.xlu0 %7807
    %7811 = vrot.lane.b32.xlu0 %v7757, 112
    %v7812 = vpop.permute.xlu0 %7811
    %v7814 = vsel %vm337, %v7677, %v7760
    %v7815 = vsel %vm339, %v7814, %v7764
    %v7816 = vsel %vm341, %v7815, %v7768
    %v7817 = vsel %vm343, %v7816, %v7772
    %v7818 = vsel %vm345, %v7817, %v7776
    %v7819 = vsel %vm347, %v7818, %v7780
    %v7820 = vsel %vm349, %v7819, %v7784
    %v7821 = vsel %vm337, %v7733, %v7788
    %v7822 = vsel %vm339, %v7821, %v7792
    %v7823 = vsel %vm341, %v7822, %v7796
    %v7824 = vsel %vm343, %v7823, %v7800
    %v7825 = vsel %vm345, %v7824, %v7804
    %v7826 = vsel %vm347, %v7825, %v7808
    %v7827 = vsel %vm349, %v7826, %v7812
    %v7828 = vpack.c.bf16 %v7827, %v7820
    %v7830 = vunpack.c.l.b16 %v7828
    %v7831 = vunpack.c.h.b16 %v7828
    %v7832 = vpack.c.b16 %v7830, %v7830
    %v7833 = vpack.c.b16 %v7831, %v7831
    %v7835 = vsel %vm364, %v7832, 0
    %v7837 = vsel %vm364, %v7833, 0
    %v7840 = vunpack.c.l.b16 %v7835
    %v7841 = vunpack.c.l.b16 %v7837
    %v7842 = vpack.c.b16 %v7841, %v7840
    %7844 = vst [vmem:[#allocation3 + $0x78] sm:$0xff] %v7842
    %v7845 = vld [vmem:[%s7159] sm:$0xff]
    %v7846 = vld [vmem:[%s7159 + $0x8] sm:$0xff]
    %v7847 = vld [vmem:[%s7159 + $0x18] sm:$0xff]
    %v7848 = vld [vmem:[%s7159 + $0x20] sm:$0xff]
    %v7849 = vld [vmem:[%s7159 + $0x30] sm:$0xff]
    %v7850 = vld [vmem:[%s7159 + $0x38] sm:$0xff]
    %v7851 = vld [vmem:[%s7159 + $0x48] sm:$0xff]
    %v7852 = vld [vmem:[%s7159 + $0x50] sm:$0xff]
    %7861 = vrot.lane.b32.xlu0 %v7845, 125
    %v7862 = vpop.permute.xlu0 %7861
    %7863 = vrot.lane.b32.xlu0 %v7846, 125
    %v7864 = vpop.permute.xlu0 %7863
    %7865 = vrot.lane.b32.xlu0 %v7847, 125
    %v7866 = vpop.permute.xlu0 %7865
    %7867 = vrot.lane.b32.xlu0 %v7848, 125
    %v7868 = vpop.permute.xlu0 %7867
    %7869 = vrot.lane.b32.xlu0 %v7849, 125
    %v7870 = vpop.permute.xlu0 %7869
    %7871 = vrot.lane.b32.xlu0 %v7850, 125
    %v7872 = vpop.permute.xlu0 %7871
    %7873 = vrot.lane.b32.xlu0 %v7851, 125
    %v7874 = vpop.permute.xlu0 %7873
    %7875 = vrot.lane.b32.xlu0 %v7852, 125
    %v7876 = vpop.permute.xlu0 %7875
    %v7885 = vrot.slane %v7870, 4
    %v7886 = vsel %vm169, %v7885, %v7862
    %v7887 = vrot.slane %v7862, 4
    %v7888 = vsel %vm169, %v7870, %v7887
    %v7890 = vunpack.c.l.s4 1983009808
    %v7891 = vunpack.c.0.s8 %v7890
    %v7892 = vperm.slane %v7886, %v7891
    %v7894 = vunpack.c.l.s4 1983009808
    %v7895 = vunpack.c.0.s8 %v7894
    %v7896 = vperm.slane %v7888, %v7895
    %v7897 = vrot.slane %v7874, 4
    %v7898 = vsel %vm169, %v7897, %v7866
    %v7899 = vrot.slane %v7866, 4
    %v7900 = vsel %vm169, %v7874, %v7899
    %v7902 = vunpack.c.l.s4 1983009808
    %v7903 = vunpack.c.0.s8 %v7902
    %v7904 = vperm.slane %v7898, %v7903
    %v7906 = vunpack.c.l.s4 1983009808
    %v7907 = vunpack.c.0.s8 %v7906
    %v7908 = vperm.slane %v7900, %v7907
    %v7909 = vrot.slane %v7904, 4
    %v7910 = vsel %vm169, %v7909, %v7892
    %v7911 = vrot.slane %v7892, 4
    %v7912 = vsel %vm169, %v7904, %v7911
    %v7914 = vunpack.c.l.s4 1934713408
    %v7915 = vunpack.c.0.s8 %v7914
    %v7916 = vperm.slane %v7910, %v7915
    %v7918 = vunpack.c.l.s4 1934713408
    %v7919 = vunpack.c.0.s8 %v7918
    %v7920 = vperm.slane %v7912, %v7919
    %v7921 = vrot.slane %v7908, 4
    %v7922 = vsel %vm169, %v7921, %v7896
    %v7923 = vrot.slane %v7896, 4
    %v7924 = vsel %vm169, %v7908, %v7923
    %v7926 = vunpack.c.l.s4 1934713408
    %v7927 = vunpack.c.0.s8 %v7926
    %v7928 = vperm.slane %v7922, %v7927
    %v7930 = vunpack.c.l.s4 1934713408
    %v7931 = vunpack.c.0.s8 %v7930
    %v7932 = vperm.slane %v7924, %v7931
    %v7933 = vrot.slane %v7916, 4
    %v7934 = vsel %vm169, 0.0, %v7933
    %v7935 = vrot.slane %v7920, 4
    %v7936 = vsel %vm169, 0.0, %v7935
    %v7937 = vrot.slane %v7928, 4
    %v7938 = vsel %vm169, 0.0, %v7937
    %v7939 = vrot.slane %v7932, 4
    %v7940 = vsel %vm169, 0.0, %v7939
    %v7941 = vrot.slane %v7872, 4
    %v7942 = vsel %vm169, %v7941, %v7864
    %v7943 = vrot.slane %v7864, 4
    %v7944 = vsel %vm169, %v7872, %v7943
    %v7946 = vunpack.c.l.s4 1983009808
    %v7947 = vunpack.c.0.s8 %v7946
    %v7948 = vperm.slane %v7942, %v7947
    %v7950 = vunpack.c.l.s4 1983009808
    %v7951 = vunpack.c.0.s8 %v7950
    %v7952 = vperm.slane %v7944, %v7951
    %v7953 = vrot.slane %v7876, 4
    %v7954 = vsel %vm169, %v7953, %v7868
    %v7955 = vrot.slane %v7868, 4
    %v7956 = vsel %vm169, %v7876, %v7955
    %v7958 = vunpack.c.l.s4 1983009808
    %v7959 = vunpack.c.0.s8 %v7958
    %v7960 = vperm.slane %v7954, %v7959
    %v7962 = vunpack.c.l.s4 1983009808
    %v7963 = vunpack.c.0.s8 %v7962
    %v7964 = vperm.slane %v7956, %v7963
    %v7965 = vrot.slane %v7960, 4
    %v7966 = vsel %vm169, %v7965, %v7948
    %v7967 = vrot.slane %v7948, 4
    %v7968 = vsel %vm169, %v7960, %v7967
    %v7970 = vunpack.c.l.s4 1934713408
    %v7971 = vunpack.c.0.s8 %v7970
    %v7972 = vperm.slane %v7966, %v7971
    %v7974 = vunpack.c.l.s4 1934713408
    %v7975 = vunpack.c.0.s8 %v7974
    %v7976 = vperm.slane %v7968, %v7975
    %v7977 = vrot.slane %v7964, 4
    %v7978 = vsel %vm169, %v7977, %v7952
    %v7979 = vrot.slane %v7952, 4
    %v7980 = vsel %vm169, %v7964, %v7979
    %v7982 = vunpack.c.l.s4 1934713408
    %v7983 = vunpack.c.0.s8 %v7982
    %v7984 = vperm.slane %v7978, %v7983
    %v7986 = vunpack.c.l.s4 1934713408
    %v7987 = vunpack.c.0.s8 %v7986
    %v7988 = vperm.slane %v7980, %v7987
    %v7989 = vrot.slane %v7972, 4
    %v7990 = vsel %vm169, 0.0, %v7989
    %v7991 = vrot.slane %v7976, 4
    %v7992 = vsel %vm169, 0.0, %v7991
    %v7993 = vrot.slane %v7984, 4
    %v7994 = vsel %vm169, 0.0, %v7993
    %v7995 = vrot.slane %v7988, 4
    %v7996 = vsel %vm169, 0.0, %v7995
    %7998 = vrot.lane.b32.xlu0 %v7934, 16
    %v7999 = vpop.permute.xlu0 %7998
    %8002 = vrot.lane.b32.xlu0 %v7920, 32
    %v8003 = vpop.permute.xlu0 %8002
    %8006 = vrot.lane.b32.xlu0 %v7936, 48
    %v8007 = vpop.permute.xlu0 %8006
    %8010 = vrot.lane.b32.xlu0 %v7928, 64
    %v8011 = vpop.permute.xlu0 %8010
    %8014 = vrot.lane.b32.xlu0 %v7938, 80
    %v8015 = vpop.permute.xlu0 %8014
    %8018 = vrot.lane.b32.xlu0 %v7932, 96
    %v8019 = vpop.permute.xlu0 %8018
    %8022 = vrot.lane.b32.xlu0 %v7940, 112
    %v8023 = vpop.permute.xlu0 %8022
    %8026 = vrot.lane.b32.xlu0 %v7990, 16
    %v8027 = vpop.permute.xlu0 %8026
    %8030 = vrot.lane.b32.xlu0 %v7976, 32
    %v8031 = vpop.permute.xlu0 %8030
    %8034 = vrot.lane.b32.xlu0 %v7992, 48
    %v8035 = vpop.permute.xlu0 %8034
    %8038 = vrot.lane.b32.xlu0 %v7984, 64
    %v8039 = vpop.permute.xlu0 %8038
    %8042 = vrot.lane.b32.xlu0 %v7994, 80
    %v8043 = vpop.permute.xlu0 %8042
    %8046 = vrot.lane.b32.xlu0 %v7988, 96
    %v8047 = vpop.permute.xlu0 %8046
    %8050 = vrot.lane.b32.xlu0 %v7996, 112
    %v8051 = vpop.permute.xlu0 %8050
    %v8053 = vsel %vm337, %v7916, %v7999
    %v8054 = vsel %vm339, %v8053, %v8003
    %v8055 = vsel %vm341, %v8054, %v8007
    %v8056 = vsel %vm343, %v8055, %v8011
    %v8057 = vsel %vm345, %v8056, %v8015
    %v8058 = vsel %vm347, %v8057, %v8019
    %v8059 = vsel %vm349, %v8058, %v8023
    %v8060 = vsel %vm337, %v7972, %v8027
    %v8061 = vsel %vm339, %v8060, %v8031
    %v8062 = vsel %vm341, %v8061, %v8035
    %v8063 = vsel %vm343, %v8062, %v8039
    %v8064 = vsel %vm345, %v8063, %v8043
    %v8065 = vsel %vm347, %v8064, %v8047
    %v8066 = vsel %vm349, %v8065, %v8051
    %v8067 = vpack.c.bf16 %v8066, %v8059
    %v8069 = vunpack.c.l.b16 %v8067
    %v8070 = vunpack.c.h.b16 %v8067
    %v8071 = vpack.c.b16 %v8069, %v8069
    %v8072 = vpack.c.b16 %v8070, %v8070
    %v8074 = vsel %vm364, %v8071, 0
    %v8076 = vsel %vm364, %v8072, 0
    %v8079 = vunpack.c.l.b16 %v8074
    %v8080 = vunpack.c.l.b16 %v8076
    %v8081 = vpack.c.b16 %v8080, %v8079
    %8083 = vst [vmem:[#allocation3 + $0x88] sm:$0xff] %v8081
    %v8084 = vld [vmem:[%s7159] sm:$0xff]
    %v8085 = vld [vmem:[%s7159 + $0x8] sm:$0xff]
    %v8086 = vld [vmem:[%s7159 + $0x18] sm:$0xff]
    %v8087 = vld [vmem:[%s7159 + $0x20] sm:$0xff]
    %v8088 = vld [vmem:[%s7159 + $0x30] sm:$0xff]
    %v8089 = vld [vmem:[%s7159 + $0x38] sm:$0xff]
    %v8090 = vld [vmem:[%s7159 + $0x48] sm:$0xff]
    %v8091 = vld [vmem:[%s7159 + $0x50] sm:$0xff]
    %8100 = vrot.lane.b32.xlu0 %v8084, 124
    %v8101 = vpop.permute.xlu0 %8100
    %8102 = vrot.lane.b32.xlu0 %v8085, 124
    %v8103 = vpop.permute.xlu0 %8102
    %8104 = vrot.lane.b32.xlu0 %v8086, 124
    %v8105 = vpop.permute.xlu0 %8104
    %8106 = vrot.lane.b32.xlu0 %v8087, 124
    %v8107 = vpop.permute.xlu0 %8106
    %8108 = vrot.lane.b32.xlu0 %v8088, 124
    %v8109 = vpop.permute.xlu0 %8108
    %8110 = vrot.lane.b32.xlu0 %v8089, 124
    %v8111 = vpop.permute.xlu0 %8110
    %8112 = vrot.lane.b32.xlu0 %v8090, 124
    %v8113 = vpop.permute.xlu0 %8112
    %8114 = vrot.lane.b32.xlu0 %v8091, 124
    %v8115 = vpop.permute.xlu0 %8114
    %v8124 = vrot.slane %v8109, 4
    %v8125 = vsel %vm169, %v8124, %v8101
    %v8126 = vrot.slane %v8101, 4
    %v8127 = vsel %vm169, %v8109, %v8126
    %v8129 = vunpack.c.l.s4 1983009808
    %v8130 = vunpack.c.0.s8 %v8129
    %v8131 = vperm.slane %v8125, %v8130
    %v8133 = vunpack.c.l.s4 1983009808
    %v8134 = vunpack.c.0.s8 %v8133
    %v8135 = vperm.slane %v8127, %v8134
    %v8136 = vrot.slane %v8113, 4
    %v8137 = vsel %vm169, %v8136, %v8105
    %v8138 = vrot.slane %v8105, 4
    %v8139 = vsel %vm169, %v8113, %v8138
    %v8141 = vunpack.c.l.s4 1983009808
    %v8142 = vunpack.c.0.s8 %v8141
    %v8143 = vperm.slane %v8137, %v8142
    %v8145 = vunpack.c.l.s4 1983009808
    %v8146 = vunpack.c.0.s8 %v8145
    %v8147 = vperm.slane %v8139, %v8146
    %v8148 = vrot.slane %v8143, 4
    %v8149 = vsel %vm169, %v8148, %v8131
    %v8150 = vrot.slane %v8131, 4
    %v8151 = vsel %vm169, %v8143, %v8150
    %v8153 = vunpack.c.l.s4 1934713408
    %v8154 = vunpack.c.0.s8 %v8153
    %v8155 = vperm.slane %v8149, %v8154
    %v8157 = vunpack.c.l.s4 1934713408
    %v8158 = vunpack.c.0.s8 %v8157
    %v8159 = vperm.slane %v8151, %v8158
    %v8160 = vrot.slane %v8147, 4
    %v8161 = vsel %vm169, %v8160, %v8135
    %v8162 = vrot.slane %v8135, 4
    %v8163 = vsel %vm169, %v8147, %v8162
    %v8165 = vunpack.c.l.s4 1934713408
    %v8166 = vunpack.c.0.s8 %v8165
    %v8167 = vperm.slane %v8161, %v8166
    %v8169 = vunpack.c.l.s4 1934713408
    %v8170 = vunpack.c.0.s8 %v8169
    %v8171 = vperm.slane %v8163, %v8170
    %v8172 = vrot.slane %v8155, 4
    %v8173 = vsel %vm169, 0.0, %v8172
    %v8174 = vrot.slane %v8159, 4
    %v8175 = vsel %vm169, 0.0, %v8174
    %v8176 = vrot.slane %v8167, 4
    %v8177 = vsel %vm169, 0.0, %v8176
    %v8178 = vrot.slane %v8171, 4
    %v8179 = vsel %vm169, 0.0, %v8178
    %v8180 = vrot.slane %v8111, 4
    %v8181 = vsel %vm169, %v8180, %v8103
    %v8182 = vrot.slane %v8103, 4
    %v8183 = vsel %vm169, %v8111, %v8182
    %v8185 = vunpack.c.l.s4 1983009808
    %v8186 = vunpack.c.0.s8 %v8185
    %v8187 = vperm.slane %v8181, %v8186
    %v8189 = vunpack.c.l.s4 1983009808
    %v8190 = vunpack.c.0.s8 %v8189
    %v8191 = vperm.slane %v8183, %v8190
    %v8192 = vrot.slane %v8115, 4
    %v8193 = vsel %vm169, %v8192, %v8107
    %v8194 = vrot.slane %v8107, 4
    %v8195 = vsel %vm169, %v8115, %v8194
    %v8197 = vunpack.c.l.s4 1983009808
    %v8198 = vunpack.c.0.s8 %v8197
    %v8199 = vperm.slane %v8193, %v8198
    %v8201 = vunpack.c.l.s4 1983009808
    %v8202 = vunpack.c.0.s8 %v8201
    %v8203 = vperm.slane %v8195, %v8202
    %v8204 = vrot.slane %v8199, 4
    %v8205 = vsel %vm169, %v8204, %v8187
    %v8206 = vrot.slane %v8187, 4
    %v8207 = vsel %vm169, %v8199, %v8206
    %v8209 = vunpack.c.l.s4 1934713408
    %v8210 = vunpack.c.0.s8 %v8209
    %v8211 = vperm.slane %v8205, %v8210
    %v8213 = vunpack.c.l.s4 1934713408
    %v8214 = vunpack.c.0.s8 %v8213
    %v8215 = vperm.slane %v8207, %v8214
    %v8216 = vrot.slane %v8203, 4
    %v8217 = vsel %vm169, %v8216, %v8191
    %v8218 = vrot.slane %v8191, 4
    %v8219 = vsel %vm169, %v8203, %v8218
    %v8221 = vunpack.c.l.s4 1934713408
    %v8222 = vunpack.c.0.s8 %v8221
    %v8223 = vperm.slane %v8217, %v8222
    %v8225 = vunpack.c.l.s4 1934713408
    %v8226 = vunpack.c.0.s8 %v8225
    %v8227 = vperm.slane %v8219, %v8226
    %v8228 = vrot.slane %v8211, 4
    %v8229 = vsel %vm169, 0.0, %v8228
    %v8230 = vrot.slane %v8215, 4
    %v8231 = vsel %vm169, 0.0, %v8230
    %v8232 = vrot.slane %v8223, 4
    %v8233 = vsel %vm169, 0.0, %v8232
    %v8234 = vrot.slane %v8227, 4
    %v8235 = vsel %vm169, 0.0, %v8234
    %8237 = vrot.lane.b32.xlu0 %v8173, 16
    %v8238 = vpop.permute.xlu0 %8237
    %8241 = vrot.lane.b32.xlu0 %v8159, 32
    %v8242 = vpop.permute.xlu0 %8241
    %8245 = vrot.lane.b32.xlu0 %v8175, 48
    %v8246 = vpop.permute.xlu0 %8245
    %8249 = vrot.lane.b32.xlu0 %v8167, 64
    %v8250 = vpop.permute.xlu0 %8249
    %8253 = vrot.lane.b32.xlu0 %v8177, 80
    %v8254 = vpop.permute.xlu0 %8253
    %8257 = vrot.lane.b32.xlu0 %v8171, 96
    %v8258 = vpop.permute.xlu0 %8257
    %8261 = vrot.lane.b32.xlu0 %v8179, 112
    %v8262 = vpop.permute.xlu0 %8261
    %8265 = vrot.lane.b32.xlu0 %v8229, 16
    %v8266 = vpop.permute.xlu0 %8265
    %8269 = vrot.lane.b32.xlu0 %v8215, 32
    %v8270 = vpop.permute.xlu0 %8269
    %8273 = vrot.lane.b32.xlu0 %v8231, 48
    %v8274 = vpop.permute.xlu0 %8273
    %8277 = vrot.lane.b32.xlu0 %v8223, 64
    %v8278 = vpop.permute.xlu0 %8277
    %8281 = vrot.lane.b32.xlu0 %v8233, 80
    %v8282 = vpop.permute.xlu0 %8281
    %8285 = vrot.lane.b32.xlu0 %v8227, 96
    %v8286 = vpop.permute.xlu0 %8285
    %8289 = vrot.lane.b32.xlu0 %v8235, 112
    %v8290 = vpop.permute.xlu0 %8289
    %v8292 = vsel %vm337, %v8155, %v8238
    %v8293 = vsel %vm339, %v8292, %v8242
    %v8294 = vsel %vm341, %v8293, %v8246
    %v8295 = vsel %vm343, %v8294, %v8250
    %v8296 = vsel %vm345, %v8295, %v8254
    %v8297 = vsel %vm347, %v8296, %v8258
    %v8298 = vsel %vm349, %v8297, %v8262
    %v8299 = vsel %vm337, %v8211, %v8266
    %v8300 = vsel %vm339, %v8299, %v8270
    %v8301 = vsel %vm341, %v8300, %v8274
    %v8302 = vsel %vm343, %v8301, %v8278
    %v8303 = vsel %vm345, %v8302, %v8282
    %v8304 = vsel %vm347, %v8303, %v8286
    %v8305 = vsel %vm349, %v8304, %v8290
    %v8306 = vpack.c.bf16 %v8305, %v8298
    %v8308 = vunpack.c.l.b16 %v8306
    %v8309 = vunpack.c.h.b16 %v8306
    %v8310 = vpack.c.b16 %v8308, %v8308
    %v8311 = vpack.c.b16 %v8309, %v8309
    %v8313 = vsel %vm364, %v8310, 0
    %v8315 = vsel %vm364, %v8311, 0
    %v8318 = vunpack.c.l.b16 %v8313
    %v8319 = vunpack.c.l.b16 %v8315
    %v8320 = vpack.c.b16 %v8319, %v8318
    %8322 = vst [vmem:[#allocation3 + $0x98] sm:$0xff] %v8320
    %s8323 = sadd.s32 %s2498, 96
    %s8324 = scalar_lea.vmem [#allocation2], %s8323
    %v8325 = vld [vmem:[%s8324] sm:$0xff]
    %v8326 = vld [vmem:[%s8324 + $0x8] sm:$0xff]
    %v8327 = vld [vmem:[%s8324 + $0x18] sm:$0xff]
    %v8328 = vld [vmem:[%s8324 + $0x20] sm:$0xff]
    %v8329 = vld [vmem:[%s8324 + $0x30] sm:$0xff]
    %v8330 = vld [vmem:[%s8324 + $0x38] sm:$0xff]
    %v8331 = vld [vmem:[%s8324 + $0x48] sm:$0xff]
    %v8332 = vld [vmem:[%s8324 + $0x50] sm:$0xff]
    %v8333 = vrot.slane %v8329, 4
    %v8334 = vsel %vm169, %v8333, %v8325
    %v8335 = vrot.slane %v8325, 4
    %v8336 = vsel %vm169, %v8329, %v8335
    %v8338 = vunpack.c.l.s4 1983009808
    %v8339 = vunpack.c.0.s8 %v8338
    %v8340 = vperm.slane %v8334, %v8339
    %v8342 = vunpack.c.l.s4 1983009808
    %v8343 = vunpack.c.0.s8 %v8342
    %v8344 = vperm.slane %v8336, %v8343
    %v8345 = vrot.slane %v8331, 4
    %v8346 = vsel %vm169, %v8345, %v8327
    %v8347 = vrot.slane %v8327, 4
    %v8348 = vsel %vm169, %v8331, %v8347
    %v8350 = vunpack.c.l.s4 1983009808
    %v8351 = vunpack.c.0.s8 %v8350
    %v8352 = vperm.slane %v8346, %v8351
    %v8354 = vunpack.c.l.s4 1983009808
    %v8355 = vunpack.c.0.s8 %v8354
    %v8356 = vperm.slane %v8348, %v8355
    %v8357 = vrot.slane %v8352, 4
    %v8358 = vsel %vm169, %v8357, %v8340
    %v8359 = vrot.slane %v8340, 4
    %v8360 = vsel %vm169, %v8352, %v8359
    %v8362 = vunpack.c.l.s4 1934713408
    %v8363 = vunpack.c.0.s8 %v8362
    %v8364 = vperm.slane %v8358, %v8363
    %v8366 = vunpack.c.l.s4 1934713408
    %v8367 = vunpack.c.0.s8 %v8366
    %v8368 = vperm.slane %v8360, %v8367
    %v8369 = vrot.slane %v8356, 4
    %v8370 = vsel %vm169, %v8369, %v8344
    %v8371 = vrot.slane %v8344, 4
    %v8372 = vsel %vm169, %v8356, %v8371
    %v8374 = vunpack.c.l.s4 1934713408
    %v8375 = vunpack.c.0.s8 %v8374
    %v8376 = vperm.slane %v8370, %v8375
    %v8378 = vunpack.c.l.s4 1934713408
    %v8379 = vunpack.c.0.s8 %v8378
    %v8380 = vperm.slane %v8372, %v8379
    %v8381 = vrot.slane %v8364, 4
    %v8382 = vsel %vm169, 0.0, %v8381
    %v8383 = vrot.slane %v8368, 4
    %v8384 = vsel %vm169, 0.0, %v8383
    %v8385 = vrot.slane %v8376, 4
    %v8386 = vsel %vm169, 0.0, %v8385
    %v8387 = vrot.slane %v8380, 4
    %v8388 = vsel %vm169, 0.0, %v8387
    %v8389 = vrot.slane %v8330, 4
    %v8390 = vsel %vm169, %v8389, %v8326
    %v8391 = vrot.slane %v8326, 4
    %v8392 = vsel %vm169, %v8330, %v8391
    %v8394 = vunpack.c.l.s4 1983009808
    %v8395 = vunpack.c.0.s8 %v8394
    %v8396 = vperm.slane %v8390, %v8395
    %v8398 = vunpack.c.l.s4 1983009808
    %v8399 = vunpack.c.0.s8 %v8398
    %v8400 = vperm.slane %v8392, %v8399
    %v8401 = vrot.slane %v8332, 4
    %v8402 = vsel %vm169, %v8401, %v8328
    %v8403 = vrot.slane %v8328, 4
    %v8404 = vsel %vm169, %v8332, %v8403
    %v8406 = vunpack.c.l.s4 1983009808
    %v8407 = vunpack.c.0.s8 %v8406
    %v8408 = vperm.slane %v8402, %v8407
    %v8410 = vunpack.c.l.s4 1983009808
    %v8411 = vunpack.c.0.s8 %v8410
    %v8412 = vperm.slane %v8404, %v8411
    %v8413 = vrot.slane %v8408, 4
    %v8414 = vsel %vm169, %v8413, %v8396
    %v8415 = vrot.slane %v8396, 4
    %v8416 = vsel %vm169, %v8408, %v8415
    %v8418 = vunpack.c.l.s4 1934713408
    %v8419 = vunpack.c.0.s8 %v8418
    %v8420 = vperm.slane %v8414, %v8419
    %v8422 = vunpack.c.l.s4 1934713408
    %v8423 = vunpack.c.0.s8 %v8422
    %v8424 = vperm.slane %v8416, %v8423
    %v8425 = vrot.slane %v8412, 4
    %v8426 = vsel %vm169, %v8425, %v8400
    %v8427 = vrot.slane %v8400, 4
    %v8428 = vsel %vm169, %v8412, %v8427
    %v8430 = vunpack.c.l.s4 1934713408
    %v8431 = vunpack.c.0.s8 %v8430
    %v8432 = vperm.slane %v8426, %v8431
    %v8434 = vunpack.c.l.s4 1934713408
    %v8435 = vunpack.c.0.s8 %v8434
    %v8436 = vperm.slane %v8428, %v8435
    %v8437 = vrot.slane %v8420, 4
    %v8438 = vsel %vm169, 0.0, %v8437
    %v8439 = vrot.slane %v8424, 4
    %v8440 = vsel %vm169, 0.0, %v8439
    %v8441 = vrot.slane %v8432, 4
    %v8442 = vsel %vm169, 0.0, %v8441
    %v8443 = vrot.slane %v8436, 4
    %v8444 = vsel %vm169, 0.0, %v8443
    %8446 = vrot.lane.b32.xlu0 %v8382, 16
    %v8447 = vpop.permute.xlu0 %8446
    %8450 = vrot.lane.b32.xlu0 %v8368, 32
    %v8451 = vpop.permute.xlu0 %8450
    %8454 = vrot.lane.b32.xlu0 %v8384, 48
    %v8455 = vpop.permute.xlu0 %8454
    %8458 = vrot.lane.b32.xlu0 %v8376, 64
    %v8459 = vpop.permute.xlu0 %8458
    %8462 = vrot.lane.b32.xlu0 %v8386, 80
    %v8463 = vpop.permute.xlu0 %8462
    %8466 = vrot.lane.b32.xlu0 %v8380, 96
    %v8467 = vpop.permute.xlu0 %8466
    %8470 = vrot.lane.b32.xlu0 %v8388, 112
    %v8471 = vpop.permute.xlu0 %8470
    %8474 = vrot.lane.b32.xlu0 %v8438, 16
    %v8475 = vpop.permute.xlu0 %8474
    %8478 = vrot.lane.b32.xlu0 %v8424, 32
    %v8479 = vpop.permute.xlu0 %8478
    %8482 = vrot.lane.b32.xlu0 %v8440, 48
    %v8483 = vpop.permute.xlu0 %8482
    %8486 = vrot.lane.b32.xlu0 %v8432, 64
    %v8487 = vpop.permute.xlu0 %8486
    %8490 = vrot.lane.b32.xlu0 %v8442, 80
    %v8491 = vpop.permute.xlu0 %8490
    %8494 = vrot.lane.b32.xlu0 %v8436, 96
    %v8495 = vpop.permute.xlu0 %8494
    %8498 = vrot.lane.b32.xlu0 %v8444, 112
    %v8499 = vpop.permute.xlu0 %8498
    %v8501 = vsel %vm337, %v8364, %v8447
    %v8502 = vsel %vm339, %v8501, %v8451
    %v8503 = vsel %vm341, %v8502, %v8455
    %v8504 = vsel %vm343, %v8503, %v8459
    %v8505 = vsel %vm345, %v8504, %v8463
    %v8506 = vsel %vm347, %v8505, %v8467
    %v8507 = vsel %vm349, %v8506, %v8471
    %v8508 = vsel %vm337, %v8420, %v8475
    %v8509 = vsel %vm339, %v8508, %v8479
    %v8510 = vsel %vm341, %v8509, %v8483
    %v8511 = vsel %vm343, %v8510, %v8487
    %v8512 = vsel %vm345, %v8511, %v8491
    %v8513 = vsel %vm347, %v8512, %v8495
    %v8514 = vsel %vm349, %v8513, %v8499
    %v8515 = vpack.c.bf16 %v8514, %v8507
    %v8517 = vunpack.c.l.b16 %v8515
    %v8518 = vunpack.c.h.b16 %v8515
    %v8519 = vpack.c.b16 %v8517, %v8517
    %v8520 = vpack.c.b16 %v8518, %v8518
    %v8522 = vsel %vm364, %v8519, 0
    %v8524 = vsel %vm364, %v8520, 0
    %v8527 = vunpack.c.l.b16 %v8522
    %v8528 = vunpack.c.l.b16 %v8524
    %v8529 = vpack.c.b16 %v8528, %v8527
    %8531 = vst [vmem:[#allocation3 + $0xa8] sm:$0xff] %v8529
    %v8532 = vld [vmem:[%s8324] sm:$0xff]
    %v8533 = vld [vmem:[%s8324 + $0x8] sm:$0xff]
    %v8534 = vld [vmem:[%s8324 + $0x18] sm:$0xff]
    %v8535 = vld [vmem:[%s8324 + $0x20] sm:$0xff]
    %v8536 = vld [vmem:[%s8324 + $0x30] sm:$0xff]
    %v8537 = vld [vmem:[%s8324 + $0x38] sm:$0xff]
    %v8538 = vld [vmem:[%s8324 + $0x48] sm:$0xff]
    %v8539 = vld [vmem:[%s8324 + $0x50] sm:$0xff]
    %8548 = vrot.lane.b32.xlu0 %v8532, 127
    %v8549 = vpop.permute.xlu0 %8548
    %8550 = vrot.lane.b32.xlu0 %v8533, 127
    %v8551 = vpop.permute.xlu0 %8550
    %8552 = vrot.lane.b32.xlu0 %v8534, 127
    %v8553 = vpop.permute.xlu0 %8552
    %8554 = vrot.lane.b32.xlu0 %v8535, 127
    %v8555 = vpop.permute.xlu0 %8554
    %8556 = vrot.lane.b32.xlu0 %v8536, 127
    %v8557 = vpop.permute.xlu0 %8556
    %8558 = vrot.lane.b32.xlu0 %v8537, 127
    %v8559 = vpop.permute.xlu0 %8558
    %8560 = vrot.lane.b32.xlu0 %v8538, 127
    %v8561 = vpop.permute.xlu0 %8560
    %8562 = vrot.lane.b32.xlu0 %v8539, 127
    %v8563 = vpop.permute.xlu0 %8562
    %v8572 = vrot.slane %v8557, 4
    %v8573 = vsel %vm169, %v8572, %v8549
    %v8574 = vrot.slane %v8549, 4
    %v8575 = vsel %vm169, %v8557, %v8574
    %v8577 = vunpack.c.l.s4 1983009808
    %v8578 = vunpack.c.0.s8 %v8577
    %v8579 = vperm.slane %v8573, %v8578
    %v8581 = vunpack.c.l.s4 1983009808
    %v8582 = vunpack.c.0.s8 %v8581
    %v8583 = vperm.slane %v8575, %v8582
    %v8584 = vrot.slane %v8561, 4
    %v8585 = vsel %vm169, %v8584, %v8553
    %v8586 = vrot.slane %v8553, 4
    %v8587 = vsel %vm169, %v8561, %v8586
    %v8589 = vunpack.c.l.s4 1983009808
    %v8590 = vunpack.c.0.s8 %v8589
    %v8591 = vperm.slane %v8585, %v8590
    %v8593 = vunpack.c.l.s4 1983009808
    %v8594 = vunpack.c.0.s8 %v8593
    %v8595 = vperm.slane %v8587, %v8594
    %v8596 = vrot.slane %v8591, 4
    %v8597 = vsel %vm169, %v8596, %v8579
    %v8598 = vrot.slane %v8579, 4
    %v8599 = vsel %vm169, %v8591, %v8598
    %v8601 = vunpack.c.l.s4 1934713408
    %v8602 = vunpack.c.0.s8 %v8601
    %v8603 = vperm.slane %v8597, %v8602
    %v8605 = vunpack.c.l.s4 1934713408
    %v8606 = vunpack.c.0.s8 %v8605
    %v8607 = vperm.slane %v8599, %v8606
    %v8608 = vrot.slane %v8595, 4
    %v8609 = vsel %vm169, %v8608, %v8583
    %v8610 = vrot.slane %v8583, 4
    %v8611 = vsel %vm169, %v8595, %v8610
    %v8613 = vunpack.c.l.s4 1934713408
    %v8614 = vunpack.c.0.s8 %v8613
    %v8615 = vperm.slane %v8609, %v8614
    %v8617 = vunpack.c.l.s4 1934713408
    %v8618 = vunpack.c.0.s8 %v8617
    %v8619 = vperm.slane %v8611, %v8618
    %v8620 = vrot.slane %v8603, 4
    %v8621 = vsel %vm169, 0.0, %v8620
    %v8622 = vrot.slane %v8607, 4
    %v8623 = vsel %vm169, 0.0, %v8622
    %v8624 = vrot.slane %v8615, 4
    %v8625 = vsel %vm169, 0.0, %v8624
    %v8626 = vrot.slane %v8619, 4
    %v8627 = vsel %vm169, 0.0, %v8626
    %v8628 = vrot.slane %v8559, 4
    %v8629 = vsel %vm169, %v8628, %v8551
    %v8630 = vrot.slane %v8551, 4
    %v8631 = vsel %vm169, %v8559, %v8630
    %v8633 = vunpack.c.l.s4 1983009808
    %v8634 = vunpack.c.0.s8 %v8633
    %v8635 = vperm.slane %v8629, %v8634
    %v8637 = vunpack.c.l.s4 1983009808
    %v8638 = vunpack.c.0.s8 %v8637
    %v8639 = vperm.slane %v8631, %v8638
    %v8640 = vrot.slane %v8563, 4
    %v8641 = vsel %vm169, %v8640, %v8555
    %v8642 = vrot.slane %v8555, 4
    %v8643 = vsel %vm169, %v8563, %v8642
    %v8645 = vunpack.c.l.s4 1983009808
    %v8646 = vunpack.c.0.s8 %v8645
    %v8647 = vperm.slane %v8641, %v8646
    %v8649 = vunpack.c.l.s4 1983009808
    %v8650 = vunpack.c.0.s8 %v8649
    %v8651 = vperm.slane %v8643, %v8650
    %v8652 = vrot.slane %v8647, 4
    %v8653 = vsel %vm169, %v8652, %v8635
    %v8654 = vrot.slane %v8635, 4
    %v8655 = vsel %vm169, %v8647, %v8654
    %v8657 = vunpack.c.l.s4 1934713408
    %v8658 = vunpack.c.0.s8 %v8657
    %v8659 = vperm.slane %v8653, %v8658
    %v8661 = vunpack.c.l.s4 1934713408
    %v8662 = vunpack.c.0.s8 %v8661
    %v8663 = vperm.slane %v8655, %v8662
    %v8664 = vrot.slane %v8651, 4
    %v8665 = vsel %vm169, %v8664, %v8639
    %v8666 = vrot.slane %v8639, 4
    %v8667 = vsel %vm169, %v8651, %v8666
    %v8669 = vunpack.c.l.s4 1934713408
    %v8670 = vunpack.c.0.s8 %v8669
    %v8671 = vperm.slane %v8665, %v8670
    %v8673 = vunpack.c.l.s4 1934713408
    %v8674 = vunpack.c.0.s8 %v8673
    %v8675 = vperm.slane %v8667, %v8674
    %v8676 = vrot.slane %v8659, 4
    %v8677 = vsel %vm169, 0.0, %v8676
    %v8678 = vrot.slane %v8663, 4
    %v8679 = vsel %vm169, 0.0, %v8678
    %v8680 = vrot.slane %v8671, 4
    %v8681 = vsel %vm169, 0.0, %v8680
    %v8682 = vrot.slane %v8675, 4
    %v8683 = vsel %vm169, 0.0, %v8682
    %8685 = vrot.lane.b32.xlu0 %v8621, 16
    %v8686 = vpop.permute.xlu0 %8685
    %8689 = vrot.lane.b32.xlu0 %v8607, 32
    %v8690 = vpop.permute.xlu0 %8689
    %8693 = vrot.lane.b32.xlu0 %v8623, 48
    %v8694 = vpop.permute.xlu0 %8693
    %8697 = vrot.lane.b32.xlu0 %v8615, 64
    %v8698 = vpop.permute.xlu0 %8697
    %8701 = vrot.lane.b32.xlu0 %v8625, 80
    %v8702 = vpop.permute.xlu0 %8701
    %8705 = vrot.lane.b32.xlu0 %v8619, 96
    %v8706 = vpop.permute.xlu0 %8705
    %8709 = vrot.lane.b32.xlu0 %v8627, 112
    %v8710 = vpop.permute.xlu0 %8709
    %8713 = vrot.lane.b32.xlu0 %v8677, 16
    %v8714 = vpop.permute.xlu0 %8713
    %8717 = vrot.lane.b32.xlu0 %v8663, 32
    %v8718 = vpop.permute.xlu0 %8717
    %8721 = vrot.lane.b32.xlu0 %v8679, 48
    %v8722 = vpop.permute.xlu0 %8721
    %8725 = vrot.lane.b32.xlu0 %v8671, 64
    %v8726 = vpop.permute.xlu0 %8725
    %8729 = vrot.lane.b32.xlu0 %v8681, 80
    %v8730 = vpop.permute.xlu0 %8729
    %8733 = vrot.lane.b32.xlu0 %v8675, 96
    %v8734 = vpop.permute.xlu0 %8733
    %8737 = vrot.lane.b32.xlu0 %v8683, 112
    %v8738 = vpop.permute.xlu0 %8737
    %v8740 = vsel %vm337, %v8603, %v8686
    %v8741 = vsel %vm339, %v8740, %v8690
    %v8742 = vsel %vm341, %v8741, %v8694
    %v8743 = vsel %vm343, %v8742, %v8698
    %v8744 = vsel %vm345, %v8743, %v8702
    %v8745 = vsel %vm347, %v8744, %v8706
    %v8746 = vsel %vm349, %v8745, %v8710
    %v8747 = vsel %vm337, %v8659, %v8714
    %v8748 = vsel %vm339, %v8747, %v8718
    %v8749 = vsel %vm341, %v8748, %v8722
    %v8750 = vsel %vm343, %v8749, %v8726
    %v8751 = vsel %vm345, %v8750, %v8730
    %v8752 = vsel %vm347, %v8751, %v8734
    %v8753 = vsel %vm349, %v8752, %v8738
    %v8754 = vpack.c.bf16 %v8753, %v8746
    %v8756 = vunpack.c.l.b16 %v8754
    %v8757 = vunpack.c.h.b16 %v8754
    %v8758 = vpack.c.b16 %v8756, %v8756
    %v8759 = vpack.c.b16 %v8757, %v8757
    %v8761 = vsel %vm364, %v8758, 0
    %v8763 = vsel %vm364, %v8759, 0
    %v8766 = vunpack.c.l.b16 %v8761
    %v8767 = vunpack.c.l.b16 %v8763
    %v8768 = vpack.c.b16 %v8767, %v8766
    %8770 = vst [vmem:[#allocation3 + $0xb8] sm:$0xff] %v8768
    %v8771 = vld [vmem:[%s8324] sm:$0xff]
    %v8772 = vld [vmem:[%s8324 + $0x8] sm:$0xff]
    %v8773 = vld [vmem:[%s8324 + $0x18] sm:$0xff]
    %v8774 = vld [vmem:[%s8324 + $0x20] sm:$0xff]
    %v8775 = vld [vmem:[%s8324 + $0x30] sm:$0xff]
    %v8776 = vld [vmem:[%s8324 + $0x38] sm:$0xff]
    %v8777 = vld [vmem:[%s8324 + $0x48] sm:$0xff]
    %v8778 = vld [vmem:[%s8324 + $0x50] sm:$0xff]
    %8787 = vrot.lane.b32.xlu0 %v8771, 126
    %v8788 = vpop.permute.xlu0 %8787
    %8789 = vrot.lane.b32.xlu0 %v8772, 126
    %v8790 = vpop.permute.xlu0 %8789
    %8791 = vrot.lane.b32.xlu0 %v8773, 126
    %v8792 = vpop.permute.xlu0 %8791
    %8793 = vrot.lane.b32.xlu0 %v8774, 126
    %v8794 = vpop.permute.xlu0 %8793
    %8795 = vrot.lane.b32.xlu0 %v8775, 126
    %v8796 = vpop.permute.xlu0 %8795
    %8797 = vrot.lane.b32.xlu0 %v8776, 126
    %v8798 = vpop.permute.xlu0 %8797
    %8799 = vrot.lane.b32.xlu0 %v8777, 126
    %v8800 = vpop.permute.xlu0 %8799
    %8801 = vrot.lane.b32.xlu0 %v8778, 126
    %v8802 = vpop.permute.xlu0 %8801
    %v8811 = vrot.slane %v8796, 4
    %v8812 = vsel %vm169, %v8811, %v8788
    %v8813 = vrot.slane %v8788, 4
    %v8814 = vsel %vm169, %v8796, %v8813
    %v8816 = vunpack.c.l.s4 1983009808
    %v8817 = vunpack.c.0.s8 %v8816
    %v8818 = vperm.slane %v8812, %v8817
    %v8820 = vunpack.c.l.s4 1983009808
    %v8821 = vunpack.c.0.s8 %v8820
    %v8822 = vperm.slane %v8814, %v8821
    %v8823 = vrot.slane %v8800, 4
    %v8824 = vsel %vm169, %v8823, %v8792
    %v8825 = vrot.slane %v8792, 4
    %v8826 = vsel %vm169, %v8800, %v8825
    %v8828 = vunpack.c.l.s4 1983009808
    %v8829 = vunpack.c.0.s8 %v8828
    %v8830 = vperm.slane %v8824, %v8829
    %v8832 = vunpack.c.l.s4 1983009808
    %v8833 = vunpack.c.0.s8 %v8832
    %v8834 = vperm.slane %v8826, %v8833
    %v8835 = vrot.slane %v8830, 4
    %v8836 = vsel %vm169, %v8835, %v8818
    %v8837 = vrot.slane %v8818, 4
    %v8838 = vsel %vm169, %v8830, %v8837
    %v8840 = vunpack.c.l.s4 1934713408
    %v8841 = vunpack.c.0.s8 %v8840
    %v8842 = vperm.slane %v8836, %v8841
    %v8844 = vunpack.c.l.s4 1934713408
    %v8845 = vunpack.c.0.s8 %v8844
    %v8846 = vperm.slane %v8838, %v8845
    %v8847 = vrot.slane %v8834, 4
    %v8848 = vsel %vm169, %v8847, %v8822
    %v8849 = vrot.slane %v8822, 4
    %v8850 = vsel %vm169, %v8834, %v8849
    %v8852 = vunpack.c.l.s4 1934713408
    %v8853 = vunpack.c.0.s8 %v8852
    %v8854 = vperm.slane %v8848, %v8853
    %v8856 = vunpack.c.l.s4 1934713408
    %v8857 = vunpack.c.0.s8 %v8856
    %v8858 = vperm.slane %v8850, %v8857
    %v8859 = vrot.slane %v8842, 4
    %v8860 = vsel %vm169, 0.0, %v8859
    %v8861 = vrot.slane %v8846, 4
    %v8862 = vsel %vm169, 0.0, %v8861
    %v8863 = vrot.slane %v8854, 4
    %v8864 = vsel %vm169, 0.0, %v8863
    %v8865 = vrot.slane %v8858, 4
    %v8866 = vsel %vm169, 0.0, %v8865
    %v8867 = vrot.slane %v8798, 4
    %v8868 = vsel %vm169, %v8867, %v8790
    %v8869 = vrot.slane %v8790, 4
    %v8870 = vsel %vm169, %v8798, %v8869
    %v8872 = vunpack.c.l.s4 1983009808
    %v8873 = vunpack.c.0.s8 %v8872
    %v8874 = vperm.slane %v8868, %v8873
    %v8876 = vunpack.c.l.s4 1983009808
    %v8877 = vunpack.c.0.s8 %v8876
    %v8878 = vperm.slane %v8870, %v8877
    %v8879 = vrot.slane %v8802, 4
    %v8880 = vsel %vm169, %v8879, %v8794
    %v8881 = vrot.slane %v8794, 4
    %v8882 = vsel %vm169, %v8802, %v8881
    %v8884 = vunpack.c.l.s4 1983009808
    %v8885 = vunpack.c.0.s8 %v8884
    %v8886 = vperm.slane %v8880, %v8885
    %v8888 = vunpack.c.l.s4 1983009808
    %v8889 = vunpack.c.0.s8 %v8888
    %v8890 = vperm.slane %v8882, %v8889
    %v8891 = vrot.slane %v8886, 4
    %v8892 = vsel %vm169, %v8891, %v8874
    %v8893 = vrot.slane %v8874, 4
    %v8894 = vsel %vm169, %v8886, %v8893
    %v8896 = vunpack.c.l.s4 1934713408
    %v8897 = vunpack.c.0.s8 %v8896
    %v8898 = vperm.slane %v8892, %v8897
    %v8900 = vunpack.c.l.s4 1934713408
    %v8901 = vunpack.c.0.s8 %v8900
    %v8902 = vperm.slane %v8894, %v8901
    %v8903 = vrot.slane %v8890, 4
    %v8904 = vsel %vm169, %v8903, %v8878
    %v8905 = vrot.slane %v8878, 4
    %v8906 = vsel %vm169, %v8890, %v8905
    %v8908 = vunpack.c.l.s4 1934713408
    %v8909 = vunpack.c.0.s8 %v8908
    %v8910 = vperm.slane %v8904, %v8909
    %v8912 = vunpack.c.l.s4 1934713408
    %v8913 = vunpack.c.0.s8 %v8912
    %v8914 = vperm.slane %v8906, %v8913
    %v8915 = vrot.slane %v8898, 4
    %v8916 = vsel %vm169, 0.0, %v8915
    %v8917 = vrot.slane %v8902, 4
    %v8918 = vsel %vm169, 0.0, %v8917
    %v8919 = vrot.slane %v8910, 4
    %v8920 = vsel %vm169, 0.0, %v8919
    %v8921 = vrot.slane %v8914, 4
    %v8922 = vsel %vm169, 0.0, %v8921
    %8924 = vrot.lane.b32.xlu0 %v8860, 16
    %v8925 = vpop.permute.xlu0 %8924
    %8928 = vrot.lane.b32.xlu0 %v8846, 32
    %v8929 = vpop.permute.xlu0 %8928
    %8932 = vrot.lane.b32.xlu0 %v8862, 48
    %v8933 = vpop.permute.xlu0 %8932
    %8936 = vrot.lane.b32.xlu0 %v8854, 64
    %v8937 = vpop.permute.xlu0 %8936
    %8940 = vrot.lane.b32.xlu0 %v8864, 80
    %v8941 = vpop.permute.xlu0 %8940
    %8944 = vrot.lane.b32.xlu0 %v8858, 96
    %v8945 = vpop.permute.xlu0 %8944
    %8948 = vrot.lane.b32.xlu0 %v8866, 112
    %v8949 = vpop.permute.xlu0 %8948
    %8952 = vrot.lane.b32.xlu0 %v8916, 16
    %v8953 = vpop.permute.xlu0 %8952
    %8956 = vrot.lane.b32.xlu0 %v8902, 32
    %v8957 = vpop.permute.xlu0 %8956
    %8960 = vrot.lane.b32.xlu0 %v8918, 48
    %v8961 = vpop.permute.xlu0 %8960
    %8964 = vrot.lane.b32.xlu0 %v8910, 64
    %v8965 = vpop.permute.xlu0 %8964
    %8968 = vrot.lane.b32.xlu0 %v8920, 80
    %v8969 = vpop.permute.xlu0 %8968
    %8972 = vrot.lane.b32.xlu0 %v8914, 96
    %v8973 = vpop.permute.xlu0 %8972
    %8976 = vrot.lane.b32.xlu0 %v8922, 112
    %v8977 = vpop.permute.xlu0 %8976
    %v8979 = vsel %vm337, %v8842, %v8925
    %v8980 = vsel %vm339, %v8979, %v8929
    %v8981 = vsel %vm341, %v8980, %v8933
    %v8982 = vsel %vm343, %v8981, %v8937
    %v8983 = vsel %vm345, %v8982, %v8941
    %v8984 = vsel %vm347, %v8983, %v8945
    %v8985 = vsel %vm349, %v8984, %v8949
    %v8986 = vsel %vm337, %v8898, %v8953
    %v8987 = vsel %vm339, %v8986, %v8957
    %v8988 = vsel %vm341, %v8987, %v8961
    %v8989 = vsel %vm343, %v8988, %v8965
    %v8990 = vsel %vm345, %v8989, %v8969
    %v8991 = vsel %vm347, %v8990, %v8973
    %v8992 = vsel %vm349, %v8991, %v8977
    %v8993 = vpack.c.bf16 %v8992, %v8985
    %v8995 = vunpack.c.l.b16 %v8993
    %v8996 = vunpack.c.h.b16 %v8993
    %v8997 = vpack.c.b16 %v8995, %v8995
    %v8998 = vpack.c.b16 %v8996, %v8996
    %v9000 = vsel %vm364, %v8997, 0
    %v9002 = vsel %vm364, %v8998, 0
    %v9005 = vunpack.c.l.b16 %v9000
    %v9006 = vunpack.c.l.b16 %v9002
    %v9007 = vpack.c.b16 %v9006, %v9005
    %9009 = vst [vmem:[#allocation3 + $0xc8] sm:$0xff] %v9007
    %v9010 = vld [vmem:[%s8324] sm:$0xff]
    %v9011 = vld [vmem:[%s8324 + $0x8] sm:$0xff]
    %v9012 = vld [vmem:[%s8324 + $0x18] sm:$0xff]
    %v9013 = vld [vmem:[%s8324 + $0x20] sm:$0xff]
    %v9014 = vld [vmem:[%s8324 + $0x30] sm:$0xff]
    %v9015 = vld [vmem:[%s8324 + $0x38] sm:$0xff]
    %v9016 = vld [vmem:[%s8324 + $0x48] sm:$0xff]
    %v9017 = vld [vmem:[%s8324 + $0x50] sm:$0xff]
    %9026 = vrot.lane.b32.xlu0 %v9010, 125
    %v9027 = vpop.permute.xlu0 %9026
    %9028 = vrot.lane.b32.xlu0 %v9011, 125
    %v9029 = vpop.permute.xlu0 %9028
    %9030 = vrot.lane.b32.xlu0 %v9012, 125
    %v9031 = vpop.permute.xlu0 %9030
    %9032 = vrot.lane.b32.xlu0 %v9013, 125
    %v9033 = vpop.permute.xlu0 %9032
    %9034 = vrot.lane.b32.xlu0 %v9014, 125
    %v9035 = vpop.permute.xlu0 %9034
    %9036 = vrot.lane.b32.xlu0 %v9015, 125
    %v9037 = vpop.permute.xlu0 %9036
    %9038 = vrot.lane.b32.xlu0 %v9016, 125
    %v9039 = vpop.permute.xlu0 %9038
    %9040 = vrot.lane.b32.xlu0 %v9017, 125
    %v9041 = vpop.permute.xlu0 %9040
    %v9050 = vrot.slane %v9035, 4
    %v9051 = vsel %vm169, %v9050, %v9027
    %v9052 = vrot.slane %v9027, 4
    %v9053 = vsel %vm169, %v9035, %v9052
    %v9055 = vunpack.c.l.s4 1983009808
    %v9056 = vunpack.c.0.s8 %v9055
    %v9057 = vperm.slane %v9051, %v9056
    %v9059 = vunpack.c.l.s4 1983009808
    %v9060 = vunpack.c.0.s8 %v9059
    %v9061 = vperm.slane %v9053, %v9060
    %v9062 = vrot.slane %v9039, 4
    %v9063 = vsel %vm169, %v9062, %v9031
    %v9064 = vrot.slane %v9031, 4
    %v9065 = vsel %vm169, %v9039, %v9064
    %v9067 = vunpack.c.l.s4 1983009808
    %v9068 = vunpack.c.0.s8 %v9067
    %v9069 = vperm.slane %v9063, %v9068
    %v9071 = vunpack.c.l.s4 1983009808
    %v9072 = vunpack.c.0.s8 %v9071
    %v9073 = vperm.slane %v9065, %v9072
    %v9074 = vrot.slane %v9069, 4
    %v9075 = vsel %vm169, %v9074, %v9057
    %v9076 = vrot.slane %v9057, 4
    %v9077 = vsel %vm169, %v9069, %v9076
    %v9079 = vunpack.c.l.s4 1934713408
    %v9080 = vunpack.c.0.s8 %v9079
    %v9081 = vperm.slane %v9075, %v9080
    %v9083 = vunpack.c.l.s4 1934713408
    %v9084 = vunpack.c.0.s8 %v9083
    %v9085 = vperm.slane %v9077, %v9084
    %v9086 = vrot.slane %v9073, 4
    %v9087 = vsel %vm169, %v9086, %v9061
    %v9088 = vrot.slane %v9061, 4
    %v9089 = vsel %vm169, %v9073, %v9088
    %v9091 = vunpack.c.l.s4 1934713408
    %v9092 = vunpack.c.0.s8 %v9091
    %v9093 = vperm.slane %v9087, %v9092
    %v9095 = vunpack.c.l.s4 1934713408
    %v9096 = vunpack.c.0.s8 %v9095
    %v9097 = vperm.slane %v9089, %v9096
    %v9098 = vrot.slane %v9081, 4
    %v9099 = vsel %vm169, 0.0, %v9098
    %v9100 = vrot.slane %v9085, 4
    %v9101 = vsel %vm169, 0.0, %v9100
    %v9102 = vrot.slane %v9093, 4
    %v9103 = vsel %vm169, 0.0, %v9102
    %v9104 = vrot.slane %v9097, 4
    %v9105 = vsel %vm169, 0.0, %v9104
    %v9106 = vrot.slane %v9037, 4
    %v9107 = vsel %vm169, %v9106, %v9029
    %v9108 = vrot.slane %v9029, 4
    %v9109 = vsel %vm169, %v9037, %v9108
    %v9111 = vunpack.c.l.s4 1983009808
    %v9112 = vunpack.c.0.s8 %v9111
    %v9113 = vperm.slane %v9107, %v9112
    %v9115 = vunpack.c.l.s4 1983009808
    %v9116 = vunpack.c.0.s8 %v9115
    %v9117 = vperm.slane %v9109, %v9116
    %v9118 = vrot.slane %v9041, 4
    %v9119 = vsel %vm169, %v9118, %v9033
    %v9120 = vrot.slane %v9033, 4
    %v9121 = vsel %vm169, %v9041, %v9120
    %v9123 = vunpack.c.l.s4 1983009808
    %v9124 = vunpack.c.0.s8 %v9123
    %v9125 = vperm.slane %v9119, %v9124
    %v9127 = vunpack.c.l.s4 1983009808
    %v9128 = vunpack.c.0.s8 %v9127
    %v9129 = vperm.slane %v9121, %v9128
    %v9130 = vrot.slane %v9125, 4
    %v9131 = vsel %vm169, %v9130, %v9113
    %v9132 = vrot.slane %v9113, 4
    %v9133 = vsel %vm169, %v9125, %v9132
    %v9135 = vunpack.c.l.s4 1934713408
    %v9136 = vunpack.c.0.s8 %v9135
    %v9137 = vperm.slane %v9131, %v9136
    %v9139 = vunpack.c.l.s4 1934713408
    %v9140 = vunpack.c.0.s8 %v9139
    %v9141 = vperm.slane %v9133, %v9140
    %v9142 = vrot.slane %v9129, 4
    %v9143 = vsel %vm169, %v9142, %v9117
    %v9144 = vrot.slane %v9117, 4
    %v9145 = vsel %vm169, %v9129, %v9144
    %v9147 = vunpack.c.l.s4 1934713408
    %v9148 = vunpack.c.0.s8 %v9147
    %v9149 = vperm.slane %v9143, %v9148
    %v9151 = vunpack.c.l.s4 1934713408
    %v9152 = vunpack.c.0.s8 %v9151
    %v9153 = vperm.slane %v9145, %v9152
    %v9154 = vrot.slane %v9137, 4
    %v9155 = vsel %vm169, 0.0, %v9154
    %v9156 = vrot.slane %v9141, 4
    %v9157 = vsel %vm169, 0.0, %v9156
    %v9158 = vrot.slane %v9149, 4
    %v9159 = vsel %vm169, 0.0, %v9158
    %v9160 = vrot.slane %v9153, 4
    %v9161 = vsel %vm169, 0.0, %v9160
    %9163 = vrot.lane.b32.xlu0 %v9099, 16
    %v9164 = vpop.permute.xlu0 %9163
    %9167 = vrot.lane.b32.xlu0 %v9085, 32
    %v9168 = vpop.permute.xlu0 %9167
    %9171 = vrot.lane.b32.xlu0 %v9101, 48
    %v9172 = vpop.permute.xlu0 %9171
    %9175 = vrot.lane.b32.xlu0 %v9093, 64
    %v9176 = vpop.permute.xlu0 %9175
    %9179 = vrot.lane.b32.xlu0 %v9103, 80
    %v9180 = vpop.permute.xlu0 %9179
    %9183 = vrot.lane.b32.xlu0 %v9097, 96
    %v9184 = vpop.permute.xlu0 %9183
    %9187 = vrot.lane.b32.xlu0 %v9105, 112
    %v9188 = vpop.permute.xlu0 %9187
    %9191 = vrot.lane.b32.xlu0 %v9155, 16
    %v9192 = vpop.permute.xlu0 %9191
    %9195 = vrot.lane.b32.xlu0 %v9141, 32
    %v9196 = vpop.permute.xlu0 %9195
    %9199 = vrot.lane.b32.xlu0 %v9157, 48
    %v9200 = vpop.permute.xlu0 %9199
    %9203 = vrot.lane.b32.xlu0 %v9149, 64
    %v9204 = vpop.permute.xlu0 %9203
    %9207 = vrot.lane.b32.xlu0 %v9159, 80
    %v9208 = vpop.permute.xlu0 %9207
    %9211 = vrot.lane.b32.xlu0 %v9153, 96
    %v9212 = vpop.permute.xlu0 %9211
    %9215 = vrot.lane.b32.xlu0 %v9161, 112
    %v9216 = vpop.permute.xlu0 %9215
    %v9218 = vsel %vm337, %v9081, %v9164
    %v9219 = vsel %vm339, %v9218, %v9168
    %v9220 = vsel %vm341, %v9219, %v9172
    %v9221 = vsel %vm343, %v9220, %v9176
    %v9222 = vsel %vm345, %v9221, %v9180
    %v9223 = vsel %vm347, %v9222, %v9184
    %v9224 = vsel %vm349, %v9223, %v9188
    %v9225 = vsel %vm337, %v9137, %v9192
    %v9226 = vsel %vm339, %v9225, %v9196
    %v9227 = vsel %vm341, %v9226, %v9200
    %v9228 = vsel %vm343, %v9227, %v9204
    %v9229 = vsel %vm345, %v9228, %v9208
    %v9230 = vsel %vm347, %v9229, %v9212
    %v9231 = vsel %vm349, %v9230, %v9216
    %v9232 = vpack.c.bf16 %v9231, %v9224
    %v9234 = vunpack.c.l.b16 %v9232
    %v9235 = vunpack.c.h.b16 %v9232
    %v9236 = vpack.c.b16 %v9234, %v9234
    %v9237 = vpack.c.b16 %v9235, %v9235
    %v9239 = vsel %vm364, %v9236, 0
    %v9241 = vsel %vm364, %v9237, 0
    %v9244 = vunpack.c.l.b16 %v9239
    %v9245 = vunpack.c.l.b16 %v9241
    %v9246 = vpack.c.b16 %v9245, %v9244
    %9248 = vst [vmem:[#allocation3 + $0xd8] sm:$0xff] %v9246
    %v9249 = vld [vmem:[%s8324] sm:$0xff]
    %v9250 = vld [vmem:[%s8324 + $0x8] sm:$0xff]
    %v9251 = vld [vmem:[%s8324 + $0x18] sm:$0xff]
    %v9252 = vld [vmem:[%s8324 + $0x20] sm:$0xff]
    %v9253 = vld [vmem:[%s8324 + $0x30] sm:$0xff]
    %v9254 = vld [vmem:[%s8324 + $0x38] sm:$0xff]
    %v9255 = vld [vmem:[%s8324 + $0x48] sm:$0xff]
    %v9256 = vld [vmem:[%s8324 + $0x50] sm:$0xff]
    %9265 = vrot.lane.b32.xlu0 %v9249, 124
    %v9266 = vpop.permute.xlu0 %9265
    %9267 = vrot.lane.b32.xlu0 %v9250, 124
    %v9268 = vpop.permute.xlu0 %9267
    %9269 = vrot.lane.b32.xlu0 %v9251, 124
    %v9270 = vpop.permute.xlu0 %9269
    %9271 = vrot.lane.b32.xlu0 %v9252, 124
    %v9272 = vpop.permute.xlu0 %9271
    %9273 = vrot.lane.b32.xlu0 %v9253, 124
    %v9274 = vpop.permute.xlu0 %9273
    %9275 = vrot.lane.b32.xlu0 %v9254, 124
    %v9276 = vpop.permute.xlu0 %9275
    %9277 = vrot.lane.b32.xlu0 %v9255, 124
    %v9278 = vpop.permute.xlu0 %9277
    %9279 = vrot.lane.b32.xlu0 %v9256, 124
    %v9280 = vpop.permute.xlu0 %9279
    %v9289 = vrot.slane %v9274, 4
    %v9290 = vsel %vm169, %v9289, %v9266
    %v9291 = vrot.slane %v9266, 4
    %v9292 = vsel %vm169, %v9274, %v9291
    %v9294 = vunpack.c.l.s4 1983009808
    %v9295 = vunpack.c.0.s8 %v9294
    %v9296 = vperm.slane %v9290, %v9295
    %v9298 = vunpack.c.l.s4 1983009808
    %v9299 = vunpack.c.0.s8 %v9298
    %v9300 = vperm.slane %v9292, %v9299
    %v9301 = vrot.slane %v9278, 4
    %v9302 = vsel %vm169, %v9301, %v9270
    %v9303 = vrot.slane %v9270, 4
    %v9304 = vsel %vm169, %v9278, %v9303
    %v9306 = vunpack.c.l.s4 1983009808
    %v9307 = vunpack.c.0.s8 %v9306
    %v9308 = vperm.slane %v9302, %v9307
    %v9310 = vunpack.c.l.s4 1983009808
    %v9311 = vunpack.c.0.s8 %v9310
    %v9312 = vperm.slane %v9304, %v9311
    %v9313 = vrot.slane %v9308, 4
    %v9314 = vsel %vm169, %v9313, %v9296
    %v9315 = vrot.slane %v9296, 4
    %v9316 = vsel %vm169, %v9308, %v9315
    %v9318 = vunpack.c.l.s4 1934713408
    %v9319 = vunpack.c.0.s8 %v9318
    %v9320 = vperm.slane %v9314, %v9319
    %v9322 = vunpack.c.l.s4 1934713408
    %v9323 = vunpack.c.0.s8 %v9322
    %v9324 = vperm.slane %v9316, %v9323
    %v9325 = vrot.slane %v9312, 4
    %v9326 = vsel %vm169, %v9325, %v9300
    %v9327 = vrot.slane %v9300, 4
    %v9328 = vsel %vm169, %v9312, %v9327
    %v9330 = vunpack.c.l.s4 1934713408
    %v9331 = vunpack.c.0.s8 %v9330
    %v9332 = vperm.slane %v9326, %v9331
    %v9334 = vunpack.c.l.s4 1934713408
    %v9335 = vunpack.c.0.s8 %v9334
    %v9336 = vperm.slane %v9328, %v9335
    %v9337 = vrot.slane %v9320, 4
    %v9338 = vsel %vm169, 0.0, %v9337
    %v9339 = vrot.slane %v9324, 4
    %v9340 = vsel %vm169, 0.0, %v9339
    %v9341 = vrot.slane %v9332, 4
    %v9342 = vsel %vm169, 0.0, %v9341
    %v9343 = vrot.slane %v9336, 4
    %v9344 = vsel %vm169, 0.0, %v9343
    %v9345 = vrot.slane %v9276, 4
    %v9346 = vsel %vm169, %v9345, %v9268
    %v9347 = vrot.slane %v9268, 4
    %v9348 = vsel %vm169, %v9276, %v9347
    %v9350 = vunpack.c.l.s4 1983009808
    %v9351 = vunpack.c.0.s8 %v9350
    %v9352 = vperm.slane %v9346, %v9351
    %v9354 = vunpack.c.l.s4 1983009808
    %v9355 = vunpack.c.0.s8 %v9354
    %v9356 = vperm.slane %v9348, %v9355
    %v9357 = vrot.slane %v9280, 4
    %v9358 = vsel %vm169, %v9357, %v9272
    %v9359 = vrot.slane %v9272, 4
    %v9360 = vsel %vm169, %v9280, %v9359
    %v9362 = vunpack.c.l.s4 1983009808
    %v9363 = vunpack.c.0.s8 %v9362
    %v9364 = vperm.slane %v9358, %v9363
    %v9366 = vunpack.c.l.s4 1983009808
    %v9367 = vunpack.c.0.s8 %v9366
    %v9368 = vperm.slane %v9360, %v9367
    %v9369 = vrot.slane %v9364, 4
    %v9370 = vsel %vm169, %v9369, %v9352
    %v9371 = vrot.slane %v9352, 4
    %v9372 = vsel %vm169, %v9364, %v9371
    %v9374 = vunpack.c.l.s4 1934713408
    %v9375 = vunpack.c.0.s8 %v9374
    %v9376 = vperm.slane %v9370, %v9375
    %v9378 = vunpack.c.l.s4 1934713408
    %v9379 = vunpack.c.0.s8 %v9378
    %v9380 = vperm.slane %v9372, %v9379
    %v9381 = vrot.slane %v9368, 4
    %v9382 = vsel %vm169, %v9381, %v9356
    %v9383 = vrot.slane %v9356, 4
    %v9384 = vsel %vm169, %v9368, %v9383
    %v9386 = vunpack.c.l.s4 1934713408
    %v9387 = vunpack.c.0.s8 %v9386
    %v9388 = vperm.slane %v9382, %v9387
    %v9390 = vunpack.c.l.s4 1934713408
    %v9391 = vunpack.c.0.s8 %v9390
    %v9392 = vperm.slane %v9384, %v9391
    %v9393 = vrot.slane %v9376, 4
    %v9394 = vsel %vm169, 0.0, %v9393
    %v9395 = vrot.slane %v9380, 4
    %v9396 = vsel %vm169, 0.0, %v9395
    %v9397 = vrot.slane %v9388, 4
    %v9398 = vsel %vm169, 0.0, %v9397
    %v9399 = vrot.slane %v9392, 4
    %v9400 = vsel %vm169, 0.0, %v9399
    %9402 = vrot.lane.b32.xlu0 %v9338, 16
    %v9403 = vpop.permute.xlu0 %9402
    %9406 = vrot.lane.b32.xlu0 %v9324, 32
    %v9407 = vpop.permute.xlu0 %9406
    %9410 = vrot.lane.b32.xlu0 %v9340, 48
    %v9411 = vpop.permute.xlu0 %9410
    %9414 = vrot.lane.b32.xlu0 %v9332, 64
    %v9415 = vpop.permute.xlu0 %9414
    %9418 = vrot.lane.b32.xlu0 %v9342, 80
    %v9419 = vpop.permute.xlu0 %9418
    %9422 = vrot.lane.b32.xlu0 %v9336, 96
    %v9423 = vpop.permute.xlu0 %9422
    %9426 = vrot.lane.b32.xlu0 %v9344, 112
    %v9427 = vpop.permute.xlu0 %9426
    %9430 = vrot.lane.b32.xlu0 %v9394, 16
    %v9431 = vpop.permute.xlu0 %9430
    %9434 = vrot.lane.b32.xlu0 %v9380, 32
    %v9435 = vpop.permute.xlu0 %9434
    %9438 = vrot.lane.b32.xlu0 %v9396, 48
    %v9439 = vpop.permute.xlu0 %9438
    %9442 = vrot.lane.b32.xlu0 %v9388, 64
    %v9443 = vpop.permute.xlu0 %9442
    %9446 = vrot.lane.b32.xlu0 %v9398, 80
    %v9447 = vpop.permute.xlu0 %9446
    %9450 = vrot.lane.b32.xlu0 %v9392, 96
    %v9451 = vpop.permute.xlu0 %9450
    %9454 = vrot.lane.b32.xlu0 %v9400, 112
    %v9455 = vpop.permute.xlu0 %9454
    %v9457 = vsel %vm337, %v9320, %v9403
    %v9458 = vsel %vm339, %v9457, %v9407
    %v9459 = vsel %vm341, %v9458, %v9411
    %v9460 = vsel %vm343, %v9459, %v9415
    %v9461 = vsel %vm345, %v9460, %v9419
    %v9462 = vsel %vm347, %v9461, %v9423
    %v9463 = vsel %vm349, %v9462, %v9427
    %v9464 = vsel %vm337, %v9376, %v9431
    %v9465 = vsel %vm339, %v9464, %v9435
    %v9466 = vsel %vm341, %v9465, %v9439
    %v9467 = vsel %vm343, %v9466, %v9443
    %v9468 = vsel %vm345, %v9467, %v9447
    %v9469 = vsel %vm347, %v9468, %v9451
    %v9470 = vsel %vm349, %v9469, %v9455
    %v9471 = vpack.c.bf16 %v9470, %v9463
    %v9473 = vunpack.c.l.b16 %v9471
    %v9474 = vunpack.c.h.b16 %v9471
    %v9475 = vpack.c.b16 %v9473, %v9473
    %v9476 = vpack.c.b16 %v9474, %v9474
    %v9478 = vsel %vm364, %v9475, 0
    %v9480 = vsel %vm364, %v9476, 0
    %v9483 = vunpack.c.l.b16 %v9478
    %v9484 = vunpack.c.l.b16 %v9480
    %v9485 = vpack.c.b16 %v9484, %v9483
    %9487 = vst [vmem:[#allocation3 + $0xe8] sm:$0xff] %v9485
    %s9488 = sadd.s32 %s3663, 96
    %s9489 = scalar_lea.vmem [#allocation2], %s9488
    %v9490 = vld [vmem:[%s9489] sm:$0xff]
    %v9491 = vld [vmem:[%s9489 + $0x8] sm:$0xff]
    %v9492 = vld [vmem:[%s9489 + $0x18] sm:$0xff]
    %v9493 = vld [vmem:[%s9489 + $0x20] sm:$0xff]
    %v9494 = vld [vmem:[%s9489 + $0x30] sm:$0xff]
    %v9495 = vld [vmem:[%s9489 + $0x38] sm:$0xff]
    %v9496 = vld [vmem:[%s9489 + $0x48] sm:$0xff]
    %v9497 = vld [vmem:[%s9489 + $0x50] sm:$0xff]
    %v9498 = vrot.slane %v9494, 4
    %v9499 = vsel %vm169, %v9498, %v9490
    %v9500 = vrot.slane %v9490, 4
    %v9501 = vsel %vm169, %v9494, %v9500
    %v9503 = vunpack.c.l.s4 1983009808
    %v9504 = vunpack.c.0.s8 %v9503
    %v9505 = vperm.slane %v9499, %v9504
    %v9507 = vunpack.c.l.s4 1983009808
    %v9508 = vunpack.c.0.s8 %v9507
    %v9509 = vperm.slane %v9501, %v9508
    %v9510 = vrot.slane %v9496, 4
    %v9511 = vsel %vm169, %v9510, %v9492
    %v9512 = vrot.slane %v9492, 4
    %v9513 = vsel %vm169, %v9496, %v9512
    %v9515 = vunpack.c.l.s4 1983009808
    %v9516 = vunpack.c.0.s8 %v9515
    %v9517 = vperm.slane %v9511, %v9516
    %v9519 = vunpack.c.l.s4 1983009808
    %v9520 = vunpack.c.0.s8 %v9519
    %v9521 = vperm.slane %v9513, %v9520
    %v9522 = vrot.slane %v9517, 4
    %v9523 = vsel %vm169, %v9522, %v9505
    %v9524 = vrot.slane %v9505, 4
    %v9525 = vsel %vm169, %v9517, %v9524
    %v9527 = vunpack.c.l.s4 1934713408
    %v9528 = vunpack.c.0.s8 %v9527
    %v9529 = vperm.slane %v9523, %v9528
    %v9531 = vunpack.c.l.s4 1934713408
    %v9532 = vunpack.c.0.s8 %v9531
    %v9533 = vperm.slane %v9525, %v9532
    %v9534 = vrot.slane %v9521, 4
    %v9535 = vsel %vm169, %v9534, %v9509
    %v9536 = vrot.slane %v9509, 4
    %v9537 = vsel %vm169, %v9521, %v9536
    %v9539 = vunpack.c.l.s4 1934713408
    %v9540 = vunpack.c.0.s8 %v9539
    %v9541 = vperm.slane %v9535, %v9540
    %v9543 = vunpack.c.l.s4 1934713408
    %v9544 = vunpack.c.0.s8 %v9543
    %v9545 = vperm.slane %v9537, %v9544
    %v9546 = vrot.slane %v9529, 4
    %v9547 = vsel %vm169, 0.0, %v9546
    %v9548 = vrot.slane %v9533, 4
    %v9549 = vsel %vm169, 0.0, %v9548
    %v9550 = vrot.slane %v9541, 4
    %v9551 = vsel %vm169, 0.0, %v9550
    %v9552 = vrot.slane %v9545, 4
    %v9553 = vsel %vm169, 0.0, %v9552
    %v9554 = vrot.slane %v9495, 4
    %v9555 = vsel %vm169, %v9554, %v9491
    %v9556 = vrot.slane %v9491, 4
    %v9557 = vsel %vm169, %v9495, %v9556
    %v9559 = vunpack.c.l.s4 1983009808
    %v9560 = vunpack.c.0.s8 %v9559
    %v9561 = vperm.slane %v9555, %v9560
    %v9563 = vunpack.c.l.s4 1983009808
    %v9564 = vunpack.c.0.s8 %v9563
    %v9565 = vperm.slane %v9557, %v9564
    %v9566 = vrot.slane %v9497, 4
    %v9567 = vsel %vm169, %v9566, %v9493
    %v9568 = vrot.slane %v9493, 4
    %v9569 = vsel %vm169, %v9497, %v9568
    %v9571 = vunpack.c.l.s4 1983009808
    %v9572 = vunpack.c.0.s8 %v9571
    %v9573 = vperm.slane %v9567, %v9572
    %v9575 = vunpack.c.l.s4 1983009808
    %v9576 = vunpack.c.0.s8 %v9575
    %v9577 = vperm.slane %v9569, %v9576
    %v9578 = vrot.slane %v9573, 4
    %v9579 = vsel %vm169, %v9578, %v9561
    %v9580 = vrot.slane %v9561, 4
    %v9581 = vsel %vm169, %v9573, %v9580
    %v9583 = vunpack.c.l.s4 1934713408
    %v9584 = vunpack.c.0.s8 %v9583
    %v9585 = vperm.slane %v9579, %v9584
    %v9587 = vunpack.c.l.s4 1934713408
    %v9588 = vunpack.c.0.s8 %v9587
    %v9589 = vperm.slane %v9581, %v9588
    %v9590 = vrot.slane %v9577, 4
    %v9591 = vsel %vm169, %v9590, %v9565
    %v9592 = vrot.slane %v9565, 4
    %v9593 = vsel %vm169, %v9577, %v9592
    %v9595 = vunpack.c.l.s4 1934713408
    %v9596 = vunpack.c.0.s8 %v9595
    %v9597 = vperm.slane %v9591, %v9596
    %v9599 = vunpack.c.l.s4 1934713408
    %v9600 = vunpack.c.0.s8 %v9599
    %v9601 = vperm.slane %v9593, %v9600
    %v9602 = vrot.slane %v9585, 4
    %v9603 = vsel %vm169, 0.0, %v9602
    %v9604 = vrot.slane %v9589, 4
    %v9605 = vsel %vm169, 0.0, %v9604
    %v9606 = vrot.slane %v9597, 4
    %v9607 = vsel %vm169, 0.0, %v9606
    %v9608 = vrot.slane %v9601, 4
    %v9609 = vsel %vm169, 0.0, %v9608
    %9611 = vrot.lane.b32.xlu0 %v9547, 16
    %v9612 = vpop.permute.xlu0 %9611
    %9615 = vrot.lane.b32.xlu0 %v9533, 32
    %v9616 = vpop.permute.xlu0 %9615
    %9619 = vrot.lane.b32.xlu0 %v9549, 48
    %v9620 = vpop.permute.xlu0 %9619
    %9623 = vrot.lane.b32.xlu0 %v9541, 64
    %v9624 = vpop.permute.xlu0 %9623
    %9627 = vrot.lane.b32.xlu0 %v9551, 80
    %v9628 = vpop.permute.xlu0 %9627
    %9631 = vrot.lane.b32.xlu0 %v9545, 96
    %v9632 = vpop.permute.xlu0 %9631
    %9635 = vrot.lane.b32.xlu0 %v9553, 112
    %v9636 = vpop.permute.xlu0 %9635
    %9639 = vrot.lane.b32.xlu0 %v9603, 16
    %v9640 = vpop.permute.xlu0 %9639
    %9643 = vrot.lane.b32.xlu0 %v9589, 32
    %v9644 = vpop.permute.xlu0 %9643
    %9647 = vrot.lane.b32.xlu0 %v9605, 48
    %v9648 = vpop.permute.xlu0 %9647
    %9651 = vrot.lane.b32.xlu0 %v9597, 64
    %v9652 = vpop.permute.xlu0 %9651
    %9655 = vrot.lane.b32.xlu0 %v9607, 80
    %v9656 = vpop.permute.xlu0 %9655
    %9659 = vrot.lane.b32.xlu0 %v9601, 96
    %v9660 = vpop.permute.xlu0 %9659
    %9663 = vrot.lane.b32.xlu0 %v9609, 112
    %v9664 = vpop.permute.xlu0 %9663
    %v9666 = vsel %vm337, %v9529, %v9612
    %v9667 = vsel %vm339, %v9666, %v9616
    %v9668 = vsel %vm341, %v9667, %v9620
    %v9669 = vsel %vm343, %v9668, %v9624
    %v9670 = vsel %vm345, %v9669, %v9628
    %v9671 = vsel %vm347, %v9670, %v9632
    %v9672 = vsel %vm349, %v9671, %v9636
    %v9673 = vsel %vm337, %v9585, %v9640
    %v9674 = vsel %vm339, %v9673, %v9644
    %v9675 = vsel %vm341, %v9674, %v9648
    %v9676 = vsel %vm343, %v9675, %v9652
    %v9677 = vsel %vm345, %v9676, %v9656
    %v9678 = vsel %vm347, %v9677, %v9660
    %v9679 = vsel %vm349, %v9678, %v9664
    %v9680 = vpack.c.bf16 %v9679, %v9672
    %v9682 = vunpack.c.l.b16 %v9680
    %v9683 = vunpack.c.h.b16 %v9680
    %v9684 = vpack.c.b16 %v9682, %v9682
    %v9685 = vpack.c.b16 %v9683, %v9683
    %v9687 = vsel %vm364, %v9684, 0
    %v9689 = vsel %vm364, %v9685, 0
    %v9692 = vunpack.c.l.b16 %v9687
    %v9693 = vunpack.c.l.b16 %v9689
    %v9694 = vpack.c.b16 %v9693, %v9692
    %9696 = vst [vmem:[#allocation3 + $0xf8] sm:$0xff] %v9694
    %v9697 = vld [vmem:[%s9489] sm:$0xff]
    %v9698 = vld [vmem:[%s9489 + $0x8] sm:$0xff]
    %v9699 = vld [vmem:[%s9489 + $0x18] sm:$0xff]
    %v9700 = vld [vmem:[%s9489 + $0x20] sm:$0xff]
    %v9701 = vld [vmem:[%s9489 + $0x30] sm:$0xff]
    %v9702 = vld [vmem:[%s9489 + $0x38] sm:$0xff]
    %v9703 = vld [vmem:[%s9489 + $0x48] sm:$0xff]
    %v9704 = vld [vmem:[%s9489 + $0x50] sm:$0xff]
    %9713 = vrot.lane.b32.xlu0 %v9697, 127
    %v9714 = vpop.permute.xlu0 %9713
    %9715 = vrot.lane.b32.xlu0 %v9698, 127
    %v9716 = vpop.permute.xlu0 %9715
    %9717 = vrot.lane.b32.xlu0 %v9699, 127
    %v9718 = vpop.permute.xlu0 %9717
    %9719 = vrot.lane.b32.xlu0 %v9700, 127
    %v9720 = vpop.permute.xlu0 %9719
    %9721 = vrot.lane.b32.xlu0 %v9701, 127
    %v9722 = vpop.permute.xlu0 %9721
    %9723 = vrot.lane.b32.xlu0 %v9702, 127
    %v9724 = vpop.permute.xlu0 %9723
    %9725 = vrot.lane.b32.xlu0 %v9703, 127
    %v9726 = vpop.permute.xlu0 %9725
    %9727 = vrot.lane.b32.xlu0 %v9704, 127
    %v9728 = vpop.permute.xlu0 %9727
    %v9737 = vrot.slane %v9722, 4
    %v9738 = vsel %vm169, %v9737, %v9714
    %v9739 = vrot.slane %v9714, 4
    %v9740 = vsel %vm169, %v9722, %v9739
    %v9742 = vunpack.c.l.s4 1983009808
    %v9743 = vunpack.c.0.s8 %v9742
    %v9744 = vperm.slane %v9738, %v9743
    %v9746 = vunpack.c.l.s4 1983009808
    %v9747 = vunpack.c.0.s8 %v9746
    %v9748 = vperm.slane %v9740, %v9747
    %v9749 = vrot.slane %v9726, 4
    %v9750 = vsel %vm169, %v9749, %v9718
    %v9751 = vrot.slane %v9718, 4
    %v9752 = vsel %vm169, %v9726, %v9751
    %v9754 = vunpack.c.l.s4 1983009808
    %v9755 = vunpack.c.0.s8 %v9754
    %v9756 = vperm.slane %v9750, %v9755
    %v9758 = vunpack.c.l.s4 1983009808
    %v9759 = vunpack.c.0.s8 %v9758
    %v9760 = vperm.slane %v9752, %v9759
    %v9761 = vrot.slane %v9756, 4
    %v9762 = vsel %vm169, %v9761, %v9744
    %v9763 = vrot.slane %v9744, 4
    %v9764 = vsel %vm169, %v9756, %v9763
    %v9766 = vunpack.c.l.s4 1934713408
    %v9767 = vunpack.c.0.s8 %v9766
    %v9768 = vperm.slane %v9762, %v9767
    %v9770 = vunpack.c.l.s4 1934713408
    %v9771 = vunpack.c.0.s8 %v9770
    %v9772 = vperm.slane %v9764, %v9771
    %v9773 = vrot.slane %v9760, 4
    %v9774 = vsel %vm169, %v9773, %v9748
    %v9775 = vrot.slane %v9748, 4
    %v9776 = vsel %vm169, %v9760, %v9775
    %v9778 = vunpack.c.l.s4 1934713408
    %v9779 = vunpack.c.0.s8 %v9778
    %v9780 = vperm.slane %v9774, %v9779
    %v9782 = vunpack.c.l.s4 1934713408
    %v9783 = vunpack.c.0.s8 %v9782
    %v9784 = vperm.slane %v9776, %v9783
    %v9785 = vrot.slane %v9768, 4
    %v9786 = vsel %vm169, 0.0, %v9785
    %v9787 = vrot.slane %v9772, 4
    %v9788 = vsel %vm169, 0.0, %v9787
    %v9789 = vrot.slane %v9780, 4
    %v9790 = vsel %vm169, 0.0, %v9789
    %v9791 = vrot.slane %v9784, 4
    %v9792 = vsel %vm169, 0.0, %v9791
    %v9793 = vrot.slane %v9724, 4
    %v9794 = vsel %vm169, %v9793, %v9716
    %v9795 = vrot.slane %v9716, 4
    %v9796 = vsel %vm169, %v9724, %v9795
    %v9798 = vunpack.c.l.s4 1983009808
    %v9799 = vunpack.c.0.s8 %v9798
    %v9800 = vperm.slane %v9794, %v9799
    %v9802 = vunpack.c.l.s4 1983009808
    %v9803 = vunpack.c.0.s8 %v9802
    %v9804 = vperm.slane %v9796, %v9803
    %v9805 = vrot.slane %v9728, 4
    %v9806 = vsel %vm169, %v9805, %v9720
    %v9807 = vrot.slane %v9720, 4
    %v9808 = vsel %vm169, %v9728, %v9807
    %v9810 = vunpack.c.l.s4 1983009808
    %v9811 = vunpack.c.0.s8 %v9810
    %v9812 = vperm.slane %v9806, %v9811
    %v9814 = vunpack.c.l.s4 1983009808
    %v9815 = vunpack.c.0.s8 %v9814
    %v9816 = vperm.slane %v9808, %v9815
    %v9817 = vrot.slane %v9812, 4
    %v9818 = vsel %vm169, %v9817, %v9800
    %v9819 = vrot.slane %v9800, 4
    %v9820 = vsel %vm169, %v9812, %v9819
    %v9822 = vunpack.c.l.s4 1934713408
    %v9823 = vunpack.c.0.s8 %v9822
    %v9824 = vperm.slane %v9818, %v9823
    %v9826 = vunpack.c.l.s4 1934713408
    %v9827 = vunpack.c.0.s8 %v9826
    %v9828 = vperm.slane %v9820, %v9827
    %v9829 = vrot.slane %v9816, 4
    %v9830 = vsel %vm169, %v9829, %v9804
    %v9831 = vrot.slane %v9804, 4
    %v9832 = vsel %vm169, %v9816, %v9831
    %v9834 = vunpack.c.l.s4 1934713408
    %v9835 = vunpack.c.0.s8 %v9834
    %v9836 = vperm.slane %v9830, %v9835
    %v9838 = vunpack.c.l.s4 1934713408
    %v9839 = vunpack.c.0.s8 %v9838
    %v9840 = vperm.slane %v9832, %v9839
    %v9841 = vrot.slane %v9824, 4
    %v9842 = vsel %vm169, 0.0, %v9841
    %v9843 = vrot.slane %v9828, 4
    %v9844 = vsel %vm169, 0.0, %v9843
    %v9845 = vrot.slane %v9836, 4
    %v9846 = vsel %vm169, 0.0, %v9845
    %v9847 = vrot.slane %v9840, 4
    %v9848 = vsel %vm169, 0.0, %v9847
    %9850 = vrot.lane.b32.xlu0 %v9786, 16
    %v9851 = vpop.permute.xlu0 %9850
    %9854 = vrot.lane.b32.xlu0 %v9772, 32
    %v9855 = vpop.permute.xlu0 %9854
    %9858 = vrot.lane.b32.xlu0 %v9788, 48
    %v9859 = vpop.permute.xlu0 %9858
    %9862 = vrot.lane.b32.xlu0 %v9780, 64
    %v9863 = vpop.permute.xlu0 %9862
    %9866 = vrot.lane.b32.xlu0 %v9790, 80
    %v9867 = vpop.permute.xlu0 %9866
    %9870 = vrot.lane.b32.xlu0 %v9784, 96
    %v9871 = vpop.permute.xlu0 %9870
    %9874 = vrot.lane.b32.xlu0 %v9792, 112
    %v9875 = vpop.permute.xlu0 %9874
    %9878 = vrot.lane.b32.xlu0 %v9842, 16
    %v9879 = vpop.permute.xlu0 %9878
    %9882 = vrot.lane.b32.xlu0 %v9828, 32
    %v9883 = vpop.permute.xlu0 %9882
    %9886 = vrot.lane.b32.xlu0 %v9844, 48
    %v9887 = vpop.permute.xlu0 %9886
    %9890 = vrot.lane.b32.xlu0 %v9836, 64
    %v9891 = vpop.permute.xlu0 %9890
    %9894 = vrot.lane.b32.xlu0 %v9846, 80
    %v9895 = vpop.permute.xlu0 %9894
    %9898 = vrot.lane.b32.xlu0 %v9840, 96
    %v9899 = vpop.permute.xlu0 %9898
    %9902 = vrot.lane.b32.xlu0 %v9848, 112
    %v9903 = vpop.permute.xlu0 %9902
    %v9905 = vsel %vm337, %v9768, %v9851
    %v9906 = vsel %vm339, %v9905, %v9855
    %v9907 = vsel %vm341, %v9906, %v9859
    %v9908 = vsel %vm343, %v9907, %v9863
    %v9909 = vsel %vm345, %v9908, %v9867
    %v9910 = vsel %vm347, %v9909, %v9871
    %v9911 = vsel %vm349, %v9910, %v9875
    %v9912 = vsel %vm337, %v9824, %v9879
    %v9913 = vsel %vm339, %v9912, %v9883
    %v9914 = vsel %vm341, %v9913, %v9887
    %v9915 = vsel %vm343, %v9914, %v9891
    %v9916 = vsel %vm345, %v9915, %v9895
    %v9917 = vsel %vm347, %v9916, %v9899
    %v9918 = vsel %vm349, %v9917, %v9903
    %v9919 = vpack.c.bf16 %v9918, %v9911
    %v9921 = vunpack.c.l.b16 %v9919
    %v9922 = vunpack.c.h.b16 %v9919
    %v9923 = vpack.c.b16 %v9921, %v9921
    %v9924 = vpack.c.b16 %v9922, %v9922
    %v9926 = vsel %vm364, %v9923, 0
    %v9928 = vsel %vm364, %v9924, 0
    %v9931 = vunpack.c.l.b16 %v9926
    %v9932 = vunpack.c.l.b16 %v9928
    %v9933 = vpack.c.b16 %v9932, %v9931
    %9935 = vst [vmem:[#allocation3 + $0x108] sm:$0xff] %v9933
    %v9936 = vld [vmem:[%s9489] sm:$0xff]
    %v9937 = vld [vmem:[%s9489 + $0x8] sm:$0xff]
    %v9938 = vld [vmem:[%s9489 + $0x18] sm:$0xff]
    %v9939 = vld [vmem:[%s9489 + $0x20] sm:$0xff]
    %v9940 = vld [vmem:[%s9489 + $0x30] sm:$0xff]
    %v9941 = vld [vmem:[%s9489 + $0x38] sm:$0xff]
    %v9942 = vld [vmem:[%s9489 + $0x48] sm:$0xff]
    %v9943 = vld [vmem:[%s9489 + $0x50] sm:$0xff]
    %9952 = vrot.lane.b32.xlu0 %v9936, 126
    %v9953 = vpop.permute.xlu0 %9952
    %9954 = vrot.lane.b32.xlu0 %v9937, 126
    %v9955 = vpop.permute.xlu0 %9954
    %9956 = vrot.lane.b32.xlu0 %v9938, 126
    %v9957 = vpop.permute.xlu0 %9956
    %9958 = vrot.lane.b32.xlu0 %v9939, 126
    %v9959 = vpop.permute.xlu0 %9958
    %9960 = vrot.lane.b32.xlu0 %v9940, 126
    %v9961 = vpop.permute.xlu0 %9960
    %9962 = vrot.lane.b32.xlu0 %v9941, 126
    %v9963 = vpop.permute.xlu0 %9962
    %9964 = vrot.lane.b32.xlu0 %v9942, 126
    %v9965 = vpop.permute.xlu0 %9964
    %9966 = vrot.lane.b32.xlu0 %v9943, 126
    %v9967 = vpop.permute.xlu0 %9966
    %v9976 = vrot.slane %v9961, 4
    %v9977 = vsel %vm169, %v9976, %v9953
    %v9978 = vrot.slane %v9953, 4
    %v9979 = vsel %vm169, %v9961, %v9978
    %v9981 = vunpack.c.l.s4 1983009808
    %v9982 = vunpack.c.0.s8 %v9981
    %v9983 = vperm.slane %v9977, %v9982
    %v9985 = vunpack.c.l.s4 1983009808
    %v9986 = vunpack.c.0.s8 %v9985
    %v9987 = vperm.slane %v9979, %v9986
    %v9988 = vrot.slane %v9965, 4
    %v9989 = vsel %vm169, %v9988, %v9957
    %v9990 = vrot.slane %v9957, 4
    %v9991 = vsel %vm169, %v9965, %v9990
    %v9993 = vunpack.c.l.s4 1983009808
    %v9994 = vunpack.c.0.s8 %v9993
    %v9995 = vperm.slane %v9989, %v9994
    %v9997 = vunpack.c.l.s4 1983009808
    %v9998 = vunpack.c.0.s8 %v9997
    %v9999 = vperm.slane %v9991, %v9998
    %v10000 = vrot.slane %v9995, 4
    %v10001 = vsel %vm169, %v10000, %v9983
    %v10002 = vrot.slane %v9983, 4
    %v10003 = vsel %vm169, %v9995, %v10002
    %v10005 = vunpack.c.l.s4 1934713408
    %v10006 = vunpack.c.0.s8 %v10005
    %v10007 = vperm.slane %v10001, %v10006
    %v10009 = vunpack.c.l.s4 1934713408
    %v10010 = vunpack.c.0.s8 %v10009
    %v10011 = vperm.slane %v10003, %v10010
    %v10012 = vrot.slane %v9999, 4
    %v10013 = vsel %vm169, %v10012, %v9987
    %v10014 = vrot.slane %v9987, 4
    %v10015 = vsel %vm169, %v9999, %v10014
    %v10017 = vunpack.c.l.s4 1934713408
    %v10018 = vunpack.c.0.s8 %v10017
    %v10019 = vperm.slane %v10013, %v10018
    %v10021 = vunpack.c.l.s4 1934713408
    %v10022 = vunpack.c.0.s8 %v10021
    %v10023 = vperm.slane %v10015, %v10022
    %v10024 = vrot.slane %v10007, 4
    %v10025 = vsel %vm169, 0.0, %v10024
    %v10026 = vrot.slane %v10011, 4
    %v10027 = vsel %vm169, 0.0, %v10026
    %v10028 = vrot.slane %v10019, 4
    %v10029 = vsel %vm169, 0.0, %v10028
    %v10030 = vrot.slane %v10023, 4
    %v10031 = vsel %vm169, 0.0, %v10030
    %v10032 = vrot.slane %v9963, 4
    %v10033 = vsel %vm169, %v10032, %v9955
    %v10034 = vrot.slane %v9955, 4
    %v10035 = vsel %vm169, %v9963, %v10034
    %v10037 = vunpack.c.l.s4 1983009808
    %v10038 = vunpack.c.0.s8 %v10037
    %v10039 = vperm.slane %v10033, %v10038
    %v10041 = vunpack.c.l.s4 1983009808
    %v10042 = vunpack.c.0.s8 %v10041
    %v10043 = vperm.slane %v10035, %v10042
    %v10044 = vrot.slane %v9967, 4
    %v10045 = vsel %vm169, %v10044, %v9959
    %v10046 = vrot.slane %v9959, 4
    %v10047 = vsel %vm169, %v9967, %v10046
    %v10049 = vunpack.c.l.s4 1983009808
    %v10050 = vunpack.c.0.s8 %v10049
    %v10051 = vperm.slane %v10045, %v10050
    %v10053 = vunpack.c.l.s4 1983009808
    %v10054 = vunpack.c.0.s8 %v10053
    %v10055 = vperm.slane %v10047, %v10054
    %v10056 = vrot.slane %v10051, 4
    %v10057 = vsel %vm169, %v10056, %v10039
    %v10058 = vrot.slane %v10039, 4
    %v10059 = vsel %vm169, %v10051, %v10058
    %v10061 = vunpack.c.l.s4 1934713408
    %v10062 = vunpack.c.0.s8 %v10061
    %v10063 = vperm.slane %v10057, %v10062
    %v10065 = vunpack.c.l.s4 1934713408
    %v10066 = vunpack.c.0.s8 %v10065
    %v10067 = vperm.slane %v10059, %v10066
    %v10068 = vrot.slane %v10055, 4
    %v10069 = vsel %vm169, %v10068, %v10043
    %v10070 = vrot.slane %v10043, 4
    %v10071 = vsel %vm169, %v10055, %v10070
    %v10073 = vunpack.c.l.s4 1934713408
    %v10074 = vunpack.c.0.s8 %v10073
    %v10075 = vperm.slane %v10069, %v10074
    %v10077 = vunpack.c.l.s4 1934713408
    %v10078 = vunpack.c.0.s8 %v10077
    %v10079 = vperm.slane %v10071, %v10078
    %v10080 = vrot.slane %v10063, 4
    %v10081 = vsel %vm169, 0.0, %v10080
    %v10082 = vrot.slane %v10067, 4
    %v10083 = vsel %vm169, 0.0, %v10082
    %v10084 = vrot.slane %v10075, 4
    %v10085 = vsel %vm169, 0.0, %v10084
    %v10086 = vrot.slane %v10079, 4
    %v10087 = vsel %vm169, 0.0, %v10086
    %10089 = vrot.lane.b32.xlu0 %v10025, 16
    %v10090 = vpop.permute.xlu0 %10089
    %10093 = vrot.lane.b32.xlu0 %v10011, 32
    %v10094 = vpop.permute.xlu0 %10093
    %10097 = vrot.lane.b32.xlu0 %v10027, 48
    %v10098 = vpop.permute.xlu0 %10097
    %10101 = vrot.lane.b32.xlu0 %v10019, 64
    %v10102 = vpop.permute.xlu0 %10101
    %10105 = vrot.lane.b32.xlu0 %v10029, 80
    %v10106 = vpop.permute.xlu0 %10105
    %10109 = vrot.lane.b32.xlu0 %v10023, 96
    %v10110 = vpop.permute.xlu0 %10109
    %10113 = vrot.lane.b32.xlu0 %v10031, 112
    %v10114 = vpop.permute.xlu0 %10113
    %10117 = vrot.lane.b32.xlu0 %v10081, 16
    %v10118 = vpop.permute.xlu0 %10117
    %10121 = vrot.lane.b32.xlu0 %v10067, 32
    %v10122 = vpop.permute.xlu0 %10121
    %10125 = vrot.lane.b32.xlu0 %v10083, 48
    %v10126 = vpop.permute.xlu0 %10125
    %10129 = vrot.lane.b32.xlu0 %v10075, 64
    %v10130 = vpop.permute.xlu0 %10129
    %10133 = vrot.lane.b32.xlu0 %v10085, 80
    %v10134 = vpop.permute.xlu0 %10133
    %10137 = vrot.lane.b32.xlu0 %v10079, 96
    %v10138 = vpop.permute.xlu0 %10137
    %10141 = vrot.lane.b32.xlu0 %v10087, 112
    %v10142 = vpop.permute.xlu0 %10141
    %v10144 = vsel %vm337, %v10007, %v10090
    %v10145 = vsel %vm339, %v10144, %v10094
    %v10146 = vsel %vm341, %v10145, %v10098
    %v10147 = vsel %vm343, %v10146, %v10102
    %v10148 = vsel %vm345, %v10147, %v10106
    %v10149 = vsel %vm347, %v10148, %v10110
    %v10150 = vsel %vm349, %v10149, %v10114
    %v10151 = vsel %vm337, %v10063, %v10118
    %v10152 = vsel %vm339, %v10151, %v10122
    %v10153 = vsel %vm341, %v10152, %v10126
    %v10154 = vsel %vm343, %v10153, %v10130
    %v10155 = vsel %vm345, %v10154, %v10134
    %v10156 = vsel %vm347, %v10155, %v10138
    %v10157 = vsel %vm349, %v10156, %v10142
    %v10158 = vpack.c.bf16 %v10157, %v10150
    %v10160 = vunpack.c.l.b16 %v10158
    %v10161 = vunpack.c.h.b16 %v10158
    %v10162 = vpack.c.b16 %v10160, %v10160
    %v10163 = vpack.c.b16 %v10161, %v10161
    %v10165 = vsel %vm364, %v10162, 0
    %v10167 = vsel %vm364, %v10163, 0
    %v10170 = vunpack.c.l.b16 %v10165
    %v10171 = vunpack.c.l.b16 %v10167
    %v10172 = vpack.c.b16 %v10171, %v10170
    %10174 = vst [vmem:[#allocation3 + $0x118] sm:$0xff] %v10172
    %v10175 = vld [vmem:[%s9489] sm:$0xff]
    %v10176 = vld [vmem:[%s9489 + $0x8] sm:$0xff]
    %v10177 = vld [vmem:[%s9489 + $0x18] sm:$0xff]
    %v10178 = vld [vmem:[%s9489 + $0x20] sm:$0xff]
    %v10179 = vld [vmem:[%s9489 + $0x30] sm:$0xff]
    %v10180 = vld [vmem:[%s9489 + $0x38] sm:$0xff]
    %v10181 = vld [vmem:[%s9489 + $0x48] sm:$0xff]
    %v10182 = vld [vmem:[%s9489 + $0x50] sm:$0xff]
    %10191 = vrot.lane.b32.xlu0 %v10175, 125
    %v10192 = vpop.permute.xlu0 %10191
    %10193 = vrot.lane.b32.xlu0 %v10176, 125
    %v10194 = vpop.permute.xlu0 %10193
    %10195 = vrot.lane.b32.xlu0 %v10177, 125
    %v10196 = vpop.permute.xlu0 %10195
    %10197 = vrot.lane.b32.xlu0 %v10178, 125
    %v10198 = vpop.permute.xlu0 %10197
    %10199 = vrot.lane.b32.xlu0 %v10179, 125
    %v10200 = vpop.permute.xlu0 %10199
    %10201 = vrot.lane.b32.xlu0 %v10180, 125
    %v10202 = vpop.permute.xlu0 %10201
    %10203 = vrot.lane.b32.xlu0 %v10181, 125
    %v10204 = vpop.permute.xlu0 %10203
    %10205 = vrot.lane.b32.xlu0 %v10182, 125
    %v10206 = vpop.permute.xlu0 %10205
    %v10215 = vrot.slane %v10200, 4
    %v10216 = vsel %vm169, %v10215, %v10192
    %v10217 = vrot.slane %v10192, 4
    %v10218 = vsel %vm169, %v10200, %v10217
    %v10220 = vunpack.c.l.s4 1983009808
    %v10221 = vunpack.c.0.s8 %v10220
    %v10222 = vperm.slane %v10216, %v10221
    %v10224 = vunpack.c.l.s4 1983009808
    %v10225 = vunpack.c.0.s8 %v10224
    %v10226 = vperm.slane %v10218, %v10225
    %v10227 = vrot.slane %v10204, 4
    %v10228 = vsel %vm169, %v10227, %v10196
    %v10229 = vrot.slane %v10196, 4
    %v10230 = vsel %vm169, %v10204, %v10229
    %v10232 = vunpack.c.l.s4 1983009808
    %v10233 = vunpack.c.0.s8 %v10232
    %v10234 = vperm.slane %v10228, %v10233
    %v10236 = vunpack.c.l.s4 1983009808
    %v10237 = vunpack.c.0.s8 %v10236
    %v10238 = vperm.slane %v10230, %v10237
    %v10239 = vrot.slane %v10234, 4
    %v10240 = vsel %vm169, %v10239, %v10222
    %v10241 = vrot.slane %v10222, 4
    %v10242 = vsel %vm169, %v10234, %v10241
    %v10244 = vunpack.c.l.s4 1934713408
    %v10245 = vunpack.c.0.s8 %v10244
    %v10246 = vperm.slane %v10240, %v10245
    %v10248 = vunpack.c.l.s4 1934713408
    %v10249 = vunpack.c.0.s8 %v10248
    %v10250 = vperm.slane %v10242, %v10249
    %v10251 = vrot.slane %v10238, 4
    %v10252 = vsel %vm169, %v10251, %v10226
    %v10253 = vrot.slane %v10226, 4
    %v10254 = vsel %vm169, %v10238, %v10253
    %v10256 = vunpack.c.l.s4 1934713408
    %v10257 = vunpack.c.0.s8 %v10256
    %v10258 = vperm.slane %v10252, %v10257
    %v10260 = vunpack.c.l.s4 1934713408
    %v10261 = vunpack.c.0.s8 %v10260
    %v10262 = vperm.slane %v10254, %v10261
    %v10263 = vrot.slane %v10246, 4
    %v10264 = vsel %vm169, 0.0, %v10263
    %v10265 = vrot.slane %v10250, 4
    %v10266 = vsel %vm169, 0.0, %v10265
    %v10267 = vrot.slane %v10258, 4
    %v10268 = vsel %vm169, 0.0, %v10267
    %v10269 = vrot.slane %v10262, 4
    %v10270 = vsel %vm169, 0.0, %v10269
    %v10271 = vrot.slane %v10202, 4
    %v10272 = vsel %vm169, %v10271, %v10194
    %v10273 = vrot.slane %v10194, 4
    %v10274 = vsel %vm169, %v10202, %v10273
    %v10276 = vunpack.c.l.s4 1983009808
    %v10277 = vunpack.c.0.s8 %v10276
    %v10278 = vperm.slane %v10272, %v10277
    %v10280 = vunpack.c.l.s4 1983009808
    %v10281 = vunpack.c.0.s8 %v10280
    %v10282 = vperm.slane %v10274, %v10281
    %v10283 = vrot.slane %v10206, 4
    %v10284 = vsel %vm169, %v10283, %v10198
    %v10285 = vrot.slane %v10198, 4
    %v10286 = vsel %vm169, %v10206, %v10285
    %v10288 = vunpack.c.l.s4 1983009808
    %v10289 = vunpack.c.0.s8 %v10288
    %v10290 = vperm.slane %v10284, %v10289
    %v10292 = vunpack.c.l.s4 1983009808
    %v10293 = vunpack.c.0.s8 %v10292
    %v10294 = vperm.slane %v10286, %v10293
    %v10295 = vrot.slane %v10290, 4
    %v10296 = vsel %vm169, %v10295, %v10278
    %v10297 = vrot.slane %v10278, 4
    %v10298 = vsel %vm169, %v10290, %v10297
    %v10300 = vunpack.c.l.s4 1934713408
    %v10301 = vunpack.c.0.s8 %v10300
    %v10302 = vperm.slane %v10296, %v10301
    %v10304 = vunpack.c.l.s4 1934713408
    %v10305 = vunpack.c.0.s8 %v10304
    %v10306 = vperm.slane %v10298, %v10305
    %v10307 = vrot.slane %v10294, 4
    %v10308 = vsel %vm169, %v10307, %v10282
    %v10309 = vrot.slane %v10282, 4
    %v10310 = vsel %vm169, %v10294, %v10309
    %v10312 = vunpack.c.l.s4 1934713408
    %v10313 = vunpack.c.0.s8 %v10312
    %v10314 = vperm.slane %v10308, %v10313
    %v10316 = vunpack.c.l.s4 1934713408
    %v10317 = vunpack.c.0.s8 %v10316
    %v10318 = vperm.slane %v10310, %v10317
    %v10319 = vrot.slane %v10302, 4
    %v10320 = vsel %vm169, 0.0, %v10319
    %v10321 = vrot.slane %v10306, 4
    %v10322 = vsel %vm169, 0.0, %v10321
    %v10323 = vrot.slane %v10314, 4
    %v10324 = vsel %vm169, 0.0, %v10323
    %v10325 = vrot.slane %v10318, 4
    %v10326 = vsel %vm169, 0.0, %v10325
    %10328 = vrot.lane.b32.xlu0 %v10264, 16
    %v10329 = vpop.permute.xlu0 %10328
    %10332 = vrot.lane.b32.xlu0 %v10250, 32
    %v10333 = vpop.permute.xlu0 %10332
    %10336 = vrot.lane.b32.xlu0 %v10266, 48
    %v10337 = vpop.permute.xlu0 %10336
    %10340 = vrot.lane.b32.xlu0 %v10258, 64
    %v10341 = vpop.permute.xlu0 %10340
    %10344 = vrot.lane.b32.xlu0 %v10268, 80
    %v10345 = vpop.permute.xlu0 %10344
    %10348 = vrot.lane.b32.xlu0 %v10262, 96
    %v10349 = vpop.permute.xlu0 %10348
    %10352 = vrot.lane.b32.xlu0 %v10270, 112
    %v10353 = vpop.permute.xlu0 %10352
    %10356 = vrot.lane.b32.xlu0 %v10320, 16
    %v10357 = vpop.permute.xlu0 %10356
    %10360 = vrot.lane.b32.xlu0 %v10306, 32
    %v10361 = vpop.permute.xlu0 %10360
    %10364 = vrot.lane.b32.xlu0 %v10322, 48
    %v10365 = vpop.permute.xlu0 %10364
    %10368 = vrot.lane.b32.xlu0 %v10314, 64
    %v10369 = vpop.permute.xlu0 %10368
    %10372 = vrot.lane.b32.xlu0 %v10324, 80
    %v10373 = vpop.permute.xlu0 %10372
    %10376 = vrot.lane.b32.xlu0 %v10318, 96
    %v10377 = vpop.permute.xlu0 %10376
    %10380 = vrot.lane.b32.xlu0 %v10326, 112
    %v10381 = vpop.permute.xlu0 %10380
    %v10383 = vsel %vm337, %v10246, %v10329
    %v10384 = vsel %vm339, %v10383, %v10333
    %v10385 = vsel %vm341, %v10384, %v10337
    %v10386 = vsel %vm343, %v10385, %v10341
    %v10387 = vsel %vm345, %v10386, %v10345
    %v10388 = vsel %vm347, %v10387, %v10349
    %v10389 = vsel %vm349, %v10388, %v10353
    %v10390 = vsel %vm337, %v10302, %v10357
    %v10391 = vsel %vm339, %v10390, %v10361
    %v10392 = vsel %vm341, %v10391, %v10365
    %v10393 = vsel %vm343, %v10392, %v10369
    %v10394 = vsel %vm345, %v10393, %v10373
    %v10395 = vsel %vm347, %v10394, %v10377
    %v10396 = vsel %vm349, %v10395, %v10381
    %v10397 = vpack.c.bf16 %v10396, %v10389
    %v10399 = vunpack.c.l.b16 %v10397
    %v10400 = vunpack.c.h.b16 %v10397
    %v10401 = vpack.c.b16 %v10399, %v10399
    %v10402 = vpack.c.b16 %v10400, %v10400
    %v10404 = vsel %vm364, %v10401, 0
    %v10406 = vsel %vm364, %v10402, 0
    %v10409 = vunpack.c.l.b16 %v10404
    %v10410 = vunpack.c.l.b16 %v10406
    %v10411 = vpack.c.b16 %v10410, %v10409
    %10413 = vst [vmem:[#allocation3 + $0x128] sm:$0xff] %v10411
    %v10414 = vld [vmem:[%s9489] sm:$0xff]
    %v10415 = vld [vmem:[%s9489 + $0x8] sm:$0xff]
    %v10416 = vld [vmem:[%s9489 + $0x18] sm:$0xff]
    %v10417 = vld [vmem:[%s9489 + $0x20] sm:$0xff]
    %v10418 = vld [vmem:[%s9489 + $0x30] sm:$0xff]
    %v10419 = vld [vmem:[%s9489 + $0x38] sm:$0xff]
    %v10420 = vld [vmem:[%s9489 + $0x48] sm:$0xff]
    %v10421 = vld [vmem:[%s9489 + $0x50] sm:$0xff]
    %10430 = vrot.lane.b32.xlu0 %v10414, 124
    %v10431 = vpop.permute.xlu0 %10430
    %10432 = vrot.lane.b32.xlu0 %v10415, 124
    %v10433 = vpop.permute.xlu0 %10432
    %10434 = vrot.lane.b32.xlu0 %v10416, 124
    %v10435 = vpop.permute.xlu0 %10434
    %10436 = vrot.lane.b32.xlu0 %v10417, 124
    %v10437 = vpop.permute.xlu0 %10436
    %10438 = vrot.lane.b32.xlu0 %v10418, 124
    %v10439 = vpop.permute.xlu0 %10438
    %10440 = vrot.lane.b32.xlu0 %v10419, 124
    %v10441 = vpop.permute.xlu0 %10440
    %10442 = vrot.lane.b32.xlu0 %v10420, 124
    %v10443 = vpop.permute.xlu0 %10442
    %10444 = vrot.lane.b32.xlu0 %v10421, 124
    %v10445 = vpop.permute.xlu0 %10444
    %v10454 = vrot.slane %v10439, 4
    %v10455 = vsel %vm169, %v10454, %v10431
    %v10456 = vrot.slane %v10431, 4
    %v10457 = vsel %vm169, %v10439, %v10456
    %v10459 = vunpack.c.l.s4 1983009808
    %v10460 = vunpack.c.0.s8 %v10459
    %v10461 = vperm.slane %v10455, %v10460
    %v10463 = vunpack.c.l.s4 1983009808
    %v10464 = vunpack.c.0.s8 %v10463
    %v10465 = vperm.slane %v10457, %v10464
    %v10466 = vrot.slane %v10443, 4
    %v10467 = vsel %vm169, %v10466, %v10435
    %v10468 = vrot.slane %v10435, 4
    %v10469 = vsel %vm169, %v10443, %v10468
    %v10471 = vunpack.c.l.s4 1983009808
    %v10472 = vunpack.c.0.s8 %v10471
    %v10473 = vperm.slane %v10467, %v10472
    %v10475 = vunpack.c.l.s4 1983009808
    %v10476 = vunpack.c.0.s8 %v10475
    %v10477 = vperm.slane %v10469, %v10476
    %v10478 = vrot.slane %v10473, 4
    %v10479 = vsel %vm169, %v10478, %v10461
    %v10480 = vrot.slane %v10461, 4
    %v10481 = vsel %vm169, %v10473, %v10480
    %v10483 = vunpack.c.l.s4 1934713408
    %v10484 = vunpack.c.0.s8 %v10483
    %v10485 = vperm.slane %v10479, %v10484
    %v10487 = vunpack.c.l.s4 1934713408
    %v10488 = vunpack.c.0.s8 %v10487
    %v10489 = vperm.slane %v10481, %v10488
    %v10490 = vrot.slane %v10477, 4
    %v10491 = vsel %vm169, %v10490, %v10465
    %v10492 = vrot.slane %v10465, 4
    %v10493 = vsel %vm169, %v10477, %v10492
    %v10495 = vunpack.c.l.s4 1934713408
    %v10496 = vunpack.c.0.s8 %v10495
    %v10497 = vperm.slane %v10491, %v10496
    %v10499 = vunpack.c.l.s4 1934713408
    %v10500 = vunpack.c.0.s8 %v10499
    %v10501 = vperm.slane %v10493, %v10500
    %v10502 = vrot.slane %v10485, 4
    %v10503 = vsel %vm169, 0.0, %v10502
    %v10504 = vrot.slane %v10489, 4
    %v10505 = vsel %vm169, 0.0, %v10504
    %v10506 = vrot.slane %v10497, 4
    %v10507 = vsel %vm169, 0.0, %v10506
    %v10508 = vrot.slane %v10501, 4
    %v10509 = vsel %vm169, 0.0, %v10508
    %v10510 = vrot.slane %v10441, 4
    %v10511 = vsel %vm169, %v10510, %v10433
    %v10512 = vrot.slane %v10433, 4
    %v10513 = vsel %vm169, %v10441, %v10512
    %v10515 = vunpack.c.l.s4 1983009808
    %v10516 = vunpack.c.0.s8 %v10515
    %v10517 = vperm.slane %v10511, %v10516
    %v10519 = vunpack.c.l.s4 1983009808
    %v10520 = vunpack.c.0.s8 %v10519
    %v10521 = vperm.slane %v10513, %v10520
    %v10522 = vrot.slane %v10445, 4
    %v10523 = vsel %vm169, %v10522, %v10437
    %v10524 = vrot.slane %v10437, 4
    %v10525 = vsel %vm169, %v10445, %v10524
    %v10527 = vunpack.c.l.s4 1983009808
    %v10528 = vunpack.c.0.s8 %v10527
    %v10529 = vperm.slane %v10523, %v10528
    %v10531 = vunpack.c.l.s4 1983009808
    %v10532 = vunpack.c.0.s8 %v10531
    %v10533 = vperm.slane %v10525, %v10532
    %v10534 = vrot.slane %v10529, 4
    %v10535 = vsel %vm169, %v10534, %v10517
    %v10536 = vrot.slane %v10517, 4
    %v10537 = vsel %vm169, %v10529, %v10536
    %v10539 = vunpack.c.l.s4 1934713408
    %v10540 = vunpack.c.0.s8 %v10539
    %v10541 = vperm.slane %v10535, %v10540
    %v10543 = vunpack.c.l.s4 1934713408
    %v10544 = vunpack.c.0.s8 %v10543
    %v10545 = vperm.slane %v10537, %v10544
    %v10546 = vrot.slane %v10533, 4
    %v10547 = vsel %vm169, %v10546, %v10521
    %v10548 = vrot.slane %v10521, 4
    %v10549 = vsel %vm169, %v10533, %v10548
    %v10551 = vunpack.c.l.s4 1934713408
    %v10552 = vunpack.c.0.s8 %v10551
    %v10553 = vperm.slane %v10547, %v10552
    %v10555 = vunpack.c.l.s4 1934713408
    %v10556 = vunpack.c.0.s8 %v10555
    %v10557 = vperm.slane %v10549, %v10556
    %v10558 = vrot.slane %v10541, 4
    %v10559 = vsel %vm169, 0.0, %v10558
    %v10560 = vrot.slane %v10545, 4
    %v10561 = vsel %vm169, 0.0, %v10560
    %v10562 = vrot.slane %v10553, 4
    %v10563 = vsel %vm169, 0.0, %v10562
    %v10564 = vrot.slane %v10557, 4
    %v10565 = vsel %vm169, 0.0, %v10564
    %10567 = vrot.lane.b32.xlu0 %v10503, 16
    %v10568 = vpop.permute.xlu0 %10567
    %10571 = vrot.lane.b32.xlu0 %v10489, 32
    %v10572 = vpop.permute.xlu0 %10571
    %10575 = vrot.lane.b32.xlu0 %v10505, 48
    %v10576 = vpop.permute.xlu0 %10575
    %10579 = vrot.lane.b32.xlu0 %v10497, 64
    %v10580 = vpop.permute.xlu0 %10579
    %10583 = vrot.lane.b32.xlu0 %v10507, 80
    %v10584 = vpop.permute.xlu0 %10583
    %10587 = vrot.lane.b32.xlu0 %v10501, 96
    %v10588 = vpop.permute.xlu0 %10587
    %10591 = vrot.lane.b32.xlu0 %v10509, 112
    %v10592 = vpop.permute.xlu0 %10591
    %10595 = vrot.lane.b32.xlu0 %v10559, 16
    %v10596 = vpop.permute.xlu0 %10595
    %10599 = vrot.lane.b32.xlu0 %v10545, 32
    %v10600 = vpop.permute.xlu0 %10599
    %10603 = vrot.lane.b32.xlu0 %v10561, 48
    %v10604 = vpop.permute.xlu0 %10603
    %10607 = vrot.lane.b32.xlu0 %v10553, 64
    %v10608 = vpop.permute.xlu0 %10607
    %10611 = vrot.lane.b32.xlu0 %v10563, 80
    %v10612 = vpop.permute.xlu0 %10611
    %10615 = vrot.lane.b32.xlu0 %v10557, 96
    %v10616 = vpop.permute.xlu0 %10615
    %10619 = vrot.lane.b32.xlu0 %v10565, 112
    %v10620 = vpop.permute.xlu0 %10619
    %v10622 = vsel %vm337, %v10485, %v10568
    %v10623 = vsel %vm339, %v10622, %v10572
    %v10624 = vsel %vm341, %v10623, %v10576
    %v10625 = vsel %vm343, %v10624, %v10580
    %v10626 = vsel %vm345, %v10625, %v10584
    %v10627 = vsel %vm347, %v10626, %v10588
    %v10628 = vsel %vm349, %v10627, %v10592
    %v10629 = vsel %vm337, %v10541, %v10596
    %v10630 = vsel %vm339, %v10629, %v10600
    %v10631 = vsel %vm341, %v10630, %v10604
    %v10632 = vsel %vm343, %v10631, %v10608
    %v10633 = vsel %vm345, %v10632, %v10612
    %v10634 = vsel %vm347, %v10633, %v10616
    %v10635 = vsel %vm349, %v10634, %v10620
    %v10636 = vpack.c.bf16 %v10635, %v10628
    %v10638 = vunpack.c.l.b16 %v10636
    %v10639 = vunpack.c.h.b16 %v10636
    %v10640 = vpack.c.b16 %v10638, %v10638
    %v10641 = vpack.c.b16 %v10639, %v10639
    %v10643 = vsel %vm364, %v10640, 0
    %v10645 = vsel %vm364, %v10641, 0
    %v10648 = vunpack.c.l.b16 %v10643
    %v10649 = vunpack.c.l.b16 %v10645
    %v10650 = vpack.c.b16 %v10649, %v10648
    %10652 = vst [vmem:[#allocation3 + $0x138] sm:$0xff] %v10650
    %s10653 = sadd.s32 %s4828, 96
    %s10654 = scalar_lea.vmem [#allocation2], %s10653
    %v10655 = vld [vmem:[%s10654] sm:$0xff]
    %v10656 = vld [vmem:[%s10654 + $0x8] sm:$0xff]
    %v10657 = vld [vmem:[%s10654 + $0x18] sm:$0xff]
    %v10658 = vld [vmem:[%s10654 + $0x20] sm:$0xff]
    %v10659 = vld [vmem:[%s10654 + $0x30] sm:$0xff]
    %v10660 = vld [vmem:[%s10654 + $0x38] sm:$0xff]
    %v10661 = vld [vmem:[%s10654 + $0x48] sm:$0xff]
    %v10662 = vld [vmem:[%s10654 + $0x50] sm:$0xff]
    %v10663 = vrot.slane %v10659, 4
    %v10664 = vsel %vm169, %v10663, %v10655
    %v10665 = vrot.slane %v10655, 4
    %v10666 = vsel %vm169, %v10659, %v10665
    %v10668 = vunpack.c.l.s4 1983009808
    %v10669 = vunpack.c.0.s8 %v10668
    %v10670 = vperm.slane %v10664, %v10669
    %v10672 = vunpack.c.l.s4 1983009808
    %v10673 = vunpack.c.0.s8 %v10672
    %v10674 = vperm.slane %v10666, %v10673
    %v10675 = vrot.slane %v10661, 4
    %v10676 = vsel %vm169, %v10675, %v10657
    %v10677 = vrot.slane %v10657, 4
    %v10678 = vsel %vm169, %v10661, %v10677
    %v10680 = vunpack.c.l.s4 1983009808
    %v10681 = vunpack.c.0.s8 %v10680
    %v10682 = vperm.slane %v10676, %v10681
    %v10684 = vunpack.c.l.s4 1983009808
    %v10685 = vunpack.c.0.s8 %v10684
    %v10686 = vperm.slane %v10678, %v10685
    %v10687 = vrot.slane %v10682, 4
    %v10688 = vsel %vm169, %v10687, %v10670
    %v10689 = vrot.slane %v10670, 4
    %v10690 = vsel %vm169, %v10682, %v10689
    %v10692 = vunpack.c.l.s4 1934713408
    %v10693 = vunpack.c.0.s8 %v10692
    %v10694 = vperm.slane %v10688, %v10693
    %v10696 = vunpack.c.l.s4 1934713408
    %v10697 = vunpack.c.0.s8 %v10696
    %v10698 = vperm.slane %v10690, %v10697
    %v10699 = vrot.slane %v10686, 4
    %v10700 = vsel %vm169, %v10699, %v10674
    %v10701 = vrot.slane %v10674, 4
    %v10702 = vsel %vm169, %v10686, %v10701
    %v10704 = vunpack.c.l.s4 1934713408
    %v10705 = vunpack.c.0.s8 %v10704
    %v10706 = vperm.slane %v10700, %v10705
    %v10708 = vunpack.c.l.s4 1934713408
    %v10709 = vunpack.c.0.s8 %v10708
    %v10710 = vperm.slane %v10702, %v10709
    %v10711 = vrot.slane %v10694, 4
    %v10712 = vsel %vm169, 0.0, %v10711
    %v10713 = vrot.slane %v10698, 4
    %v10714 = vsel %vm169, 0.0, %v10713
    %v10715 = vrot.slane %v10706, 4
    %v10716 = vsel %vm169, 0.0, %v10715
    %v10717 = vrot.slane %v10710, 4
    %v10718 = vsel %vm169, 0.0, %v10717
    %v10719 = vrot.slane %v10660, 4
    %v10720 = vsel %vm169, %v10719, %v10656
    %v10721 = vrot.slane %v10656, 4
    %v10722 = vsel %vm169, %v10660, %v10721
    %v10724 = vunpack.c.l.s4 1983009808
    %v10725 = vunpack.c.0.s8 %v10724
    %v10726 = vperm.slane %v10720, %v10725
    %v10728 = vunpack.c.l.s4 1983009808
    %v10729 = vunpack.c.0.s8 %v10728
    %v10730 = vperm.slane %v10722, %v10729
    %v10731 = vrot.slane %v10662, 4
    %v10732 = vsel %vm169, %v10731, %v10658
    %v10733 = vrot.slane %v10658, 4
    %v10734 = vsel %vm169, %v10662, %v10733
    %v10736 = vunpack.c.l.s4 1983009808
    %v10737 = vunpack.c.0.s8 %v10736
    %v10738 = vperm.slane %v10732, %v10737
    %v10740 = vunpack.c.l.s4 1983009808
    %v10741 = vunpack.c.0.s8 %v10740
    %v10742 = vperm.slane %v10734, %v10741
    %v10743 = vrot.slane %v10738, 4
    %v10744 = vsel %vm169, %v10743, %v10726
    %v10745 = vrot.slane %v10726, 4
    %v10746 = vsel %vm169, %v10738, %v10745
    %v10748 = vunpack.c.l.s4 1934713408
    %v10749 = vunpack.c.0.s8 %v10748
    %v10750 = vperm.slane %v10744, %v10749
    %v10752 = vunpack.c.l.s4 1934713408
    %v10753 = vunpack.c.0.s8 %v10752
    %v10754 = vperm.slane %v10746, %v10753
    %v10755 = vrot.slane %v10742, 4
    %v10756 = vsel %vm169, %v10755, %v10730
    %v10757 = vrot.slane %v10730, 4
    %v10758 = vsel %vm169, %v10742, %v10757
    %v10760 = vunpack.c.l.s4 1934713408
    %v10761 = vunpack.c.0.s8 %v10760
    %v10762 = vperm.slane %v10756, %v10761
    %v10764 = vunpack.c.l.s4 1934713408
    %v10765 = vunpack.c.0.s8 %v10764
    %v10766 = vperm.slane %v10758, %v10765
    %v10767 = vrot.slane %v10750, 4
    %v10768 = vsel %vm169, 0.0, %v10767
    %v10769 = vrot.slane %v10754, 4
    %v10770 = vsel %vm169, 0.0, %v10769
    %v10771 = vrot.slane %v10762, 4
    %v10772 = vsel %vm169, 0.0, %v10771
    %v10773 = vrot.slane %v10766, 4
    %v10774 = vsel %vm169, 0.0, %v10773
    %10776 = vrot.lane.b32.xlu0 %v10712, 16
    %v10777 = vpop.permute.xlu0 %10776
    %10780 = vrot.lane.b32.xlu0 %v10698, 32
    %v10781 = vpop.permute.xlu0 %10780
    %10784 = vrot.lane.b32.xlu0 %v10714, 48
    %v10785 = vpop.permute.xlu0 %10784
    %10788 = vrot.lane.b32.xlu0 %v10706, 64
    %v10789 = vpop.permute.xlu0 %10788
    %10792 = vrot.lane.b32.xlu0 %v10716, 80
    %v10793 = vpop.permute.xlu0 %10792
    %10796 = vrot.lane.b32.xlu0 %v10710, 96
    %v10797 = vpop.permute.xlu0 %10796
    %10800 = vrot.lane.b32.xlu0 %v10718, 112
    %v10801 = vpop.permute.xlu0 %10800
    %10804 = vrot.lane.b32.xlu0 %v10768, 16
    %v10805 = vpop.permute.xlu0 %10804
    %10808 = vrot.lane.b32.xlu0 %v10754, 32
    %v10809 = vpop.permute.xlu0 %10808
    %10812 = vrot.lane.b32.xlu0 %v10770, 48
    %v10813 = vpop.permute.xlu0 %10812
    %10816 = vrot.lane.b32.xlu0 %v10762, 64
    %v10817 = vpop.permute.xlu0 %10816
    %10820 = vrot.lane.b32.xlu0 %v10772, 80
    %v10821 = vpop.permute.xlu0 %10820
    %10824 = vrot.lane.b32.xlu0 %v10766, 96
    %v10825 = vpop.permute.xlu0 %10824
    %10828 = vrot.lane.b32.xlu0 %v10774, 112
    %v10829 = vpop.permute.xlu0 %10828
    %v10831 = vsel %vm337, %v10694, %v10777
    %v10832 = vsel %vm339, %v10831, %v10781
    %v10833 = vsel %vm341, %v10832, %v10785
    %v10834 = vsel %vm343, %v10833, %v10789
    %v10835 = vsel %vm345, %v10834, %v10793
    %v10836 = vsel %vm347, %v10835, %v10797
    %v10837 = vsel %vm349, %v10836, %v10801
    %v10838 = vsel %vm337, %v10750, %v10805
    %v10839 = vsel %vm339, %v10838, %v10809
    %v10840 = vsel %vm341, %v10839, %v10813
    %v10841 = vsel %vm343, %v10840, %v10817
    %v10842 = vsel %vm345, %v10841, %v10821
    %v10843 = vsel %vm347, %v10842, %v10825
    %v10844 = vsel %vm349, %v10843, %v10829
    %v10845 = vpack.c.bf16 %v10844, %v10837
    %v10847 = vunpack.c.l.b16 %v10845
    %v10848 = vunpack.c.h.b16 %v10845
    %v10849 = vpack.c.b16 %v10847, %v10847
    %v10850 = vpack.c.b16 %v10848, %v10848
    %v10852 = vsel %vm364, %v10849, 0
    %v10854 = vsel %vm364, %v10850, 0
    %v10857 = vunpack.c.l.b16 %v10852
    %v10858 = vunpack.c.l.b16 %v10854
    %v10859 = vpack.c.b16 %v10858, %v10857
    %10861 = vst [vmem:[#allocation3 + $0x148] sm:$0xff] %v10859
    %v10862 = vld [vmem:[%s10654] sm:$0xff]
    %v10863 = vld [vmem:[%s10654 + $0x8] sm:$0xff]
    %v10864 = vld [vmem:[%s10654 + $0x18] sm:$0xff]
    %v10865 = vld [vmem:[%s10654 + $0x20] sm:$0xff]
    %v10866 = vld [vmem:[%s10654 + $0x30] sm:$0xff]
    %v10867 = vld [vmem:[%s10654 + $0x38] sm:$0xff]
    %v10868 = vld [vmem:[%s10654 + $0x48] sm:$0xff]
    %v10869 = vld [vmem:[%s10654 + $0x50] sm:$0xff]
    %10878 = vrot.lane.b32.xlu0 %v10862, 127
    %v10879 = vpop.permute.xlu0 %10878
    %10880 = vrot.lane.b32.xlu0 %v10863, 127
    %v10881 = vpop.permute.xlu0 %10880
    %10882 = vrot.lane.b32.xlu0 %v10864, 127
    %v10883 = vpop.permute.xlu0 %10882
    %10884 = vrot.lane.b32.xlu0 %v10865, 127
    %v10885 = vpop.permute.xlu0 %10884
    %10886 = vrot.lane.b32.xlu0 %v10866, 127
    %v10887 = vpop.permute.xlu0 %10886
    %10888 = vrot.lane.b32.xlu0 %v10867, 127
    %v10889 = vpop.permute.xlu0 %10888
    %10890 = vrot.lane.b32.xlu0 %v10868, 127
    %v10891 = vpop.permute.xlu0 %10890
    %10892 = vrot.lane.b32.xlu0 %v10869, 127
    %v10893 = vpop.permute.xlu0 %10892
    %v10902 = vrot.slane %v10887, 4
    %v10903 = vsel %vm169, %v10902, %v10879
    %v10904 = vrot.slane %v10879, 4
    %v10905 = vsel %vm169, %v10887, %v10904
    %v10907 = vunpack.c.l.s4 1983009808
    %v10908 = vunpack.c.0.s8 %v10907
    %v10909 = vperm.slane %v10903, %v10908
    %v10911 = vunpack.c.l.s4 1983009808
    %v10912 = vunpack.c.0.s8 %v10911
    %v10913 = vperm.slane %v10905, %v10912
    %v10914 = vrot.slane %v10891, 4
    %v10915 = vsel %vm169, %v10914, %v10883
    %v10916 = vrot.slane %v10883, 4
    %v10917 = vsel %vm169, %v10891, %v10916
    %v10919 = vunpack.c.l.s4 1983009808
    %v10920 = vunpack.c.0.s8 %v10919
    %v10921 = vperm.slane %v10915, %v10920
    %v10923 = vunpack.c.l.s4 1983009808
    %v10924 = vunpack.c.0.s8 %v10923
    %v10925 = vperm.slane %v10917, %v10924
    %v10926 = vrot.slane %v10921, 4
    %v10927 = vsel %vm169, %v10926, %v10909
    %v10928 = vrot.slane %v10909, 4
    %v10929 = vsel %vm169, %v10921, %v10928
    %v10931 = vunpack.c.l.s4 1934713408
    %v10932 = vunpack.c.0.s8 %v10931
    %v10933 = vperm.slane %v10927, %v10932
    %v10935 = vunpack.c.l.s4 1934713408
    %v10936 = vunpack.c.0.s8 %v10935
    %v10937 = vperm.slane %v10929, %v10936
    %v10938 = vrot.slane %v10925, 4
    %v10939 = vsel %vm169, %v10938, %v10913
    %v10940 = vrot.slane %v10913, 4
    %v10941 = vsel %vm169, %v10925, %v10940
    %v10943 = vunpack.c.l.s4 1934713408
    %v10944 = vunpack.c.0.s8 %v10943
    %v10945 = vperm.slane %v10939, %v10944
    %v10947 = vunpack.c.l.s4 1934713408
    %v10948 = vunpack.c.0.s8 %v10947
    %v10949 = vperm.slane %v10941, %v10948
    %v10950 = vrot.slane %v10933, 4
    %v10951 = vsel %vm169, 0.0, %v10950
    %v10952 = vrot.slane %v10937, 4
    %v10953 = vsel %vm169, 0.0, %v10952
    %v10954 = vrot.slane %v10945, 4
    %v10955 = vsel %vm169, 0.0, %v10954
    %v10956 = vrot.slane %v10949, 4
    %v10957 = vsel %vm169, 0.0, %v10956
    %v10958 = vrot.slane %v10889, 4
    %v10959 = vsel %vm169, %v10958, %v10881
    %v10960 = vrot.slane %v10881, 4
    %v10961 = vsel %vm169, %v10889, %v10960
    %v10963 = vunpack.c.l.s4 1983009808
    %v10964 = vunpack.c.0.s8 %v10963
    %v10965 = vperm.slane %v10959, %v10964
    %v10967 = vunpack.c.l.s4 1983009808
    %v10968 = vunpack.c.0.s8 %v10967
    %v10969 = vperm.slane %v10961, %v10968
    %v10970 = vrot.slane %v10893, 4
    %v10971 = vsel %vm169, %v10970, %v10885
    %v10972 = vrot.slane %v10885, 4
    %v10973 = vsel %vm169, %v10893, %v10972
    %v10975 = vunpack.c.l.s4 1983009808
    %v10976 = vunpack.c.0.s8 %v10975
    %v10977 = vperm.slane %v10971, %v10976
    %v10979 = vunpack.c.l.s4 1983009808
    %v10980 = vunpack.c.0.s8 %v10979
    %v10981 = vperm.slane %v10973, %v10980
    %v10982 = vrot.slane %v10977, 4
    %v10983 = vsel %vm169, %v10982, %v10965
    %v10984 = vrot.slane %v10965, 4
    %v10985 = vsel %vm169, %v10977, %v10984
    %v10987 = vunpack.c.l.s4 1934713408
    %v10988 = vunpack.c.0.s8 %v10987
    %v10989 = vperm.slane %v10983, %v10988
    %v10991 = vunpack.c.l.s4 1934713408
    %v10992 = vunpack.c.0.s8 %v10991
    %v10993 = vperm.slane %v10985, %v10992
    %v10994 = vrot.slane %v10981, 4
    %v10995 = vsel %vm169, %v10994, %v10969
    %v10996 = vrot.slane %v10969, 4
    %v10997 = vsel %vm169, %v10981, %v10996
    %v10999 = vunpack.c.l.s4 1934713408
    %v11000 = vunpack.c.0.s8 %v10999
    %v11001 = vperm.slane %v10995, %v11000
    %v11003 = vunpack.c.l.s4 1934713408
    %v11004 = vunpack.c.0.s8 %v11003
    %v11005 = vperm.slane %v10997, %v11004
    %v11006 = vrot.slane %v10989, 4
    %v11007 = vsel %vm169, 0.0, %v11006
    %v11008 = vrot.slane %v10993, 4
    %v11009 = vsel %vm169, 0.0, %v11008
    %v11010 = vrot.slane %v11001, 4
    %v11011 = vsel %vm169, 0.0, %v11010
    %v11012 = vrot.slane %v11005, 4
    %v11013 = vsel %vm169, 0.0, %v11012
    %11015 = vrot.lane.b32.xlu0 %v10951, 16
    %v11016 = vpop.permute.xlu0 %11015
    %11019 = vrot.lane.b32.xlu0 %v10937, 32
    %v11020 = vpop.permute.xlu0 %11019
    %11023 = vrot.lane.b32.xlu0 %v10953, 48
    %v11024 = vpop.permute.xlu0 %11023
    %11027 = vrot.lane.b32.xlu0 %v10945, 64
    %v11028 = vpop.permute.xlu0 %11027
    %11031 = vrot.lane.b32.xlu0 %v10955, 80
    %v11032 = vpop.permute.xlu0 %11031
    %11035 = vrot.lane.b32.xlu0 %v10949, 96
    %v11036 = vpop.permute.xlu0 %11035
    %11039 = vrot.lane.b32.xlu0 %v10957, 112
    %v11040 = vpop.permute.xlu0 %11039
    %11043 = vrot.lane.b32.xlu0 %v11007, 16
    %v11044 = vpop.permute.xlu0 %11043
    %11047 = vrot.lane.b32.xlu0 %v10993, 32
    %v11048 = vpop.permute.xlu0 %11047
    %11051 = vrot.lane.b32.xlu0 %v11009, 48
    %v11052 = vpop.permute.xlu0 %11051
    %11055 = vrot.lane.b32.xlu0 %v11001, 64
    %v11056 = vpop.permute.xlu0 %11055
    %11059 = vrot.lane.b32.xlu0 %v11011, 80
    %v11060 = vpop.permute.xlu0 %11059
    %11063 = vrot.lane.b32.xlu0 %v11005, 96
    %v11064 = vpop.permute.xlu0 %11063
    %11067 = vrot.lane.b32.xlu0 %v11013, 112
    %v11068 = vpop.permute.xlu0 %11067
    %v11070 = vsel %vm337, %v10933, %v11016
    %v11071 = vsel %vm339, %v11070, %v11020
    %v11072 = vsel %vm341, %v11071, %v11024
    %v11073 = vsel %vm343, %v11072, %v11028
    %v11074 = vsel %vm345, %v11073, %v11032
    %v11075 = vsel %vm347, %v11074, %v11036
    %v11076 = vsel %vm349, %v11075, %v11040
    %v11077 = vsel %vm337, %v10989, %v11044
    %v11078 = vsel %vm339, %v11077, %v11048
    %v11079 = vsel %vm341, %v11078, %v11052
    %v11080 = vsel %vm343, %v11079, %v11056
    %v11081 = vsel %vm345, %v11080, %v11060
    %v11082 = vsel %vm347, %v11081, %v11064
    %v11083 = vsel %vm349, %v11082, %v11068
    %v11084 = vpack.c.bf16 %v11083, %v11076
    %v11086 = vunpack.c.l.b16 %v11084
    %v11087 = vunpack.c.h.b16 %v11084
    %v11088 = vpack.c.b16 %v11086, %v11086
    %v11089 = vpack.c.b16 %v11087, %v11087
    %v11091 = vsel %vm364, %v11088, 0
    %v11093 = vsel %vm364, %v11089, 0
    %v11096 = vunpack.c.l.b16 %v11091
    %v11097 = vunpack.c.l.b16 %v11093
    %v11098 = vpack.c.b16 %v11097, %v11096
    %11100 = vst [vmem:[#allocation3 + $0x158] sm:$0xff] %v11098
    %v11101 = vld [vmem:[%s10654] sm:$0xff]
    %v11102 = vld [vmem:[%s10654 + $0x8] sm:$0xff]
    %v11103 = vld [vmem:[%s10654 + $0x18] sm:$0xff]
    %v11104 = vld [vmem:[%s10654 + $0x20] sm:$0xff]
    %v11105 = vld [vmem:[%s10654 + $0x30] sm:$0xff]
    %v11106 = vld [vmem:[%s10654 + $0x38] sm:$0xff]
    %v11107 = vld [vmem:[%s10654 + $0x48] sm:$0xff]
    %v11108 = vld [vmem:[%s10654 + $0x50] sm:$0xff]
    %11117 = vrot.lane.b32.xlu0 %v11101, 126
    %v11118 = vpop.permute.xlu0 %11117
    %11119 = vrot.lane.b32.xlu0 %v11102, 126
    %v11120 = vpop.permute.xlu0 %11119
    %11121 = vrot.lane.b32.xlu0 %v11103, 126
    %v11122 = vpop.permute.xlu0 %11121
    %11123 = vrot.lane.b32.xlu0 %v11104, 126
    %v11124 = vpop.permute.xlu0 %11123
    %11125 = vrot.lane.b32.xlu0 %v11105, 126
    %v11126 = vpop.permute.xlu0 %11125
    %11127 = vrot.lane.b32.xlu0 %v11106, 126
    %v11128 = vpop.permute.xlu0 %11127
    %11129 = vrot.lane.b32.xlu0 %v11107, 126
    %v11130 = vpop.permute.xlu0 %11129
    %11131 = vrot.lane.b32.xlu0 %v11108, 126
    %v11132 = vpop.permute.xlu0 %11131
    %v11141 = vrot.slane %v11126, 4
    %v11142 = vsel %vm169, %v11141, %v11118
    %v11143 = vrot.slane %v11118, 4
    %v11144 = vsel %vm169, %v11126, %v11143
    %v11146 = vunpack.c.l.s4 1983009808
    %v11147 = vunpack.c.0.s8 %v11146
    %v11148 = vperm.slane %v11142, %v11147
    %v11150 = vunpack.c.l.s4 1983009808
    %v11151 = vunpack.c.0.s8 %v11150
    %v11152 = vperm.slane %v11144, %v11151
    %v11153 = vrot.slane %v11130, 4
    %v11154 = vsel %vm169, %v11153, %v11122
    %v11155 = vrot.slane %v11122, 4
    %v11156 = vsel %vm169, %v11130, %v11155
    %v11158 = vunpack.c.l.s4 1983009808
    %v11159 = vunpack.c.0.s8 %v11158
    %v11160 = vperm.slane %v11154, %v11159
    %v11162 = vunpack.c.l.s4 1983009808
    %v11163 = vunpack.c.0.s8 %v11162
    %v11164 = vperm.slane %v11156, %v11163
    %v11165 = vrot.slane %v11160, 4
    %v11166 = vsel %vm169, %v11165, %v11148
    %v11167 = vrot.slane %v11148, 4
    %v11168 = vsel %vm169, %v11160, %v11167
    %v11170 = vunpack.c.l.s4 1934713408
    %v11171 = vunpack.c.0.s8 %v11170
    %v11172 = vperm.slane %v11166, %v11171
    %v11174 = vunpack.c.l.s4 1934713408
    %v11175 = vunpack.c.0.s8 %v11174
    %v11176 = vperm.slane %v11168, %v11175
    %v11177 = vrot.slane %v11164, 4
    %v11178 = vsel %vm169, %v11177, %v11152
    %v11179 = vrot.slane %v11152, 4
    %v11180 = vsel %vm169, %v11164, %v11179
    %v11182 = vunpack.c.l.s4 1934713408
    %v11183 = vunpack.c.0.s8 %v11182
    %v11184 = vperm.slane %v11178, %v11183
    %v11186 = vunpack.c.l.s4 1934713408
    %v11187 = vunpack.c.0.s8 %v11186
    %v11188 = vperm.slane %v11180, %v11187
    %v11189 = vrot.slane %v11172, 4
    %v11190 = vsel %vm169, 0.0, %v11189
    %v11191 = vrot.slane %v11176, 4
    %v11192 = vsel %vm169, 0.0, %v11191
    %v11193 = vrot.slane %v11184, 4
    %v11194 = vsel %vm169, 0.0, %v11193
    %v11195 = vrot.slane %v11188, 4
    %v11196 = vsel %vm169, 0.0, %v11195
    %v11197 = vrot.slane %v11128, 4
    %v11198 = vsel %vm169, %v11197, %v11120
    %v11199 = vrot.slane %v11120, 4
    %v11200 = vsel %vm169, %v11128, %v11199
    %v11202 = vunpack.c.l.s4 1983009808
    %v11203 = vunpack.c.0.s8 %v11202
    %v11204 = vperm.slane %v11198, %v11203
    %v11206 = vunpack.c.l.s4 1983009808
    %v11207 = vunpack.c.0.s8 %v11206
    %v11208 = vperm.slane %v11200, %v11207
    %v11209 = vrot.slane %v11132, 4
    %v11210 = vsel %vm169, %v11209, %v11124
    %v11211 = vrot.slane %v11124, 4
    %v11212 = vsel %vm169, %v11132, %v11211
    %v11214 = vunpack.c.l.s4 1983009808
    %v11215 = vunpack.c.0.s8 %v11214
    %v11216 = vperm.slane %v11210, %v11215
    %v11218 = vunpack.c.l.s4 1983009808
    %v11219 = vunpack.c.0.s8 %v11218
    %v11220 = vperm.slane %v11212, %v11219
    %v11221 = vrot.slane %v11216, 4
    %v11222 = vsel %vm169, %v11221, %v11204
    %v11223 = vrot.slane %v11204, 4
    %v11224 = vsel %vm169, %v11216, %v11223
    %v11226 = vunpack.c.l.s4 1934713408
    %v11227 = vunpack.c.0.s8 %v11226
    %v11228 = vperm.slane %v11222, %v11227
    %v11230 = vunpack.c.l.s4 1934713408
    %v11231 = vunpack.c.0.s8 %v11230
    %v11232 = vperm.slane %v11224, %v11231
    %v11233 = vrot.slane %v11220, 4
    %v11234 = vsel %vm169, %v11233, %v11208
    %v11235 = vrot.slane %v11208, 4
    %v11236 = vsel %vm169, %v11220, %v11235
    %v11238 = vunpack.c.l.s4 1934713408
    %v11239 = vunpack.c.0.s8 %v11238
    %v11240 = vperm.slane %v11234, %v11239
    %v11242 = vunpack.c.l.s4 1934713408
    %v11243 = vunpack.c.0.s8 %v11242
    %v11244 = vperm.slane %v11236, %v11243
    %v11245 = vrot.slane %v11228, 4
    %v11246 = vsel %vm169, 0.0, %v11245
    %v11247 = vrot.slane %v11232, 4
    %v11248 = vsel %vm169, 0.0, %v11247
    %v11249 = vrot.slane %v11240, 4
    %v11250 = vsel %vm169, 0.0, %v11249
    %v11251 = vrot.slane %v11244, 4
    %v11252 = vsel %vm169, 0.0, %v11251
    %11254 = vrot.lane.b32.xlu0 %v11190, 16
    %v11255 = vpop.permute.xlu0 %11254
    %11258 = vrot.lane.b32.xlu0 %v11176, 32
    %v11259 = vpop.permute.xlu0 %11258
    %11262 = vrot.lane.b32.xlu0 %v11192, 48
    %v11263 = vpop.permute.xlu0 %11262
    %11266 = vrot.lane.b32.xlu0 %v11184, 64
    %v11267 = vpop.permute.xlu0 %11266
    %11270 = vrot.lane.b32.xlu0 %v11194, 80
    %v11271 = vpop.permute.xlu0 %11270
    %11274 = vrot.lane.b32.xlu0 %v11188, 96
    %v11275 = vpop.permute.xlu0 %11274
    %11278 = vrot.lane.b32.xlu0 %v11196, 112
    %v11279 = vpop.permute.xlu0 %11278
    %11282 = vrot.lane.b32.xlu0 %v11246, 16
    %v11283 = vpop.permute.xlu0 %11282
    %11286 = vrot.lane.b32.xlu0 %v11232, 32
    %v11287 = vpop.permute.xlu0 %11286
    %11290 = vrot.lane.b32.xlu0 %v11248, 48
    %v11291 = vpop.permute.xlu0 %11290
    %11294 = vrot.lane.b32.xlu0 %v11240, 64
    %v11295 = vpop.permute.xlu0 %11294
    %11298 = vrot.lane.b32.xlu0 %v11250, 80
    %v11299 = vpop.permute.xlu0 %11298
    %11302 = vrot.lane.b32.xlu0 %v11244, 96
    %v11303 = vpop.permute.xlu0 %11302
    %11306 = vrot.lane.b32.xlu0 %v11252, 112
    %v11307 = vpop.permute.xlu0 %11306
    %v11309 = vsel %vm337, %v11172, %v11255
    %v11310 = vsel %vm339, %v11309, %v11259
    %v11311 = vsel %vm341, %v11310, %v11263
    %v11312 = vsel %vm343, %v11311, %v11267
    %v11313 = vsel %vm345, %v11312, %v11271
    %v11314 = vsel %vm347, %v11313, %v11275
    %v11315 = vsel %vm349, %v11314, %v11279
    %v11316 = vsel %vm337, %v11228, %v11283
    %v11317 = vsel %vm339, %v11316, %v11287
    %v11318 = vsel %vm341, %v11317, %v11291
    %v11319 = vsel %vm343, %v11318, %v11295
    %v11320 = vsel %vm345, %v11319, %v11299
    %v11321 = vsel %vm347, %v11320, %v11303
    %v11322 = vsel %vm349, %v11321, %v11307
    %v11323 = vpack.c.bf16 %v11322, %v11315
    %v11325 = vunpack.c.l.b16 %v11323
    %v11326 = vunpack.c.h.b16 %v11323
    %v11327 = vpack.c.b16 %v11325, %v11325
    %v11328 = vpack.c.b16 %v11326, %v11326
    %v11330 = vsel %vm364, %v11327, 0
    %v11332 = vsel %vm364, %v11328, 0
    %v11335 = vunpack.c.l.b16 %v11330
    %v11336 = vunpack.c.l.b16 %v11332
    %v11337 = vpack.c.b16 %v11336, %v11335
    %11339 = vst [vmem:[#allocation3 + $0x168] sm:$0xff] %v11337
    %v11340 = vld [vmem:[%s10654] sm:$0xff]
    %v11341 = vld [vmem:[%s10654 + $0x8] sm:$0xff]
    %v11342 = vld [vmem:[%s10654 + $0x18] sm:$0xff]
    %v11343 = vld [vmem:[%s10654 + $0x20] sm:$0xff]
    %v11344 = vld [vmem:[%s10654 + $0x30] sm:$0xff]
    %v11345 = vld [vmem:[%s10654 + $0x38] sm:$0xff]
    %v11346 = vld [vmem:[%s10654 + $0x48] sm:$0xff]
    %v11347 = vld [vmem:[%s10654 + $0x50] sm:$0xff]
    %11356 = vrot.lane.b32.xlu0 %v11340, 125
    %v11357 = vpop.permute.xlu0 %11356
    %11358 = vrot.lane.b32.xlu0 %v11341, 125
    %v11359 = vpop.permute.xlu0 %11358
    %11360 = vrot.lane.b32.xlu0 %v11342, 125
    %v11361 = vpop.permute.xlu0 %11360
    %11362 = vrot.lane.b32.xlu0 %v11343, 125
    %v11363 = vpop.permute.xlu0 %11362
    %11364 = vrot.lane.b32.xlu0 %v11344, 125
    %v11365 = vpop.permute.xlu0 %11364
    %11366 = vrot.lane.b32.xlu0 %v11345, 125
    %v11367 = vpop.permute.xlu0 %11366
    %11368 = vrot.lane.b32.xlu0 %v11346, 125
    %v11369 = vpop.permute.xlu0 %11368
    %11370 = vrot.lane.b32.xlu0 %v11347, 125
    %v11371 = vpop.permute.xlu0 %11370
    %v11380 = vrot.slane %v11365, 4
    %v11381 = vsel %vm169, %v11380, %v11357
    %v11382 = vrot.slane %v11357, 4
    %v11383 = vsel %vm169, %v11365, %v11382
    %v11385 = vunpack.c.l.s4 1983009808
    %v11386 = vunpack.c.0.s8 %v11385
    %v11387 = vperm.slane %v11381, %v11386
    %v11389 = vunpack.c.l.s4 1983009808
    %v11390 = vunpack.c.0.s8 %v11389
    %v11391 = vperm.slane %v11383, %v11390
    %v11392 = vrot.slane %v11369, 4
    %v11393 = vsel %vm169, %v11392, %v11361
    %v11394 = vrot.slane %v11361, 4
    %v11395 = vsel %vm169, %v11369, %v11394
    %v11397 = vunpack.c.l.s4 1983009808
    %v11398 = vunpack.c.0.s8 %v11397
    %v11399 = vperm.slane %v11393, %v11398
    %v11401 = vunpack.c.l.s4 1983009808
    %v11402 = vunpack.c.0.s8 %v11401
    %v11403 = vperm.slane %v11395, %v11402
    %v11404 = vrot.slane %v11399, 4
    %v11405 = vsel %vm169, %v11404, %v11387
    %v11406 = vrot.slane %v11387, 4
    %v11407 = vsel %vm169, %v11399, %v11406
    %v11409 = vunpack.c.l.s4 1934713408
    %v11410 = vunpack.c.0.s8 %v11409
    %v11411 = vperm.slane %v11405, %v11410
    %v11413 = vunpack.c.l.s4 1934713408
    %v11414 = vunpack.c.0.s8 %v11413
    %v11415 = vperm.slane %v11407, %v11414
    %v11416 = vrot.slane %v11403, 4
    %v11417 = vsel %vm169, %v11416, %v11391
    %v11418 = vrot.slane %v11391, 4
    %v11419 = vsel %vm169, %v11403, %v11418
    %v11421 = vunpack.c.l.s4 1934713408
    %v11422 = vunpack.c.0.s8 %v11421
    %v11423 = vperm.slane %v11417, %v11422
    %v11425 = vunpack.c.l.s4 1934713408
    %v11426 = vunpack.c.0.s8 %v11425
    %v11427 = vperm.slane %v11419, %v11426
    %v11428 = vrot.slane %v11411, 4
    %v11429 = vsel %vm169, 0.0, %v11428
    %v11430 = vrot.slane %v11415, 4
    %v11431 = vsel %vm169, 0.0, %v11430
    %v11432 = vrot.slane %v11423, 4
    %v11433 = vsel %vm169, 0.0, %v11432
    %v11434 = vrot.slane %v11427, 4
    %v11435 = vsel %vm169, 0.0, %v11434
    %v11436 = vrot.slane %v11367, 4
    %v11437 = vsel %vm169, %v11436, %v11359
    %v11438 = vrot.slane %v11359, 4
    %v11439 = vsel %vm169, %v11367, %v11438
    %v11441 = vunpack.c.l.s4 1983009808
    %v11442 = vunpack.c.0.s8 %v11441
    %v11443 = vperm.slane %v11437, %v11442
    %v11445 = vunpack.c.l.s4 1983009808
    %v11446 = vunpack.c.0.s8 %v11445
    %v11447 = vperm.slane %v11439, %v11446
    %v11448 = vrot.slane %v11371, 4
    %v11449 = vsel %vm169, %v11448, %v11363
    %v11450 = vrot.slane %v11363, 4
    %v11451 = vsel %vm169, %v11371, %v11450
    %v11453 = vunpack.c.l.s4 1983009808
    %v11454 = vunpack.c.0.s8 %v11453
    %v11455 = vperm.slane %v11449, %v11454
    %v11457 = vunpack.c.l.s4 1983009808
    %v11458 = vunpack.c.0.s8 %v11457
    %v11459 = vperm.slane %v11451, %v11458
    %v11460 = vrot.slane %v11455, 4
    %v11461 = vsel %vm169, %v11460, %v11443
    %v11462 = vrot.slane %v11443, 4
    %v11463 = vsel %vm169, %v11455, %v11462
    %v11465 = vunpack.c.l.s4 1934713408
    %v11466 = vunpack.c.0.s8 %v11465
    %v11467 = vperm.slane %v11461, %v11466
    %v11469 = vunpack.c.l.s4 1934713408
    %v11470 = vunpack.c.0.s8 %v11469
    %v11471 = vperm.slane %v11463, %v11470
    %v11472 = vrot.slane %v11459, 4
    %v11473 = vsel %vm169, %v11472, %v11447
    %v11474 = vrot.slane %v11447, 4
    %v11475 = vsel %vm169, %v11459, %v11474
    %v11477 = vunpack.c.l.s4 1934713408
    %v11478 = vunpack.c.0.s8 %v11477
    %v11479 = vperm.slane %v11473, %v11478
    %v11481 = vunpack.c.l.s4 1934713408
    %v11482 = vunpack.c.0.s8 %v11481
    %v11483 = vperm.slane %v11475, %v11482
    %v11484 = vrot.slane %v11467, 4
    %v11485 = vsel %vm169, 0.0, %v11484
    %v11486 = vrot.slane %v11471, 4
    %v11487 = vsel %vm169, 0.0, %v11486
    %v11488 = vrot.slane %v11479, 4
    %v11489 = vsel %vm169, 0.0, %v11488
    %v11490 = vrot.slane %v11483, 4
    %v11491 = vsel %vm169, 0.0, %v11490
    %11493 = vrot.lane.b32.xlu0 %v11429, 16
    %v11494 = vpop.permute.xlu0 %11493
    %11497 = vrot.lane.b32.xlu0 %v11415, 32
    %v11498 = vpop.permute.xlu0 %11497
    %11501 = vrot.lane.b32.xlu0 %v11431, 48
    %v11502 = vpop.permute.xlu0 %11501
    %11505 = vrot.lane.b32.xlu0 %v11423, 64
    %v11506 = vpop.permute.xlu0 %11505
    %11509 = vrot.lane.b32.xlu0 %v11433, 80
    %v11510 = vpop.permute.xlu0 %11509
    %11513 = vrot.lane.b32.xlu0 %v11427, 96
    %v11514 = vpop.permute.xlu0 %11513
    %11517 = vrot.lane.b32.xlu0 %v11435, 112
    %v11518 = vpop.permute.xlu0 %11517
    %11521 = vrot.lane.b32.xlu0 %v11485, 16
    %v11522 = vpop.permute.xlu0 %11521
    %11525 = vrot.lane.b32.xlu0 %v11471, 32
    %v11526 = vpop.permute.xlu0 %11525
    %11529 = vrot.lane.b32.xlu0 %v11487, 48
    %v11530 = vpop.permute.xlu0 %11529
    %11533 = vrot.lane.b32.xlu0 %v11479, 64
    %v11534 = vpop.permute.xlu0 %11533
    %11537 = vrot.lane.b32.xlu0 %v11489, 80
    %v11538 = vpop.permute.xlu0 %11537
    %11541 = vrot.lane.b32.xlu0 %v11483, 96
    %v11542 = vpop.permute.xlu0 %11541
    %11545 = vrot.lane.b32.xlu0 %v11491, 112
    %v11546 = vpop.permute.xlu0 %11545
    %v11548 = vsel %vm337, %v11411, %v11494
    %v11549 = vsel %vm339, %v11548, %v11498
    %v11550 = vsel %vm341, %v11549, %v11502
    %v11551 = vsel %vm343, %v11550, %v11506
    %v11552 = vsel %vm345, %v11551, %v11510
    %v11553 = vsel %vm347, %v11552, %v11514
    %v11554 = vsel %vm349, %v11553, %v11518
    %v11555 = vsel %vm337, %v11467, %v11522
    %v11556 = vsel %vm339, %v11555, %v11526
    %v11557 = vsel %vm341, %v11556, %v11530
    %v11558 = vsel %vm343, %v11557, %v11534
    %v11559 = vsel %vm345, %v11558, %v11538
    %v11560 = vsel %vm347, %v11559, %v11542
    %v11561 = vsel %vm349, %v11560, %v11546
    %v11562 = vpack.c.bf16 %v11561, %v11554
    %v11564 = vunpack.c.l.b16 %v11562
    %v11565 = vunpack.c.h.b16 %v11562
    %v11566 = vpack.c.b16 %v11564, %v11564
    %v11567 = vpack.c.b16 %v11565, %v11565
    %v11569 = vsel %vm364, %v11566, 0
    %v11571 = vsel %vm364, %v11567, 0
    %v11574 = vunpack.c.l.b16 %v11569
    %v11575 = vunpack.c.l.b16 %v11571
    %v11576 = vpack.c.b16 %v11575, %v11574
    %11578 = vst [vmem:[#allocation3 + $0x178] sm:$0xff] %v11576
    %v11579 = vld [vmem:[%s10654] sm:$0xff]
    %v11580 = vld [vmem:[%s10654 + $0x8] sm:$0xff]
    %v11581 = vld [vmem:[%s10654 + $0x18] sm:$0xff]
    %v11582 = vld [vmem:[%s10654 + $0x20] sm:$0xff]
    %v11583 = vld [vmem:[%s10654 + $0x30] sm:$0xff]
    %v11584 = vld [vmem:[%s10654 + $0x38] sm:$0xff]
    %v11585 = vld [vmem:[%s10654 + $0x48] sm:$0xff]
    %v11586 = vld [vmem:[%s10654 + $0x50] sm:$0xff]
    %11595 = vrot.lane.b32.xlu0 %v11579, 124
    %v11596 = vpop.permute.xlu0 %11595
    %11597 = vrot.lane.b32.xlu0 %v11580, 124
    %v11598 = vpop.permute.xlu0 %11597
    %11599 = vrot.lane.b32.xlu0 %v11581, 124
    %v11600 = vpop.permute.xlu0 %11599
    %11601 = vrot.lane.b32.xlu0 %v11582, 124
    %v11602 = vpop.permute.xlu0 %11601
    %11603 = vrot.lane.b32.xlu0 %v11583, 124
    %v11604 = vpop.permute.xlu0 %11603
    %11605 = vrot.lane.b32.xlu0 %v11584, 124
    %v11606 = vpop.permute.xlu0 %11605
    %11607 = vrot.lane.b32.xlu0 %v11585, 124
    %v11608 = vpop.permute.xlu0 %11607
    %11609 = vrot.lane.b32.xlu0 %v11586, 124
    %v11610 = vpop.permute.xlu0 %11609
    %v11619 = vrot.slane %v11604, 4
    %v11620 = vsel %vm169, %v11619, %v11596
    %v11621 = vrot.slane %v11596, 4
    %v11622 = vsel %vm169, %v11604, %v11621
    %v11624 = vunpack.c.l.s4 1983009808
    %v11625 = vunpack.c.0.s8 %v11624
    %v11626 = vperm.slane %v11620, %v11625
    %v11628 = vunpack.c.l.s4 1983009808
    %v11629 = vunpack.c.0.s8 %v11628
    %v11630 = vperm.slane %v11622, %v11629
    %v11631 = vrot.slane %v11608, 4
    %v11632 = vsel %vm169, %v11631, %v11600
    %v11633 = vrot.slane %v11600, 4
    %v11634 = vsel %vm169, %v11608, %v11633
    %v11636 = vunpack.c.l.s4 1983009808
    %v11637 = vunpack.c.0.s8 %v11636
    %v11638 = vperm.slane %v11632, %v11637
    %v11640 = vunpack.c.l.s4 1983009808
    %v11641 = vunpack.c.0.s8 %v11640
    %v11642 = vperm.slane %v11634, %v11641
    %v11643 = vrot.slane %v11638, 4
    %v11644 = vsel %vm169, %v11643, %v11626
    %v11645 = vrot.slane %v11626, 4
    %v11646 = vsel %vm169, %v11638, %v11645
    %v11648 = vunpack.c.l.s4 1934713408
    %v11649 = vunpack.c.0.s8 %v11648
    %v11650 = vperm.slane %v11644, %v11649
    %v11652 = vunpack.c.l.s4 1934713408
    %v11653 = vunpack.c.0.s8 %v11652
    %v11654 = vperm.slane %v11646, %v11653
    %v11655 = vrot.slane %v11642, 4
    %v11656 = vsel %vm169, %v11655, %v11630
    %v11657 = vrot.slane %v11630, 4
    %v11658 = vsel %vm169, %v11642, %v11657
    %v11660 = vunpack.c.l.s4 1934713408
    %v11661 = vunpack.c.0.s8 %v11660
    %v11662 = vperm.slane %v11656, %v11661
    %v11664 = vunpack.c.l.s4 1934713408
    %v11665 = vunpack.c.0.s8 %v11664
    %v11666 = vperm.slane %v11658, %v11665
    %v11667 = vrot.slane %v11650, 4
    %v11668 = vsel %vm169, 0.0, %v11667
    %v11669 = vrot.slane %v11654, 4
    %v11670 = vsel %vm169, 0.0, %v11669
    %v11671 = vrot.slane %v11662, 4
    %v11672 = vsel %vm169, 0.0, %v11671
    %v11673 = vrot.slane %v11666, 4
    %v11674 = vsel %vm169, 0.0, %v11673
    %v11675 = vrot.slane %v11606, 4
    %v11676 = vsel %vm169, %v11675, %v11598
    %v11677 = vrot.slane %v11598, 4
    %v11678 = vsel %vm169, %v11606, %v11677
    %v11680 = vunpack.c.l.s4 1983009808
    %v11681 = vunpack.c.0.s8 %v11680
    %v11682 = vperm.slane %v11676, %v11681
    %v11684 = vunpack.c.l.s4 1983009808
    %v11685 = vunpack.c.0.s8 %v11684
    %v11686 = vperm.slane %v11678, %v11685
    %v11687 = vrot.slane %v11610, 4
    %v11688 = vsel %vm169, %v11687, %v11602
    %v11689 = vrot.slane %v11602, 4
    %v11690 = vsel %vm169, %v11610, %v11689
    %v11692 = vunpack.c.l.s4 1983009808
    %v11693 = vunpack.c.0.s8 %v11692
    %v11694 = vperm.slane %v11688, %v11693
    %v11696 = vunpack.c.l.s4 1983009808
    %v11697 = vunpack.c.0.s8 %v11696
    %v11698 = vperm.slane %v11690, %v11697
    %v11699 = vrot.slane %v11694, 4
    %v11700 = vsel %vm169, %v11699, %v11682
    %v11701 = vrot.slane %v11682, 4
    %v11702 = vsel %vm169, %v11694, %v11701
    %v11704 = vunpack.c.l.s4 1934713408
    %v11705 = vunpack.c.0.s8 %v11704
    %v11706 = vperm.slane %v11700, %v11705
    %v11708 = vunpack.c.l.s4 1934713408
    %v11709 = vunpack.c.0.s8 %v11708
    %v11710 = vperm.slane %v11702, %v11709
    %v11711 = vrot.slane %v11698, 4
    %v11712 = vsel %vm169, %v11711, %v11686
    %v11713 = vrot.slane %v11686, 4
    %v11714 = vsel %vm169, %v11698, %v11713
    %v11716 = vunpack.c.l.s4 1934713408
    %v11717 = vunpack.c.0.s8 %v11716
    %v11718 = vperm.slane %v11712, %v11717
    %v11720 = vunpack.c.l.s4 1934713408
    %v11721 = vunpack.c.0.s8 %v11720
    %v11722 = vperm.slane %v11714, %v11721
    %v11723 = vrot.slane %v11706, 4
    %v11724 = vsel %vm169, 0.0, %v11723
    %v11725 = vrot.slane %v11710, 4
    %v11726 = vsel %vm169, 0.0, %v11725
    %v11727 = vrot.slane %v11718, 4
    %v11728 = vsel %vm169, 0.0, %v11727
    %v11729 = vrot.slane %v11722, 4
    %v11730 = vsel %vm169, 0.0, %v11729
    %11732 = vrot.lane.b32.xlu0 %v11668, 16
    %v11733 = vpop.permute.xlu0 %11732
    %11736 = vrot.lane.b32.xlu0 %v11654, 32
    %v11737 = vpop.permute.xlu0 %11736
    %11740 = vrot.lane.b32.xlu0 %v11670, 48
    %v11741 = vpop.permute.xlu0 %11740
    %11744 = vrot.lane.b32.xlu0 %v11662, 64
    %v11745 = vpop.permute.xlu0 %11744
    %11748 = vrot.lane.b32.xlu0 %v11672, 80
    %v11749 = vpop.permute.xlu0 %11748
    %11752 = vrot.lane.b32.xlu0 %v11666, 96
    %v11753 = vpop.permute.xlu0 %11752
    %11756 = vrot.lane.b32.xlu0 %v11674, 112
    %v11757 = vpop.permute.xlu0 %11756
    %11760 = vrot.lane.b32.xlu0 %v11724, 16
    %v11761 = vpop.permute.xlu0 %11760
    %11764 = vrot.lane.b32.xlu0 %v11710, 32
    %v11765 = vpop.permute.xlu0 %11764
    %11768 = vrot.lane.b32.xlu0 %v11726, 48
    %v11769 = vpop.permute.xlu0 %11768
    %11772 = vrot.lane.b32.xlu0 %v11718, 64
    %v11773 = vpop.permute.xlu0 %11772
    %11776 = vrot.lane.b32.xlu0 %v11728, 80
    %v11777 = vpop.permute.xlu0 %11776
    %11780 = vrot.lane.b32.xlu0 %v11722, 96
    %v11781 = vpop.permute.xlu0 %11780
    %11784 = vrot.lane.b32.xlu0 %v11730, 112
    %v11785 = vpop.permute.xlu0 %11784
    %v11787 = vsel %vm337, %v11650, %v11733
    %v11788 = vsel %vm339, %v11787, %v11737
    %v11789 = vsel %vm341, %v11788, %v11741
    %v11790 = vsel %vm343, %v11789, %v11745
    %v11791 = vsel %vm345, %v11790, %v11749
    %v11792 = vsel %vm347, %v11791, %v11753
    %v11793 = vsel %vm349, %v11792, %v11757
    %v11794 = vsel %vm337, %v11706, %v11761
    %v11795 = vsel %vm339, %v11794, %v11765
    %v11796 = vsel %vm341, %v11795, %v11769
    %v11797 = vsel %vm343, %v11796, %v11773
    %v11798 = vsel %vm345, %v11797, %v11777
    %v11799 = vsel %vm347, %v11798, %v11781
    %v11800 = vsel %vm349, %v11799, %v11785
    %v11801 = vpack.c.bf16 %v11800, %v11793
    %v11803 = vunpack.c.l.b16 %v11801
    %v11804 = vunpack.c.h.b16 %v11801
    %v11805 = vpack.c.b16 %v11803, %v11803
    %v11806 = vpack.c.b16 %v11804, %v11804
    %v11808 = vsel %vm364, %v11805, 0
    %v11810 = vsel %vm364, %v11806, 0
    %v11813 = vunpack.c.l.b16 %v11808
    %v11814 = vunpack.c.l.b16 %v11810
    %v11815 = vpack.c.b16 %v11814, %v11813
    %11817 = vst [vmem:[#allocation3 + $0x188] sm:$0xff] %v11815
    %v11818 = vld [vmem:[%s1] sm:$0xff]
    %v11819 = vld [vmem:[#allocation3] sm:$0xff]
    %v11820 = vld [vmem:[#allocation3 + $0x8] sm:$0xff]
    %v11821 = vld [vmem:[#allocation3 + $0x10] sm:$0xff]
    %v11822 = vld [vmem:[#allocation3 + $0x18] sm:$0xff]
    %v11823 = vld [vmem:[#allocation3 + $0x20] sm:$0xff]
    %v11824 = vld [vmem:[#allocation3 + $0x28] sm:$0xff]
    %v11825 = vld [vmem:[#allocation3 + $0x30] sm:$0xff]
    %v11826 = vld [vmem:[#allocation3 + $0x38] sm:$0xff]
    %v11827 = vld [vmem:[#allocation3 + $0x40] sm:$0xff]
    %v11828 = vld [vmem:[#allocation3 + $0x48] sm:$0xff]
    %v11829 = vld [vmem:[#allocation3 + $0x50] sm:$0xff]
    %v11830 = vld [vmem:[#allocation3 + $0x58] sm:$0xff]
    %v11831 = vld [vmem:[#allocation3 + $0x60] sm:$0xff]
    %v11832 = vld [vmem:[#allocation3 + $0x68] sm:$0xff]
    %v11833 = vld [vmem:[#allocation3 + $0x70] sm:$0xff]
    %v11834 = vld [vmem:[#allocation3 + $0x78] sm:$0xff]
    %v11835 = vld [vmem:[#allocation3 + $0x80] sm:$0xff]
    %v11836 = vld [vmem:[#allocation3 + $0x88] sm:$0xff]
    %v11837 = vld [vmem:[#allocation3 + $0x90] sm:$0xff]
    %v11838 = vld [vmem:[#allocation3 + $0x98] sm:$0xff]
    %v11839 = vld [vmem:[#allocation3 + $0xa0] sm:$0xff]
    %v11840 = vld [vmem:[#allocation3 + $0xa8] sm:$0xff]
    %v11841 = vld [vmem:[#allocation3 + $0xb0] sm:$0xff]
    %v11842 = vld [vmem:[#allocation3 + $0xb8] sm:$0xff]
    %v11843 = vld [vmem:[#allocation3 + $0xc0] sm:$0xff]
    %v11844 = vld [vmem:[#allocation3 + $0xc8] sm:$0xff]
    %v11845 = vld [vmem:[#allocation3 + $0xd0] sm:$0xff]
    %v11846 = vld [vmem:[#allocation3 + $0xd8] sm:$0xff]
    %v11847 = vld [vmem:[#allocation3 + $0xe0] sm:$0xff]
    %v11848 = vld [vmem:[#allocation3 + $0xe8] sm:$0xff]
    %v11849 = vld [vmem:[#allocation3 + $0xf0] sm:$0xff]
    %v11850 = vld [vmem:[#allocation3 + $0xf8] sm:$0xff]
    %v11851 = vld [vmem:[#allocation3 + $0x100] sm:$0xff]
    %v11852 = vld [vmem:[#allocation3 + $0x108] sm:$0xff]
    %v11853 = vld [vmem:[#allocation3 + $0x110] sm:$0xff]
    %v11854 = vld [vmem:[#allocation3 + $0x118] sm:$0xff]
    %v11855 = vld [vmem:[#allocation3 + $0x120] sm:$0xff]
    %v11856 = vld [vmem:[#allocation3 + $0x128] sm:$0xff]
    %v11857 = vld [vmem:[#allocation3 + $0x130] sm:$0xff]
    %v11858 = vld [vmem:[#allocation3 + $0x138] sm:$0xff]
    %v11859 = vld [vmem:[#allocation3 + $0x140] sm:$0xff]
    %v11860 = vld [vmem:[#allocation3 + $0x148] sm:$0xff]
    %v11861 = vld [vmem:[#allocation3 + $0x150] sm:$0xff]
    %v11862 = vld [vmem:[#allocation3 + $0x158] sm:$0xff]
    %v11863 = vld [vmem:[#allocation3 + $0x160] sm:$0xff]
    %v11864 = vld [vmem:[#allocation3 + $0x168] sm:$0xff]
    %v11865 = vld [vmem:[#allocation3 + $0x170] sm:$0xff]
    %v11866 = vld [vmem:[#allocation3 + $0x178] sm:$0xff]
    %v11867 = vld [vmem:[#allocation3 + $0x180] sm:$0xff]
    %v11868 = vld [vmem:[#allocation3 + $0x188] sm:$0xff]
    %v11869 = vld [vmem:[%s2] sm:$0xff]
    %11871 = vset.pattern.permute.xlu0 0
    %11872 = vperm.xlu0 %11871, %v11869
    %v11873 = vpop.permute.xlu0 %11872
    %v11876 = vunpack.c.l.b16 %v11818
    %v11877 = vunpack.c.h.b16 %v11818
    %v11878 = vpack.c.b16 %v11876, %v11876
    %v11879 = vpack.c.b16 %v11877, %v11877
    %v11931 = vunpack.c.l.b16 %v11819
    %v11932 = vunpack.c.h.b16 %v11819
    %v11933 = vunpack.c.l.b16 %v11820
    %v11934 = vunpack.c.h.b16 %v11820
    %v11935 = vunpack.c.l.b16 %v11821
    %v11936 = vunpack.c.h.b16 %v11821
    %v11937 = vunpack.c.l.b16 %v11822
    %v11938 = vunpack.c.h.b16 %v11822
    %v11939 = vunpack.c.l.b16 %v11823
    %v11940 = vunpack.c.h.b16 %v11823
    %v11941 = vunpack.c.l.b16 %v11824
    %v11942 = vunpack.c.h.b16 %v11824
    %v11943 = vunpack.c.l.b16 %v11825
    %v11944 = vunpack.c.h.b16 %v11825
    %v11945 = vunpack.c.l.b16 %v11826
    %v11946 = vunpack.c.h.b16 %v11826
    %v11947 = vunpack.c.l.b16 %v11827
    %v11948 = vunpack.c.h.b16 %v11827
    %v11949 = vunpack.c.l.b16 %v11828
    %v11950 = vunpack.c.h.b16 %v11828
    %v11951 = vunpack.c.l.b16 %v11829
    %v11952 = vunpack.c.h.b16 %v11829
    %v11953 = vunpack.c.l.b16 %v11830
    %v11954 = vunpack.c.h.b16 %v11830
    %v11955 = vunpack.c.l.b16 %v11831
    %v11956 = vunpack.c.h.b16 %v11831
    %v11957 = vunpack.c.l.b16 %v11832
    %v11958 = vunpack.c.h.b16 %v11832
    %v11959 = vunpack.c.l.b16 %v11833
    %v11960 = vunpack.c.h.b16 %v11833
    %v11961 = vunpack.c.l.b16 %v11834
    %v11962 = vunpack.c.h.b16 %v11834
    %v11963 = vunpack.c.l.b16 %v11835
    %v11964 = vunpack.c.h.b16 %v11835
    %v11965 = vunpack.c.l.b16 %v11836
    %v11966 = vunpack.c.h.b16 %v11836
    %v11967 = vunpack.c.l.b16 %v11837
    %v11968 = vunpack.c.h.b16 %v11837
    %v11969 = vunpack.c.l.b16 %v11838
    %v11970 = vunpack.c.h.b16 %v11838
    %v11971 = vunpack.c.l.b16 %v11839
    %v11972 = vunpack.c.h.b16 %v11839
    %v11973 = vunpack.c.l.b16 %v11840
    %v11974 = vunpack.c.h.b16 %v11840
    %v11975 = vunpack.c.l.b16 %v11841
    %v11976 = vunpack.c.h.b16 %v11841
    %v11977 = vunpack.c.l.b16 %v11842
    %v11978 = vunpack.c.h.b16 %v11842
    %v11979 = vunpack.c.l.b16 %v11843
    %v11980 = vunpack.c.h.b16 %v11843
    %v11981 = vunpack.c.l.b16 %v11844
    %v11982 = vunpack.c.h.b16 %v11844
    %v11983 = vunpack.c.l.b16 %v11845
    %v11984 = vunpack.c.h.b16 %v11845
    %v11985 = vunpack.c.l.b16 %v11846
    %v11986 = vunpack.c.h.b16 %v11846
    %v11987 = vunpack.c.l.b16 %v11847
    %v11988 = vunpack.c.h.b16 %v11847
    %v11989 = vunpack.c.l.b16 %v11848
    %v11990 = vunpack.c.h.b16 %v11848
    %v11991 = vunpack.c.l.b16 %v11849
    %v11992 = vunpack.c.h.b16 %v11849
    %v11993 = vunpack.c.l.b16 %v11850
    %v11994 = vunpack.c.h.b16 %v11850
    %v11995 = vunpack.c.l.b16 %v11851
    %v11996 = vunpack.c.h.b16 %v11851
    %v11997 = vunpack.c.l.b16 %v11852
    %v11998 = vunpack.c.h.b16 %v11852
    %v11999 = vunpack.c.l.b16 %v11853
    %v12000 = vunpack.c.h.b16 %v11853
    %v12001 = vunpack.c.l.b16 %v11854
    %v12002 = vunpack.c.h.b16 %v11854
    %v12003 = vunpack.c.l.b16 %v11855
    %v12004 = vunpack.c.h.b16 %v11855
    %v12005 = vunpack.c.l.b16 %v11856
    %v12006 = vunpack.c.h.b16 %v11856
    %v12007 = vunpack.c.l.b16 %v11857
    %v12008 = vunpack.c.h.b16 %v11857
    %v12009 = vunpack.c.l.b16 %v11858
    %v12010 = vunpack.c.h.b16 %v11858
    %v12011 = vunpack.c.l.b16 %v11859
    %v12012 = vunpack.c.h.b16 %v11859
    %v12013 = vunpack.c.l.b16 %v11860
    %v12014 = vunpack.c.h.b16 %v11860
    %v12015 = vunpack.c.l.b16 %v11861
    %v12016 = vunpack.c.h.b16 %v11861
    %v12017 = vunpack.c.l.b16 %v11862
    %v12018 = vunpack.c.h.b16 %v11862
    %v12019 = vunpack.c.l.b16 %v11863
    %v12020 = vunpack.c.h.b16 %v11863
    %v12021 = vunpack.c.l.b16 %v11864
    %v12022 = vunpack.c.h.b16 %v11864
    %v12023 = vunpack.c.l.b16 %v11865
    %v12024 = vunpack.c.h.b16 %v11865
    %v12025 = vunpack.c.l.b16 %v11866
    %v12026 = vunpack.c.h.b16 %v11866
    %v12027 = vunpack.c.l.b16 %v11867
    %v12028 = vunpack.c.h.b16 %v11867
    %v12029 = vunpack.c.l.b16 %v11868
    %v12030 = vunpack.c.h.b16 %v11868
    %v12031 = vpack.c.b16 %v11935, %v11931
    %v12032 = vpack.c.b16 %v11936, %v11932
    %v12033 = vpack.c.b16 %v11937, %v11933
    %v12034 = vpack.c.b16 %v11938, %v11934
    %v12035 = vpack.c.b16 %v11943, %v11939
    %v12036 = vpack.c.b16 %v11944, %v11940
    %v12037 = vpack.c.b16 %v11945, %v11941
    %v12038 = vpack.c.b16 %v11946, %v11942
    %v12039 = vpack.c.b16 %v11951, %v11947
    %v12040 = vpack.c.b16 %v11952, %v11948
    %v12041 = vpack.c.b16 %v11953, %v11949
    %v12042 = vpack.c.b16 %v11954, %v11950
    %v12043 = vpack.c.b16 %v11959, %v11955
    %v12044 = vpack.c.b16 %v11960, %v11956
    %v12045 = vpack.c.b16 %v11961, %v11957
    %v12046 = vpack.c.b16 %v11962, %v11958
    %v12047 = vpack.c.b16 %v11967, %v11963
    %v12048 = vpack.c.b16 %v11968, %v11964
    %v12049 = vpack.c.b16 %v11969, %v11965
    %v12050 = vpack.c.b16 %v11970, %v11966
    %v12051 = vpack.c.b16 %v11975, %v11971
    %v12052 = vpack.c.b16 %v11976, %v11972
    %v12053 = vpack.c.b16 %v11977, %v11973
    %v12054 = vpack.c.b16 %v11978, %v11974
    %v12055 = vpack.c.b16 %v11983, %v11979
    %v12056 = vpack.c.b16 %v11984, %v11980
    %v12057 = vpack.c.b16 %v11985, %v11981
    %v12058 = vpack.c.b16 %v11986, %v11982
    %v12059 = vpack.c.b16 %v11991, %v11987
    %v12060 = vpack.c.b16 %v11992, %v11988
    %v12061 = vpack.c.b16 %v11993, %v11989
    %v12062 = vpack.c.b16 %v11994, %v11990
    %v12063 = vpack.c.b16 %v11999, %v11995
    %v12064 = vpack.c.b16 %v12000, %v11996
    %v12065 = vpack.c.b16 %v12001, %v11997
    %v12066 = vpack.c.b16 %v12002, %v11998
    %v12067 = vpack.c.b16 %v12007, %v12003
    %v12068 = vpack.c.b16 %v12008, %v12004
    %v12069 = vpack.c.b16 %v12009, %v12005
    %v12070 = vpack.c.b16 %v12010, %v12006
    %v12071 = vpack.c.b16 %v12015, %v12011
    %v12072 = vpack.c.b16 %v12016, %v12012
    %v12073 = vpack.c.b16 %v12017, %v12013
    %v12074 = vpack.c.b16 %v12018, %v12014
    %v12075 = vpack.c.b16 %v12023, %v12019
    %v12076 = vpack.c.b16 %v12024, %v12020
    %v12077 = vpack.c.b16 %v12025, %v12021
    %v12078 = vpack.c.b16 %v12026, %v12022
    %v12079 = vpack.c.b16 %v12027, %v12027
    %v12080 = vpack.c.b16 %v12028, %v12028
    %v12081 = vpack.c.b16 %v12029, %v12029
    %v12082 = vpack.c.b16 %v12030, %v12030
    %vm12131 = vcmask 588800
    %v12133 = vsel %vm12131, %v11879, 0
    %vm12135 = vcmask 1043456
    %v12137 = vsel %vm12135, %v12079, 0
    %v12140 = vsel %vm12135, %v12080, 0
    %v12143 = vsel %vm12135, %v12081, 0
    %v12146 = vsel %vm12135, %v12082, 0
    %12148 = vmatpush.bf16.msra.mxu0 %v12059
    %12149 = vmatpush.bf16.msra.mxu0 %v12055
    %12150 = vmatpush.bf16.msra.mxu0 %v12051
    %12151 = vmatpush.bf16.msra.mxu0 %v12047
    %12152 = vmatpush.bf16.msra.mxu0 %v12043
    %12153 = vmatpush.bf16.msra.mxu0 %v12039
    %12154 = vmatpush.bf16.msra.mxu0 %v12035
    %12155 = vmatpush.bf16.msra.mxu0 %v12031
    %12156 = vmatmul.bf16.gmra.mxu0 %v11878
    %v12157 = vpop.f32.mrf.mxu0
    %v12158 = vadd.f32 %v11873, %v12157
    %v12159 = vpop.f32.mrf.mxu0
    %12160 = vdwg.mxu0
    %12161 = vmatpush.bf16.msra.mxu0 0
    %12162 = vmatpush.bf16.msra.mxu0 0
    %12163 = vmatpush.bf16.msra.mxu0 0
    %12164 = vmatpush.bf16.msra.mxu0 %v12137
    %12165 = vmatpush.bf16.msra.mxu0 %v12075
    %12166 = vmatpush.bf16.msra.mxu0 %v12071
    %12167 = vmatpush.bf16.msra.mxu0 %v12067
    %12168 = vmatpush.bf16.msra.mxu0 %v12063
    %12169 = vmatmul.bf16.gmra.mxu0 %v12133
    %v12170 = vpop.f32.mrf.mxu0
    %v12171 = vadd.f32 %v12158, %v12170
    %v12172 = vpop.f32.mrf.mxu0
    %12173 = vdwg.mxu0
    %12174 = vmatpush.bf16.msra.mxu0 %v12060
    %12175 = vmatpush.bf16.msra.mxu0 %v12056
    %12176 = vmatpush.bf16.msra.mxu0 %v12052
    %12177 = vmatpush.bf16.msra.mxu0 %v12048
    %12178 = vmatpush.bf16.msra.mxu0 %v12044
    %12179 = vmatpush.bf16.msra.mxu0 %v12040
    %12180 = vmatpush.bf16.msra.mxu0 %v12036
    %12181 = vmatpush.bf16.msra.mxu0 %v12032
    %12182 = vmatmul.bf16.gmra.mxu0 %v11878
    %v12183 = vpop.f32.mrf.mxu0
    %v12184 = vadd.f32 %v11873, %v12183
    %v12185 = vpop.f32.mrf.mxu0
    %12186 = vdwg.mxu0
    %12187 = vmatpush.bf16.msra.mxu0 0
    %12188 = vmatpush.bf16.msra.mxu0 0
    %12189 = vmatpush.bf16.msra.mxu0 0
    %12190 = vmatpush.bf16.msra.mxu0 %v12140
    %12191 = vmatpush.bf16.msra.mxu0 %v12076
    %12192 = vmatpush.bf16.msra.mxu0 %v12072
    %12193 = vmatpush.bf16.msra.mxu0 %v12068
    %12194 = vmatpush.bf16.msra.mxu0 %v12064
    %12195 = vmatmul.bf16.gmra.mxu0 %v12133
    %v12196 = vpop.f32.mrf.mxu0
    %v12197 = vadd.f32 %v12184, %v12196
    %v12198 = vpop.f32.mrf.mxu0
    %12199 = vdwg.mxu0
    %12200 = vmatpush.bf16.msra.mxu0 %v12061
    %12201 = vmatpush.bf16.msra.mxu0 %v12057
    %12202 = vmatpush.bf16.msra.mxu0 %v12053
    %12203 = vmatpush.bf16.msra.mxu0 %v12049
    %12204 = vmatpush.bf16.msra.mxu0 %v12045
    %12205 = vmatpush.bf16.msra.mxu0 %v12041
    %12206 = vmatpush.bf16.msra.mxu0 %v12037
    %12207 = vmatpush.bf16.msra.mxu0 %v12033
    %12208 = vmatmul.bf16.gmra.mxu0 %v11878
    %v12209 = vpop.f32.mrf.mxu0
    %v12210 = vadd.f32 %v11873, %v12209
    %v12211 = vpop.f32.mrf.mxu0
    %12212 = vdwg.mxu0
    %12213 = vmatpush.bf16.msra.mxu0 0
    %12214 = vmatpush.bf16.msra.mxu0 0
    %12215 = vmatpush.bf16.msra.mxu0 0
    %12216 = vmatpush.bf16.msra.mxu0 %v12143
    %12217 = vmatpush.bf16.msra.mxu0 %v12077
    %12218 = vmatpush.bf16.msra.mxu0 %v12073
    %12219 = vmatpush.bf16.msra.mxu0 %v12069
    %12220 = vmatpush.bf16.msra.mxu0 %v12065
    %12221 = vmatmul.bf16.gmra.mxu0 %v12133
    %v12222 = vpop.f32.mrf.mxu0
    %v12223 = vadd.f32 %v12210, %v12222
    %v12224 = vpop.f32.mrf.mxu0
    %12225 = vdwg.mxu0
    %12226 = vmatpush.bf16.msra.mxu0 %v12062
    %12227 = vmatpush.bf16.msra.mxu0 %v12058
    %12228 = vmatpush.bf16.msra.mxu0 %v12054
    %12229 = vmatpush.bf16.msra.mxu0 %v12050
    %12230 = vmatpush.bf16.msra.mxu0 %v12046
    %12231 = vmatpush.bf16.msra.mxu0 %v12042
    %12232 = vmatpush.bf16.msra.mxu0 %v12038
    %12233 = vmatpush.bf16.msra.mxu0 %v12034
    %12234 = vmatmul.bf16.gmra.mxu0 %v11878
    %v12235 = vpop.f32.mrf.mxu0
    %v12236 = vadd.f32 %v11873, %v12235
    %v12237 = vpop.f32.mrf.mxu0
    %12238 = vdwg.mxu0
    %12239 = vmatpush.bf16.msra.mxu0 0
    %12240 = vmatpush.bf16.msra.mxu0 0
    %12241 = vmatpush.bf16.msra.mxu0 0
    %12242 = vmatpush.bf16.msra.mxu0 %v12146
    %12243 = vmatpush.bf16.msra.mxu0 %v12078
    %12244 = vmatpush.bf16.msra.mxu0 %v12074
    %12245 = vmatpush.bf16.msra.mxu0 %v12070
    %12246 = vmatpush.bf16.msra.mxu0 %v12066
    %12247 = vmatmul.bf16.gmra.mxu0 %v12133
    %v12248 = vpop.f32.mrf.mxu0
    %v12249 = vadd.f32 %v12236, %v12248
    %v12250 = vpop.f32.mrf.mxu0
    %12251 = vdwg.mxu0
    %v12252 = vmax.f32 %v12171, 0.0
    %v12253 = vmax.f32 %v12197, 0.0
    %v12254 = vmax.f32 %v12223, 0.0
    %v12255 = vmax.f32 %v12249, 0.0
    %12256 = vst [vmem:[%s3] sm:$0xff] %v12252
    %12257 = vst [vmem:[%s3 + $0x8] sm:$0xff] %v12253
    %s12258 = scalar_lea.vmem %s3, 16
    %12259 = vst [vmem:[%s12258] sm:$0xff] %v12254
    %12260 = vst [vmem:[%s12258 + $0x8] sm:$0xff] %v12255
    // Predicated region
    $region22: #{multi_scale_block.1} parent=1 // pred_check
      _
    $region23: #{multi_scale_block.1} parent=1 // pred_check_branch
      %12262 = sbr.rel (0) target = $region25
    $region24: #{multi_scale_block.1} parent=1 // pred_region
      _
    $region25: #{multi_scale_block.1} parent=1 // pred_fallthru
      _
    // Predicated region
    $region26: #{multi_scale_block.1} parent=1 // pred_check
      _
    $region27: #{multi_scale_block.1} parent=1 // pred_check_branch
      %12264 = sbr.rel (0) target = $region29
    $region28: #{multi_scale_block.1} parent=1 // pred_region
      _
    $region29: #{multi_scale_block.1} parent=1 // pred_fallthru
      _
    %12265 = vsyncpa [#allocation5], 1

</llo_original>
